<compile_context>
chip_gen: v7x
topology: tpu7x:2x2x1
jax: 0.10.0
libtpu: 0.0.40
codegen_flags: <defaults>
</compile_context>

<pallas_src>
import functools

import jax
import jax.numpy as jnp
from jax import lax
from jax.experimental import pallas as pl
from jax.experimental.pallas import tpu as pltpu

EPS = 1e-5       # nn.BatchNorm2d default eps
LANE = 128       # TPU lane width


def _round_up(x, m):
    return ((x + m - 1) // m) * m


def conv3x3_kernel(x_ref, scale_ref, shift_ref, w_ref, b_ref,
                   y_ref, s_ref, ss_ref,
                   xpad_ref, patch_ref, *, apply_pre_act):
    """One image tile: [optional folded-BN + SiLU] -> zero-pad -> im2col -> matmul.

    Also emits per-channel sum / sum-of-squares of the conv output so global
    BatchNorm batch statistics can be reduced across the grid outside.
    """
    H, W, Cin = x_ref.shape[1], x_ref.shape[2], x_ref.shape[3]
    Cout = y_ref.shape[3]

    xin = x_ref[0]                                            # (H, W, Cin) bf16
    if apply_pre_act:
        # folded BatchNorm (scale/shift) + SiLU of the previous conv's output
        h = xin.astype(jnp.float32) * scale_ref[...] + shift_ref[...]
        xin = h * jax.nn.sigmoid(h)
    xin = xin.astype(xpad_ref.dtype)

    # zero only the 1-pixel halo of the padded scratch, then write the interior
    zrow = jnp.zeros((1, W + 2, Cin), xpad_ref.dtype)
    zcol = jnp.zeros((H + 2, 1, Cin), xpad_ref.dtype)
    xpad_ref[0:1, :, :] = zrow
    xpad_ref[H + 1:H + 2, :, :] = zrow
    xpad_ref[:, 0:1, :] = zcol
    xpad_ref[:, W + 1:W + 2, :] = zcol
    xpad_ref[1:H + 1, 1:W + 1, :] = xin

    # im2col: one [H*W, 9*Cin] bf16 patch matrix -> one lane-dense MXU matmul
    for dy in range(3):
        for dx in range(3):
            t = dy * 3 + dx
            patch_ref[:, t * Cin:(t + 1) * Cin] = (
                xpad_ref[dy:dy + H, dx:dx + W, :].reshape(H * W, Cin))

    acc = jnp.dot(patch_ref[...], w_ref[...],
                  preferred_element_type=jnp.float32)         # (H*W, Cout) f32
    y = acc + b_ref[...]

    y_ref[0] = y.reshape(H, W, Cout).astype(y_ref.dtype)

    # per-tile partial BatchNorm statistics (f32, from the f32 accumulator)
    s_ref[0] = jnp.broadcast_to(jnp.sum(y, axis=0, keepdims=True), (8, Cout))
    ss_ref[0] = jnp.broadcast_to(jnp.sum(y * y, axis=0, keepdims=True), (8, Cout))


def bn_silu_kernel(y_ref, scale_ref, shift_ref, o_ref):
    h = y_ref[0].astype(jnp.float32) * scale_ref[...] + shift_ref[...]
    o_ref[0] = (h * jax.nn.sigmoid(h)).astype(o_ref.dtype)


def _conv_call(x, scale, shift, w2d, bias, *, apply_pre_act):
    B, H, W, Cin = x.shape
    K9Cin, Cout = w2d.shape
    kernel = functools.partial(conv3x3_kernel, apply_pre_act=apply_pre_act)
    return pl.pallas_call(
        kernel,
        grid=(B,),
        in_specs=[
            pl.BlockSpec((1, H, W, Cin), lambda b: (b, 0, 0, 0)),
            pl.BlockSpec((1, Cin), lambda b: (0, 0)),
            pl.BlockSpec((1, Cin), lambda b: (0, 0)),
            pl.BlockSpec((K9Cin, Cout), lambda b: (0, 0)),
            pl.BlockSpec((1, Cout), lambda b: (0, 0)),
        ],
        out_specs=[
            pl.BlockSpec((1, H, W, Cout), lambda b: (b, 0, 0, 0)),
            pl.BlockSpec((1, 8, Cout), lambda b: (b, 0, 0)),
            pl.BlockSpec((1, 8, Cout), lambda b: (b, 0, 0)),
        ],
        out_shape=[
            jax.ShapeDtypeStruct((B, H, W, Cout), jnp.bfloat16),
            jax.ShapeDtypeStruct((B, 8, Cout), jnp.float32),
            jax.ShapeDtypeStruct((B, 8, Cout), jnp.float32),
        ],
        scratch_shapes=[
            pltpu.VMEM((H + 2, W + 2, Cin), jnp.bfloat16),   # padded input
            pltpu.VMEM((H * W, K9Cin), jnp.bfloat16),        # im2col patches
        ],
        compiler_params=pltpu.CompilerParams(
            dimension_semantics=("parallel",),
            vmem_limit_bytes=48 * 1024 * 1024),
    )(x, scale, shift, w2d, bias)


def _bn_silu_call(y, scale, shift):
    B, H, W, C = y.shape
    return pl.pallas_call(
        bn_silu_kernel,
        grid=(B,),
        in_specs=[
            pl.BlockSpec((1, H, W, C), lambda b: (b, 0, 0, 0)),
            pl.BlockSpec((1, C), lambda b: (0, 0)),
            pl.BlockSpec((1, C), lambda b: (0, 0)),
        ],
        out_specs=pl.BlockSpec((1, H, W, C), lambda b: (b, 0, 0, 0)),
        out_shape=jax.ShapeDtypeStruct((B, H, W, C), jnp.float32),
        compiler_params=pltpu.CompilerParams(
            dimension_semantics=("parallel",),
            vmem_limit_bytes=48 * 1024 * 1024),
    )(y, scale, shift)


def _bn_fold(s, ss, gamma, beta, n):
    """Reduce per-tile stats -> global biased batch stats -> folded scale/shift."""
    s_tot = jnp.sum(s[:, 0, :], axis=0)
    ss_tot = jnp.sum(ss[:, 0, :], axis=0)
    mean = s_tot / n
    var = jnp.maximum(ss_tot / n - mean * mean, 0.0)
    scale = gamma[0] * lax.rsqrt(var + EPS)
    shift = beta[0] - mean * scale
    return scale.reshape(1, -1), shift.reshape(1, -1)


def double_conv_forward(x, p):
    """DoubleConv forward.  x: [B, Cin, H, W] f32 (NCHW); returns NCHW f32."""
    B, Cin, H, W = x.shape
    Cout = p['b1'].shape[0]
    Cp_in = _round_up(max(Cin, LANE), LANE)
    Cp_out = _round_up(max(Cout, LANE), LANE)
    n = B * H * W

    # NCHW -> NHWC (channels on the lane dim), pad channels to 128, bf16 DMA
    x_nhwc = jnp.transpose(x, (0, 2, 3, 1))
    x_p = jnp.pad(x_nhwc, ((0, 0), (0, 0), (0, 0), (0, Cp_in - Cin)))
    x_p = x_p.astype(jnp.bfloat16)

    def pad_w(w, ci, co):   # (3,3,cin,cout) -> (9*ci, co) bf16 for im2col matmul
        wp = jnp.pad(w, ((0, 0), (0, 0), (0, ci - w.shape[2]),
                         (0, co - w.shape[3])))
        return wp.reshape(9 * ci, co).astype(jnp.bfloat16)

    def pad_v(v, c):        # (cout,) -> (1, c) f32
        return jnp.pad(v, (0, c - v.shape[0])).reshape(1, c).astype(jnp.float32)

    w1, b1 = pad_w(p['w1'], Cp_in, Cp_out), pad_v(p['b1'], Cp_out)
    g1, be1 = pad_v(p['g1'], Cp_out), pad_v(p['be1'], Cp_out)
    w2, b2 = pad_w(p['w2'], Cp_out, Cp_out), pad_v(p['b2'], Cp_out)
    g2, be2 = pad_v(p['g2'], Cp_out), pad_v(p['be2'], Cp_out)

    one_in = jnp.ones((1, Cp_in), jnp.float32)
    zero_in = jnp.zeros((1, Cp_in), jnp.float32)

    # conv1 (+ BN1 partial stats)
    y1, s1, ss1 = _conv_call(x_p, one_in, zero_in, w1, b1, apply_pre_act=False)
    scale1, shift1 = _bn_fold(s1, ss1, g1, be1, n)

    # BN1 + SiLU + conv2 fused in one kernel (+ BN2 partial stats)
    y2, s2, ss2 = _conv_call(y1, scale1, shift1, w2, b2, apply_pre_act=True)
    scale2, shift2 = _bn_fold(s2, ss2, g2, be2, n)

    # final BN2 + SiLU epilogue
    out = _bn_silu_call(y2, scale2, shift2)                  # (B,H,W,Cp_out) f32
    return jnp.transpose(out[..., :Cout], (0, 3, 1, 2))


def double_conv_reference(x, p):
    # pure-JAX f32 reference (NCHW, matches the PyTorch module in training mode)
    def conv(x, w, b):
        y = lax.conv_general_dilated(x, w, (1, 1), 'SAME',
                                     dimension_numbers=('NCHW', 'HWIO', 'NCHW'))
        return y + b[None, :, None, None]

    def bn_silu(x, g, be):
        m = jnp.mean(x, axis=(0, 2, 3), keepdims=True)
        v = jnp.mean((x - m) ** 2, axis=(0, 2, 3), keepdims=True)
        h = (x - m) * lax.rsqrt(v + EPS) * g[None, :, None, None] \
            + be[None, :, None, None]
        return h * jax.nn.sigmoid(h)

    y = bn_silu(conv(x, p['w1'], p['b1']), p['g1'], p['be1'])
    return bn_silu(conv(y, p['w2'], p['b2']), p['g2'], p['be2'])


def init_params(key, cin, cout):
    ks = jax.random.split(key, 8)
    s1 = 1.0 / (3.0 * (cin ** 0.5))    # ~1/sqrt(fan_in) like PyTorch conv init
    s2 = 1.0 / (3.0 * (cout ** 0.5))
    return dict(
        w1=s1 * jax.random.normal(ks[0], (3, 3, cin, cout), jnp.float32),
        b1=0.1 * jax.random.normal(ks[1], (cout,), jnp.float32),
        g1=1.0 + 0.1 * jax.random.normal(ks[2], (cout,), jnp.float32),
        be1=0.1 * jax.random.normal(ks[3], (cout,), jnp.float32),
        w2=s2 * jax.random.normal(ks[4], (3, 3, cout, cout), jnp.float32),
        b2=0.1 * jax.random.normal(ks[5], (cout,), jnp.float32),
        g2=1.0 + 0.1 * jax.random.normal(ks[6], (cout,), jnp.float32),
        be2=0.1 * jax.random.normal(ks[7], (cout,), jnp.float32),
    )


if __name__ == "__main__":
    B, Cin, Cout, H, W = 2, 4, 8, 16, 16

    key = jax.random.PRNGKey(0)
    kx, kp = jax.random.split(key)
    x = jax.random.normal(kx, (B, Cin, H, W), jnp.float32)
    params = init_params(kp, Cin, Cout)

    fwd = jax.jit(double_conv_forward)
    out = jax.block_until_ready(fwd(x, params))
    ref = jax.block_until_ready(double_conv_reference(x, params))

    assert out.shape == (B, Cout, H, W), out.shape
    err = float(jnp.max(jnp.abs(out - ref)))
    # bf16 MXU operands (per the perf review) vs f32 reference -> loose tolerance
    if not jnp.allclose(out, ref, atol=5e-2, rtol=5e-2):
        raise AssertionError(f"mismatch vs reference, max abs err={err}")
    print("KERNEL_OK")
</pallas_src>

<mosaic_0001>
module attributes {stable_mosaic.version = 11 : i64} {
  func.func @conv3x3_kernel(%arg0: i32, %arg1: memref<1x16x16x128xbf16, #tpu.memory_space<vmem>>, %arg2: memref<1x128xf32, #tpu.memory_space<vmem>>, %arg3: memref<1x128xf32, #tpu.memory_space<vmem>>, %arg4: memref<1152x128xbf16, #tpu.memory_space<vmem>>, %arg5: memref<1x128xf32, #tpu.memory_space<vmem>>, %arg6: memref<1x16x16x128xbf16, #tpu.memory_space<vmem>>, %arg7: memref<1x8x128xf32, #tpu.memory_space<vmem>>, %arg8: memref<1x8x128xf32, #tpu.memory_space<vmem>>, %arg9: memref<18x18x128xbf16, #tpu.memory_space<vmem>>, %arg10: memref<256x1152xbf16, #tpu.memory_space<vmem>>) attributes {dimension_semantics = [#tpu.dimension_semantics<parallel>], iteration_bounds = array<i64: 2>, scalar_prefetch = 0 : i64, scratch_operands = 2 : i64, tpu.core_type = #tpu.core_type<tc>, window_params = [{transform_indices = @transform_0, window_bounds = array<i64: 1, 16, 16, 128>}, {pipeline_mode = #tpu.pipeline_mode<synchronous>, transform_indices = @transform_1, window_bounds = array<i64: 1, 128>}, {pipeline_mode = #tpu.pipeline_mode<synchronous>, transform_indices = @transform_2, window_bounds = array<i64: 1, 128>}, {pipeline_mode = #tpu.pipeline_mode<synchronous>, transform_indices = @transform_3, window_bounds = array<i64: 1152, 128>}, {pipeline_mode = #tpu.pipeline_mode<synchronous>, transform_indices = @transform_4, window_bounds = array<i64: 1, 128>}, {transform_indices = @transform_5, window_bounds = array<i64: 1, 16, 16, 128>}, {transform_indices = @transform_6, window_bounds = array<i64: 1, 8, 128>}, {transform_indices = @transform_7, window_bounds = array<i64: 1, 8, 128>}]} {
    %c0 = arith.constant 0 : index
    %c0_0 = arith.constant 0 : index
    %c0_1 = arith.constant 0 : index
    %c0_2 = arith.constant 0 : index
    %0 = vector.load %arg1[%c0, %c0_0, %c0_1, %c0_2] : memref<1x16x16x128xbf16, #tpu.memory_space<vmem>>, vector<1x16x16x128xbf16>
    %1 = vector.shape_cast %0 : vector<1x16x16x128xbf16> to vector<16x16x128xbf16>
    %cst = arith.constant 0.000000e+00 : bf16
    %2 = vector.broadcast %cst : bf16 to vector<1x18x128xbf16>
    %cst_3 = arith.constant 0.000000e+00 : bf16
    %3 = vector.broadcast %cst_3 : bf16 to vector<18x1x128xbf16>
    %c0_4 = arith.constant 0 : index
    %c0_5 = arith.constant 0 : index
    %c0_6 = arith.constant 0 : index
    %4 = vector.load %arg9[%c0_4, %c0_5, %c0_6] : memref<18x18x128xbf16, #tpu.memory_space<vmem>>, vector<1x18x128xbf16>
    tpu.vector_store %arg9[%c0_4, %c0_5, %c0_6], %2 {strides = array<i32>} : memref<18x18x128xbf16, #tpu.memory_space<vmem>>, vector<1x18x128xbf16>,
    %c17 = arith.constant 17 : index
    %c0_7 = arith.constant 0 : index
    %c0_8 = arith.constant 0 : index
    %5 = vector.load %arg9[%c17, %c0_7, %c0_8] : memref<18x18x128xbf16, #tpu.memory_space<vmem>>, vector<1x18x128xbf16>
    tpu.vector_store %arg9[%c17, %c0_7, %c0_8], %2 {strides = array<i32>} : memref<18x18x128xbf16, #tpu.memory_space<vmem>>, vector<1x18x128xbf16>,
    %c0_9 = arith.constant 0 : index
    %c0_10 = arith.constant 0 : index
    %c0_11 = arith.constant 0 : index
    %6 = vector.load %arg9[%c0_9, %c0_10, %c0_11] : memref<18x18x128xbf16, #tpu.memory_space<vmem>>, vector<18x1x128xbf16>
    tpu.vector_store %arg9[%c0_9, %c0_10, %c0_11], %3 {strides = array<i32>} : memref<18x18x128xbf16, #tpu.memory_space<vmem>>, vector<18x1x128xbf16>,
    %c0_12 = arith.constant 0 : index
    %c17_13 = arith.constant 17 : index
    %c0_14 = arith.constant 0 : index
    %7 = vector.load %arg9[%c0_12, %c17_13, %c0_14] : memref<18x18x128xbf16, #tpu.memory_space<vmem>>, vector<18x1x128xbf16>
    tpu.vector_store %arg9[%c0_12, %c17_13, %c0_14], %3 {strides = array<i32>} : memref<18x18x128xbf16, #tpu.memory_space<vmem>>, vector<18x1x128xbf16>,
    %c1 = arith.constant 1 : index
    %c1_15 = arith.constant 1 : index
    %c0_16 = arith.constant 0 : index
    %8 = vector.load %arg9[%c1, %c1_15, %c0_16] : memref<18x18x128xbf16, #tpu.memory_space<vmem>>, vector<16x16x128xbf16>
    tpu.vector_store %arg9[%c1, %c1_15, %c0_16], %1 {strides = array<i32>} : memref<18x18x128xbf16, #tpu.memory_space<vmem>>, vector<16x16x128xbf16>,
    %c0_17 = arith.constant 0 : index
    %c0_18 = arith.constant 0 : index
    %c0_19 = arith.constant 0 : index
    %9 = vector.load %arg9[%c0_17, %c0_18, %c0_19] : memref<18x18x128xbf16, #tpu.memory_space<vmem>>, vector<16x16x128xbf16>
    %10 = vector.shape_cast %9 : vector<16x16x128xbf16> to vector<256x128xbf16>
    %c0_20 = arith.constant 0 : index
    %c0_21 = arith.constant 0 : index
    %11 = vector.load %arg10[%c0_20, %c0_21] : memref<256x1152xbf16, #tpu.memory_space<vmem>>, vector<256x128xbf16>
    tpu.vector_store %arg10[%c0_20, %c0_21], %10 {strides = array<i32>} : memref<256x1152xbf16, #tpu.memory_space<vmem>>, vector<256x128xbf16>,
    %c0_22 = arith.constant 0 : index
    %c1_23 = arith.constant 1 : index
    %c0_24 = arith.constant 0 : index
    %12 = vector.load %arg9[%c0_22, %c1_23, %c0_24] : memref<18x18x128xbf16, #tpu.memory_space<vmem>>, vector<16x16x128xbf16>
    %13 = vector.shape_cast %12 : vector<16x16x128xbf16> to vector<256x128xbf16>
    %c0_25 = arith.constant 0 : index
    %c128 = arith.constant 128 : index
    %14 = vector.load %arg10[%c0_25, %c128] : memref<256x1152xbf16, #tpu.memory_space<vmem>>, vector<256x128xbf16>
    tpu.vector_store %arg10[%c0_25, %c128], %13 {strides = array<i32>} : memref<256x1152xbf16, #tpu.memory_space<vmem>>, vector<256x128xbf16>,
    %c0_26 = arith.constant 0 : index
    %c2 = arith.constant 2 : index
    %c0_27 = arith.constant 0 : index
    %15 = vector.load %arg9[%c0_26, %c2, %c0_27] : memref<18x18x128xbf16, #tpu.memory_space<vmem>>, vector<16x16x128xbf16>
    %16 = vector.shape_cast %15 : vector<16x16x128xbf16> to vector<256x128xbf16>
    %c0_28 = arith.constant 0 : index
    %c256 = arith.constant 256 : index
    %17 = vector.load %arg10[%c0_28, %c256] : memref<256x1152xbf16, #tpu.memory_space<vmem>>, vector<256x128xbf16>
    tpu.vector_store %arg10[%c0_28, %c256], %16 {strides = array<i32>} : memref<256x1152xbf16, #tpu.memory_space<vmem>>, vector<256x128xbf16>,
    %c1_29 = arith.constant 1 : index
    %c0_30 = arith.constant 0 : index
    %c0_31 = arith.constant 0 : index
    %18 = vector.load %arg9[%c1_29, %c0_30, %c0_31] : memref<18x18x128xbf16, #tpu.memory_space<vmem>>, vector<16x16x128xbf16>
    %19 = vector.shape_cast %18 : vector<16x16x128xbf16> to vector<256x128xbf16>
    %c0_32 = arith.constant 0 : index
    %c384 = arith.constant 384 : index
    %20 = vector.load %arg10[%c0_32, %c384] : memref<256x1152xbf16, #tpu.memory_space<vmem>>, vector<256x128xbf16>
    tpu.vector_store %arg10[%c0_32, %c384], %19 {strides = array<i32>} : memref<256x1152xbf16, #tpu.memory_space<vmem>>, vector<256x128xbf16>,
    %c1_33 = arith.constant 1 : index
    %c1_34 = arith.constant 1 : index
    %c0_35 = arith.constant 0 : index
    %21 = vector.load %arg9[%c1_33, %c1_34, %c0_35] : memref<18x18x128xbf16, #tpu.memory_space<vmem>>, vector<16x16x128xbf16>
    %22 = vector.shape_cast %21 : vector<16x16x128xbf16> to vector<256x128xbf16>
    %c0_36 = arith.constant 0 : index
    %c512 = arith.constant 512 : index
    %23 = vector.load %arg10[%c0_36, %c512] : memref<256x1152xbf16, #tpu.memory_space<vmem>>, vector<256x128xbf16>
    tpu.vector_store %arg10[%c0_36, %c512], %22 {strides = array<i32>} : memref<256x1152xbf16, #tpu.memory_space<vmem>>, vector<256x128xbf16>,
    %c1_37 = arith.constant 1 : index
    %c2_38 = arith.constant 2 : index
    %c0_39 = arith.constant 0 : index
    %24 = vector.load %arg9[%c1_37, %c2_38, %c0_39] : memref<18x18x128xbf16, #tpu.memory_space<vmem>>, vector<16x16x128xbf16>
    %25 = vector.shape_cast %24 : vector<16x16x128xbf16> to vector<256x128xbf16>
    %c0_40 = arith.constant 0 : index
    %c640 = arith.constant 640 : index
    %26 = vector.load %arg10[%c0_40, %c640] : memref<256x1152xbf16, #tpu.memory_space<vmem>>, vector<256x128xbf16>
    tpu.vector_store %arg10[%c0_40, %c640], %25 {strides = array<i32>} : memref<256x1152xbf16, #tpu.memory_space<vmem>>, vector<256x128xbf16>,
    %c2_41 = arith.constant 2 : index
    %c0_42 = arith.constant 0 : index
    %c0_43 = arith.constant 0 : index
    %27 = vector.load %arg9[%c2_41, %c0_42, %c0_43] : memref<18x18x128xbf16, #tpu.memory_space<vmem>>, vector<16x16x128xbf16>
    %28 = vector.shape_cast %27 : vector<16x16x128xbf16> to vector<256x128xbf16>
    %c0_44 = arith.constant 0 : index
    %c768 = arith.constant 768 : index
    %29 = vector.load %arg10[%c0_44, %c768] : memref<256x1152xbf16, #tpu.memory_space<vmem>>, vector<256x128xbf16>
    tpu.vector_store %arg10[%c0_44, %c768], %28 {strides = array<i32>} : memref<256x1152xbf16, #tpu.memory_space<vmem>>, vector<256x128xbf16>,
    %c2_45 = arith.constant 2 : index
    %c1_46 = arith.constant 1 : index
    %c0_47 = arith.constant 0 : index
    %30 = vector.load %arg9[%c2_45, %c1_46, %c0_47] : memref<18x18x128xbf16, #tpu.memory_space<vmem>>, vector<16x16x128xbf16>
    %31 = vector.shape_cast %30 : vector<16x16x128xbf16> to vector<256x128xbf16>
    %c0_48 = arith.constant 0 : index
    %c896 = arith.constant 896 : index
    %32 = vector.load %arg10[%c0_48, %c896] : memref<256x1152xbf16, #tpu.memory_space<vmem>>, vector<256x128xbf16>
    tpu.vector_store %arg10[%c0_48, %c896], %31 {strides = array<i32>} : memref<256x1152xbf16, #tpu.memory_space<vmem>>, vector<256x128xbf16>,
    %c2_49 = arith.constant 2 : index
    %c2_50 = arith.constant 2 : index
    %c0_51 = arith.constant 0 : index
    %33 = vector.load %arg9[%c2_49, %c2_50, %c0_51] : memref<18x18x128xbf16, #tpu.memory_space<vmem>>, vector<16x16x128xbf16>
    %34 = vector.shape_cast %33 : vector<16x16x128xbf16> to vector<256x128xbf16>
    %c0_52 = arith.constant 0 : index
    %c1024 = arith.constant 1024 : index
    %35 = vector.load %arg10[%c0_52, %c1024] : memref<256x1152xbf16, #tpu.memory_space<vmem>>, vector<256x128xbf16>
    tpu.vector_store %arg10[%c0_52, %c1024], %34 {strides = array<i32>} : memref<256x1152xbf16, #tpu.memory_space<vmem>>, vector<256x128xbf16>,
    %c0_53 = arith.constant 0 : index
    %c0_54 = arith.constant 0 : index
    %36 = vector.load %arg10[%c0_53, %c0_54] : memref<256x1152xbf16, #tpu.memory_space<vmem>>, vector<256x1152xbf16>
    %c0_55 = arith.constant 0 : index
    %c0_56 = arith.constant 0 : index
    %37 = vector.load %arg4[%c0_55, %c0_56] : memref<1152x128xbf16, #tpu.memory_space<vmem>>, vector<1152x128xbf16>
    %cst_57 = arith.constant dense<0.000000e+00> : vector<256x128xf32>
    %38 = tpu.matmul %36, %37, %cst_57 {dimension_numbers = #tpu.dot_dimension_numbers<[1], [0], [0], [1], [0, 0, 1, 1], [], []>} : vector<256x1152xbf16>, vector<1152x128xbf16>, vector<256x128xf32> -> vector<256x128xf32>
    %c0_58 = arith.constant 0 : index
    %c0_59 = arith.constant 0 : index
    %39 = vector.load %arg5[%c0_58, %c0_59] : memref<1x128xf32, #tpu.memory_space<vmem>>, vector<1x128xf32>
    %40 = vector.broadcast %39 : vector<1x128xf32> to vector<256x128xf32>
    %41 = arith.addf %38, %40 : vector<256x128xf32>
    %42 = vector.shape_cast %41 : vector<256x128xf32> to vector<16x16x128xf32>
    %43 = arith.truncf %42 : vector<16x16x128xf32> to vector<16x16x128xbf16>
    %c0_60 = arith.constant 0 : index
    %c0_61 = arith.constant 0 : index
    %c0_62 = arith.constant 0 : index
    %c0_63 = arith.constant 0 : index
    %44 = vector.load %arg6[%c0_60, %c0_61, %c0_62, %c0_63] : memref<1x16x16x128xbf16, #tpu.memory_space<vmem>>, vector<1x16x16x128xbf16>
    %45 = vector.shape_cast %44 : vector<1x16x16x128xbf16> to vector<16x16x128xbf16>
    %46 = vector.shape_cast %43 : vector<16x16x128xbf16> to vector<1x16x16x128xbf16>
    tpu.vector_store %arg6[%c0_60, %c0_61, %c0_62, %c0_63], %46 {strides = array<i32>} : memref<1x16x16x128xbf16, #tpu.memory_space<vmem>>, vector<1x16x16x128xbf16>,
    %cst_64 = arith.constant dense<0.000000e+00> : vector<128xf32>
    %47 = vector.multi_reduction <add>, %41, %cst_64 [0] : vector<256x128xf32> to vector<128xf32>
    %48 = vector.shape_cast %47 : vector<128xf32> to vector<1x128xf32>
    %49 = vector.shape_cast %48 : vector<1x128xf32> to vector<1x128xf32>
    %50 = vector.broadcast %49 : vector<1x128xf32> to vector<8x128xf32>
    %c0_65 = arith.constant 0 : index
    %c0_66 = arith.constant 0 : index
    %c0_67 = arith.constant 0 : index
    %51 = vector.load %arg7[%c0_65, %c0_66, %c0_67] : memref<1x8x128xf32, #tpu.memory_space<vmem>>, vector<1x8x128xf32>
    %52 = vector.shape_cast %51 : vector<1x8x128xf32> to vector<8x128xf32>
    %53 = vector.shape_cast %50 : vector<8x128xf32> to vector<1x8x128xf32>
    tpu.vector_store %arg7[%c0_65, %c0_66, %c0_67], %53 {strides = array<i32>} : memref<1x8x128xf32, #tpu.memory_space<vmem>>, vector<1x8x128xf32>,
    %54 = arith.mulf %41, %41 : vector<256x128xf32>
    %cst_68 = arith.constant dense<0.000000e+00> : vector<128xf32>
    %55 = vector.multi_reduction <add>, %54, %cst_68 [0] : vector<256x128xf32> to vector<128xf32>
    %56 = vector.shape_cast %55 : vector<128xf32> to vector<1x128xf32>
    %57 = vector.shape_cast %56 : vector<1x128xf32> to vector<1x128xf32>
    %58 = vector.broadcast %57 : vector<1x128xf32> to vector<8x128xf32>
    %c0_69 = arith.constant 0 : index
    %c0_70 = arith.constant 0 : index
    %c0_71 = arith.constant 0 : index
    %59 = vector.load %arg8[%c0_69, %c0_70, %c0_71] : memref<1x8x128xf32, #tpu.memory_space<vmem>>, vector<1x8x128xf32>
    %60 = vector.shape_cast %59 : vector<1x8x128xf32> to vector<8x128xf32>
    %61 = vector.shape_cast %58 : vector<8x128xf32> to vector<1x8x128xf32>
    tpu.vector_store %arg8[%c0_69, %c0_70, %c0_71], %61 {strides = array<i32>} : memref<1x8x128xf32, #tpu.memory_space<vmem>>, vector<1x8x128xf32>,
    return
  }
  func.func @transform_0(%arg0: i32) -> (i32, i32, i32, i32) {
    %c0_i32 = arith.constant 0 : i32
    %c0_i32_0 = arith.constant 0 : i32
    %c0_i32_1 = arith.constant 0 : i32
    %c0_i32_2 = arith.constant 0 : i32
    return %arg0, %c0_i32, %c0_i32_0, %c0_i32_1 : i32, i32, i32, i32
  }
  func.func @transform_1(%arg0: i32) -> (i32, i32) {
    %c0_i32 = arith.constant 0 : i32
    %c0_i32_0 = arith.constant 0 : i32
    %c0_i32_1 = arith.constant 0 : i32
    return %c0_i32, %c0_i32_0 : i32, i32
  }
  func.func @transform_2(%arg0: i32) -> (i32, i32) {
    %c0_i32 = arith.constant 0 : i32
    %c0_i32_0 = arith.constant 0 : i32
    %c0_i32_1 = arith.constant 0 : i32
    return %c0_i32, %c0_i32_0 : i32, i32
  }
  func.func @transform_3(%arg0: i32) -> (i32, i32) {
    %c0_i32 = arith.constant 0 : i32
    %c0_i32_0 = arith.constant 0 : i32
    %c0_i32_1 = arith.constant 0 : i32
    return %c0_i32, %c0_i32_0 : i32, i32
  }
  func.func @transform_4(%arg0: i32) -> (i32, i32) {
    %c0_i32 = arith.constant 0 : i32
    %c0_i32_0 = arith.constant 0 : i32
    %c0_i32_1 = arith.constant 0 : i32
    return %c0_i32, %c0_i32_0 : i32, i32
  }
  func.func @transform_5(%arg0: i32) -> (i32, i32, i32, i32) {
    %c0_i32 = arith.constant 0 : i32
    %c0_i32_0 = arith.constant 0 : i32
    %c0_i32_1 = arith.constant 0 : i32
    %c0_i32_2 = arith.constant 0 : i32
    return %arg0, %c0_i32, %c0_i32_0, %c0_i32_1 : i32, i32, i32, i32
  }
  func.func @transform_6(%arg0: i32) -> (i32, i32, i32) {
    %c0_i32 = arith.constant 0 : i32
    %c0_i32_0 = arith.constant 0 : i32
    %c0_i32_1 = arith.constant 0 : i32
    return %arg0, %c0_i32, %c0_i32_0 : i32, i32, i32
  }
  func.func @transform_7(%arg0: i32) -> (i32, i32, i32) {
    %c0_i32 = arith.constant 0 : i32
    %c0_i32_0 = arith.constant 0 : i32
    %c0_i32_1 = arith.constant 0 : i32
    return %arg0, %c0_i32, %c0_i32_0 : i32, i32, i32
  }
}

module attributes {stable_mosaic.version = 11 : i64} {
  func.func @conv3x3_kernel(%arg0: i32, %arg1: memref<1x16x16x128xbf16, #tpu.memory_space<vmem>>, %arg2: memref<1x128xf32, #tpu.memory_space<vmem>>, %arg3: memref<1x128xf32, #tpu.memory_space<vmem>>, %arg4: memref<1152x128xbf16, #tpu.memory_space<vmem>>, %arg5: memref<1x128xf32, #tpu.memory_space<vmem>>, %arg6: memref<1x16x16x128xbf16, #tpu.memory_space<vmem>>, %arg7: memref<1x8x128xf32, #tpu.memory_space<vmem>>, %arg8: memref<1x8x128xf32, #tpu.memory_space<vmem>>, %arg9: memref<18x18x128xbf16, #tpu.memory_space<vmem>>, %arg10: memref<256x1152xbf16, #tpu.memory_space<vmem>>) attributes {dimension_semantics = [#tpu.dimension_semantics<parallel>], iteration_bounds = array<i64: 2>, scalar_prefetch = 0 : i64, scratch_operands = 2 : i64, tpu.core_type = #tpu.core_type<tc>, window_params = [{transform_indices = @transform_0, window_bounds = array<i64: 1, 16, 16, 128>}, {pipeline_mode = #tpu.pipeline_mode<synchronous>, transform_indices = @transform_1, window_bounds = array<i64: 1, 128>}, {pipeline_mode = #tpu.pipeline_mode<synchronous>, transform_indices = @transform_2, window_bounds = array<i64: 1, 128>}, {pipeline_mode = #tpu.pipeline_mode<synchronous>, transform_indices = @transform_3, window_bounds = array<i64: 1152, 128>}, {pipeline_mode = #tpu.pipeline_mode<synchronous>, transform_indices = @transform_4, window_bounds = array<i64: 1, 128>}, {transform_indices = @transform_5, window_bounds = array<i64: 1, 16, 16, 128>}, {transform_indices = @transform_6, window_bounds = array<i64: 1, 8, 128>}, {transform_indices = @transform_7, window_bounds = array<i64: 1, 8, 128>}]} {
    %c0 = arith.constant 0 : index
    %c0_0 = arith.constant 0 : index
    %c0_1 = arith.constant 0 : index
    %c0_2 = arith.constant 0 : index
    %0 = vector.load %arg1[%c0, %c0_0, %c0_1, %c0_2] : memref<1x16x16x128xbf16, #tpu.memory_space<vmem>>, vector<1x16x16x128xbf16>
    %1 = vector.shape_cast %0 : vector<1x16x16x128xbf16> to vector<16x16x128xbf16>
    %2 = arith.extf %1 : vector<16x16x128xbf16> to vector<16x16x128xf32>
    %c0_3 = arith.constant 0 : index
    %c0_4 = arith.constant 0 : index
    %3 = vector.load %arg2[%c0_3, %c0_4] : memref<1x128xf32, #tpu.memory_space<vmem>>, vector<1x128xf32>
    %4 = vector.shape_cast %3 : vector<1x128xf32> to vector<1x1x128xf32>
    %5 = vector.broadcast %4 : vector<1x1x128xf32> to vector<16x16x128xf32>
    %6 = arith.mulf %2, %5 : vector<16x16x128xf32>
    %c0_5 = arith.constant 0 : index
    %c0_6 = arith.constant 0 : index
    %7 = vector.load %arg3[%c0_5, %c0_6] : memref<1x128xf32, #tpu.memory_space<vmem>>, vector<1x128xf32>
    %8 = vector.shape_cast %7 : vector<1x128xf32> to vector<1x1x128xf32>
    %9 = vector.broadcast %8 : vector<1x1x128xf32> to vector<16x16x128xf32>
    %10 = arith.addf %6, %9 : vector<16x16x128xf32>
    %11 = arith.negf %10 : vector<16x16x128xf32>
    %12 = math.exp %11 : vector<16x16x128xf32>
    %cst = arith.constant 1.000000e+00 : f32
    %13 = vector.broadcast %cst : f32 to vector<16x16x128xf32>
    %14 = arith.addf %13, %12 : vector<16x16x128xf32>
    %15 = arith.divf %13, %14 : vector<16x16x128xf32>
    %16 = arith.mulf %10, %15 : vector<16x16x128xf32>
    %17 = arith.truncf %16 : vector<16x16x128xf32> to vector<16x16x128xbf16>
    %cst_7 = arith.constant 0.000000e+00 : bf16
    %18 = vector.broadcast %cst_7 : bf16 to vector<1x18x128xbf16>
    %cst_8 = arith.constant 0.000000e+00 : bf16
    %19 = vector.broadcast %cst_8 : bf16 to vector<18x1x128xbf16>
    %c0_9 = arith.constant 0 : index
    %c0_10 = arith.constant 0 : index
    %c0_11 = arith.constant 0 : index
    %20 = vector.load %arg9[%c0_9, %c0_10, %c0_11] : memref<18x18x128xbf16, #tpu.memory_space<vmem>>, vector<1x18x128xbf16>
    tpu.vector_store %arg9[%c0_9, %c0_10, %c0_11], %18 {strides = array<i32>} : memref<18x18x128xbf16, #tpu.memory_space<vmem>>, vector<1x18x128xbf16>,
    %c17 = arith.constant 17 : index
    %c0_12 = arith.constant 0 : index
    %c0_13 = arith.constant 0 : index
    %21 = vector.load %arg9[%c17, %c0_12, %c0_13] : memref<18x18x128xbf16, #tpu.memory_space<vmem>>, vector<1x18x128xbf16>
    tpu.vector_store %arg9[%c17, %c0_12, %c0_13], %18 {strides = array<i32>} : memref<18x18x128xbf16, #tpu.memory_space<vmem>>, vector<1x18x128xbf16>,
    %c0_14 = arith.constant 0 : index
    %c0_15 = arith.constant 0 : index
    %c0_16 = arith.constant 0 : index
    %22 = vector.load %arg9[%c0_14, %c0_15, %c0_16] : memref<18x18x128xbf16, #tpu.memory_space<vmem>>, vector<18x1x128xbf16>
    tpu.vector_store %arg9[%c0_14, %c0_15, %c0_16], %19 {strides = array<i32>} : memref<18x18x128xbf16, #tpu.memory_space<vmem>>, vector<18x1x128xbf16>,
    %c0_17 = arith.constant 0 : index
    %c17_18 = arith.constant 17 : index
    %c0_19 = arith.constant 0 : index
    %23 = vector.load %arg9[%c0_17, %c17_18, %c0_19] : memref<18x18x128xbf16, #tpu.memory_space<vmem>>, vector<18x1x128xbf16>
    tpu.vector_store %arg9[%c0_17, %c17_18, %c0_19], %19 {strides = array<i32>} : memref<18x18x128xbf16, #tpu.memory_space<vmem>>, vector<18x1x128xbf16>,
    %c1 = arith.constant 1 : index
    %c1_20 = arith.constant 1 : index
    %c0_21 = arith.constant 0 : index
    %24 = vector.load %arg9[%c1, %c1_20, %c0_21] : memref<18x18x128xbf16, #tpu.memory_space<vmem>>, vector<16x16x128xbf16>
    tpu.vector_store %arg9[%c1, %c1_20, %c0_21], %17 {strides = array<i32>} : memref<18x18x128xbf16, #tpu.memory_space<vmem>>, vector<16x16x128xbf16>,
    %c0_22 = arith.constant 0 : index
    %c0_23 = arith.constant 0 : index
    %c0_24 = arith.constant 0 : index
    %25 = vector.load %arg9[%c0_22, %c0_23, %c0_24] : memref<18x18x128xbf16, #tpu.memory_space<vmem>>, vector<16x16x128xbf16>
    %26 = vector.shape_cast %25 : vector<16x16x128xbf16> to vector<256x128xbf16>
    %c0_25 = arith.constant 0 : index
    %c0_26 = arith.constant 0 : index
    %27 = vector.load %arg10[%c0_25, %c0_26] : memref<256x1152xbf16, #tpu.memory_space<vmem>>, vector<256x128xbf16>
    tpu.vector_store %arg10[%c0_25, %c0_26], %26 {strides = array<i32>} : memref<256x1152xbf16, #tpu.memory_space<vmem>>, vector<256x128xbf16>,
    %c0_27 = arith.constant 0 : index
    %c1_28 = arith.constant 1 : index
    %c0_29 = arith.constant 0 : index
    %28 = vector.load %arg9[%c0_27, %c1_28, %c0_29] : memref<18x18x128xbf16, #tpu.memory_space<vmem>>, vector<16x16x128xbf16>
    %29 = vector.shape_cast %28 : vector<16x16x128xbf16> to vector<256x128xbf16>
    %c0_30 = arith.constant 0 : index
    %c128 = arith.constant 128 : index
    %30 = vector.load %arg10[%c0_30, %c128] : memref<256x1152xbf16, #tpu.memory_space<vmem>>, vector<256x128xbf16>
    tpu.vector_store %arg10[%c0_30, %c128], %29 {strides = array<i32>} : memref<256x1152xbf16, #tpu.memory_space<vmem>>, vector<256x128xbf16>,
    %c0_31 = arith.constant 0 : index
    %c2 = arith.constant 2 : index
    %c0_32 = arith.constant 0 : index
    %31 = vector.load %arg9[%c0_31, %c2, %c0_32] : memref<18x18x128xbf16, #tpu.memory_space<vmem>>, vector<16x16x128xbf16>
    %32 = vector.shape_cast %31 : vector<16x16x128xbf16> to vector<256x128xbf16>
    %c0_33 = arith.constant 0 : index
    %c256 = arith.constant 256 : index
    %33 = vector.load %arg10[%c0_33, %c256] : memref<256x1152xbf16, #tpu.memory_space<vmem>>, vector<256x128xbf16>
    tpu.vector_store %arg10[%c0_33, %c256], %32 {strides = array<i32>} : memref<256x1152xbf16, #tpu.memory_space<vmem>>, vector<256x128xbf16>,
    %c1_34 = arith.constant 1 : index
    %c0_35 = arith.constant 0 : index
    %c0_36 = arith.constant 0 : index
    %34 = vector.load %arg9[%c1_34, %c0_35, %c0_36] : memref<18x18x128xbf16, #tpu.memory_space<vmem>>, vector<16x16x128xbf16>
    %35 = vector.shape_cast %34 : vector<16x16x128xbf16> to vector<256x128xbf16>
    %c0_37 = arith.constant 0 : index
    %c384 = arith.constant 384 : index
    %36 = vector.load %arg10[%c0_37, %c384] : memref<256x1152xbf16, #tpu.memory_space<vmem>>, vector<256x128xbf16>
    tpu.vector_store %arg10[%c0_37, %c384], %35 {strides = array<i32>} : memref<256x1152xbf16, #tpu.memory_space<vmem>>, vector<256x128xbf16>,
    %c1_38 = arith.constant 1 : index
    %c1_39 = arith.constant 1 : index
    %c0_40 = arith.constant 0 : index
    %37 = vector.load %arg9[%c1_38, %c1_39, %c0_40] : memref<18x18x128xbf16, #tpu.memory_space<vmem>>, vector<16x16x128xbf16>
    %38 = vector.shape_cast %37 : vector<16x16x128xbf16> to vector<256x128xbf16>
    %c0_41 = arith.constant 0 : index
    %c512 = arith.constant 512 : index
    %39 = vector.load %arg10[%c0_41, %c512] : memref<256x1152xbf16, #tpu.memory_space<vmem>>, vector<256x128xbf16>
    tpu.vector_store %arg10[%c0_41, %c512], %38 {strides = array<i32>} : memref<256x1152xbf16, #tpu.memory_space<vmem>>, vector<256x128xbf16>,
    %c1_42 = arith.constant 1 : index
    %c2_43 = arith.constant 2 : index
    %c0_44 = arith.constant 0 : index
    %40 = vector.load %arg9[%c1_42, %c2_43, %c0_44] : memref<18x18x128xbf16, #tpu.memory_space<vmem>>, vector<16x16x128xbf16>
    %41 = vector.shape_cast %40 : vector<16x16x128xbf16> to vector<256x128xbf16>
    %c0_45 = arith.constant 0 : index
    %c640 = arith.constant 640 : index
    %42 = vector.load %arg10[%c0_45, %c640] : memref<256x1152xbf16, #tpu.memory_space<vmem>>, vector<256x128xbf16>
    tpu.vector_store %arg10[%c0_45, %c640], %41 {strides = array<i32>} : memref<256x1152xbf16, #tpu.memory_space<vmem>>, vector<256x128xbf16>,
    %c2_46 = arith.constant 2 : index
    %c0_47 = arith.constant 0 : index
    %c0_48 = arith.constant 0 : index
    %43 = vector.load %arg9[%c2_46, %c0_47, %c0_48] : memref<18x18x128xbf16, #tpu.memory_space<vmem>>, vector<16x16x128xbf16>
    %44 = vector.shape_cast %43 : vector<16x16x128xbf16> to vector<256x128xbf16>
    %c0_49 = arith.constant 0 : index
    %c768 = arith.constant 768 : index
    %45 = vector.load %arg10[%c0_49, %c768] : memref<256x1152xbf16, #tpu.memory_space<vmem>>, vector<256x128xbf16>
    tpu.vector_store %arg10[%c0_49, %c768], %44 {strides = array<i32>} : memref<256x1152xbf16, #tpu.memory_space<vmem>>, vector<256x128xbf16>,
    %c2_50 = arith.constant 2 : index
    %c1_51 = arith.constant 1 : index
    %c0_52 = arith.constant 0 : index
    %46 = vector.load %arg9[%c2_50, %c1_51, %c0_52] : memref<18x18x128xbf16, #tpu.memory_space<vmem>>, vector<16x16x128xbf16>
    %47 = vector.shape_cast %46 : vector<16x16x128xbf16> to vector<256x128xbf16>
    %c0_53 = arith.constant 0 : index
    %c896 = arith.constant 896 : index
    %48 = vector.load %arg10[%c0_53, %c896] : memref<256x1152xbf16, #tpu.memory_space<vmem>>, vector<256x128xbf16>
    tpu.vector_store %arg10[%c0_53, %c896], %47 {strides = array<i32>} : memref<256x1152xbf16, #tpu.memory_space<vmem>>, vector<256x128xbf16>,
    %c2_54 = arith.constant 2 : index
    %c2_55 = arith.constant 2 : index
    %c0_56 = arith.constant 0 : index
    %49 = vector.load %arg9[%c2_54, %c2_55, %c0_56] : memref<18x18x128xbf16, #tpu.memory_space<vmem>>, vector<16x16x128xbf16>
    %50 = vector.shape_cast %49 : vector<16x16x128xbf16> to vector<256x128xbf16>
    %c0_57 = arith.constant 0 : index
    %c1024 = arith.constant 1024 : index
    %51 = vector.load %arg10[%c0_57, %c1024] : memref<256x1152xbf16, #tpu.memory_space<vmem>>, vector<256x128xbf16>
    tpu.vector_store %arg10[%c0_57, %c1024], %50 {strides = array<i32>} : memref<256x1152xbf16, #tpu.memory_space<vmem>>, vector<256x128xbf16>,
    %c0_58 = arith.constant 0 : index
    %c0_59 = arith.constant 0 : index
    %52 = vector.load %arg10[%c0_58, %c0_59] : memref<256x1152xbf16, #tpu.memory_space<vmem>>, vector<256x1152xbf16>
    %c0_60 = arith.constant 0 : index
    %c0_61 = arith.constant 0 : index
    %53 = vector.load %arg4[%c0_60, %c0_61] : memref<1152x128xbf16, #tpu.memory_space<vmem>>, vector<1152x128xbf16>
    %cst_62 = arith.constant dense<0.000000e+00> : vector<256x128xf32>
    %54 = tpu.matmul %52, %53, %cst_62 {dimension_numbers = #tpu.dot_dimension_numbers<[1], [0], [0], [1], [0, 0, 1, 1], [], []>} : vector<256x1152xbf16>, vector<1152x128xbf16>, vector<256x128xf32> -> vector<256x128xf32>
    %c0_63 = arith.constant 0 : index
    %c0_64 = arith.constant 0 : index
    %55 = vector.load %arg5[%c0_63, %c0_64] : memref<1x128xf32, #tpu.memory_space<vmem>>, vector<1x128xf32>
    %56 = vector.broadcast %55 : vector<1x128xf32> to vector<256x128xf32>
    %57 = arith.addf %54, %56 : vector<256x128xf32>
    %58 = vector.shape_cast %57 : vector<256x128xf32> to vector<16x16x128xf32>
    %59 = arith.truncf %58 : vector<16x16x128xf32> to vector<16x16x128xbf16>
    %c0_65 = arith.constant 0 : index
    %c0_66 = arith.constant 0 : index
    %c0_67 = arith.constant 0 : index
    %c0_68 = arith.constant 0 : index
    %60 = vector.load %arg6[%c0_65, %c0_66, %c0_67, %c0_68] : memref<1x16x16x128xbf16, #tpu.memory_space<vmem>>, vector<1x16x16x128xbf16>
    %61 = vector.shape_cast %60 : vector<1x16x16x128xbf16> to vector<16x16x128xbf16>
    %62 = vector.shape_cast %59 : vector<16x16x128xbf16> to vector<1x16x16x128xbf16>
    tpu.vector_store %arg6[%c0_65, %c0_66, %c0_67, %c0_68], %62 {strides = array<i32>} : memref<1x16x16x128xbf16, #tpu.memory_space<vmem>>, vector<1x16x16x128xbf16>,
    %cst_69 = arith.constant dense<0.000000e+00> : vector<128xf32>
    %63 = vector.multi_reduction <add>, %57, %cst_69 [0] : vector<256x128xf32> to vector<128xf32>
    %64 = vector.shape_cast %63 : vector<128xf32> to vector<1x128xf32>
    %65 = vector.shape_cast %64 : vector<1x128xf32> to vector<1x128xf32>
    %66 = vector.broadcast %65 : vector<1x128xf32> to vector<8x128xf32>
    %c0_70 = arith.constant 0 : index
    %c0_71 = arith.constant 0 : index
    %c0_72 = arith.constant 0 : index
    %67 = vector.load %arg7[%c0_70, %c0_71, %c0_72] : memref<1x8x128xf32, #tpu.memory_space<vmem>>, vector<1x8x128xf32>
    %68 = vector.shape_cast %67 : vector<1x8x128xf32> to vector<8x128xf32>
    %69 = vector.shape_cast %66 : vector<8x128xf32> to vector<1x8x128xf32>
    tpu.vector_store %arg7[%c0_70, %c0_71, %c0_72], %69 {strides = array<i32>} : memref<1x8x128xf32, #tpu.memory_space<vmem>>, vector<1x8x128xf32>,
    %70 = arith.mulf %57, %57 : vector<256x128xf32>
    %cst_73 = arith.constant dense<0.000000e+00> : vector<128xf32>
    %71 = vector.multi_reduction <add>, %70, %cst_73 [0] : vector<256x128xf32> to vector<128xf32>
    %72 = vector.shape_cast %71 : vector<128xf32> to vector<1x128xf32>
    %73 = vector.shape_cast %72 : vector<1x128xf32> to vector<1x128xf32>
    %74 = vector.broadcast %73 : vector<1x128xf32> to vector<8x128xf32>
    %c0_74 = arith.constant 0 : index
    %c0_75 = arith.constant 0 : index
    %c0_76 = arith.constant 0 : index
    %75 = vector.load %arg8[%c0_74, %c0_75, %c0_76] : memref<1x8x128xf32, #tpu.memory_space<vmem>>, vector<1x8x128xf32>
    %76 = vector.shape_cast %75 : vector<1x8x128xf32> to vector<8x128xf32>
    %77 = vector.shape_cast %74 : vector<8x128xf32> to vector<1x8x128xf32>
    tpu.vector_store %arg8[%c0_74, %c0_75, %c0_76], %77 {strides = array<i32>} : memref<1x8x128xf32, #tpu.memory_space<vmem>>, vector<1x8x128xf32>,
    return
  }
  func.func @transform_0(%arg0: i32) -> (i32, i32, i32, i32) {
    %c0_i32 = arith.constant 0 : i32
    %c0_i32_0 = arith.constant 0 : i32
    %c0_i32_1 = arith.constant 0 : i32
    %c0_i32_2 = arith.constant 0 : i32
    return %arg0, %c0_i32, %c0_i32_0, %c0_i32_1 : i32, i32, i32, i32
  }
  func.func @transform_1(%arg0: i32) -> (i32, i32) {
    %c0_i32 = arith.constant 0 : i32
    %c0_i32_0 = arith.constant 0 : i32
    %c0_i32_1 = arith.constant 0 : i32
    return %c0_i32, %c0_i32_0 : i32, i32
  }
  func.func @transform_2(%arg0: i32) -> (i32, i32) {
    %c0_i32 = arith.constant 0 : i32
    %c0_i32_0 = arith.constant 0 : i32
    %c0_i32_1 = arith.constant 0 : i32
    return %c0_i32, %c0_i32_0 : i32, i32
  }
  func.func @transform_3(%arg0: i32) -> (i32, i32) {
    %c0_i32 = arith.constant 0 : i32
    %c0_i32_0 = arith.constant 0 : i32
    %c0_i32_1 = arith.constant 0 : i32
    return %c0_i32, %c0_i32_0 : i32, i32
  }
  func.func @transform_4(%arg0: i32) -> (i32, i32) {
    %c0_i32 = arith.constant 0 : i32
    %c0_i32_0 = arith.constant 0 : i32
    %c0_i32_1 = arith.constant 0 : i32
    return %c0_i32, %c0_i32_0 : i32, i32
  }
  func.func @transform_5(%arg0: i32) -> (i32, i32, i32, i32) {
    %c0_i32 = arith.constant 0 : i32
    %c0_i32_0 = arith.constant 0 : i32
    %c0_i32_1 = arith.constant 0 : i32
    %c0_i32_2 = arith.constant 0 : i32
    return %arg0, %c0_i32, %c0_i32_0, %c0_i32_1 : i32, i32, i32, i32
  }
  func.func @transform_6(%arg0: i32) -> (i32, i32, i32) {
    %c0_i32 = arith.constant 0 : i32
    %c0_i32_0 = arith.constant 0 : i32
    %c0_i32_1 = arith.constant 0 : i32
    return %arg0, %c0_i32, %c0_i32_0 : i32, i32, i32
  }
  func.func @transform_7(%arg0: i32) -> (i32, i32, i32) {
    %c0_i32 = arith.constant 0 : i32
    %c0_i32_0 = arith.constant 0 : i32
    %c0_i32_1 = arith.constant 0 : i32
    return %arg0, %c0_i32, %c0_i32_0 : i32, i32, i32
  }
}

module attributes {stable_mosaic.version = 11 : i64} {
  func.func @bn_silu_kernel(%arg0: i32, %arg1: memref<1x16x16x128xbf16, #tpu.memory_space<vmem>>, %arg2: memref<1x128xf32, #tpu.memory_space<vmem>>, %arg3: memref<1x128xf32, #tpu.memory_space<vmem>>, %arg4: memref<1x16x16x128xf32, #tpu.memory_space<vmem>>) attributes {dimension_semantics = [#tpu.dimension_semantics<parallel>], iteration_bounds = array<i64: 2>, scalar_prefetch = 0 : i64, scratch_operands = 0 : i64, tpu.core_type = #tpu.core_type<tc>, window_params = [{transform_indices = @transform_0, window_bounds = array<i64: 1, 16, 16, 128>}, {pipeline_mode = #tpu.pipeline_mode<synchronous>, transform_indices = @transform_1, window_bounds = array<i64: 1, 128>}, {pipeline_mode = #tpu.pipeline_mode<synchronous>, transform_indices = @transform_2, window_bounds = array<i64: 1, 128>}, {transform_indices = @transform_3, window_bounds = array<i64: 1, 16, 16, 128>}]} {
    %c0 = arith.constant 0 : index
    %c0_0 = arith.constant 0 : index
    %c0_1 = arith.constant 0 : index
    %c0_2 = arith.constant 0 : index
    %0 = vector.load %arg1[%c0, %c0_0, %c0_1, %c0_2] : memref<1x16x16x128xbf16, #tpu.memory_space<vmem>>, vector<1x16x16x128xbf16>
    %1 = vector.shape_cast %0 : vector<1x16x16x128xbf16> to vector<16x16x128xbf16>
    %2 = arith.extf %1 : vector<16x16x128xbf16> to vector<16x16x128xf32>
    %c0_3 = arith.constant 0 : index
    %c0_4 = arith.constant 0 : index
    %3 = vector.load %arg2[%c0_3, %c0_4] : memref<1x128xf32, #tpu.memory_space<vmem>>, vector<1x128xf32>
    %4 = vector.shape_cast %3 : vector<1x128xf32> to vector<1x1x128xf32>
    %5 = vector.broadcast %4 : vector<1x1x128xf32> to vector<16x16x128xf32>
    %6 = arith.mulf %2, %5 : vector<16x16x128xf32>
    %c0_5 = arith.constant 0 : index
    %c0_6 = arith.constant 0 : index
    %7 = vector.load %arg3[%c0_5, %c0_6] : memref<1x128xf32, #tpu.memory_space<vmem>>, vector<1x128xf32>
    %8 = vector.shape_cast %7 : vector<1x128xf32> to vector<1x1x128xf32>
    %9 = vector.broadcast %8 : vector<1x1x128xf32> to vector<16x16x128xf32>
    %10 = arith.addf %6, %9 : vector<16x16x128xf32>
    %11 = arith.negf %10 : vector<16x16x128xf32>
    %12 = math.exp %11 : vector<16x16x128xf32>
    %cst = arith.constant 1.000000e+00 : f32
    %13 = vector.broadcast %cst : f32 to vector<16x16x128xf32>
    %14 = arith.addf %13, %12 : vector<16x16x128xf32>
    %15 = arith.divf %13, %14 : vector<16x16x128xf32>
    %16 = arith.mulf %10, %15 : vector<16x16x128xf32>
    %c0_7 = arith.constant 0 : index
    %c0_8 = arith.constant 0 : index
    %c0_9 = arith.constant 0 : index
    %c0_10 = arith.constant 0 : index
    %17 = vector.load %arg4[%c0_7, %c0_8, %c0_9, %c0_10] : memref<1x16x16x128xf32, #tpu.memory_space<vmem>>, vector<1x16x16x128xf32>
    %18 = vector.shape_cast %17 : vector<1x16x16x128xf32> to vector<16x16x128xf32>
    %19 = vector.shape_cast %16 : vector<16x16x128xf32> to vector<1x16x16x128xf32>
    tpu.vector_store %arg4[%c0_7, %c0_8, %c0_9, %c0_10], %19 {strides = array<i32>} : memref<1x16x16x128xf32, #tpu.memory_space<vmem>>, vector<1x16x16x128xf32>,
    return
  }
  func.func @transform_0(%arg0: i32) -> (i32, i32, i32, i32) {
    %c0_i32 = arith.constant 0 : i32
    %c0_i32_0 = arith.constant 0 : i32
    %c0_i32_1 = arith.constant 0 : i32
    %c0_i32_2 = arith.constant 0 : i32
    return %arg0, %c0_i32, %c0_i32_0, %c0_i32_1 : i32, i32, i32, i32
  }
  func.func @transform_1(%arg0: i32) -> (i32, i32) {
    %c0_i32 = arith.constant 0 : i32
    %c0_i32_0 = arith.constant 0 : i32
    %c0_i32_1 = arith.constant 0 : i32
    return %c0_i32, %c0_i32_0 : i32, i32
  }
  func.func @transform_2(%arg0: i32) -> (i32, i32) {
    %c0_i32 = arith.constant 0 : i32
    %c0_i32_0 = arith.constant 0 : i32
    %c0_i32_1 = arith.constant 0 : i32
    return %c0_i32, %c0_i32_0 : i32, i32
  }
  func.func @transform_3(%arg0: i32) -> (i32, i32, i32, i32) {
    %c0_i32 = arith.constant 0 : i32
    %c0_i32_0 = arith.constant 0 : i32
    %c0_i32_1 = arith.constant 0 : i32
    %c0_i32_2 = arith.constant 0 : i32
    return %arg0, %c0_i32, %c0_i32_0, %c0_i32_1 : i32, i32, i32, i32
  }
}

</mosaic_0001>

<llo_original>
// kernel: double_conv_forward.5
$region0: #{double_conv_forward.5}
  #allocation0 [shape = 'u32[]', space=smem, size = 0x4, offset = 0x4, fixed_abs, tag = 'smem constant byte address 0x4 - core index']
  #allocation1 [shape = 'u32[144,128]{1,0:T(1,128)}', space=vmem, size = 0x12000, scoped, tag = 'internal scratch']
  %s0 = inlined_call_operand.vmem [shape: bf16[2,16,16,128], index: 0, kind: input, shape index: {}]
  %s1 = inlined_call_operand.vmem [shape: f32[1,128], index: 1, kind: input, shape index: {}]
  %s2 = inlined_call_operand.vmem [shape: f32[1,128], index: 2, kind: input, shape index: {}]
  %s3 = inlined_call_operand.vmem [shape: f32[2,16,16,128], index: 3, kind: output, shape index: {}]
  %s4 = sld [smem:[#allocation0]]
  $region45: #{double_conv_forward.5} parent=0
    _
  %s6 = ssub.s32 1, %s4
  %s7 = scalar_select 0, %s6, %s4
  loop: start=0, step=1, limit=4
  $region2: #{double_conv_forward.5} parent=0 // loop_pre_header
    _
  $region3: #{double_conv_forward.5} parent=0 // loop_header
    %s9 = sphi 0, %s13
    %p10 = scmp.ge.s32.totalorder %s9, 4
    %s19 = sphi 0, %s21
    %s22 = sphi 0, %s19
    %s23 = sphi 0, %s22
    %s39 = sphi 0, %s23
    %s43 = sphi 0, %s43
    %s45 = sphi 0, %s43
    %s46 = sphi 0, %s45
    %s60 = sphi 0, %s46
    %s64 = sphi 0, %s64
    %s66 = sphi 0, %s64
    %s67 = sphi 0, %s66
    %s81 = sphi 0, %s67
    %s87 = sphi 0, %s89
    %s90 = sphi 0, %s87
    %s91 = sphi 0, %s90
    %s107 = sphi 0, %s91
  $region4: #{double_conv_forward.5} parent=0 // loop_header_branch
    %12 = sbr.rel (%p10) target = $region8
  $region5: #{double_conv_forward.5} parent=0 // loop_body
    %s14 = ssub.s32 %s9, 1
    %s15 = ssub.s32 %s9, 2
    %s16 = sadd.s32 %s9, 1
    %s17 = ssub.s32 %s9, %s16
    %p18 = scmp.eq.s32.totalorder %s17, 0
    %s20 = sadd.s32 %s19, 1
    %s21 = scalar_select %p18, %s19, %s20
    %p24 = pneg %p18
    %p25 = scmp.eq.s32.totalorder %s9, 1
    %p26 = por %p24, %p25
    %p27 = scmp.ne.s32.totalorder %s19, %s22
    %p28 = scmp.eq.s32.totalorder %s9, 0
    %p29 = por %p27, %p28
    %p30 = scmp.ne.s32.totalorder %s19, %s22
    %p31 = scmp.eq.s32.totalorder %s14, 1
    %p32 = por %p30, %p31
    %p33 = scmp.ne.s32.totalorder %s22, %s23
    %p34 = scmp.eq.s32.totalorder %s14, 0
    %p35 = por %p33, %p34
    %p36 = scmp.ne.s32.totalorder %s22, %s23
    %p37 = scmp.eq.s32.totalorder %s15, 1
    %p38 = por %p36, %p37
    %p40 = scmp.ne.s32.totalorder %s23, %s39
    %p41 = scmp.eq.s32.totalorder %s15, 0
    %p42 = por %p40, %p41
    %s44 = sadd.s32 %s43, 1
    %p47 = scmp.eq.s32.totalorder %s9, 1
    %p48 = scmp.ne.s32.totalorder %s43, %s45
    %p49 = scmp.eq.s32.totalorder %s9, 0
    %p50 = por %p48, %p49
    %p51 = scmp.ne.s32.totalorder %s43, %s45
    %p52 = scmp.eq.s32.totalorder %s14, 1
    %p53 = por %p51, %p52
    %p54 = scmp.ne.s32.totalorder %s45, %s46
    %p55 = scmp.eq.s32.totalorder %s14, 0
    %p56 = por %p54, %p55
    %p57 = scmp.ne.s32.totalorder %s45, %s46
    %p58 = scmp.eq.s32.totalorder %s15, 1
    %p59 = por %p57, %p58
    %p61 = scmp.ne.s32.totalorder %s46, %s60
    %p62 = scmp.eq.s32.totalorder %s15, 0
    %p63 = por %p61, %p62
    %s65 = sadd.s32 %s64, 1
    %p68 = scmp.eq.s32.totalorder %s9, 1
    %p69 = scmp.ne.s32.totalorder %s64, %s66
    %p70 = scmp.eq.s32.totalorder %s9, 0
    %p71 = por %p69, %p70
    %p72 = scmp.ne.s32.totalorder %s64, %s66
    %p73 = scmp.eq.s32.totalorder %s14, 1
    %p74 = por %p72, %p73
    %p75 = scmp.ne.s32.totalorder %s66, %s67
    %p76 = scmp.eq.s32.totalorder %s14, 0
    %p77 = por %p75, %p76
    %p78 = scmp.ne.s32.totalorder %s66, %s67
    %p79 = scmp.eq.s32.totalorder %s15, 1
    %p80 = por %p78, %p79
    %p82 = scmp.ne.s32.totalorder %s67, %s81
    %p83 = scmp.eq.s32.totalorder %s15, 0
    %p84 = por %p82, %p83
    %s85 = ssub.s32 %s9, %s16
    %p86 = scmp.eq.s32.totalorder %s85, 0
    %s88 = sadd.s32 %s87, 1
    %s89 = scalar_select %p86, %s87, %s88
    %p92 = pneg %p86
    %p93 = scmp.eq.s32.totalorder %s9, 1
    %p94 = por %p92, %p93
    %p95 = scmp.ne.s32.totalorder %s87, %s90
    %p96 = scmp.eq.s32.totalorder %s9, 0
    %p97 = por %p95, %p96
    %p98 = scmp.ne.s32.totalorder %s87, %s90
    %p99 = scmp.eq.s32.totalorder %s14, 1
    %p100 = por %p98, %p99
    %p101 = scmp.ne.s32.totalorder %s90, %s91
    %p102 = scmp.eq.s32.totalorder %s14, 0
    %p103 = por %p101, %p102
    %p104 = scmp.ne.s32.totalorder %s90, %s91
    %p105 = scmp.eq.s32.totalorder %s15, 1
    %p106 = por %p104, %p105
    %p108 = scmp.ne.s32.totalorder %s91, %s107
    %p109 = scmp.eq.s32.totalorder %s15, 0
    %p110 = por %p108, %p109
    %p111 = scmp.le.s32.totalorder 1, %s9
    %p112 = scmp.lt.s32.totalorder %s9, 3
    %p113 = pnand %p111, %p112
    %p114 = pneg %p113
    // Predicated region
    $region9: #{double_conv_forward.5} parent=5 // pred_check
      _
    $region10: #{double_conv_forward.5} parent=5 // pred_check_branch
      %116 = sbr.rel (%p113) target = $region12
    $region11: #{double_conv_forward.5} parent=5 // pred_region
      %s117 = ssub.s32 %s9, 1
      // Predicated region
      $region13: #{double_conv_forward.5} parent=11 // pred_check
        %p118 = pneg %p56
      $region14: #{double_conv_forward.5} parent=11 // pred_check_branch
        %120 = sbr.rel (%p118) target = $region16
      $region15: #{double_conv_forward.5} parent=11 // pred_region
        _
      $region16: #{double_conv_forward.5} parent=11 // pred_fallthru
        _
      // Predicated region
      $region17: #{double_conv_forward.5} parent=11 // pred_check
        %p121 = pneg %p77
      $region18: #{double_conv_forward.5} parent=11 // pred_check_branch
        %123 = sbr.rel (%p121) target = $region20
      $region19: #{double_conv_forward.5} parent=11 // pred_region
        _
      $region20: #{double_conv_forward.5} parent=11 // pred_fallthru
        _
    $region12: #{double_conv_forward.5} parent=5 // pred_fallthru
      _
    %p124 = scmp.lt.s32.totalorder %s9, 2
    // Predicated region
    $region21: #{double_conv_forward.5} parent=5 // pred_check
      %p125 = pneg %p124
    $region22: #{double_conv_forward.5} parent=5 // pred_check_branch
      %127 = sbr.rel (%p125) target = $region24
    $region23: #{double_conv_forward.5} parent=5 // pred_region
      // Predicated region
      $region25: #{double_conv_forward.5} parent=23 // pred_check
        %p128 = pneg %p29
      $region26: #{double_conv_forward.5} parent=23 // pred_check_branch
        %130 = sbr.rel (%p128) target = $region28
      $region27: #{double_conv_forward.5} parent=23 // pred_region
        %p131 = scmp.lt.s32.totalorder %s9, 1
        %s132 = scalar_select %p131, %s9, 1
        %s133 = smul.addr %s132, 32
        %s134 = smul.addr %s133, 4
        %s135 = scalar_lea.vmem %s0, %s134
      $region28: #{double_conv_forward.5} parent=23 // pred_fallthru
        _
    $region24: #{double_conv_forward.5} parent=5 // pred_fallthru
      _
    %p136 = scmp.le.s32.totalorder 1, %s9
    %p137 = scmp.lt.s32.totalorder %s9, 3
    %p138 = pnand %p136, %p137
    %p139 = pneg %p138
    // Predicated region
    $region29: #{double_conv_forward.5} parent=5 // pred_check
      _
    $region30: #{double_conv_forward.5} parent=5 // pred_check_branch
      %141 = sbr.rel (%p138) target = $region32
    $region31: #{double_conv_forward.5} parent=5 // pred_region
      %s142 = ssub.s32 %s9, 1
      %p143 = scmp.lt.s32.totalorder %s14, 1
      %s144 = scalar_select %p143, %s14, 1
      %s145 = smul.addr %s144, 32
      %s146 = smul.addr %s145, 4
      %s147 = scalar_lea.vmem %s0, %s146
      %p148 = pneg %p35
      %p149 = pneg %p32
      %p150 = pneg %p56
      %p151 = pneg %p53
      %p152 = pneg %p77
      %p153 = pneg %p74
      %p154 = pneg %p103
      %p155 = pneg %p100
      %p156 = scmp.lt.s32.totalorder %s14, 1
      %s157 = scalar_select %p156, %s14, 1
      %s158 = smul.addr %s157, 32
      %s159 = smul.addr %s158, 8
      %s160 = scalar_lea.vmem %s3, %s159
      %p161 = scmp.lt.s32.totalorder %s14, 1
      %s162 = scalar_select %p161, %s14, 1
      %s163 = smul.addr %s162, 32
      %s164 = smul.addr %s163, 4
      %s165 = scalar_lea.vmem %s0, %s164
      %p166 = scmp.lt.s32.totalorder %s14, 1
      %s167 = scalar_select %p166, %s14, 1
      %s168 = smul.addr %s167, 32
      %s169 = smul.addr %s168, 8
      %s170 = scalar_lea.vmem %s3, %s169
      %v171 = vld [vmem:[%s165] sm:$0xf]
      %v172 = vld [vmem:[%s165 + $0x4] sm:$0xf]
      %v173 = vld [vmem:[%s165 + $0x8] sm:$0xf]
      %v174 = vld [vmem:[%s165 + $0xc] sm:$0xf]
      %v175 = vld [vmem:[%s165 + $0x10] sm:$0xf]
      %v176 = vld [vmem:[%s165 + $0x14] sm:$0xf]
      %v177 = vld [vmem:[%s165 + $0x18] sm:$0xf]
      %v178 = vld [vmem:[%s165 + $0x1c] sm:$0xf]
      %v179 = vld [vmem:[%s165 + $0x20] sm:$0xf]
      %v180 = vld [vmem:[%s165 + $0x24] sm:$0xf]
      %v181 = vld [vmem:[%s165 + $0x28] sm:$0xf]
      %v182 = vld [vmem:[%s165 + $0x2c] sm:$0xf]
      %v183 = vld [vmem:[%s165 + $0x30] sm:$0xf]
      %v184 = vld [vmem:[%s165 + $0x34] sm:$0xf]
      %v185 = vld [vmem:[%s165 + $0x38] sm:$0xf]
      %v186 = vld [vmem:[%s165 + $0x3c] sm:$0xf]
      %v187 = vld [vmem:[%s165 + $0x40] sm:$0xf]
      %v188 = vld [vmem:[%s165 + $0x44] sm:$0xf]
      %v189 = vld [vmem:[%s165 + $0x48] sm:$0xf]
      %v190 = vld [vmem:[%s165 + $0x4c] sm:$0xf]
      %v191 = vld [vmem:[%s165 + $0x50] sm:$0xf]
      %v192 = vld [vmem:[%s165 + $0x54] sm:$0xf]
      %v193 = vld [vmem:[%s165 + $0x58] sm:$0xf]
      %v194 = vld [vmem:[%s165 + $0x5c] sm:$0xf]
      %v195 = vld [vmem:[%s165 + $0x60] sm:$0xf]
      %v196 = vld [vmem:[%s165 + $0x64] sm:$0xf]
      %v197 = vld [vmem:[%s165 + $0x68] sm:$0xf]
      %v198 = vld [vmem:[%s165 + $0x6c] sm:$0xf]
      %v199 = vld [vmem:[%s165 + $0x70] sm:$0xf]
      %v200 = vld [vmem:[%s165 + $0x74] sm:$0xf]
      %v201 = vld [vmem:[%s165 + $0x78] sm:$0xf]
      %v202 = vld [vmem:[%s165 + $0x7c] sm:$0xf]
      %v203 = vunpack.c.l.bf16 %v171
      %v204 = vunpack.c.l.bf16 %v172
      %v205 = vunpack.c.l.bf16 %v173
      %v206 = vunpack.c.l.bf16 %v174
      %v207 = vunpack.c.l.bf16 %v175
      %v208 = vunpack.c.l.bf16 %v176
      %v209 = vunpack.c.l.bf16 %v177
      %v210 = vunpack.c.l.bf16 %v178
      %v211 = vunpack.c.l.bf16 %v179
      %v212 = vunpack.c.l.bf16 %v180
      %v213 = vunpack.c.l.bf16 %v181
      %v214 = vunpack.c.l.bf16 %v182
      %v215 = vunpack.c.l.bf16 %v183
      %v216 = vunpack.c.l.bf16 %v184
      %v217 = vunpack.c.l.bf16 %v185
      %v218 = vunpack.c.l.bf16 %v186
      %v219 = vunpack.c.l.bf16 %v187
      %v220 = vunpack.c.l.bf16 %v188
      %v221 = vunpack.c.l.bf16 %v189
      %v222 = vunpack.c.l.bf16 %v190
      %v223 = vunpack.c.l.bf16 %v191
      %v224 = vunpack.c.l.bf16 %v192
      %v225 = vunpack.c.l.bf16 %v193
      %v226 = vunpack.c.l.bf16 %v194
      %v227 = vunpack.c.l.bf16 %v195
      %v228 = vunpack.c.l.bf16 %v196
      %v229 = vunpack.c.l.bf16 %v197
      %v230 = vunpack.c.l.bf16 %v198
      %v231 = vunpack.c.l.bf16 %v199
      %v232 = vunpack.c.l.bf16 %v200
      %v233 = vunpack.c.l.bf16 %v201
      %v234 = vunpack.c.l.bf16 %v202
      %v235 = vld [vmem:[%s1] sm:$0x1]
      %v237 = vlaneseq
      %v238 = vshrl.u32 %v237, 7
      %v239 = vsub.s32 0, %v238
      %v240 = vrot.slane %v235, %v239
      %v242 = vmul.f32 %v203, %v240
      %v243 = vmul.f32 %v204, %v240
      %v244 = vmul.f32 %v205, %v240
      %v245 = vmul.f32 %v206, %v240
      %v246 = vmul.f32 %v207, %v240
      %v247 = vmul.f32 %v208, %v240
      %v248 = vmul.f32 %v209, %v240
      %v249 = vmul.f32 %v210, %v240
      %v250 = vmul.f32 %v211, %v240
      %v251 = vmul.f32 %v212, %v240
      %v252 = vmul.f32 %v213, %v240
      %v253 = vmul.f32 %v214, %v240
      %v254 = vmul.f32 %v215, %v240
      %v255 = vmul.f32 %v216, %v240
      %v256 = vmul.f32 %v217, %v240
      %v257 = vmul.f32 %v218, %v240
      %v258 = vmul.f32 %v219, %v240
      %v259 = vmul.f32 %v220, %v240
      %v260 = vmul.f32 %v221, %v240
      %v261 = vmul.f32 %v222, %v240
      %v262 = vmul.f32 %v223, %v240
      %v263 = vmul.f32 %v224, %v240
      %v264 = vmul.f32 %v225, %v240
      %v265 = vmul.f32 %v226, %v240
      %v266 = vmul.f32 %v227, %v240
      %v267 = vmul.f32 %v228, %v240
      %v268 = vmul.f32 %v229, %v240
      %v269 = vmul.f32 %v230, %v240
      %v270 = vmul.f32 %v231, %v240
      %v271 = vmul.f32 %v232, %v240
      %v272 = vmul.f32 %v233, %v240
      %v273 = vmul.f32 %v234, %v240
      %v274 = vld [vmem:[%s2] sm:$0x1]
      %v276 = vlaneseq
      %v277 = vshrl.u32 %v276, 7
      %v278 = vsub.s32 0, %v277
      %v279 = vrot.slane %v274, %v278
      %v281 = vadd.f32 %v242, %v279
      %v282 = vadd.f32 %v243, %v279
      %v283 = vadd.f32 %v244, %v279
      %v284 = vadd.f32 %v245, %v279
      %v285 = vadd.f32 %v246, %v279
      %v286 = vadd.f32 %v247, %v279
      %v287 = vadd.f32 %v248, %v279
      %v288 = vadd.f32 %v249, %v279
      %v289 = vadd.f32 %v250, %v279
      %v290 = vadd.f32 %v251, %v279
      %v291 = vadd.f32 %v252, %v279
      %v292 = vadd.f32 %v253, %v279
      %v293 = vadd.f32 %v254, %v279
      %v294 = vadd.f32 %v255, %v279
      %v295 = vadd.f32 %v256, %v279
      %v296 = vadd.f32 %v257, %v279
      %v297 = vadd.f32 %v258, %v279
      %v298 = vadd.f32 %v259, %v279
      %v299 = vadd.f32 %v260, %v279
      %v300 = vadd.f32 %v261, %v279
      %v301 = vadd.f32 %v262, %v279
      %v302 = vadd.f32 %v263, %v279
      %v303 = vadd.f32 %v264, %v279
      %v304 = vadd.f32 %v265, %v279
      %v305 = vadd.f32 %v266, %v279
      %v306 = vadd.f32 %v267, %v279
      %v307 = vadd.f32 %v268, %v279
      %v308 = vadd.f32 %v269, %v279
      %v309 = vadd.f32 %v270, %v279
      %v310 = vadd.f32 %v271, %v279
      %v311 = vadd.f32 %v272, %v279
      %v312 = vadd.f32 %v273, %v279
      %v313 = vxor.u32 %v281, 2147483648
      %v314 = vxor.u32 %v282, 2147483648
      %v315 = vxor.u32 %v283, 2147483648
      %v316 = vxor.u32 %v284, 2147483648
      %v317 = vxor.u32 %v285, 2147483648
      %v318 = vxor.u32 %v286, 2147483648
      %v319 = vxor.u32 %v287, 2147483648
      %v320 = vxor.u32 %v288, 2147483648
      %v321 = vxor.u32 %v289, 2147483648
      %v322 = vxor.u32 %v290, 2147483648
      %v323 = vxor.u32 %v291, 2147483648
      %v324 = vxor.u32 %v292, 2147483648
      %v325 = vxor.u32 %v293, 2147483648
      %v326 = vxor.u32 %v294, 2147483648
      %v327 = vxor.u32 %v295, 2147483648
      %v328 = vxor.u32 %v296, 2147483648
      %v329 = vxor.u32 %v297, 2147483648
      %v330 = vxor.u32 %v298, 2147483648
      %v331 = vxor.u32 %v299, 2147483648
      %v332 = vxor.u32 %v300, 2147483648
      %v333 = vxor.u32 %v301, 2147483648
      %v334 = vxor.u32 %v302, 2147483648
      %v335 = vxor.u32 %v303, 2147483648
      %v336 = vxor.u32 %v304, 2147483648
      %v337 = vxor.u32 %v305, 2147483648
      %v338 = vxor.u32 %v306, 2147483648
      %v339 = vxor.u32 %v307, 2147483648
      %v340 = vxor.u32 %v308, 2147483648
      %v341 = vxor.u32 %v309, 2147483648
      %v342 = vxor.u32 %v310, 2147483648
      %v343 = vxor.u32 %v311, 2147483648
      %v344 = vxor.u32 %v312, 2147483648
      %v345 = vmul.f32 %v313, 1.442695
      %v346 = vpow.pop %v345
      %v347 = vmul.f32 %v314, 1.442695
      %v348 = vpow.pop %v347
      %v349 = vmul.f32 %v315, 1.442695
      %v350 = vpow.pop %v349
      %v351 = vmul.f32 %v316, 1.442695
      %v352 = vpow.pop %v351
      %v353 = vmul.f32 %v317, 1.442695
      %v354 = vpow.pop %v353
      %v355 = vmul.f32 %v318, 1.442695
      %v356 = vpow.pop %v355
      %v357 = vmul.f32 %v319, 1.442695
      %v358 = vpow.pop %v357
      %v359 = vmul.f32 %v320, 1.442695
      %v360 = vpow.pop %v359
      %v361 = vmul.f32 %v321, 1.442695
      %v362 = vpow.pop %v361
      %v363 = vmul.f32 %v322, 1.442695
      %v364 = vpow.pop %v363
      %v365 = vmul.f32 %v323, 1.442695
      %v366 = vpow.pop %v365
      %v367 = vmul.f32 %v324, 1.442695
      %v368 = vpow.pop %v367
      %v369 = vmul.f32 %v325, 1.442695
      %v370 = vpow.pop %v369
      %v371 = vmul.f32 %v326, 1.442695
      %v372 = vpow.pop %v371
      %v373 = vmul.f32 %v327, 1.442695
      %v374 = vpow.pop %v373
      %v375 = vmul.f32 %v328, 1.442695
      %v376 = vpow.pop %v375
      %v377 = vmul.f32 %v329, 1.442695
      %v378 = vpow.pop %v377
      %v379 = vmul.f32 %v330, 1.442695
      %v380 = vpow.pop %v379
      %v381 = vmul.f32 %v331, 1.442695
      %v382 = vpow.pop %v381
      %v383 = vmul.f32 %v332, 1.442695
      %v384 = vpow.pop %v383
      %v385 = vmul.f32 %v333, 1.442695
      %v386 = vpow.pop %v385
      %v387 = vmul.f32 %v334, 1.442695
      %v388 = vpow.pop %v387
      %v389 = vmul.f32 %v335, 1.442695
      %v390 = vpow.pop %v389
      %v391 = vmul.f32 %v336, 1.442695
      %v392 = vpow.pop %v391
      %v393 = vmul.f32 %v337, 1.442695
      %v394 = vpow.pop %v393
      %v395 = vmul.f32 %v338, 1.442695
      %v396 = vpow.pop %v395
      %v397 = vmul.f32 %v339, 1.442695
      %v398 = vpow.pop %v397
      %v399 = vmul.f32 %v340, 1.442695
      %v400 = vpow.pop %v399
      %v401 = vmul.f32 %v341, 1.442695
      %v402 = vpow.pop %v401
      %v403 = vmul.f32 %v342, 1.442695
      %v404 = vpow.pop %v403
      %v405 = vmul.f32 %v343, 1.442695
      %v406 = vpow.pop %v405
      %v407 = vmul.f32 %v344, 1.442695
      %v408 = vpow.pop %v407
      %v409 = vadd.f32 %v346, 1.0
      %v410 = vadd.f32 %v348, 1.0
      %v411 = vadd.f32 %v350, 1.0
      %v412 = vadd.f32 %v352, 1.0
      %v413 = vadd.f32 %v354, 1.0
      %v414 = vadd.f32 %v356, 1.0
      %v415 = vadd.f32 %v358, 1.0
      %v416 = vadd.f32 %v360, 1.0
      %v417 = vadd.f32 %v362, 1.0
      %v418 = vadd.f32 %v364, 1.0
      %v419 = vadd.f32 %v366, 1.0
      %v420 = vadd.f32 %v368, 1.0
      %v421 = vadd.f32 %v370, 1.0
      %v422 = vadd.f32 %v372, 1.0
      %v423 = vadd.f32 %v374, 1.0
      %v424 = vadd.f32 %v376, 1.0
      %v425 = vadd.f32 %v378, 1.0
      %v426 = vadd.f32 %v380, 1.0
      %v427 = vadd.f32 %v382, 1.0
      %v428 = vadd.f32 %v384, 1.0
      %v429 = vadd.f32 %v386, 1.0
      %v430 = vadd.f32 %v388, 1.0
      %v431 = vadd.f32 %v390, 1.0
      %v432 = vadd.f32 %v392, 1.0
      %v433 = vadd.f32 %v394, 1.0
      %v434 = vadd.f32 %v396, 1.0
      %v435 = vadd.f32 %v398, 1.0
      %v436 = vadd.f32 %v400, 1.0
      %v437 = vadd.f32 %v402, 1.0
      %v438 = vadd.f32 %v404, 1.0
      %v439 = vadd.f32 %v406, 1.0
      %v440 = vadd.f32 %v408, 1.0
      %v441 = vrcp.pop %v409
      %v442 = vmul.f32 1.0, %v441
      %v443 = vrcp.pop %v410
      %v444 = vmul.f32 1.0, %v443
      %v445 = vrcp.pop %v411
      %v446 = vmul.f32 1.0, %v445
      %v447 = vrcp.pop %v412
      %v448 = vmul.f32 1.0, %v447
      %v449 = vrcp.pop %v413
      %v450 = vmul.f32 1.0, %v449
      %v451 = vrcp.pop %v414
      %v452 = vmul.f32 1.0, %v451
      %v453 = vrcp.pop %v415
      %v454 = vmul.f32 1.0, %v453
      %v455 = vrcp.pop %v416
      %v456 = vmul.f32 1.0, %v455
      %v457 = vrcp.pop %v417
      %v458 = vmul.f32 1.0, %v457
      %v459 = vrcp.pop %v418
      %v460 = vmul.f32 1.0, %v459
      %v461 = vrcp.pop %v419
      %v462 = vmul.f32 1.0, %v461
      %v463 = vrcp.pop %v420
      %v464 = vmul.f32 1.0, %v463
      %v465 = vrcp.pop %v421
      %v466 = vmul.f32 1.0, %v465
      %v467 = vrcp.pop %v422
      %v468 = vmul.f32 1.0, %v467
      %v469 = vrcp.pop %v423
      %v470 = vmul.f32 1.0, %v469
      %v471 = vrcp.pop %v424
      %v472 = vmul.f32 1.0, %v471
      %v473 = vrcp.pop %v425
      %v474 = vmul.f32 1.0, %v473
      %v475 = vrcp.pop %v426
      %v476 = vmul.f32 1.0, %v475
      %v477 = vrcp.pop %v427
      %v478 = vmul.f32 1.0, %v477
      %v479 = vrcp.pop %v428
      %v480 = vmul.f32 1.0, %v479
      %v481 = vrcp.pop %v429
      %v482 = vmul.f32 1.0, %v481
      %v483 = vrcp.pop %v430
      %v484 = vmul.f32 1.0, %v483
      %v485 = vrcp.pop %v431
      %v486 = vmul.f32 1.0, %v485
      %v487 = vrcp.pop %v432
      %v488 = vmul.f32 1.0, %v487
      %v489 = vrcp.pop %v433
      %v490 = vmul.f32 1.0, %v489
      %v491 = vrcp.pop %v434
      %v492 = vmul.f32 1.0, %v491
      %v493 = vrcp.pop %v435
      %v494 = vmul.f32 1.0, %v493
      %v495 = vrcp.pop %v436
      %v496 = vmul.f32 1.0, %v495
      %v497 = vrcp.pop %v437
      %v498 = vmul.f32 1.0, %v497
      %v499 = vrcp.pop %v438
      %v500 = vmul.f32 1.0, %v499
      %v501 = vrcp.pop %v439
      %v502 = vmul.f32 1.0, %v501
      %v503 = vrcp.pop %v440
      %v504 = vmul.f32 1.0, %v503
      %v505 = vmul.f32 %v281, %v442
      %v506 = vmul.f32 %v282, %v444
      %v507 = vmul.f32 %v283, %v446
      %v508 = vmul.f32 %v284, %v448
      %v509 = vmul.f32 %v285, %v450
      %v510 = vmul.f32 %v286, %v452
      %v511 = vmul.f32 %v287, %v454
      %v512 = vmul.f32 %v288, %v456
      %v513 = vmul.f32 %v289, %v458
      %v514 = vmul.f32 %v290, %v460
      %v515 = vmul.f32 %v291, %v462
      %v516 = vmul.f32 %v292, %v464
      %v517 = vmul.f32 %v293, %v466
      %v518 = vmul.f32 %v294, %v468
      %v519 = vmul.f32 %v295, %v470
      %v520 = vmul.f32 %v296, %v472
      %v521 = vmul.f32 %v297, %v474
      %v522 = vmul.f32 %v298, %v476
      %v523 = vmul.f32 %v299, %v478
      %v524 = vmul.f32 %v300, %v480
      %v525 = vmul.f32 %v301, %v482
      %v526 = vmul.f32 %v302, %v484
      %v527 = vmul.f32 %v303, %v486
      %v528 = vmul.f32 %v304, %v488
      %v529 = vmul.f32 %v305, %v490
      %v530 = vmul.f32 %v306, %v492
      %v531 = vmul.f32 %v307, %v494
      %v532 = vmul.f32 %v308, %v496
      %v533 = vmul.f32 %v309, %v498
      %v534 = vmul.f32 %v310, %v500
      %v535 = vmul.f32 %v311, %v502
      %v536 = vmul.f32 %v312, %v504
      %537 = vst [vmem:[%s170] sm:$0xff] %v505
      %538 = vst [vmem:[%s170 + $0x8] sm:$0xff] %v506
      %539 = vst [vmem:[%s170 + $0x10] sm:$0xff] %v507
      %540 = vst [vmem:[%s170 + $0x18] sm:$0xff] %v508
      %541 = vst [vmem:[%s170 + $0x20] sm:$0xff] %v509
      %542 = vst [vmem:[%s170 + $0x28] sm:$0xff] %v510
      %543 = vst [vmem:[%s170 + $0x30] sm:$0xff] %v511
      %544 = vst [vmem:[%s170 + $0x38] sm:$0xff] %v512
      %545 = vst [vmem:[%s170 + $0x40] sm:$0xff] %v513
      %546 = vst [vmem:[%s170 + $0x48] sm:$0xff] %v514
      %547 = vst [vmem:[%s170 + $0x50] sm:$0xff] %v515
      %548 = vst [vmem:[%s170 + $0x58] sm:$0xff] %v516
      %549 = vst [vmem:[%s170 + $0x60] sm:$0xff] %v517
      %550 = vst [vmem:[%s170 + $0x68] sm:$0xff] %v518
      %551 = vst [vmem:[%s170 + $0x70] sm:$0xff] %v519
      %552 = vst [vmem:[%s170 + $0x78] sm:$0xff] %v520
      %553 = vst [vmem:[%s170 + $0x80] sm:$0xff] %v521
      %554 = vst [vmem:[%s170 + $0x88] sm:$0xff] %v522
      %555 = vst [vmem:[%s170 + $0x90] sm:$0xff] %v523
      %556 = vst [vmem:[%s170 + $0x98] sm:$0xff] %v524
      %557 = vst [vmem:[%s170 + $0xa0] sm:$0xff] %v525
      %558 = vst [vmem:[%s170 + $0xa8] sm:$0xff] %v526
      %559 = vst [vmem:[%s170 + $0xb0] sm:$0xff] %v527
      %560 = vst [vmem:[%s170 + $0xb8] sm:$0xff] %v528
      %561 = vst [vmem:[%s170 + $0xc0] sm:$0xff] %v529
      %562 = vst [vmem:[%s170 + $0xc8] sm:$0xff] %v530
      %563 = vst [vmem:[%s170 + $0xd0] sm:$0xff] %v531
      %564 = vst [vmem:[%s170 + $0xd8] sm:$0xff] %v532
      %565 = vst [vmem:[%s170 + $0xe0] sm:$0xff] %v533
      %566 = vst [vmem:[%s170 + $0xe8] sm:$0xff] %v534
      %567 = vst [vmem:[%s170 + $0xf0] sm:$0xff] %v535
      %568 = vst [vmem:[%s170 + $0xf8] sm:$0xff] %v536
      %p569 = scmp.lt.s32.totalorder %s14, 1
      %s570 = scalar_select %p569, %s14, 1
      %s571 = smul.addr %s570, 32
      %s572 = smul.addr %s571, 8
      %s573 = scalar_lea.vmem %s3, %s572
      // Predicated region
      $region33: #{double_conv_forward.5} parent=31 // pred_check
        %p574 = pneg %p100
      $region34: #{double_conv_forward.5} parent=31 // pred_check_branch
        %576 = sbr.rel (%p574) target = $region36
      $region35: #{double_conv_forward.5} parent=31 // pred_region
        _
      $region36: #{double_conv_forward.5} parent=31 // pred_fallthru
        _
    $region32: #{double_conv_forward.5} parent=5 // pred_fallthru
      _
    %p577 = scmp.le.s32.totalorder 2, %s9
    // Predicated region
    $region37: #{double_conv_forward.5} parent=5 // pred_check
      %p578 = pneg %p577
    $region38: #{double_conv_forward.5} parent=5 // pred_check_branch
      %580 = sbr.rel (%p578) target = $region40
    $region39: #{double_conv_forward.5} parent=5 // pred_region
      %s581 = ssub.s32 %s9, 2
      // Predicated region
      $region41: #{double_conv_forward.5} parent=39 // pred_check
        %p582 = pneg %p106
      $region42: #{double_conv_forward.5} parent=39 // pred_check_branch
        %584 = sbr.rel (%p582) target = $region44
      $region43: #{double_conv_forward.5} parent=39 // pred_region
        %p585 = scmp.lt.s32.totalorder %s15, 1
        %s586 = scalar_select %p585, %s15, 1
        %s587 = smul.addr %s586, 32
        %s588 = smul.addr %s587, 8
        %s589 = scalar_lea.vmem %s3, %s588
      $region44: #{double_conv_forward.5} parent=39 // pred_fallthru
        _
    $region40: #{double_conv_forward.5} parent=5 // pred_fallthru
      _
  $region6: #{double_conv_forward.5} parent=0 // loop_footer
    %s13 = sadd.s32 1, %s9
  $region7: #{double_conv_forward.5} parent=0 // loop_footer_branch
    %8 = sbr.rel target = $region3
  $region8: #{double_conv_forward.5} parent=0 // loop_exit
    _

// kernel: double_conv_forward.3
$region0: #{double_conv_forward.3}
  #allocation0 [shape = 'u32[]', space=smem, size = 0x4, offset = 0x4, fixed_abs, tag = 'smem constant byte address 0x4 - core index']
  #allocation1 [shape = 'u32[144,128]{1,0:T(1,128)}', space=vmem, size = 0x12000, scoped, tag = 'internal scratch']
  #allocation2 [shape = 'bf16[18,18,128]{2,1,0:T(8,128)(2,1)}', space=vmem, size = 0x1b000, scoped, tag = 'scratch operand']
  #allocation3 [shape = 'bf16[256,1152]{1,0:T(16,128)(2,1)}', space=vmem, size = 0x90000, scoped, tag = 'scratch operand']
  %s0 = inlined_call_operand.vmem [shape: bf16[2,16,16,128], index: 0, kind: input, shape index: {}]
  %s1 = inlined_call_operand.vmem [shape: f32[1,128], index: 1, kind: input, shape index: {}]
  %s2 = inlined_call_operand.vmem [shape: f32[1,128], index: 2, kind: input, shape index: {}]
  %s3 = inlined_call_operand.vmem [shape: bf16[1152,128], index: 3, kind: input, shape index: {}]
  %s4 = inlined_call_operand.vmem [shape: f32[1,128], index: 4, kind: input, shape index: {}]
  %s5 = inlined_call_operand.vmem [shape: bf16[2,16,16,128], index: 5, kind: output, shape index: {0}]
  %s6 = inlined_call_operand.vmem [shape: f32[2,8,128], index: 6, kind: output, shape index: {1}]
  %s7 = inlined_call_operand.vmem [shape: f32[2,8,128], index: 7, kind: output, shape index: {2}]
  %8 = xla_tuple %s5, %s6, %s7
  %s9 = sld [smem:[#allocation0]]
  $region69: #{double_conv_forward.3} parent=0
    _
  %s11 = ssub.s32 1, %s9
  %s12 = scalar_select 0, %s11, %s9
  loop: start=0, step=1, limit=4
  $region2: #{double_conv_forward.3} parent=0 // loop_pre_header
    _
  $region3: #{double_conv_forward.3} parent=0 // loop_header
    %s14 = sphi 0, %s18
    %p15 = scmp.ge.s32.totalorder %s14, 4
    %s24 = sphi 0, %s26
    %s27 = sphi 0, %s24
    %s28 = sphi 0, %s27
    %s44 = sphi 0, %s28
    %s48 = sphi 0, %s48
    %s50 = sphi 0, %s48
    %s51 = sphi 0, %s50
    %s65 = sphi 0, %s51
    %s69 = sphi 0, %s69
    %s71 = sphi 0, %s69
    %s72 = sphi 0, %s71
    %s86 = sphi 0, %s72
    %s90 = sphi 0, %s90
    %s92 = sphi 0, %s90
    %s93 = sphi 0, %s92
    %s107 = sphi 0, %s93
    %s111 = sphi 0, %s111
    %s113 = sphi 0, %s111
    %s114 = sphi 0, %s113
    %s128 = sphi 0, %s114
    %s134 = sphi 0, %s136
    %s137 = sphi 0, %s134
    %s138 = sphi 0, %s137
    %s154 = sphi 0, %s138
    %s160 = sphi 0, %s162
    %s163 = sphi 0, %s160
    %s164 = sphi 0, %s163
    %s180 = sphi 0, %s164
    %s186 = sphi 0, %s188
    %s189 = sphi 0, %s186
    %s190 = sphi 0, %s189
    %s206 = sphi 0, %s190
  $region4: #{double_conv_forward.3} parent=0 // loop_header_branch
    %17 = sbr.rel (%p15) target = $region8
  $region5: #{double_conv_forward.3} parent=0 // loop_body
    %s19 = ssub.s32 %s14, 1
    %s20 = ssub.s32 %s14, 2
    %s21 = sadd.s32 %s14, 1
    %s22 = ssub.s32 %s14, %s21
    %p23 = scmp.eq.s32.totalorder %s22, 0
    %s25 = sadd.s32 %s24, 1
    %s26 = scalar_select %p23, %s24, %s25
    %p29 = pneg %p23
    %p30 = scmp.eq.s32.totalorder %s14, 1
    %p31 = por %p29, %p30
    %p32 = scmp.ne.s32.totalorder %s24, %s27
    %p33 = scmp.eq.s32.totalorder %s14, 0
    %p34 = por %p32, %p33
    %p35 = scmp.ne.s32.totalorder %s24, %s27
    %p36 = scmp.eq.s32.totalorder %s19, 1
    %p37 = por %p35, %p36
    %p38 = scmp.ne.s32.totalorder %s27, %s28
    %p39 = scmp.eq.s32.totalorder %s19, 0
    %p40 = por %p38, %p39
    %p41 = scmp.ne.s32.totalorder %s27, %s28
    %p42 = scmp.eq.s32.totalorder %s20, 1
    %p43 = por %p41, %p42
    %p45 = scmp.ne.s32.totalorder %s28, %s44
    %p46 = scmp.eq.s32.totalorder %s20, 0
    %p47 = por %p45, %p46
    %s49 = sadd.s32 %s48, 1
    %p52 = scmp.eq.s32.totalorder %s14, 1
    %p53 = scmp.ne.s32.totalorder %s48, %s50
    %p54 = scmp.eq.s32.totalorder %s14, 0
    %p55 = por %p53, %p54
    %p56 = scmp.ne.s32.totalorder %s48, %s50
    %p57 = scmp.eq.s32.totalorder %s19, 1
    %p58 = por %p56, %p57
    %p59 = scmp.ne.s32.totalorder %s50, %s51
    %p60 = scmp.eq.s32.totalorder %s19, 0
    %p61 = por %p59, %p60
    %p62 = scmp.ne.s32.totalorder %s50, %s51
    %p63 = scmp.eq.s32.totalorder %s20, 1
    %p64 = por %p62, %p63
    %p66 = scmp.ne.s32.totalorder %s51, %s65
    %p67 = scmp.eq.s32.totalorder %s20, 0
    %p68 = por %p66, %p67
    %s70 = sadd.s32 %s69, 1
    %p73 = scmp.eq.s32.totalorder %s14, 1
    %p74 = scmp.ne.s32.totalorder %s69, %s71
    %p75 = scmp.eq.s32.totalorder %s14, 0
    %p76 = por %p74, %p75
    %p77 = scmp.ne.s32.totalorder %s69, %s71
    %p78 = scmp.eq.s32.totalorder %s19, 1
    %p79 = por %p77, %p78
    %p80 = scmp.ne.s32.totalorder %s71, %s72
    %p81 = scmp.eq.s32.totalorder %s19, 0
    %p82 = por %p80, %p81
    %p83 = scmp.ne.s32.totalorder %s71, %s72
    %p84 = scmp.eq.s32.totalorder %s20, 1
    %p85 = por %p83, %p84
    %p87 = scmp.ne.s32.totalorder %s72, %s86
    %p88 = scmp.eq.s32.totalorder %s20, 0
    %p89 = por %p87, %p88
    %s91 = sadd.s32 %s90, 1
    %p94 = scmp.eq.s32.totalorder %s14, 1
    %p95 = scmp.ne.s32.totalorder %s90, %s92
    %p96 = scmp.eq.s32.totalorder %s14, 0
    %p97 = por %p95, %p96
    %p98 = scmp.ne.s32.totalorder %s90, %s92
    %p99 = scmp.eq.s32.totalorder %s19, 1
    %p100 = por %p98, %p99
    %p101 = scmp.ne.s32.totalorder %s92, %s93
    %p102 = scmp.eq.s32.totalorder %s19, 0
    %p103 = por %p101, %p102
    %p104 = scmp.ne.s32.totalorder %s92, %s93
    %p105 = scmp.eq.s32.totalorder %s20, 1
    %p106 = por %p104, %p105
    %p108 = scmp.ne.s32.totalorder %s93, %s107
    %p109 = scmp.eq.s32.totalorder %s20, 0
    %p110 = por %p108, %p109
    %s112 = sadd.s32 %s111, 1
    %p115 = scmp.eq.s32.totalorder %s14, 1
    %p116 = scmp.ne.s32.totalorder %s111, %s113
    %p117 = scmp.eq.s32.totalorder %s14, 0
    %p118 = por %p116, %p117
    %p119 = scmp.ne.s32.totalorder %s111, %s113
    %p120 = scmp.eq.s32.totalorder %s19, 1
    %p121 = por %p119, %p120
    %p122 = scmp.ne.s32.totalorder %s113, %s114
    %p123 = scmp.eq.s32.totalorder %s19, 0
    %p124 = por %p122, %p123
    %p125 = scmp.ne.s32.totalorder %s113, %s114
    %p126 = scmp.eq.s32.totalorder %s20, 1
    %p127 = por %p125, %p126
    %p129 = scmp.ne.s32.totalorder %s114, %s128
    %p130 = scmp.eq.s32.totalorder %s20, 0
    %p131 = por %p129, %p130
    %s132 = ssub.s32 %s14, %s21
    %p133 = scmp.eq.s32.totalorder %s132, 0
    %s135 = sadd.s32 %s134, 1
    %s136 = scalar_select %p133, %s134, %s135
    %p139 = pneg %p133
    %p140 = scmp.eq.s32.totalorder %s14, 1
    %p141 = por %p139, %p140
    %p142 = scmp.ne.s32.totalorder %s134, %s137
    %p143 = scmp.eq.s32.totalorder %s14, 0
    %p144 = por %p142, %p143
    %p145 = scmp.ne.s32.totalorder %s134, %s137
    %p146 = scmp.eq.s32.totalorder %s19, 1
    %p147 = por %p145, %p146
    %p148 = scmp.ne.s32.totalorder %s137, %s138
    %p149 = scmp.eq.s32.totalorder %s19, 0
    %p150 = por %p148, %p149
    %p151 = scmp.ne.s32.totalorder %s137, %s138
    %p152 = scmp.eq.s32.totalorder %s20, 1
    %p153 = por %p151, %p152
    %p155 = scmp.ne.s32.totalorder %s138, %s154
    %p156 = scmp.eq.s32.totalorder %s20, 0
    %p157 = por %p155, %p156
    %s158 = ssub.s32 %s14, %s21
    %p159 = scmp.eq.s32.totalorder %s158, 0
    %s161 = sadd.s32 %s160, 1
    %s162 = scalar_select %p159, %s160, %s161
    %p165 = pneg %p159
    %p166 = scmp.eq.s32.totalorder %s14, 1
    %p167 = por %p165, %p166
    %p168 = scmp.ne.s32.totalorder %s160, %s163
    %p169 = scmp.eq.s32.totalorder %s14, 0
    %p170 = por %p168, %p169
    %p171 = scmp.ne.s32.totalorder %s160, %s163
    %p172 = scmp.eq.s32.totalorder %s19, 1
    %p173 = por %p171, %p172
    %p174 = scmp.ne.s32.totalorder %s163, %s164
    %p175 = scmp.eq.s32.totalorder %s19, 0
    %p176 = por %p174, %p175
    %p177 = scmp.ne.s32.totalorder %s163, %s164
    %p178 = scmp.eq.s32.totalorder %s20, 1
    %p179 = por %p177, %p178
    %p181 = scmp.ne.s32.totalorder %s164, %s180
    %p182 = scmp.eq.s32.totalorder %s20, 0
    %p183 = por %p181, %p182
    %s184 = ssub.s32 %s14, %s21
    %p185 = scmp.eq.s32.totalorder %s184, 0
    %s187 = sadd.s32 %s186, 1
    %s188 = scalar_select %p185, %s186, %s187
    %p191 = pneg %p185
    %p192 = scmp.eq.s32.totalorder %s14, 1
    %p193 = por %p191, %p192
    %p194 = scmp.ne.s32.totalorder %s186, %s189
    %p195 = scmp.eq.s32.totalorder %s14, 0
    %p196 = por %p194, %p195
    %p197 = scmp.ne.s32.totalorder %s186, %s189
    %p198 = scmp.eq.s32.totalorder %s19, 1
    %p199 = por %p197, %p198
    %p200 = scmp.ne.s32.totalorder %s189, %s190
    %p201 = scmp.eq.s32.totalorder %s19, 0
    %p202 = por %p200, %p201
    %p203 = scmp.ne.s32.totalorder %s189, %s190
    %p204 = scmp.eq.s32.totalorder %s20, 1
    %p205 = por %p203, %p204
    %p207 = scmp.ne.s32.totalorder %s190, %s206
    %p208 = scmp.eq.s32.totalorder %s20, 0
    %p209 = por %p207, %p208
    %p210 = scmp.le.s32.totalorder 1, %s14
    %p211 = scmp.lt.s32.totalorder %s14, 3
    %p212 = pnand %p210, %p211
    %p213 = pneg %p212
    // Predicated region
    $region9: #{double_conv_forward.3} parent=5 // pred_check
      _
    $region10: #{double_conv_forward.3} parent=5 // pred_check_branch
      %215 = sbr.rel (%p212) target = $region12
    $region11: #{double_conv_forward.3} parent=5 // pred_region
      %s216 = ssub.s32 %s14, 1
      // Predicated region
      $region13: #{double_conv_forward.3} parent=11 // pred_check
        %p217 = pneg %p61
      $region14: #{double_conv_forward.3} parent=11 // pred_check_branch
        %219 = sbr.rel (%p217) target = $region16
      $region15: #{double_conv_forward.3} parent=11 // pred_region
        _
      $region16: #{double_conv_forward.3} parent=11 // pred_fallthru
        _
      // Predicated region
      $region17: #{double_conv_forward.3} parent=11 // pred_check
        %p220 = pneg %p82
      $region18: #{double_conv_forward.3} parent=11 // pred_check_branch
        %222 = sbr.rel (%p220) target = $region20
      $region19: #{double_conv_forward.3} parent=11 // pred_region
        _
      $region20: #{double_conv_forward.3} parent=11 // pred_fallthru
        _
      // Predicated region
      $region21: #{double_conv_forward.3} parent=11 // pred_check
        %p223 = pneg %p103
      $region22: #{double_conv_forward.3} parent=11 // pred_check_branch
        %225 = sbr.rel (%p223) target = $region24
      $region23: #{double_conv_forward.3} parent=11 // pred_region
        _
      $region24: #{double_conv_forward.3} parent=11 // pred_fallthru
        _
      // Predicated region
      $region25: #{double_conv_forward.3} parent=11 // pred_check
        %p226 = pneg %p124
      $region26: #{double_conv_forward.3} parent=11 // pred_check_branch
        %228 = sbr.rel (%p226) target = $region28
      $region27: #{double_conv_forward.3} parent=11 // pred_region
        _
      $region28: #{double_conv_forward.3} parent=11 // pred_fallthru
        _
    $region12: #{double_conv_forward.3} parent=5 // pred_fallthru
      _
    %p229 = scmp.lt.s32.totalorder %s14, 2
    // Predicated region
    $region29: #{double_conv_forward.3} parent=5 // pred_check
      %p230 = pneg %p229
    $region30: #{double_conv_forward.3} parent=5 // pred_check_branch
      %232 = sbr.rel (%p230) target = $region32
    $region31: #{double_conv_forward.3} parent=5 // pred_region
      // Predicated region
      $region33: #{double_conv_forward.3} parent=31 // pred_check
        %p233 = pneg %p34
      $region34: #{double_conv_forward.3} parent=31 // pred_check_branch
        %235 = sbr.rel (%p233) target = $region36
      $region35: #{double_conv_forward.3} parent=31 // pred_region
        %p236 = scmp.lt.s32.totalorder %s14, 1
        %s237 = scalar_select %p236, %s14, 1
        %s238 = smul.addr %s237, 32
        %s239 = smul.addr %s238, 4
        %s240 = scalar_lea.vmem %s0, %s239
      $region36: #{double_conv_forward.3} parent=31 // pred_fallthru
        _
    $region32: #{double_conv_forward.3} parent=5 // pred_fallthru
      _
    %p241 = scmp.le.s32.totalorder 1, %s14
    %p242 = scmp.lt.s32.totalorder %s14, 3
    %p243 = pnand %p241, %p242
    %p244 = pneg %p243
    // Predicated region
    $region37: #{double_conv_forward.3} parent=5 // pred_check
      _
    $region38: #{double_conv_forward.3} parent=5 // pred_check_branch
      %246 = sbr.rel (%p243) target = $region40
    $region39: #{double_conv_forward.3} parent=5 // pred_region
      %s247 = ssub.s32 %s14, 1
      %p248 = scmp.lt.s32.totalorder %s19, 1
      %s249 = scalar_select %p248, %s19, 1
      %s250 = smul.addr %s249, 32
      %s251 = smul.addr %s250, 4
      %s252 = scalar_lea.vmem %s0, %s251
      %p253 = pneg %p40
      %p254 = pneg %p37
      %p255 = pneg %p61
      %p256 = pneg %p58
      %p257 = pneg %p82
      %p258 = pneg %p79
      %p259 = pneg %p103
      %p260 = pneg %p100
      %p261 = pneg %p124
      %p262 = pneg %p121
      %p263 = pneg %p150
      %p264 = pneg %p147
      %p265 = scmp.lt.s32.totalorder %s19, 1
      %s266 = scalar_select %p265, %s19, 1
      %s267 = smul.addr %s266, 32
      %s268 = smul.addr %s267, 4
      %s269 = scalar_lea.vmem %s5, %s268
      %p270 = pneg %p176
      %p271 = pneg %p173
      %p272 = scmp.lt.s32.totalorder %s19, 1
      %s273 = scalar_select %p272, %s19, 1
      %s274 = smul.addr %s273, 8
      %s275 = scalar_lea.vmem %s6, %s274
      %p276 = pneg %p202
      %p277 = pneg %p199
      %p278 = scmp.lt.s32.totalorder %s19, 1
      %s279 = scalar_select %p278, %s19, 1
      %s280 = smul.addr %s279, 8
      %s281 = scalar_lea.vmem %s7, %s280
      %p282 = scmp.lt.s32.totalorder %s19, 1
      %s283 = scalar_select %p282, %s19, 1
      %s284 = smul.addr %s283, 32
      %s285 = smul.addr %s284, 4
      %s286 = scalar_lea.vmem %s0, %s285
      %p287 = scmp.lt.s32.totalorder %s19, 1
      %s288 = scalar_select %p287, %s19, 1
      %s289 = smul.addr %s288, 32
      %s290 = smul.addr %s289, 4
      %s291 = scalar_lea.vmem %s5, %s290
      %p292 = scmp.lt.s32.totalorder %s19, 1
      %s293 = scalar_select %p292, %s19, 1
      %s294 = smul.addr %s293, 8
      %s295 = scalar_lea.vmem %s6, %s294
      %p296 = scmp.lt.s32.totalorder %s19, 1
      %s297 = scalar_select %p296, %s19, 1
      %s298 = smul.addr %s297, 8
      %s299 = scalar_lea.vmem %s7, %s298
      %v301 = vld [vmem:[%s286] sm:$0xf]
      %v302 = vld [vmem:[%s286 + $0x4] sm:$0xf]
      %v303 = vld [vmem:[%s286 + $0x8] sm:$0xf]
      %v304 = vld [vmem:[%s286 + $0xc] sm:$0xf]
      %v305 = vld [vmem:[%s286 + $0x10] sm:$0xf]
      %v306 = vld [vmem:[%s286 + $0x14] sm:$0xf]
      %v307 = vld [vmem:[%s286 + $0x18] sm:$0xf]
      %v308 = vld [vmem:[%s286 + $0x1c] sm:$0xf]
      %v309 = vld [vmem:[%s286 + $0x20] sm:$0xf]
      %v310 = vld [vmem:[%s286 + $0x24] sm:$0xf]
      %v311 = vld [vmem:[%s286 + $0x28] sm:$0xf]
      %v312 = vld [vmem:[%s286 + $0x2c] sm:$0xf]
      %v313 = vld [vmem:[%s286 + $0x30] sm:$0xf]
      %v314 = vld [vmem:[%s286 + $0x34] sm:$0xf]
      %v315 = vld [vmem:[%s286 + $0x38] sm:$0xf]
      %v316 = vld [vmem:[%s286 + $0x3c] sm:$0xf]
      %v317 = vld [vmem:[%s286 + $0x40] sm:$0xf]
      %v318 = vld [vmem:[%s286 + $0x44] sm:$0xf]
      %v319 = vld [vmem:[%s286 + $0x48] sm:$0xf]
      %v320 = vld [vmem:[%s286 + $0x4c] sm:$0xf]
      %v321 = vld [vmem:[%s286 + $0x50] sm:$0xf]
      %v322 = vld [vmem:[%s286 + $0x54] sm:$0xf]
      %v323 = vld [vmem:[%s286 + $0x58] sm:$0xf]
      %v324 = vld [vmem:[%s286 + $0x5c] sm:$0xf]
      %v325 = vld [vmem:[%s286 + $0x60] sm:$0xf]
      %v326 = vld [vmem:[%s286 + $0x64] sm:$0xf]
      %v327 = vld [vmem:[%s286 + $0x68] sm:$0xf]
      %v328 = vld [vmem:[%s286 + $0x6c] sm:$0xf]
      %v329 = vld [vmem:[%s286 + $0x70] sm:$0xf]
      %v330 = vld [vmem:[%s286 + $0x74] sm:$0xf]
      %v331 = vld [vmem:[%s286 + $0x78] sm:$0xf]
      %v332 = vld [vmem:[%s286 + $0x7c] sm:$0xf]
      %333 = vst [vmem:[#allocation2] sm:$0xf] 0
      %334 = vst [vmem:[#allocation2 + $0x4] sm:$0xf] 0
      %335 = vst [vmem:[#allocation2 + $0x8] sm:$0x1] 0
      %s336 = scalar_lea.vmem [#allocation2], 204
      %337 = vst [vmem:[%s336] sm:$0xf] 0
      %338 = vst [vmem:[%s336 + $0x4] sm:$0xf] 0
      %339 = vst [vmem:[%s336 + $0x8] sm:$0x1] 0
      %vm340 = vcmask 1040384
      %vm341 = vsmask.f32 256
      %vm342 = vmand %vm340, %vm341
      %v343 = vld [vmem:[#allocation2] sm:$0x1]
      %v344 = vsel %vm342, 0, %v343
      %345 = vst [vmem:[#allocation2] sm:$0x1] %v344
      %v346 = vld [vmem:[#allocation2 + $0xc] sm:$0x1]
      %v347 = vsel %vm342, 0, %v346
      %348 = vst [vmem:[#allocation2 + $0xc] sm:$0x1] %v347
      %v349 = vld [vmem:[#allocation2 + $0x18] sm:$0x1]
      %v350 = vsel %vm342, 0, %v349
      %351 = vst [vmem:[#allocation2 + $0x18] sm:$0x1] %v350
      %v352 = vld [vmem:[#allocation2 + $0x24] sm:$0x1]
      %v353 = vsel %vm342, 0, %v352
      %354 = vst [vmem:[#allocation2 + $0x24] sm:$0x1] %v353
      %v355 = vld [vmem:[#allocation2 + $0x30] sm:$0x1]
      %v356 = vsel %vm342, 0, %v355
      %357 = vst [vmem:[#allocation2 + $0x30] sm:$0x1] %v356
      %v358 = vld [vmem:[#allocation2 + $0x3c] sm:$0x1]
      %v359 = vsel %vm342, 0, %v358
      %360 = vst [vmem:[#allocation2 + $0x3c] sm:$0x1] %v359
      %v361 = vld [vmem:[#allocation2 + $0x48] sm:$0x1]
      %v362 = vsel %vm342, 0, %v361
      %363 = vst [vmem:[#allocation2 + $0x48] sm:$0x1] %v362
      %v364 = vld [vmem:[#allocation2 + $0x54] sm:$0x1]
      %v365 = vsel %vm342, 0, %v364
      %366 = vst [vmem:[#allocation2 + $0x54] sm:$0x1] %v365
      %v367 = vld [vmem:[#allocation2 + $0x60] sm:$0x1]
      %v368 = vsel %vm342, 0, %v367
      %369 = vst [vmem:[#allocation2 + $0x60] sm:$0x1] %v368
      %v370 = vld [vmem:[#allocation2 + $0x6c] sm:$0x1]
      %v371 = vsel %vm342, 0, %v370
      %372 = vst [vmem:[#allocation2 + $0x6c] sm:$0x1] %v371
      %v373 = vld [vmem:[#allocation2 + $0x78] sm:$0x1]
      %v374 = vsel %vm342, 0, %v373
      %375 = vst [vmem:[#allocation2 + $0x78] sm:$0x1] %v374
      %v376 = vld [vmem:[#allocation2 + $0x84] sm:$0x1]
      %v377 = vsel %vm342, 0, %v376
      %378 = vst [vmem:[#allocation2 + $0x84] sm:$0x1] %v377
      %v379 = vld [vmem:[#allocation2 + $0x90] sm:$0x1]
      %v380 = vsel %vm342, 0, %v379
      %381 = vst [vmem:[#allocation2 + $0x90] sm:$0x1] %v380
      %v382 = vld [vmem:[#allocation2 + $0x9c] sm:$0x1]
      %v383 = vsel %vm342, 0, %v382
      %384 = vst [vmem:[#allocation2 + $0x9c] sm:$0x1] %v383
      %v385 = vld [vmem:[#allocation2 + $0xa8] sm:$0x1]
      %v386 = vsel %vm342, 0, %v385
      %387 = vst [vmem:[#allocation2 + $0xa8] sm:$0x1] %v386
      %v388 = vld [vmem:[#allocation2 + $0xb4] sm:$0x1]
      %v389 = vsel %vm342, 0, %v388
      %390 = vst [vmem:[#allocation2 + $0xb4] sm:$0x1] %v389
      %v391 = vld [vmem:[#allocation2 + $0xc0] sm:$0x1]
      %v392 = vsel %vm342, 0, %v391
      %393 = vst [vmem:[#allocation2 + $0xc0] sm:$0x1] %v392
      %v394 = vld [vmem:[#allocation2 + $0xcc] sm:$0x1]
      %v395 = vsel %vm342, 0, %v394
      %396 = vst [vmem:[#allocation2 + $0xcc] sm:$0x1] %v395
      %vm397 = vsmask.f32 7938
      %vm398 = vmand %vm340, %vm397
      %v399 = vld [vmem:[#allocation2 + $0x8] sm:$0x1]
      %v400 = vsel %vm398, 0, %v399
      %401 = vst [vmem:[#allocation2 + $0x8] sm:$0x1] %v400
      %v402 = vld [vmem:[#allocation2 + $0x14] sm:$0x1]
      %v403 = vsel %vm398, 0, %v402
      %404 = vst [vmem:[#allocation2 + $0x14] sm:$0x1] %v403
      %v405 = vld [vmem:[#allocation2 + $0x20] sm:$0x1]
      %v406 = vsel %vm398, 0, %v405
      %407 = vst [vmem:[#allocation2 + $0x20] sm:$0x1] %v406
      %v408 = vld [vmem:[#allocation2 + $0x2c] sm:$0x1]
      %v409 = vsel %vm398, 0, %v408
      %410 = vst [vmem:[#allocation2 + $0x2c] sm:$0x1] %v409
      %v411 = vld [vmem:[#allocation2 + $0x38] sm:$0x1]
      %v412 = vsel %vm398, 0, %v411
      %413 = vst [vmem:[#allocation2 + $0x38] sm:$0x1] %v412
      %v414 = vld [vmem:[#allocation2 + $0x44] sm:$0x1]
      %v415 = vsel %vm398, 0, %v414
      %416 = vst [vmem:[#allocation2 + $0x44] sm:$0x1] %v415
      %v417 = vld [vmem:[#allocation2 + $0x50] sm:$0x1]
      %v418 = vsel %vm398, 0, %v417
      %419 = vst [vmem:[#allocation2 + $0x50] sm:$0x1] %v418
      %v420 = vld [vmem:[#allocation2 + $0x5c] sm:$0x1]
      %v421 = vsel %vm398, 0, %v420
      %422 = vst [vmem:[#allocation2 + $0x5c] sm:$0x1] %v421
      %v423 = vld [vmem:[#allocation2 + $0x68] sm:$0x1]
      %v424 = vsel %vm398, 0, %v423
      %425 = vst [vmem:[#allocation2 + $0x68] sm:$0x1] %v424
      %v426 = vld [vmem:[#allocation2 + $0x74] sm:$0x1]
      %v427 = vsel %vm398, 0, %v426
      %428 = vst [vmem:[#allocation2 + $0x74] sm:$0x1] %v427
      %v429 = vld [vmem:[#allocation2 + $0x80] sm:$0x1]
      %v430 = vsel %vm398, 0, %v429
      %431 = vst [vmem:[#allocation2 + $0x80] sm:$0x1] %v430
      %v432 = vld [vmem:[#allocation2 + $0x8c] sm:$0x1]
      %v433 = vsel %vm398, 0, %v432
      %434 = vst [vmem:[#allocation2 + $0x8c] sm:$0x1] %v433
      %v435 = vld [vmem:[#allocation2 + $0x98] sm:$0x1]
      %v436 = vsel %vm398, 0, %v435
      %437 = vst [vmem:[#allocation2 + $0x98] sm:$0x1] %v436
      %v438 = vld [vmem:[#allocation2 + $0xa4] sm:$0x1]
      %v439 = vsel %vm398, 0, %v438
      %440 = vst [vmem:[#allocation2 + $0xa4] sm:$0x1] %v439
      %v441 = vld [vmem:[#allocation2 + $0xb0] sm:$0x1]
      %v442 = vsel %vm398, 0, %v441
      %443 = vst [vmem:[#allocation2 + $0xb0] sm:$0x1] %v442
      %v444 = vld [vmem:[#allocation2 + $0xbc] sm:$0x1]
      %v445 = vsel %vm398, 0, %v444
      %446 = vst [vmem:[#allocation2 + $0xbc] sm:$0x1] %v445
      %v447 = vld [vmem:[#allocation2 + $0xc8] sm:$0x1]
      %v448 = vsel %vm398, 0, %v447
      %449 = vst [vmem:[#allocation2 + $0xc8] sm:$0x1] %v448
      %v450 = vld [vmem:[#allocation2 + $0xd4] sm:$0x1]
      %v451 = vsel %vm398, 0, %v450
      %452 = vst [vmem:[#allocation2 + $0xd4] sm:$0x1] %v451
      %vm453 = vsmask.f32 4368
      %vm454 = vmor %vm341, %vm453
      %v456 = vshrl.u32 %v301, 16
      %v458 = vrot.slane %v456, 7
      %v459 = vshll.u32 %v301, 16
      %v461 = vor.u32 %v458, %v459
      %v462 = vrot.slane %v458, 4
      %v464 = vshrl.u32 %v302, 16
      %v466 = vrot.slane %v464, 7
      %v467 = vshll.u32 %v302, 16
      %v469 = vor.u32 %v466, %v467
      %v470 = vsel %vm454, %v462, %v469
      %v471 = vrot.slane %v466, 4
      %v473 = vshrl.u32 %v303, 16
      %v475 = vrot.slane %v473, 7
      %v476 = vshll.u32 %v303, 16
      %v478 = vor.u32 %v475, %v476
      %v479 = vrot.slane %v475, 4
      %v481 = vshrl.u32 %v304, 16
      %v483 = vrot.slane %v481, 7
      %v484 = vshll.u32 %v304, 16
      %v486 = vor.u32 %v483, %v484
      %v487 = vsel %vm454, %v479, %v486
      %v488 = vrot.slane %v483, 4
      %v490 = vshrl.u32 %v305, 16
      %v492 = vrot.slane %v490, 7
      %v493 = vshll.u32 %v305, 16
      %v495 = vor.u32 %v492, %v493
      %v496 = vrot.slane %v492, 4
      %v498 = vshrl.u32 %v306, 16
      %v500 = vrot.slane %v498, 7
      %v501 = vshll.u32 %v306, 16
      %v503 = vor.u32 %v500, %v501
      %v504 = vsel %vm454, %v496, %v503
      %v505 = vrot.slane %v500, 4
      %v507 = vshrl.u32 %v307, 16
      %v509 = vrot.slane %v507, 7
      %v510 = vshll.u32 %v307, 16
      %v512 = vor.u32 %v509, %v510
      %v513 = vrot.slane %v509, 4
      %v515 = vshrl.u32 %v308, 16
      %v517 = vrot.slane %v515, 7
      %v518 = vshll.u32 %v308, 16
      %v520 = vor.u32 %v517, %v518
      %v521 = vsel %vm454, %v513, %v520
      %v522 = vrot.slane %v517, 4
      %v524 = vshrl.u32 %v309, 16
      %v526 = vrot.slane %v524, 7
      %v527 = vshll.u32 %v309, 16
      %v529 = vor.u32 %v526, %v527
      %v530 = vrot.slane %v526, 4
      %v532 = vshrl.u32 %v310, 16
      %v534 = vrot.slane %v532, 7
      %v535 = vshll.u32 %v310, 16
      %v537 = vor.u32 %v534, %v535
      %v538 = vsel %vm454, %v530, %v537
      %v539 = vrot.slane %v534, 4
      %v541 = vshrl.u32 %v311, 16
      %v543 = vrot.slane %v541, 7
      %v544 = vshll.u32 %v311, 16
      %v546 = vor.u32 %v543, %v544
      %v547 = vrot.slane %v543, 4
      %v549 = vshrl.u32 %v312, 16
      %v551 = vrot.slane %v549, 7
      %v552 = vshll.u32 %v312, 16
      %v554 = vor.u32 %v551, %v552
      %v555 = vsel %vm454, %v547, %v554
      %v556 = vrot.slane %v551, 4
      %v558 = vshrl.u32 %v313, 16
      %v560 = vrot.slane %v558, 7
      %v561 = vshll.u32 %v313, 16
      %v563 = vor.u32 %v560, %v561
      %v564 = vrot.slane %v560, 4
      %v566 = vshrl.u32 %v314, 16
      %v568 = vrot.slane %v566, 7
      %v569 = vshll.u32 %v314, 16
      %v571 = vor.u32 %v568, %v569
      %v572 = vsel %vm454, %v564, %v571
      %v573 = vrot.slane %v568, 4
      %v575 = vshrl.u32 %v315, 16
      %v577 = vrot.slane %v575, 7
      %v578 = vshll.u32 %v315, 16
      %v580 = vor.u32 %v577, %v578
      %v581 = vrot.slane %v577, 4
      %v583 = vshrl.u32 %v316, 16
      %v585 = vrot.slane %v583, 7
      %v586 = vshll.u32 %v316, 16
      %v588 = vor.u32 %v585, %v586
      %v589 = vsel %vm454, %v581, %v588
      %v590 = vrot.slane %v585, 4
      %v592 = vshrl.u32 %v317, 16
      %v594 = vrot.slane %v592, 7
      %v595 = vshll.u32 %v317, 16
      %v597 = vor.u32 %v594, %v595
      %v598 = vrot.slane %v594, 4
      %v600 = vshrl.u32 %v318, 16
      %v602 = vrot.slane %v600, 7
      %v603 = vshll.u32 %v318, 16
      %v605 = vor.u32 %v602, %v603
      %v606 = vsel %vm454, %v598, %v605
      %v607 = vrot.slane %v602, 4
      %v609 = vshrl.u32 %v319, 16
      %v611 = vrot.slane %v609, 7
      %v612 = vshll.u32 %v319, 16
      %v614 = vor.u32 %v611, %v612
      %v615 = vrot.slane %v611, 4
      %v617 = vshrl.u32 %v320, 16
      %v619 = vrot.slane %v617, 7
      %v620 = vshll.u32 %v320, 16
      %v622 = vor.u32 %v619, %v620
      %v623 = vsel %vm454, %v615, %v622
      %v624 = vrot.slane %v619, 4
      %v626 = vshrl.u32 %v321, 16
      %v628 = vrot.slane %v626, 7
      %v629 = vshll.u32 %v321, 16
      %v631 = vor.u32 %v628, %v629
      %v632 = vrot.slane %v628, 4
      %v634 = vshrl.u32 %v322, 16
      %v636 = vrot.slane %v634, 7
      %v637 = vshll.u32 %v322, 16
      %v639 = vor.u32 %v636, %v637
      %v640 = vsel %vm454, %v632, %v639
      %v641 = vrot.slane %v636, 4
      %v643 = vshrl.u32 %v323, 16
      %v645 = vrot.slane %v643, 7
      %v646 = vshll.u32 %v323, 16
      %v648 = vor.u32 %v645, %v646
      %v649 = vrot.slane %v645, 4
      %v651 = vshrl.u32 %v324, 16
      %v653 = vrot.slane %v651, 7
      %v654 = vshll.u32 %v324, 16
      %v656 = vor.u32 %v653, %v654
      %v657 = vsel %vm454, %v649, %v656
      %v658 = vrot.slane %v653, 4
      %v660 = vshrl.u32 %v325, 16
      %v662 = vrot.slane %v660, 7
      %v663 = vshll.u32 %v325, 16
      %v665 = vor.u32 %v662, %v663
      %v666 = vrot.slane %v662, 4
      %v668 = vshrl.u32 %v326, 16
      %v670 = vrot.slane %v668, 7
      %v671 = vshll.u32 %v326, 16
      %v673 = vor.u32 %v670, %v671
      %v674 = vsel %vm454, %v666, %v673
      %v675 = vrot.slane %v670, 4
      %v677 = vshrl.u32 %v327, 16
      %v679 = vrot.slane %v677, 7
      %v680 = vshll.u32 %v327, 16
      %v682 = vor.u32 %v679, %v680
      %v683 = vrot.slane %v679, 4
      %v685 = vshrl.u32 %v328, 16
      %v687 = vrot.slane %v685, 7
      %v688 = vshll.u32 %v328, 16
      %v690 = vor.u32 %v687, %v688
      %v691 = vsel %vm454, %v683, %v690
      %v692 = vrot.slane %v687, 4
      %v694 = vshrl.u32 %v329, 16
      %v696 = vrot.slane %v694, 7
      %v697 = vshll.u32 %v329, 16
      %v699 = vor.u32 %v696, %v697
      %v700 = vrot.slane %v696, 4
      %v702 = vshrl.u32 %v330, 16
      %v704 = vrot.slane %v702, 7
      %v705 = vshll.u32 %v330, 16
      %v707 = vor.u32 %v704, %v705
      %v708 = vsel %vm454, %v700, %v707
      %v709 = vrot.slane %v704, 4
      %v711 = vshrl.u32 %v331, 16
      %v713 = vrot.slane %v711, 7
      %v714 = vshll.u32 %v331, 16
      %v716 = vor.u32 %v713, %v714
      %v717 = vrot.slane %v713, 4
      %v719 = vshrl.u32 %v332, 16
      %v721 = vrot.slane %v719, 7
      %v722 = vshll.u32 %v332, 16
      %v724 = vor.u32 %v721, %v722
      %v725 = vsel %vm454, %v717, %v724
      %v726 = vrot.slane %v721, 4
      %s775 = scalar_lea.vmem [#allocation2], 12
      %vm776 = vcmask 1043456
      %vm777 = vmand %vm776, %vm397
      %v778 = vld [vmem:[%s775] sm:$0xf]
      %v779 = vsel %vm777, %v461, %v778
      %780 = vst [vmem:[%s775] sm:$0xf] %v779
      %781 = vst [vmem:[%s775 + $0x4] sm:$0xf] %v470
      %v782 = vld [vmem:[%s775 + $0x8] sm:$0x1]
      %v783 = vsel %vm342, %v471, %v782
      %784 = vst [vmem:[%s775 + $0x8] sm:$0x1] %v783
      %v785 = vld [vmem:[%s775 + $0xc] sm:$0xf]
      %v786 = vsel %vm777, %v478, %v785
      %787 = vst [vmem:[%s775 + $0xc] sm:$0xf] %v786
      %788 = vst [vmem:[%s775 + $0x10] sm:$0xf] %v487
      %v789 = vld [vmem:[%s775 + $0x14] sm:$0x1]
      %v790 = vsel %vm342, %v488, %v789
      %791 = vst [vmem:[%s775 + $0x14] sm:$0x1] %v790
      %v792 = vld [vmem:[%s775 + $0x18] sm:$0xf]
      %v793 = vsel %vm777, %v495, %v792
      %794 = vst [vmem:[%s775 + $0x18] sm:$0xf] %v793
      %795 = vst [vmem:[%s775 + $0x1c] sm:$0xf] %v504
      %v796 = vld [vmem:[%s775 + $0x20] sm:$0x1]
      %v797 = vsel %vm342, %v505, %v796
      %798 = vst [vmem:[%s775 + $0x20] sm:$0x1] %v797
      %v799 = vld [vmem:[%s775 + $0x24] sm:$0xf]
      %v800 = vsel %vm777, %v512, %v799
      %801 = vst [vmem:[%s775 + $0x24] sm:$0xf] %v800
      %802 = vst [vmem:[%s775 + $0x28] sm:$0xf] %v521
      %v803 = vld [vmem:[%s775 + $0x2c] sm:$0x1]
      %v804 = vsel %vm342, %v522, %v803
      %805 = vst [vmem:[%s775 + $0x2c] sm:$0x1] %v804
      %v806 = vld [vmem:[%s775 + $0x30] sm:$0xf]
      %v807 = vsel %vm777, %v529, %v806
      %808 = vst [vmem:[%s775 + $0x30] sm:$0xf] %v807
      %809 = vst [vmem:[%s775 + $0x34] sm:$0xf] %v538
      %v810 = vld [vmem:[%s775 + $0x38] sm:$0x1]
      %v811 = vsel %vm342, %v539, %v810
      %812 = vst [vmem:[%s775 + $0x38] sm:$0x1] %v811
      %v813 = vld [vmem:[%s775 + $0x3c] sm:$0xf]
      %v814 = vsel %vm777, %v546, %v813
      %815 = vst [vmem:[%s775 + $0x3c] sm:$0xf] %v814
      %816 = vst [vmem:[%s775 + $0x40] sm:$0xf] %v555
      %v817 = vld [vmem:[%s775 + $0x44] sm:$0x1]
      %v818 = vsel %vm342, %v556, %v817
      %819 = vst [vmem:[%s775 + $0x44] sm:$0x1] %v818
      %v820 = vld [vmem:[%s775 + $0x48] sm:$0xf]
      %v821 = vsel %vm777, %v563, %v820
      %822 = vst [vmem:[%s775 + $0x48] sm:$0xf] %v821
      %823 = vst [vmem:[%s775 + $0x4c] sm:$0xf] %v572
      %v824 = vld [vmem:[%s775 + $0x50] sm:$0x1]
      %v825 = vsel %vm342, %v573, %v824
      %826 = vst [vmem:[%s775 + $0x50] sm:$0x1] %v825
      %v827 = vld [vmem:[%s775 + $0x54] sm:$0xf]
      %v828 = vsel %vm777, %v580, %v827
      %829 = vst [vmem:[%s775 + $0x54] sm:$0xf] %v828
      %830 = vst [vmem:[%s775 + $0x58] sm:$0xf] %v589
      %v831 = vld [vmem:[%s775 + $0x5c] sm:$0x1]
      %v832 = vsel %vm342, %v590, %v831
      %833 = vst [vmem:[%s775 + $0x5c] sm:$0x1] %v832
      %v834 = vld [vmem:[%s775 + $0x60] sm:$0xf]
      %v835 = vsel %vm777, %v597, %v834
      %836 = vst [vmem:[%s775 + $0x60] sm:$0xf] %v835
      %837 = vst [vmem:[%s775 + $0x64] sm:$0xf] %v606
      %v838 = vld [vmem:[%s775 + $0x68] sm:$0x1]
      %v839 = vsel %vm342, %v607, %v838
      %840 = vst [vmem:[%s775 + $0x68] sm:$0x1] %v839
      %v841 = vld [vmem:[%s775 + $0x6c] sm:$0xf]
      %v842 = vsel %vm777, %v614, %v841
      %843 = vst [vmem:[%s775 + $0x6c] sm:$0xf] %v842
      %844 = vst [vmem:[%s775 + $0x70] sm:$0xf] %v623
      %v845 = vld [vmem:[%s775 + $0x74] sm:$0x1]
      %v846 = vsel %vm342, %v624, %v845
      %847 = vst [vmem:[%s775 + $0x74] sm:$0x1] %v846
      %v848 = vld [vmem:[%s775 + $0x78] sm:$0xf]
      %v849 = vsel %vm777, %v631, %v848
      %850 = vst [vmem:[%s775 + $0x78] sm:$0xf] %v849
      %851 = vst [vmem:[%s775 + $0x7c] sm:$0xf] %v640
      %v852 = vld [vmem:[%s775 + $0x80] sm:$0x1]
      %v853 = vsel %vm342, %v641, %v852
      %854 = vst [vmem:[%s775 + $0x80] sm:$0x1] %v853
      %v855 = vld [vmem:[%s775 + $0x84] sm:$0xf]
      %v856 = vsel %vm777, %v648, %v855
      %857 = vst [vmem:[%s775 + $0x84] sm:$0xf] %v856
      %858 = vst [vmem:[%s775 + $0x88] sm:$0xf] %v657
      %v859 = vld [vmem:[%s775 + $0x8c] sm:$0x1]
      %v860 = vsel %vm342, %v658, %v859
      %861 = vst [vmem:[%s775 + $0x8c] sm:$0x1] %v860
      %v862 = vld [vmem:[%s775 + $0x90] sm:$0xf]
      %v863 = vsel %vm777, %v665, %v862
      %864 = vst [vmem:[%s775 + $0x90] sm:$0xf] %v863
      %865 = vst [vmem:[%s775 + $0x94] sm:$0xf] %v674
      %v866 = vld [vmem:[%s775 + $0x98] sm:$0x1]
      %v867 = vsel %vm342, %v675, %v866
      %868 = vst [vmem:[%s775 + $0x98] sm:$0x1] %v867
      %v869 = vld [vmem:[%s775 + $0x9c] sm:$0xf]
      %v870 = vsel %vm777, %v682, %v869
      %871 = vst [vmem:[%s775 + $0x9c] sm:$0xf] %v870
      %872 = vst [vmem:[%s775 + $0xa0] sm:$0xf] %v691
      %v873 = vld [vmem:[%s775 + $0xa4] sm:$0x1]
      %v874 = vsel %vm342, %v692, %v873
      %875 = vst [vmem:[%s775 + $0xa4] sm:$0x1] %v874
      %v876 = vld [vmem:[%s775 + $0xa8] sm:$0xf]
      %v877 = vsel %vm777, %v699, %v876
      %878 = vst [vmem:[%s775 + $0xa8] sm:$0xf] %v877
      %879 = vst [vmem:[%s775 + $0xac] sm:$0xf] %v708
      %v880 = vld [vmem:[%s775 + $0xb0] sm:$0x1]
      %v881 = vsel %vm342, %v709, %v880
      %882 = vst [vmem:[%s775 + $0xb0] sm:$0x1] %v881
      %v883 = vld [vmem:[%s775 + $0xb4] sm:$0xf]
      %v884 = vsel %vm777, %v716, %v883
      %885 = vst [vmem:[%s775 + $0xb4] sm:$0xf] %v884
      %886 = vst [vmem:[%s775 + $0xb8] sm:$0xf] %v725
      %v887 = vld [vmem:[%s775 + $0xbc] sm:$0x1]
      %v888 = vsel %vm342, %v726, %v887
      %889 = vst [vmem:[%s775 + $0xbc] sm:$0x1] %v888
      %v890 = vld [vmem:[#allocation2] sm:$0xf]
      %v891 = vld [vmem:[#allocation2 + $0x4] sm:$0xf]
      %v892 = vld [vmem:[#allocation2 + $0xc] sm:$0xf]
      %v893 = vld [vmem:[#allocation2 + $0x10] sm:$0xf]
      %v894 = vld [vmem:[#allocation2 + $0x18] sm:$0xf]
      %v895 = vld [vmem:[#allocation2 + $0x1c] sm:$0xf]
      %v896 = vld [vmem:[#allocation2 + $0x24] sm:$0xf]
      %v897 = vld [vmem:[#allocation2 + $0x28] sm:$0xf]
      %v898 = vld [vmem:[#allocation2 + $0x30] sm:$0xf]
      %v899 = vld [vmem:[#allocation2 + $0x34] sm:$0xf]
      %v900 = vld [vmem:[#allocation2 + $0x3c] sm:$0xf]
      %v901 = vld [vmem:[#allocation2 + $0x40] sm:$0xf]
      %v902 = vld [vmem:[#allocation2 + $0x48] sm:$0xf]
      %v903 = vld [vmem:[#allocation2 + $0x4c] sm:$0xf]
      %v904 = vld [vmem:[#allocation2 + $0x54] sm:$0xf]
      %v905 = vld [vmem:[#allocation2 + $0x58] sm:$0xf]
      %v906 = vld [vmem:[#allocation2 + $0x60] sm:$0xf]
      %v907 = vld [vmem:[#allocation2 + $0x64] sm:$0xf]
      %v908 = vld [vmem:[#allocation2 + $0x6c] sm:$0xf]
      %v909 = vld [vmem:[#allocation2 + $0x70] sm:$0xf]
      %v910 = vld [vmem:[#allocation2 + $0x78] sm:$0xf]
      %v911 = vld [vmem:[#allocation2 + $0x7c] sm:$0xf]
      %v912 = vld [vmem:[#allocation2 + $0x84] sm:$0xf]
      %v913 = vld [vmem:[#allocation2 + $0x88] sm:$0xf]
      %v914 = vld [vmem:[#allocation2 + $0x90] sm:$0xf]
      %v915 = vld [vmem:[#allocation2 + $0x94] sm:$0xf]
      %v916 = vld [vmem:[#allocation2 + $0x9c] sm:$0xf]
      %v917 = vld [vmem:[#allocation2 + $0xa0] sm:$0xf]
      %v918 = vld [vmem:[#allocation2 + $0xa8] sm:$0xf]
      %v919 = vld [vmem:[#allocation2 + $0xac] sm:$0xf]
      %v920 = vld [vmem:[#allocation2 + $0xb4] sm:$0xf]
      %v921 = vld [vmem:[#allocation2 + $0xb8] sm:$0xf]
      %v954 = vunpack.c.l.b16 %v890
      %v955 = vunpack.c.l.b16 %v891
      %v956 = vunpack.c.l.b16 %v892
      %v957 = vunpack.c.l.b16 %v893
      %v958 = vunpack.c.l.b16 %v894
      %v959 = vunpack.c.l.b16 %v895
      %v960 = vunpack.c.l.b16 %v896
      %v961 = vunpack.c.l.b16 %v897
      %v962 = vunpack.c.l.b16 %v898
      %v963 = vunpack.c.l.b16 %v899
      %v964 = vunpack.c.l.b16 %v900
      %v965 = vunpack.c.l.b16 %v901
      %v966 = vunpack.c.l.b16 %v902
      %v967 = vunpack.c.l.b16 %v903
      %v968 = vunpack.c.l.b16 %v904
      %v969 = vunpack.c.l.b16 %v905
      %v970 = vunpack.c.l.b16 %v906
      %v971 = vunpack.c.l.b16 %v907
      %v972 = vunpack.c.l.b16 %v908
      %v973 = vunpack.c.l.b16 %v909
      %v974 = vunpack.c.l.b16 %v910
      %v975 = vunpack.c.l.b16 %v911
      %v976 = vunpack.c.l.b16 %v912
      %v977 = vunpack.c.l.b16 %v913
      %v978 = vunpack.c.l.b16 %v914
      %v979 = vunpack.c.l.b16 %v915
      %v980 = vunpack.c.l.b16 %v916
      %v981 = vunpack.c.l.b16 %v917
      %v982 = vunpack.c.l.b16 %v918
      %v983 = vunpack.c.l.b16 %v919
      %v984 = vunpack.c.l.b16 %v920
      %v985 = vunpack.c.l.b16 %v921
      %v986 = vpack.c.b16 %v955, %v954
      %v987 = vpack.c.b16 %v957, %v956
      %v988 = vpack.c.b16 %v959, %v958
      %v989 = vpack.c.b16 %v961, %v960
      %v990 = vpack.c.b16 %v963, %v962
      %v991 = vpack.c.b16 %v965, %v964
      %v992 = vpack.c.b16 %v967, %v966
      %v993 = vpack.c.b16 %v969, %v968
      %v994 = vpack.c.b16 %v971, %v970
      %v995 = vpack.c.b16 %v973, %v972
      %v996 = vpack.c.b16 %v975, %v974
      %v997 = vpack.c.b16 %v977, %v976
      %v998 = vpack.c.b16 %v979, %v978
      %v999 = vpack.c.b16 %v981, %v980
      %v1000 = vpack.c.b16 %v983, %v982
      %v1001 = vpack.c.b16 %v985, %v984
      %1018 = vst [vmem:[#allocation3] sm:$0xff] %v986
      %1019 = vst [vmem:[#allocation3 + $0x48] sm:$0xff] %v987
      %1020 = vst [vmem:[#allocation3 + $0x90] sm:$0xff] %v988
      %1021 = vst [vmem:[#allocation3 + $0xd8] sm:$0xff] %v989
      %1022 = vst [vmem:[#allocation3 + $0x120] sm:$0xff] %v990
      %1023 = vst [vmem:[#allocation3 + $0x168] sm:$0xff] %v991
      %1024 = vst [vmem:[#allocation3 + $0x1b0] sm:$0xff] %v992
      %1025 = vst [vmem:[#allocation3 + $0x1f8] sm:$0xff] %v993
      %1026 = vst [vmem:[#allocation3 + $0x240] sm:$0xff] %v994
      %1027 = vst [vmem:[#allocation3 + $0x288] sm:$0xff] %v995
      %1028 = vst [vmem:[#allocation3 + $0x2d0] sm:$0xff] %v996
      %1029 = vst [vmem:[#allocation3 + $0x318] sm:$0xff] %v997
      %1030 = vst [vmem:[#allocation3 + $0x360] sm:$0xff] %v998
      %1031 = vst [vmem:[#allocation3 + $0x3a8] sm:$0xff] %v999
      %1032 = vst [vmem:[#allocation3 + $0x3f0] sm:$0xff] %v1000
      %1033 = vst [vmem:[#allocation3 + $0x438] sm:$0xff] %v1001
      %v1034 = vld [vmem:[#allocation2] sm:$0xf]
      %v1035 = vld [vmem:[#allocation2 + $0x4] sm:$0xf]
      %v1036 = vld [vmem:[#allocation2 + $0x8] sm:$0x1]
      %v1037 = vld [vmem:[#allocation2 + $0xc] sm:$0xf]
      %v1038 = vld [vmem:[#allocation2 + $0x10] sm:$0xf]
      %v1039 = vld [vmem:[#allocation2 + $0x14] sm:$0x1]
      %v1040 = vld [vmem:[#allocation2 + $0x18] sm:$0xf]
      %v1041 = vld [vmem:[#allocation2 + $0x1c] sm:$0xf]
      %v1042 = vld [vmem:[#allocation2 + $0x20] sm:$0x1]
      %v1043 = vld [vmem:[#allocation2 + $0x24] sm:$0xf]
      %v1044 = vld [vmem:[#allocation2 + $0x28] sm:$0xf]
      %v1045 = vld [vmem:[#allocation2 + $0x2c] sm:$0x1]
      %v1046 = vld [vmem:[#allocation2 + $0x30] sm:$0xf]
      %v1047 = vld [vmem:[#allocation2 + $0x34] sm:$0xf]
      %v1048 = vld [vmem:[#allocation2 + $0x38] sm:$0x1]
      %v1049 = vld [vmem:[#allocation2 + $0x3c] sm:$0xf]
      %v1050 = vld [vmem:[#allocation2 + $0x40] sm:$0xf]
      %v1051 = vld [vmem:[#allocation2 + $0x44] sm:$0x1]
      %v1052 = vld [vmem:[#allocation2 + $0x48] sm:$0xf]
      %v1053 = vld [vmem:[#allocation2 + $0x4c] sm:$0xf]
      %v1054 = vld [vmem:[#allocation2 + $0x50] sm:$0x1]
      %v1055 = vld [vmem:[#allocation2 + $0x54] sm:$0xf]
      %v1056 = vld [vmem:[#allocation2 + $0x58] sm:$0xf]
      %v1057 = vld [vmem:[#allocation2 + $0x5c] sm:$0x1]
      %v1058 = vld [vmem:[#allocation2 + $0x60] sm:$0xf]
      %v1059 = vld [vmem:[#allocation2 + $0x64] sm:$0xf]
      %v1060 = vld [vmem:[#allocation2 + $0x68] sm:$0x1]
      %v1061 = vld [vmem:[#allocation2 + $0x6c] sm:$0xf]
      %v1062 = vld [vmem:[#allocation2 + $0x70] sm:$0xf]
      %v1063 = vld [vmem:[#allocation2 + $0x74] sm:$0x1]
      %v1064 = vld [vmem:[#allocation2 + $0x78] sm:$0xf]
      %v1065 = vld [vmem:[#allocation2 + $0x7c] sm:$0xf]
      %v1066 = vld [vmem:[#allocation2 + $0x80] sm:$0x1]
      %v1067 = vld [vmem:[#allocation2 + $0x84] sm:$0xf]
      %v1068 = vld [vmem:[#allocation2 + $0x88] sm:$0xf]
      %v1069 = vld [vmem:[#allocation2 + $0x8c] sm:$0x1]
      %v1070 = vld [vmem:[#allocation2 + $0x90] sm:$0xf]
      %v1071 = vld [vmem:[#allocation2 + $0x94] sm:$0xf]
      %v1072 = vld [vmem:[#allocation2 + $0x98] sm:$0x1]
      %v1073 = vld [vmem:[#allocation2 + $0x9c] sm:$0xf]
      %v1074 = vld [vmem:[#allocation2 + $0xa0] sm:$0xf]
      %v1075 = vld [vmem:[#allocation2 + $0xa4] sm:$0x1]
      %v1076 = vld [vmem:[#allocation2 + $0xa8] sm:$0xf]
      %v1077 = vld [vmem:[#allocation2 + $0xac] sm:$0xf]
      %v1078 = vld [vmem:[#allocation2 + $0xb0] sm:$0x1]
      %v1079 = vld [vmem:[#allocation2 + $0xb4] sm:$0xf]
      %v1080 = vld [vmem:[#allocation2 + $0xb8] sm:$0xf]
      %v1081 = vld [vmem:[#allocation2 + $0xbc] sm:$0x1]
      %vm1082 = vsmask.f32 3328
      %vm1083 = vsmask.f32 7440
      %vm1084 = vmor %vm1082, %vm1083
      %v1086 = vshrl.u32 %v1034, 16
      %v1088 = vrot.slane %v1086, 4
      %v1089 = vshll.u32 %v1034, 16
      %v1091 = vrot.slane %v1089, 5
      %v1092 = vor.u32 %v1088, %v1091
      %v1093 = vrot.slane %v1092, 4
      %v1095 = vshll.u32 %v1035, 16
      %v1097 = vrot.slane %v1095, 5
      %v1098 = vsel %vm1084, %v1093, %v1097
      %v1099 = vshrl.u32 %v1035, 16
      %v1101 = vrot.slane %v1099, 4
      %v1102 = vor.u32 %v1101, %v1097
      %v1103 = vrot.slane %v1102, 4
      %v1105 = vshll.u32 %v1036, 16
      %v1107 = vrot.slane %v1105, 5
      %v1108 = vsel %vm1084, %v1103, %v1107
      %v1110 = vshrl.u32 %v1037, 16
      %v1112 = vrot.slane %v1110, 4
      %v1113 = vshll.u32 %v1037, 16
      %v1115 = vrot.slane %v1113, 5
      %v1116 = vor.u32 %v1112, %v1115
      %v1117 = vrot.slane %v1116, 4
      %v1119 = vshll.u32 %v1038, 16
      %v1121 = vrot.slane %v1119, 5
      %v1122 = vsel %vm1084, %v1117, %v1121
      %v1123 = vshrl.u32 %v1038, 16
      %v1125 = vrot.slane %v1123, 4
      %v1126 = vor.u32 %v1125, %v1121
      %v1127 = vrot.slane %v1126, 4
      %v1129 = vshll.u32 %v1039, 16
      %v1131 = vrot.slane %v1129, 5
      %v1132 = vsel %vm1084, %v1127, %v1131
      %v1134 = vshrl.u32 %v1040, 16
      %v1136 = vrot.slane %v1134, 4
      %v1137 = vshll.u32 %v1040, 16
      %v1139 = vrot.slane %v1137, 5
      %v1140 = vor.u32 %v1136, %v1139
      %v1141 = vrot.slane %v1140, 4
      %v1143 = vshll.u32 %v1041, 16
      %v1145 = vrot.slane %v1143, 5
      %v1146 = vsel %vm1084, %v1141, %v1145
      %v1147 = vshrl.u32 %v1041, 16
      %v1149 = vrot.slane %v1147, 4
      %v1150 = vor.u32 %v1149, %v1145
      %v1151 = vrot.slane %v1150, 4
      %v1153 = vshll.u32 %v1042, 16
      %v1155 = vrot.slane %v1153, 5
      %v1156 = vsel %vm1084, %v1151, %v1155
      %v1158 = vshrl.u32 %v1043, 16
      %v1160 = vrot.slane %v1158, 4
      %v1161 = vshll.u32 %v1043, 16
      %v1163 = vrot.slane %v1161, 5
      %v1164 = vor.u32 %v1160, %v1163
      %v1165 = vrot.slane %v1164, 4
      %v1167 = vshll.u32 %v1044, 16
      %v1169 = vrot.slane %v1167, 5
      %v1170 = vsel %vm1084, %v1165, %v1169
      %v1171 = vshrl.u32 %v1044, 16
      %v1173 = vrot.slane %v1171, 4
      %v1174 = vor.u32 %v1173, %v1169
      %v1175 = vrot.slane %v1174, 4
      %v1177 = vshll.u32 %v1045, 16
      %v1179 = vrot.slane %v1177, 5
      %v1180 = vsel %vm1084, %v1175, %v1179
      %v1182 = vshrl.u32 %v1046, 16
      %v1184 = vrot.slane %v1182, 4
      %v1185 = vshll.u32 %v1046, 16
      %v1187 = vrot.slane %v1185, 5
      %v1188 = vor.u32 %v1184, %v1187
      %v1189 = vrot.slane %v1188, 4
      %v1191 = vshll.u32 %v1047, 16
      %v1193 = vrot.slane %v1191, 5
      %v1194 = vsel %vm1084, %v1189, %v1193
      %v1195 = vshrl.u32 %v1047, 16
      %v1197 = vrot.slane %v1195, 4
      %v1198 = vor.u32 %v1197, %v1193
      %v1199 = vrot.slane %v1198, 4
      %v1201 = vshll.u32 %v1048, 16
      %v1203 = vrot.slane %v1201, 5
      %v1204 = vsel %vm1084, %v1199, %v1203
      %v1206 = vshrl.u32 %v1049, 16
      %v1208 = vrot.slane %v1206, 4
      %v1209 = vshll.u32 %v1049, 16
      %v1211 = vrot.slane %v1209, 5
      %v1212 = vor.u32 %v1208, %v1211
      %v1213 = vrot.slane %v1212, 4
      %v1215 = vshll.u32 %v1050, 16
      %v1217 = vrot.slane %v1215, 5
      %v1218 = vsel %vm1084, %v1213, %v1217
      %v1219 = vshrl.u32 %v1050, 16
      %v1221 = vrot.slane %v1219, 4
      %v1222 = vor.u32 %v1221, %v1217
      %v1223 = vrot.slane %v1222, 4
      %v1225 = vshll.u32 %v1051, 16
      %v1227 = vrot.slane %v1225, 5
      %v1228 = vsel %vm1084, %v1223, %v1227
      %v1230 = vshrl.u32 %v1052, 16
      %v1232 = vrot.slane %v1230, 4
      %v1233 = vshll.u32 %v1052, 16
      %v1235 = vrot.slane %v1233, 5
      %v1236 = vor.u32 %v1232, %v1235
      %v1237 = vrot.slane %v1236, 4
      %v1239 = vshll.u32 %v1053, 16
      %v1241 = vrot.slane %v1239, 5
      %v1242 = vsel %vm1084, %v1237, %v1241
      %v1243 = vshrl.u32 %v1053, 16
      %v1245 = vrot.slane %v1243, 4
      %v1246 = vor.u32 %v1245, %v1241
      %v1247 = vrot.slane %v1246, 4
      %v1249 = vshll.u32 %v1054, 16
      %v1251 = vrot.slane %v1249, 5
      %v1252 = vsel %vm1084, %v1247, %v1251
      %v1254 = vshrl.u32 %v1055, 16
      %v1256 = vrot.slane %v1254, 4
      %v1257 = vshll.u32 %v1055, 16
      %v1259 = vrot.slane %v1257, 5
      %v1260 = vor.u32 %v1256, %v1259
      %v1261 = vrot.slane %v1260, 4
      %v1263 = vshll.u32 %v1056, 16
      %v1265 = vrot.slane %v1263, 5
      %v1266 = vsel %vm1084, %v1261, %v1265
      %v1267 = vshrl.u32 %v1056, 16
      %v1269 = vrot.slane %v1267, 4
      %v1270 = vor.u32 %v1269, %v1265
      %v1271 = vrot.slane %v1270, 4
      %v1273 = vshll.u32 %v1057, 16
      %v1275 = vrot.slane %v1273, 5
      %v1276 = vsel %vm1084, %v1271, %v1275
      %v1278 = vshrl.u32 %v1058, 16
      %v1280 = vrot.slane %v1278, 4
      %v1281 = vshll.u32 %v1058, 16
      %v1283 = vrot.slane %v1281, 5
      %v1284 = vor.u32 %v1280, %v1283
      %v1285 = vrot.slane %v1284, 4
      %v1287 = vshll.u32 %v1059, 16
      %v1289 = vrot.slane %v1287, 5
      %v1290 = vsel %vm1084, %v1285, %v1289
      %v1291 = vshrl.u32 %v1059, 16
      %v1293 = vrot.slane %v1291, 4
      %v1294 = vor.u32 %v1293, %v1289
      %v1295 = vrot.slane %v1294, 4
      %v1297 = vshll.u32 %v1060, 16
      %v1299 = vrot.slane %v1297, 5
      %v1300 = vsel %vm1084, %v1295, %v1299
      %v1302 = vshrl.u32 %v1061, 16
      %v1304 = vrot.slane %v1302, 4
      %v1305 = vshll.u32 %v1061, 16
      %v1307 = vrot.slane %v1305, 5
      %v1308 = vor.u32 %v1304, %v1307
      %v1309 = vrot.slane %v1308, 4
      %v1311 = vshll.u32 %v1062, 16
      %v1313 = vrot.slane %v1311, 5
      %v1314 = vsel %vm1084, %v1309, %v1313
      %v1315 = vshrl.u32 %v1062, 16
      %v1317 = vrot.slane %v1315, 4
      %v1318 = vor.u32 %v1317, %v1313
      %v1319 = vrot.slane %v1318, 4
      %v1321 = vshll.u32 %v1063, 16
      %v1323 = vrot.slane %v1321, 5
      %v1324 = vsel %vm1084, %v1319, %v1323
      %v1326 = vshrl.u32 %v1064, 16
      %v1328 = vrot.slane %v1326, 4
      %v1329 = vshll.u32 %v1064, 16
      %v1331 = vrot.slane %v1329, 5
      %v1332 = vor.u32 %v1328, %v1331
      %v1333 = vrot.slane %v1332, 4
      %v1335 = vshll.u32 %v1065, 16
      %v1337 = vrot.slane %v1335, 5
      %v1338 = vsel %vm1084, %v1333, %v1337
      %v1339 = vshrl.u32 %v1065, 16
      %v1341 = vrot.slane %v1339, 4
      %v1342 = vor.u32 %v1341, %v1337
      %v1343 = vrot.slane %v1342, 4
      %v1345 = vshll.u32 %v1066, 16
      %v1347 = vrot.slane %v1345, 5
      %v1348 = vsel %vm1084, %v1343, %v1347
      %v1350 = vshrl.u32 %v1067, 16
      %v1352 = vrot.slane %v1350, 4
      %v1353 = vshll.u32 %v1067, 16
      %v1355 = vrot.slane %v1353, 5
      %v1356 = vor.u32 %v1352, %v1355
      %v1357 = vrot.slane %v1356, 4
      %v1359 = vshll.u32 %v1068, 16
      %v1361 = vrot.slane %v1359, 5
      %v1362 = vsel %vm1084, %v1357, %v1361
      %v1363 = vshrl.u32 %v1068, 16
      %v1365 = vrot.slane %v1363, 4
      %v1366 = vor.u32 %v1365, %v1361
      %v1367 = vrot.slane %v1366, 4
      %v1369 = vshll.u32 %v1069, 16
      %v1371 = vrot.slane %v1369, 5
      %v1372 = vsel %vm1084, %v1367, %v1371
      %v1374 = vshrl.u32 %v1070, 16
      %v1376 = vrot.slane %v1374, 4
      %v1377 = vshll.u32 %v1070, 16
      %v1379 = vrot.slane %v1377, 5
      %v1380 = vor.u32 %v1376, %v1379
      %v1381 = vrot.slane %v1380, 4
      %v1383 = vshll.u32 %v1071, 16
      %v1385 = vrot.slane %v1383, 5
      %v1386 = vsel %vm1084, %v1381, %v1385
      %v1387 = vshrl.u32 %v1071, 16
      %v1389 = vrot.slane %v1387, 4
      %v1390 = vor.u32 %v1389, %v1385
      %v1391 = vrot.slane %v1390, 4
      %v1393 = vshll.u32 %v1072, 16
      %v1395 = vrot.slane %v1393, 5
      %v1396 = vsel %vm1084, %v1391, %v1395
      %v1398 = vshrl.u32 %v1073, 16
      %v1400 = vrot.slane %v1398, 4
      %v1401 = vshll.u32 %v1073, 16
      %v1403 = vrot.slane %v1401, 5
      %v1404 = vor.u32 %v1400, %v1403
      %v1405 = vrot.slane %v1404, 4
      %v1407 = vshll.u32 %v1074, 16
      %v1409 = vrot.slane %v1407, 5
      %v1410 = vsel %vm1084, %v1405, %v1409
      %v1411 = vshrl.u32 %v1074, 16
      %v1413 = vrot.slane %v1411, 4
      %v1414 = vor.u32 %v1413, %v1409
      %v1415 = vrot.slane %v1414, 4
      %v1417 = vshll.u32 %v1075, 16
      %v1419 = vrot.slane %v1417, 5
      %v1420 = vsel %vm1084, %v1415, %v1419
      %v1422 = vshrl.u32 %v1076, 16
      %v1424 = vrot.slane %v1422, 4
      %v1425 = vshll.u32 %v1076, 16
      %v1427 = vrot.slane %v1425, 5
      %v1428 = vor.u32 %v1424, %v1427
      %v1429 = vrot.slane %v1428, 4
      %v1431 = vshll.u32 %v1077, 16
      %v1433 = vrot.slane %v1431, 5
      %v1434 = vsel %vm1084, %v1429, %v1433
      %v1435 = vshrl.u32 %v1077, 16
      %v1437 = vrot.slane %v1435, 4
      %v1438 = vor.u32 %v1437, %v1433
      %v1439 = vrot.slane %v1438, 4
      %v1441 = vshll.u32 %v1078, 16
      %v1443 = vrot.slane %v1441, 5
      %v1444 = vsel %vm1084, %v1439, %v1443
      %v1446 = vshrl.u32 %v1079, 16
      %v1448 = vrot.slane %v1446, 4
      %v1449 = vshll.u32 %v1079, 16
      %v1451 = vrot.slane %v1449, 5
      %v1452 = vor.u32 %v1448, %v1451
      %v1453 = vrot.slane %v1452, 4
      %v1455 = vshll.u32 %v1080, 16
      %v1457 = vrot.slane %v1455, 5
      %v1458 = vsel %vm1084, %v1453, %v1457
      %v1459 = vshrl.u32 %v1080, 16
      %v1461 = vrot.slane %v1459, 4
      %v1462 = vor.u32 %v1461, %v1457
      %v1463 = vrot.slane %v1462, 4
      %v1465 = vshll.u32 %v1081, 16
      %v1467 = vrot.slane %v1465, 5
      %v1468 = vsel %vm1084, %v1463, %v1467
      %v1469 = vunpack.c.l.b16 %v1098
      %v1470 = vunpack.c.l.b16 %v1108
      %v1471 = vunpack.c.l.b16 %v1122
      %v1472 = vunpack.c.l.b16 %v1132
      %v1473 = vunpack.c.l.b16 %v1146
      %v1474 = vunpack.c.l.b16 %v1156
      %v1475 = vunpack.c.l.b16 %v1170
      %v1476 = vunpack.c.l.b16 %v1180
      %v1477 = vunpack.c.l.b16 %v1194
      %v1478 = vunpack.c.l.b16 %v1204
      %v1479 = vunpack.c.l.b16 %v1218
      %v1480 = vunpack.c.l.b16 %v1228
      %v1481 = vunpack.c.l.b16 %v1242
      %v1482 = vunpack.c.l.b16 %v1252
      %v1483 = vunpack.c.l.b16 %v1266
      %v1484 = vunpack.c.l.b16 %v1276
      %v1485 = vunpack.c.l.b16 %v1290
      %v1486 = vunpack.c.l.b16 %v1300
      %v1487 = vunpack.c.l.b16 %v1314
      %v1488 = vunpack.c.l.b16 %v1324
      %v1489 = vunpack.c.l.b16 %v1338
      %v1490 = vunpack.c.l.b16 %v1348
      %v1491 = vunpack.c.l.b16 %v1362
      %v1492 = vunpack.c.l.b16 %v1372
      %v1493 = vunpack.c.l.b16 %v1386
      %v1494 = vunpack.c.l.b16 %v1396
      %v1495 = vunpack.c.l.b16 %v1410
      %v1496 = vunpack.c.l.b16 %v1420
      %v1497 = vunpack.c.l.b16 %v1434
      %v1498 = vunpack.c.l.b16 %v1444
      %v1499 = vunpack.c.l.b16 %v1458
      %v1500 = vunpack.c.l.b16 %v1468
      %v1501 = vpack.c.b16 %v1470, %v1469
      %v1502 = vpack.c.b16 %v1472, %v1471
      %v1503 = vpack.c.b16 %v1474, %v1473
      %v1504 = vpack.c.b16 %v1476, %v1475
      %v1505 = vpack.c.b16 %v1478, %v1477
      %v1506 = vpack.c.b16 %v1480, %v1479
      %v1507 = vpack.c.b16 %v1482, %v1481
      %v1508 = vpack.c.b16 %v1484, %v1483
      %v1509 = vpack.c.b16 %v1486, %v1485
      %v1510 = vpack.c.b16 %v1488, %v1487
      %v1511 = vpack.c.b16 %v1490, %v1489
      %v1512 = vpack.c.b16 %v1492, %v1491
      %v1513 = vpack.c.b16 %v1494, %v1493
      %v1514 = vpack.c.b16 %v1496, %v1495
      %v1515 = vpack.c.b16 %v1498, %v1497
      %v1516 = vpack.c.b16 %v1500, %v1499
      %1533 = vst [vmem:[#allocation3 + $0x8] sm:$0xff] %v1501
      %1534 = vst [vmem:[#allocation3 + $0x50] sm:$0xff] %v1502
      %1535 = vst [vmem:[#allocation3 + $0x98] sm:$0xff] %v1503
      %1536 = vst [vmem:[#allocation3 + $0xe0] sm:$0xff] %v1504
      %1537 = vst [vmem:[#allocation3 + $0x128] sm:$0xff] %v1505
      %1538 = vst [vmem:[#allocation3 + $0x170] sm:$0xff] %v1506
      %1539 = vst [vmem:[#allocation3 + $0x1b8] sm:$0xff] %v1507
      %1540 = vst [vmem:[#allocation3 + $0x200] sm:$0xff] %v1508
      %1541 = vst [vmem:[#allocation3 + $0x248] sm:$0xff] %v1509
      %1542 = vst [vmem:[#allocation3 + $0x290] sm:$0xff] %v1510
      %1543 = vst [vmem:[#allocation3 + $0x2d8] sm:$0xff] %v1511
      %1544 = vst [vmem:[#allocation3 + $0x320] sm:$0xff] %v1512
      %1545 = vst [vmem:[#allocation3 + $0x368] sm:$0xff] %v1513
      %1546 = vst [vmem:[#allocation3 + $0x3b0] sm:$0xff] %v1514
      %1547 = vst [vmem:[#allocation3 + $0x3f8] sm:$0xff] %v1515
      %1548 = vst [vmem:[#allocation3 + $0x440] sm:$0xff] %v1516
      %v1549 = vld [vmem:[#allocation2] sm:$0xe]
      %v1550 = vld [vmem:[#allocation2 + $0x4] sm:$0xf]
      %v1551 = vld [vmem:[#allocation2 + $0x8] sm:$0x1]
      %v1552 = vld [vmem:[#allocation2 + $0xc] sm:$0xe]
      %v1553 = vld [vmem:[#allocation2 + $0x10] sm:$0xf]
      %v1554 = vld [vmem:[#allocation2 + $0x14] sm:$0x1]
      %v1555 = vld [vmem:[#allocation2 + $0x18] sm:$0xe]
      %v1556 = vld [vmem:[#allocation2 + $0x1c] sm:$0xf]
      %v1557 = vld [vmem:[#allocation2 + $0x20] sm:$0x1]
      %v1558 = vld [vmem:[#allocation2 + $0x24] sm:$0xe]
      %v1559 = vld [vmem:[#allocation2 + $0x28] sm:$0xf]
      %v1560 = vld [vmem:[#allocation2 + $0x2c] sm:$0x1]
      %v1561 = vld [vmem:[#allocation2 + $0x30] sm:$0xe]
      %v1562 = vld [vmem:[#allocation2 + $0x34] sm:$0xf]
      %v1563 = vld [vmem:[#allocation2 + $0x38] sm:$0x1]
      %v1564 = vld [vmem:[#allocation2 + $0x3c] sm:$0xe]
      %v1565 = vld [vmem:[#allocation2 + $0x40] sm:$0xf]
      %v1566 = vld [vmem:[#allocation2 + $0x44] sm:$0x1]
      %v1567 = vld [vmem:[#allocation2 + $0x48] sm:$0xe]
      %v1568 = vld [vmem:[#allocation2 + $0x4c] sm:$0xf]
      %v1569 = vld [vmem:[#allocation2 + $0x50] sm:$0x1]
      %v1570 = vld [vmem:[#allocation2 + $0x54] sm:$0xe]
      %v1571 = vld [vmem:[#allocation2 + $0x58] sm:$0xf]
      %v1572 = vld [vmem:[#allocation2 + $0x5c] sm:$0x1]
      %v1573 = vld [vmem:[#allocation2 + $0x60] sm:$0xe]
      %v1574 = vld [vmem:[#allocation2 + $0x64] sm:$0xf]
      %v1575 = vld [vmem:[#allocation2 + $0x68] sm:$0x1]
      %v1576 = vld [vmem:[#allocation2 + $0x6c] sm:$0xe]
      %v1577 = vld [vmem:[#allocation2 + $0x70] sm:$0xf]
      %v1578 = vld [vmem:[#allocation2 + $0x74] sm:$0x1]
      %v1579 = vld [vmem:[#allocation2 + $0x78] sm:$0xe]
      %v1580 = vld [vmem:[#allocation2 + $0x7c] sm:$0xf]
      %v1581 = vld [vmem:[#allocation2 + $0x80] sm:$0x1]
      %v1582 = vld [vmem:[#allocation2 + $0x84] sm:$0xe]
      %v1583 = vld [vmem:[#allocation2 + $0x88] sm:$0xf]
      %v1584 = vld [vmem:[#allocation2 + $0x8c] sm:$0x1]
      %v1585 = vld [vmem:[#allocation2 + $0x90] sm:$0xe]
      %v1586 = vld [vmem:[#allocation2 + $0x94] sm:$0xf]
      %v1587 = vld [vmem:[#allocation2 + $0x98] sm:$0x1]
      %v1588 = vld [vmem:[#allocation2 + $0x9c] sm:$0xe]
      %v1589 = vld [vmem:[#allocation2 + $0xa0] sm:$0xf]
      %v1590 = vld [vmem:[#allocation2 + $0xa4] sm:$0x1]
      %v1591 = vld [vmem:[#allocation2 + $0xa8] sm:$0xe]
      %v1592 = vld [vmem:[#allocation2 + $0xac] sm:$0xf]
      %v1593 = vld [vmem:[#allocation2 + $0xb0] sm:$0x1]
      %v1594 = vld [vmem:[#allocation2 + $0xb4] sm:$0xe]
      %v1595 = vld [vmem:[#allocation2 + $0xb8] sm:$0xf]
      %v1596 = vld [vmem:[#allocation2 + $0xbc] sm:$0x1]
      %vm1645 = vcmask 1042432
      %vm1646 = vcmask 1046532
      %vm1647 = vmor %vm1645, %vm1646
      %v1648 = vrot.slane %v1549, 5
      %v1649 = vrot.slane %v1648, 4
      %v1650 = vrot.slane %v1550, 5
      %v1651 = vsel %vm1647, %v1649, %v1650
      %v1652 = vrot.slane %v1650, 4
      %v1653 = vrot.slane %v1551, 5
      %v1654 = vsel %vm1647, %v1652, %v1653
      %v1655 = vrot.slane %v1552, 5
      %v1656 = vrot.slane %v1655, 4
      %v1657 = vrot.slane %v1553, 5
      %v1658 = vsel %vm1647, %v1656, %v1657
      %v1659 = vrot.slane %v1657, 4
      %v1660 = vrot.slane %v1554, 5
      %v1661 = vsel %vm1647, %v1659, %v1660
      %v1662 = vrot.slane %v1555, 5
      %v1663 = vrot.slane %v1662, 4
      %v1664 = vrot.slane %v1556, 5
      %v1665 = vsel %vm1647, %v1663, %v1664
      %v1666 = vrot.slane %v1664, 4
      %v1667 = vrot.slane %v1557, 5
      %v1668 = vsel %vm1647, %v1666, %v1667
      %v1669 = vrot.slane %v1558, 5
      %v1670 = vrot.slane %v1669, 4
      %v1671 = vrot.slane %v1559, 5
      %v1672 = vsel %vm1647, %v1670, %v1671
      %v1673 = vrot.slane %v1671, 4
      %v1674 = vrot.slane %v1560, 5
      %v1675 = vsel %vm1647, %v1673, %v1674
      %v1676 = vrot.slane %v1561, 5
      %v1677 = vrot.slane %v1676, 4
      %v1678 = vrot.slane %v1562, 5
      %v1679 = vsel %vm1647, %v1677, %v1678
      %v1680 = vrot.slane %v1678, 4
      %v1681 = vrot.slane %v1563, 5
      %v1682 = vsel %vm1647, %v1680, %v1681
      %v1683 = vrot.slane %v1564, 5
      %v1684 = vrot.slane %v1683, 4
      %v1685 = vrot.slane %v1565, 5
      %v1686 = vsel %vm1647, %v1684, %v1685
      %v1687 = vrot.slane %v1685, 4
      %v1688 = vrot.slane %v1566, 5
      %v1689 = vsel %vm1647, %v1687, %v1688
      %v1690 = vrot.slane %v1567, 5
      %v1691 = vrot.slane %v1690, 4
      %v1692 = vrot.slane %v1568, 5
      %v1693 = vsel %vm1647, %v1691, %v1692
      %v1694 = vrot.slane %v1692, 4
      %v1695 = vrot.slane %v1569, 5
      %v1696 = vsel %vm1647, %v1694, %v1695
      %v1697 = vrot.slane %v1570, 5
      %v1698 = vrot.slane %v1697, 4
      %v1699 = vrot.slane %v1571, 5
      %v1700 = vsel %vm1647, %v1698, %v1699
      %v1701 = vrot.slane %v1699, 4
      %v1702 = vrot.slane %v1572, 5
      %v1703 = vsel %vm1647, %v1701, %v1702
      %v1704 = vrot.slane %v1573, 5
      %v1705 = vrot.slane %v1704, 4
      %v1706 = vrot.slane %v1574, 5
      %v1707 = vsel %vm1647, %v1705, %v1706
      %v1708 = vrot.slane %v1706, 4
      %v1709 = vrot.slane %v1575, 5
      %v1710 = vsel %vm1647, %v1708, %v1709
      %v1711 = vrot.slane %v1576, 5
      %v1712 = vrot.slane %v1711, 4
      %v1713 = vrot.slane %v1577, 5
      %v1714 = vsel %vm1647, %v1712, %v1713
      %v1715 = vrot.slane %v1713, 4
      %v1716 = vrot.slane %v1578, 5
      %v1717 = vsel %vm1647, %v1715, %v1716
      %v1718 = vrot.slane %v1579, 5
      %v1719 = vrot.slane %v1718, 4
      %v1720 = vrot.slane %v1580, 5
      %v1721 = vsel %vm1647, %v1719, %v1720
      %v1722 = vrot.slane %v1720, 4
      %v1723 = vrot.slane %v1581, 5
      %v1724 = vsel %vm1647, %v1722, %v1723
      %v1725 = vrot.slane %v1582, 5
      %v1726 = vrot.slane %v1725, 4
      %v1727 = vrot.slane %v1583, 5
      %v1728 = vsel %vm1647, %v1726, %v1727
      %v1729 = vrot.slane %v1727, 4
      %v1730 = vrot.slane %v1584, 5
      %v1731 = vsel %vm1647, %v1729, %v1730
      %v1732 = vrot.slane %v1585, 5
      %v1733 = vrot.slane %v1732, 4
      %v1734 = vrot.slane %v1586, 5
      %v1735 = vsel %vm1647, %v1733, %v1734
      %v1736 = vrot.slane %v1734, 4
      %v1737 = vrot.slane %v1587, 5
      %v1738 = vsel %vm1647, %v1736, %v1737
      %v1739 = vrot.slane %v1588, 5
      %v1740 = vrot.slane %v1739, 4
      %v1741 = vrot.slane %v1589, 5
      %v1742 = vsel %vm1647, %v1740, %v1741
      %v1743 = vrot.slane %v1741, 4
      %v1744 = vrot.slane %v1590, 5
      %v1745 = vsel %vm1647, %v1743, %v1744
      %v1746 = vrot.slane %v1591, 5
      %v1747 = vrot.slane %v1746, 4
      %v1748 = vrot.slane %v1592, 5
      %v1749 = vsel %vm1647, %v1747, %v1748
      %v1750 = vrot.slane %v1748, 4
      %v1751 = vrot.slane %v1593, 5
      %v1752 = vsel %vm1647, %v1750, %v1751
      %v1753 = vrot.slane %v1594, 5
      %v1754 = vrot.slane %v1753, 4
      %v1755 = vrot.slane %v1595, 5
      %v1756 = vsel %vm1647, %v1754, %v1755
      %v1757 = vrot.slane %v1755, 4
      %v1758 = vrot.slane %v1596, 5
      %v1759 = vsel %vm1647, %v1757, %v1758
      %v1760 = vunpack.c.l.b16 %v1651
      %v1761 = vunpack.c.l.b16 %v1654
      %v1762 = vunpack.c.l.b16 %v1658
      %v1763 = vunpack.c.l.b16 %v1661
      %v1764 = vunpack.c.l.b16 %v1665
      %v1765 = vunpack.c.l.b16 %v1668
      %v1766 = vunpack.c.l.b16 %v1672
      %v1767 = vunpack.c.l.b16 %v1675
      %v1768 = vunpack.c.l.b16 %v1679
      %v1769 = vunpack.c.l.b16 %v1682
      %v1770 = vunpack.c.l.b16 %v1686
      %v1771 = vunpack.c.l.b16 %v1689
      %v1772 = vunpack.c.l.b16 %v1693
      %v1773 = vunpack.c.l.b16 %v1696
      %v1774 = vunpack.c.l.b16 %v1700
      %v1775 = vunpack.c.l.b16 %v1703
      %v1776 = vunpack.c.l.b16 %v1707
      %v1777 = vunpack.c.l.b16 %v1710
      %v1778 = vunpack.c.l.b16 %v1714
      %v1779 = vunpack.c.l.b16 %v1717
      %v1780 = vunpack.c.l.b16 %v1721
      %v1781 = vunpack.c.l.b16 %v1724
      %v1782 = vunpack.c.l.b16 %v1728
      %v1783 = vunpack.c.l.b16 %v1731
      %v1784 = vunpack.c.l.b16 %v1735
      %v1785 = vunpack.c.l.b16 %v1738
      %v1786 = vunpack.c.l.b16 %v1742
      %v1787 = vunpack.c.l.b16 %v1745
      %v1788 = vunpack.c.l.b16 %v1749
      %v1789 = vunpack.c.l.b16 %v1752
      %v1790 = vunpack.c.l.b16 %v1756
      %v1791 = vunpack.c.l.b16 %v1759
      %v1792 = vpack.c.b16 %v1761, %v1760
      %v1793 = vpack.c.b16 %v1763, %v1762
      %v1794 = vpack.c.b16 %v1765, %v1764
      %v1795 = vpack.c.b16 %v1767, %v1766
      %v1796 = vpack.c.b16 %v1769, %v1768
      %v1797 = vpack.c.b16 %v1771, %v1770
      %v1798 = vpack.c.b16 %v1773, %v1772
      %v1799 = vpack.c.b16 %v1775, %v1774
      %v1800 = vpack.c.b16 %v1777, %v1776
      %v1801 = vpack.c.b16 %v1779, %v1778
      %v1802 = vpack.c.b16 %v1781, %v1780
      %v1803 = vpack.c.b16 %v1783, %v1782
      %v1804 = vpack.c.b16 %v1785, %v1784
      %v1805 = vpack.c.b16 %v1787, %v1786
      %v1806 = vpack.c.b16 %v1789, %v1788
      %v1807 = vpack.c.b16 %v1791, %v1790
      %1824 = vst [vmem:[#allocation3 + $0x10] sm:$0xff] %v1792
      %1825 = vst [vmem:[#allocation3 + $0x58] sm:$0xff] %v1793
      %1826 = vst [vmem:[#allocation3 + $0xa0] sm:$0xff] %v1794
      %1827 = vst [vmem:[#allocation3 + $0xe8] sm:$0xff] %v1795
      %1828 = vst [vmem:[#allocation3 + $0x130] sm:$0xff] %v1796
      %1829 = vst [vmem:[#allocation3 + $0x178] sm:$0xff] %v1797
      %1830 = vst [vmem:[#allocation3 + $0x1c0] sm:$0xff] %v1798
      %1831 = vst [vmem:[#allocation3 + $0x208] sm:$0xff] %v1799
      %1832 = vst [vmem:[#allocation3 + $0x250] sm:$0xff] %v1800
      %1833 = vst [vmem:[#allocation3 + $0x298] sm:$0xff] %v1801
      %1834 = vst [vmem:[#allocation3 + $0x2e0] sm:$0xff] %v1802
      %1835 = vst [vmem:[#allocation3 + $0x328] sm:$0xff] %v1803
      %1836 = vst [vmem:[#allocation3 + $0x370] sm:$0xff] %v1804
      %1837 = vst [vmem:[#allocation3 + $0x3b8] sm:$0xff] %v1805
      %1838 = vst [vmem:[#allocation3 + $0x400] sm:$0xff] %v1806
      %1839 = vst [vmem:[#allocation3 + $0x448] sm:$0xff] %v1807
      %v1840 = vld [vmem:[%s775] sm:$0xf]
      %v1841 = vld [vmem:[%s775 + $0x4] sm:$0xf]
      %v1842 = vld [vmem:[%s775 + $0xc] sm:$0xf]
      %v1843 = vld [vmem:[%s775 + $0x10] sm:$0xf]
      %v1844 = vld [vmem:[%s775 + $0x18] sm:$0xf]
      %v1845 = vld [vmem:[%s775 + $0x1c] sm:$0xf]
      %v1846 = vld [vmem:[%s775 + $0x24] sm:$0xf]
      %v1847 = vld [vmem:[%s775 + $0x28] sm:$0xf]
      %v1848 = vld [vmem:[%s775 + $0x30] sm:$0xf]
      %v1849 = vld [vmem:[%s775 + $0x34] sm:$0xf]
      %v1850 = vld [vmem:[%s775 + $0x3c] sm:$0xf]
      %v1851 = vld [vmem:[%s775 + $0x40] sm:$0xf]
      %v1852 = vld [vmem:[%s775 + $0x48] sm:$0xf]
      %v1853 = vld [vmem:[%s775 + $0x4c] sm:$0xf]
      %v1854 = vld [vmem:[%s775 + $0x54] sm:$0xf]
      %v1855 = vld [vmem:[%s775 + $0x58] sm:$0xf]
      %v1856 = vld [vmem:[%s775 + $0x60] sm:$0xf]
      %v1857 = vld [vmem:[%s775 + $0x64] sm:$0xf]
      %v1858 = vld [vmem:[%s775 + $0x6c] sm:$0xf]
      %v1859 = vld [vmem:[%s775 + $0x70] sm:$0xf]
      %v1860 = vld [vmem:[%s775 + $0x78] sm:$0xf]
      %v1861 = vld [vmem:[%s775 + $0x7c] sm:$0xf]
      %v1862 = vld [vmem:[%s775 + $0x84] sm:$0xf]
      %v1863 = vld [vmem:[%s775 + $0x88] sm:$0xf]
      %v1864 = vld [vmem:[%s775 + $0x90] sm:$0xf]
      %v1865 = vld [vmem:[%s775 + $0x94] sm:$0xf]
      %v1866 = vld [vmem:[%s775 + $0x9c] sm:$0xf]
      %v1867 = vld [vmem:[%s775 + $0xa0] sm:$0xf]
      %v1868 = vld [vmem:[%s775 + $0xa8] sm:$0xf]
      %v1869 = vld [vmem:[%s775 + $0xac] sm:$0xf]
      %v1870 = vld [vmem:[%s775 + $0xb4] sm:$0xf]
      %v1871 = vld [vmem:[%s775 + $0xb8] sm:$0xf]
      %v1904 = vunpack.c.l.b16 %v1840
      %v1905 = vunpack.c.l.b16 %v1841
      %v1906 = vunpack.c.l.b16 %v1842
      %v1907 = vunpack.c.l.b16 %v1843
      %v1908 = vunpack.c.l.b16 %v1844
      %v1909 = vunpack.c.l.b16 %v1845
      %v1910 = vunpack.c.l.b16 %v1846
      %v1911 = vunpack.c.l.b16 %v1847
      %v1912 = vunpack.c.l.b16 %v1848
      %v1913 = vunpack.c.l.b16 %v1849
      %v1914 = vunpack.c.l.b16 %v1850
      %v1915 = vunpack.c.l.b16 %v1851
      %v1916 = vunpack.c.l.b16 %v1852
      %v1917 = vunpack.c.l.b16 %v1853
      %v1918 = vunpack.c.l.b16 %v1854
      %v1919 = vunpack.c.l.b16 %v1855
      %v1920 = vunpack.c.l.b16 %v1856
      %v1921 = vunpack.c.l.b16 %v1857
      %v1922 = vunpack.c.l.b16 %v1858
      %v1923 = vunpack.c.l.b16 %v1859
      %v1924 = vunpack.c.l.b16 %v1860
      %v1925 = vunpack.c.l.b16 %v1861
      %v1926 = vunpack.c.l.b16 %v1862
      %v1927 = vunpack.c.l.b16 %v1863
      %v1928 = vunpack.c.l.b16 %v1864
      %v1929 = vunpack.c.l.b16 %v1865
      %v1930 = vunpack.c.l.b16 %v1866
      %v1931 = vunpack.c.l.b16 %v1867
      %v1932 = vunpack.c.l.b16 %v1868
      %v1933 = vunpack.c.l.b16 %v1869
      %v1934 = vunpack.c.l.b16 %v1870
      %v1935 = vunpack.c.l.b16 %v1871
      %v1936 = vpack.c.b16 %v1905, %v1904
      %v1937 = vpack.c.b16 %v1907, %v1906
      %v1938 = vpack.c.b16 %v1909, %v1908
      %v1939 = vpack.c.b16 %v1911, %v1910
      %v1940 = vpack.c.b16 %v1913, %v1912
      %v1941 = vpack.c.b16 %v1915, %v1914
      %v1942 = vpack.c.b16 %v1917, %v1916
      %v1943 = vpack.c.b16 %v1919, %v1918
      %v1944 = vpack.c.b16 %v1921, %v1920
      %v1945 = vpack.c.b16 %v1923, %v1922
      %v1946 = vpack.c.b16 %v1925, %v1924
      %v1947 = vpack.c.b16 %v1927, %v1926
      %v1948 = vpack.c.b16 %v1929, %v1928
      %v1949 = vpack.c.b16 %v1931, %v1930
      %v1950 = vpack.c.b16 %v1933, %v1932
      %v1951 = vpack.c.b16 %v1935, %v1934
      %1968 = vst [vmem:[#allocation3 + $0x18] sm:$0xff] %v1936
      %1969 = vst [vmem:[#allocation3 + $0x60] sm:$0xff] %v1937
      %1970 = vst [vmem:[#allocation3 + $0xa8] sm:$0xff] %v1938
      %1971 = vst [vmem:[#allocation3 + $0xf0] sm:$0xff] %v1939
      %1972 = vst [vmem:[#allocation3 + $0x138] sm:$0xff] %v1940
      %1973 = vst [vmem:[#allocation3 + $0x180] sm:$0xff] %v1941
      %1974 = vst [vmem:[#allocation3 + $0x1c8] sm:$0xff] %v1942
      %1975 = vst [vmem:[#allocation3 + $0x210] sm:$0xff] %v1943
      %1976 = vst [vmem:[#allocation3 + $0x258] sm:$0xff] %v1944
      %1977 = vst [vmem:[#allocation3 + $0x2a0] sm:$0xff] %v1945
      %1978 = vst [vmem:[#allocation3 + $0x2e8] sm:$0xff] %v1946
      %1979 = vst [vmem:[#allocation3 + $0x330] sm:$0xff] %v1947
      %1980 = vst [vmem:[#allocation3 + $0x378] sm:$0xff] %v1948
      %1981 = vst [vmem:[#allocation3 + $0x3c0] sm:$0xff] %v1949
      %1982 = vst [vmem:[#allocation3 + $0x408] sm:$0xff] %v1950
      %1983 = vst [vmem:[#allocation3 + $0x450] sm:$0xff] %v1951
      %v1984 = vld [vmem:[%s775] sm:$0xf]
      %v1985 = vld [vmem:[%s775 + $0x4] sm:$0xf]
      %v1986 = vld [vmem:[%s775 + $0x8] sm:$0x1]
      %v1987 = vld [vmem:[%s775 + $0xc] sm:$0xf]
      %v1988 = vld [vmem:[%s775 + $0x10] sm:$0xf]
      %v1989 = vld [vmem:[%s775 + $0x14] sm:$0x1]
      %v1990 = vld [vmem:[%s775 + $0x18] sm:$0xf]
      %v1991 = vld [vmem:[%s775 + $0x1c] sm:$0xf]
      %v1992 = vld [vmem:[%s775 + $0x20] sm:$0x1]
      %v1993 = vld [vmem:[%s775 + $0x24] sm:$0xf]
      %v1994 = vld [vmem:[%s775 + $0x28] sm:$0xf]
      %v1995 = vld [vmem:[%s775 + $0x2c] sm:$0x1]
      %v1996 = vld [vmem:[%s775 + $0x30] sm:$0xf]
      %v1997 = vld [vmem:[%s775 + $0x34] sm:$0xf]
      %v1998 = vld [vmem:[%s775 + $0x38] sm:$0x1]
      %v1999 = vld [vmem:[%s775 + $0x3c] sm:$0xf]
      %v2000 = vld [vmem:[%s775 + $0x40] sm:$0xf]
      %v2001 = vld [vmem:[%s775 + $0x44] sm:$0x1]
      %v2002 = vld [vmem:[%s775 + $0x48] sm:$0xf]
      %v2003 = vld [vmem:[%s775 + $0x4c] sm:$0xf]
      %v2004 = vld [vmem:[%s775 + $0x50] sm:$0x1]
      %v2005 = vld [vmem:[%s775 + $0x54] sm:$0xf]
      %v2006 = vld [vmem:[%s775 + $0x58] sm:$0xf]
      %v2007 = vld [vmem:[%s775 + $0x5c] sm:$0x1]
      %v2008 = vld [vmem:[%s775 + $0x60] sm:$0xf]
      %v2009 = vld [vmem:[%s775 + $0x64] sm:$0xf]
      %v2010 = vld [vmem:[%s775 + $0x68] sm:$0x1]
      %v2011 = vld [vmem:[%s775 + $0x6c] sm:$0xf]
      %v2012 = vld [vmem:[%s775 + $0x70] sm:$0xf]
      %v2013 = vld [vmem:[%s775 + $0x74] sm:$0x1]
      %v2014 = vld [vmem:[%s775 + $0x78] sm:$0xf]
      %v2015 = vld [vmem:[%s775 + $0x7c] sm:$0xf]
      %v2016 = vld [vmem:[%s775 + $0x80] sm:$0x1]
      %v2017 = vld [vmem:[%s775 + $0x84] sm:$0xf]
      %v2018 = vld [vmem:[%s775 + $0x88] sm:$0xf]
      %v2019 = vld [vmem:[%s775 + $0x8c] sm:$0x1]
      %v2020 = vld [vmem:[%s775 + $0x90] sm:$0xf]
      %v2021 = vld [vmem:[%s775 + $0x94] sm:$0xf]
      %v2022 = vld [vmem:[%s775 + $0x98] sm:$0x1]
      %v2023 = vld [vmem:[%s775 + $0x9c] sm:$0xf]
      %v2024 = vld [vmem:[%s775 + $0xa0] sm:$0xf]
      %v2025 = vld [vmem:[%s775 + $0xa4] sm:$0x1]
      %v2026 = vld [vmem:[%s775 + $0xa8] sm:$0xf]
      %v2027 = vld [vmem:[%s775 + $0xac] sm:$0xf]
      %v2028 = vld [vmem:[%s775 + $0xb0] sm:$0x1]
      %v2029 = vld [vmem:[%s775 + $0xb4] sm:$0xf]
      %v2030 = vld [vmem:[%s775 + $0xb8] sm:$0xf]
      %v2031 = vld [vmem:[%s775 + $0xbc] sm:$0x1]
      %v2033 = vshrl.u32 %v1984, 16
      %v2035 = vrot.slane %v2033, 4
      %v2036 = vshll.u32 %v1984, 16
      %v2038 = vrot.slane %v2036, 5
      %v2039 = vor.u32 %v2035, %v2038
      %v2040 = vrot.slane %v2039, 4
      %v2042 = vshll.u32 %v1985, 16
      %v2044 = vrot.slane %v2042, 5
      %v2045 = vsel %vm1084, %v2040, %v2044
      %v2046 = vshrl.u32 %v1985, 16
      %v2048 = vrot.slane %v2046, 4
      %v2049 = vor.u32 %v2048, %v2044
      %v2050 = vrot.slane %v2049, 4
      %v2052 = vshll.u32 %v1986, 16
      %v2054 = vrot.slane %v2052, 5
      %v2055 = vsel %vm1084, %v2050, %v2054
      %v2057 = vshrl.u32 %v1987, 16
      %v2059 = vrot.slane %v2057, 4
      %v2060 = vshll.u32 %v1987, 16
      %v2062 = vrot.slane %v2060, 5
      %v2063 = vor.u32 %v2059, %v2062
      %v2064 = vrot.slane %v2063, 4
      %v2066 = vshll.u32 %v1988, 16
      %v2068 = vrot.slane %v2066, 5
      %v2069 = vsel %vm1084, %v2064, %v2068
      %v2070 = vshrl.u32 %v1988, 16
      %v2072 = vrot.slane %v2070, 4
      %v2073 = vor.u32 %v2072, %v2068
      %v2074 = vrot.slane %v2073, 4
      %v2076 = vshll.u32 %v1989, 16
      %v2078 = vrot.slane %v2076, 5
      %v2079 = vsel %vm1084, %v2074, %v2078
      %v2081 = vshrl.u32 %v1990, 16
      %v2083 = vrot.slane %v2081, 4
      %v2084 = vshll.u32 %v1990, 16
      %v2086 = vrot.slane %v2084, 5
      %v2087 = vor.u32 %v2083, %v2086
      %v2088 = vrot.slane %v2087, 4
      %v2090 = vshll.u32 %v1991, 16
      %v2092 = vrot.slane %v2090, 5
      %v2093 = vsel %vm1084, %v2088, %v2092
      %v2094 = vshrl.u32 %v1991, 16
      %v2096 = vrot.slane %v2094, 4
      %v2097 = vor.u32 %v2096, %v2092
      %v2098 = vrot.slane %v2097, 4
      %v2100 = vshll.u32 %v1992, 16
      %v2102 = vrot.slane %v2100, 5
      %v2103 = vsel %vm1084, %v2098, %v2102
      %v2105 = vshrl.u32 %v1993, 16
      %v2107 = vrot.slane %v2105, 4
      %v2108 = vshll.u32 %v1993, 16
      %v2110 = vrot.slane %v2108, 5
      %v2111 = vor.u32 %v2107, %v2110
      %v2112 = vrot.slane %v2111, 4
      %v2114 = vshll.u32 %v1994, 16
      %v2116 = vrot.slane %v2114, 5
      %v2117 = vsel %vm1084, %v2112, %v2116
      %v2118 = vshrl.u32 %v1994, 16
      %v2120 = vrot.slane %v2118, 4
      %v2121 = vor.u32 %v2120, %v2116
      %v2122 = vrot.slane %v2121, 4
      %v2124 = vshll.u32 %v1995, 16
      %v2126 = vrot.slane %v2124, 5
      %v2127 = vsel %vm1084, %v2122, %v2126
      %v2129 = vshrl.u32 %v1996, 16
      %v2131 = vrot.slane %v2129, 4
      %v2132 = vshll.u32 %v1996, 16
      %v2134 = vrot.slane %v2132, 5
      %v2135 = vor.u32 %v2131, %v2134
      %v2136 = vrot.slane %v2135, 4
      %v2138 = vshll.u32 %v1997, 16
      %v2140 = vrot.slane %v2138, 5
      %v2141 = vsel %vm1084, %v2136, %v2140
      %v2142 = vshrl.u32 %v1997, 16
      %v2144 = vrot.slane %v2142, 4
      %v2145 = vor.u32 %v2144, %v2140
      %v2146 = vrot.slane %v2145, 4
      %v2148 = vshll.u32 %v1998, 16
      %v2150 = vrot.slane %v2148, 5
      %v2151 = vsel %vm1084, %v2146, %v2150
      %v2153 = vshrl.u32 %v1999, 16
      %v2155 = vrot.slane %v2153, 4
      %v2156 = vshll.u32 %v1999, 16
      %v2158 = vrot.slane %v2156, 5
      %v2159 = vor.u32 %v2155, %v2158
      %v2160 = vrot.slane %v2159, 4
      %v2162 = vshll.u32 %v2000, 16
      %v2164 = vrot.slane %v2162, 5
      %v2165 = vsel %vm1084, %v2160, %v2164
      %v2166 = vshrl.u32 %v2000, 16
      %v2168 = vrot.slane %v2166, 4
      %v2169 = vor.u32 %v2168, %v2164
      %v2170 = vrot.slane %v2169, 4
      %v2172 = vshll.u32 %v2001, 16
      %v2174 = vrot.slane %v2172, 5
      %v2175 = vsel %vm1084, %v2170, %v2174
      %v2177 = vshrl.u32 %v2002, 16
      %v2179 = vrot.slane %v2177, 4
      %v2180 = vshll.u32 %v2002, 16
      %v2182 = vrot.slane %v2180, 5
      %v2183 = vor.u32 %v2179, %v2182
      %v2184 = vrot.slane %v2183, 4
      %v2186 = vshll.u32 %v2003, 16
      %v2188 = vrot.slane %v2186, 5
      %v2189 = vsel %vm1084, %v2184, %v2188
      %v2190 = vshrl.u32 %v2003, 16
      %v2192 = vrot.slane %v2190, 4
      %v2193 = vor.u32 %v2192, %v2188
      %v2194 = vrot.slane %v2193, 4
      %v2196 = vshll.u32 %v2004, 16
      %v2198 = vrot.slane %v2196, 5
      %v2199 = vsel %vm1084, %v2194, %v2198
      %v2201 = vshrl.u32 %v2005, 16
      %v2203 = vrot.slane %v2201, 4
      %v2204 = vshll.u32 %v2005, 16
      %v2206 = vrot.slane %v2204, 5
      %v2207 = vor.u32 %v2203, %v2206
      %v2208 = vrot.slane %v2207, 4
      %v2210 = vshll.u32 %v2006, 16
      %v2212 = vrot.slane %v2210, 5
      %v2213 = vsel %vm1084, %v2208, %v2212
      %v2214 = vshrl.u32 %v2006, 16
      %v2216 = vrot.slane %v2214, 4
      %v2217 = vor.u32 %v2216, %v2212
      %v2218 = vrot.slane %v2217, 4
      %v2220 = vshll.u32 %v2007, 16
      %v2222 = vrot.slane %v2220, 5
      %v2223 = vsel %vm1084, %v2218, %v2222
      %v2225 = vshrl.u32 %v2008, 16
      %v2227 = vrot.slane %v2225, 4
      %v2228 = vshll.u32 %v2008, 16
      %v2230 = vrot.slane %v2228, 5
      %v2231 = vor.u32 %v2227, %v2230
      %v2232 = vrot.slane %v2231, 4
      %v2234 = vshll.u32 %v2009, 16
      %v2236 = vrot.slane %v2234, 5
      %v2237 = vsel %vm1084, %v2232, %v2236
      %v2238 = vshrl.u32 %v2009, 16
      %v2240 = vrot.slane %v2238, 4
      %v2241 = vor.u32 %v2240, %v2236
      %v2242 = vrot.slane %v2241, 4
      %v2244 = vshll.u32 %v2010, 16
      %v2246 = vrot.slane %v2244, 5
      %v2247 = vsel %vm1084, %v2242, %v2246
      %v2249 = vshrl.u32 %v2011, 16
      %v2251 = vrot.slane %v2249, 4
      %v2252 = vshll.u32 %v2011, 16
      %v2254 = vrot.slane %v2252, 5
      %v2255 = vor.u32 %v2251, %v2254
      %v2256 = vrot.slane %v2255, 4
      %v2258 = vshll.u32 %v2012, 16
      %v2260 = vrot.slane %v2258, 5
      %v2261 = vsel %vm1084, %v2256, %v2260
      %v2262 = vshrl.u32 %v2012, 16
      %v2264 = vrot.slane %v2262, 4
      %v2265 = vor.u32 %v2264, %v2260
      %v2266 = vrot.slane %v2265, 4
      %v2268 = vshll.u32 %v2013, 16
      %v2270 = vrot.slane %v2268, 5
      %v2271 = vsel %vm1084, %v2266, %v2270
      %v2273 = vshrl.u32 %v2014, 16
      %v2275 = vrot.slane %v2273, 4
      %v2276 = vshll.u32 %v2014, 16
      %v2278 = vrot.slane %v2276, 5
      %v2279 = vor.u32 %v2275, %v2278
      %v2280 = vrot.slane %v2279, 4
      %v2282 = vshll.u32 %v2015, 16
      %v2284 = vrot.slane %v2282, 5
      %v2285 = vsel %vm1084, %v2280, %v2284
      %v2286 = vshrl.u32 %v2015, 16
      %v2288 = vrot.slane %v2286, 4
      %v2289 = vor.u32 %v2288, %v2284
      %v2290 = vrot.slane %v2289, 4
      %v2292 = vshll.u32 %v2016, 16
      %v2294 = vrot.slane %v2292, 5
      %v2295 = vsel %vm1084, %v2290, %v2294
      %v2297 = vshrl.u32 %v2017, 16
      %v2299 = vrot.slane %v2297, 4
      %v2300 = vshll.u32 %v2017, 16
      %v2302 = vrot.slane %v2300, 5
      %v2303 = vor.u32 %v2299, %v2302
      %v2304 = vrot.slane %v2303, 4
      %v2306 = vshll.u32 %v2018, 16
      %v2308 = vrot.slane %v2306, 5
      %v2309 = vsel %vm1084, %v2304, %v2308
      %v2310 = vshrl.u32 %v2018, 16
      %v2312 = vrot.slane %v2310, 4
      %v2313 = vor.u32 %v2312, %v2308
      %v2314 = vrot.slane %v2313, 4
      %v2316 = vshll.u32 %v2019, 16
      %v2318 = vrot.slane %v2316, 5
      %v2319 = vsel %vm1084, %v2314, %v2318
      %v2321 = vshrl.u32 %v2020, 16
      %v2323 = vrot.slane %v2321, 4
      %v2324 = vshll.u32 %v2020, 16
      %v2326 = vrot.slane %v2324, 5
      %v2327 = vor.u32 %v2323, %v2326
      %v2328 = vrot.slane %v2327, 4
      %v2330 = vshll.u32 %v2021, 16
      %v2332 = vrot.slane %v2330, 5
      %v2333 = vsel %vm1084, %v2328, %v2332
      %v2334 = vshrl.u32 %v2021, 16
      %v2336 = vrot.slane %v2334, 4
      %v2337 = vor.u32 %v2336, %v2332
      %v2338 = vrot.slane %v2337, 4
      %v2340 = vshll.u32 %v2022, 16
      %v2342 = vrot.slane %v2340, 5
      %v2343 = vsel %vm1084, %v2338, %v2342
      %v2345 = vshrl.u32 %v2023, 16
      %v2347 = vrot.slane %v2345, 4
      %v2348 = vshll.u32 %v2023, 16
      %v2350 = vrot.slane %v2348, 5
      %v2351 = vor.u32 %v2347, %v2350
      %v2352 = vrot.slane %v2351, 4
      %v2354 = vshll.u32 %v2024, 16
      %v2356 = vrot.slane %v2354, 5
      %v2357 = vsel %vm1084, %v2352, %v2356
      %v2358 = vshrl.u32 %v2024, 16
      %v2360 = vrot.slane %v2358, 4
      %v2361 = vor.u32 %v2360, %v2356
      %v2362 = vrot.slane %v2361, 4
      %v2364 = vshll.u32 %v2025, 16
      %v2366 = vrot.slane %v2364, 5
      %v2367 = vsel %vm1084, %v2362, %v2366
      %v2369 = vshrl.u32 %v2026, 16
      %v2371 = vrot.slane %v2369, 4
      %v2372 = vshll.u32 %v2026, 16
      %v2374 = vrot.slane %v2372, 5
      %v2375 = vor.u32 %v2371, %v2374
      %v2376 = vrot.slane %v2375, 4
      %v2378 = vshll.u32 %v2027, 16
      %v2380 = vrot.slane %v2378, 5
      %v2381 = vsel %vm1084, %v2376, %v2380
      %v2382 = vshrl.u32 %v2027, 16
      %v2384 = vrot.slane %v2382, 4
      %v2385 = vor.u32 %v2384, %v2380
      %v2386 = vrot.slane %v2385, 4
      %v2388 = vshll.u32 %v2028, 16
      %v2390 = vrot.slane %v2388, 5
      %v2391 = vsel %vm1084, %v2386, %v2390
      %v2393 = vshrl.u32 %v2029, 16
      %v2395 = vrot.slane %v2393, 4
      %v2396 = vshll.u32 %v2029, 16
      %v2398 = vrot.slane %v2396, 5
      %v2399 = vor.u32 %v2395, %v2398
      %v2400 = vrot.slane %v2399, 4
      %v2402 = vshll.u32 %v2030, 16
      %v2404 = vrot.slane %v2402, 5
      %v2405 = vsel %vm1084, %v2400, %v2404
      %v2406 = vshrl.u32 %v2030, 16
      %v2408 = vrot.slane %v2406, 4
      %v2409 = vor.u32 %v2408, %v2404
      %v2410 = vrot.slane %v2409, 4
      %v2412 = vshll.u32 %v2031, 16
      %v2414 = vrot.slane %v2412, 5
      %v2415 = vsel %vm1084, %v2410, %v2414
      %v2416 = vunpack.c.l.b16 %v2045
      %v2417 = vunpack.c.l.b16 %v2055
      %v2418 = vunpack.c.l.b16 %v2069
      %v2419 = vunpack.c.l.b16 %v2079
      %v2420 = vunpack.c.l.b16 %v2093
      %v2421 = vunpack.c.l.b16 %v2103
      %v2422 = vunpack.c.l.b16 %v2117
      %v2423 = vunpack.c.l.b16 %v2127
      %v2424 = vunpack.c.l.b16 %v2141
      %v2425 = vunpack.c.l.b16 %v2151
      %v2426 = vunpack.c.l.b16 %v2165
      %v2427 = vunpack.c.l.b16 %v2175
      %v2428 = vunpack.c.l.b16 %v2189
      %v2429 = vunpack.c.l.b16 %v2199
      %v2430 = vunpack.c.l.b16 %v2213
      %v2431 = vunpack.c.l.b16 %v2223
      %v2432 = vunpack.c.l.b16 %v2237
      %v2433 = vunpack.c.l.b16 %v2247
      %v2434 = vunpack.c.l.b16 %v2261
      %v2435 = vunpack.c.l.b16 %v2271
      %v2436 = vunpack.c.l.b16 %v2285
      %v2437 = vunpack.c.l.b16 %v2295
      %v2438 = vunpack.c.l.b16 %v2309
      %v2439 = vunpack.c.l.b16 %v2319
      %v2440 = vunpack.c.l.b16 %v2333
      %v2441 = vunpack.c.l.b16 %v2343
      %v2442 = vunpack.c.l.b16 %v2357
      %v2443 = vunpack.c.l.b16 %v2367
      %v2444 = vunpack.c.l.b16 %v2381
      %v2445 = vunpack.c.l.b16 %v2391
      %v2446 = vunpack.c.l.b16 %v2405
      %v2447 = vunpack.c.l.b16 %v2415
      %v2448 = vpack.c.b16 %v2417, %v2416
      %v2449 = vpack.c.b16 %v2419, %v2418
      %v2450 = vpack.c.b16 %v2421, %v2420
      %v2451 = vpack.c.b16 %v2423, %v2422
      %v2452 = vpack.c.b16 %v2425, %v2424
      %v2453 = vpack.c.b16 %v2427, %v2426
      %v2454 = vpack.c.b16 %v2429, %v2428
      %v2455 = vpack.c.b16 %v2431, %v2430
      %v2456 = vpack.c.b16 %v2433, %v2432
      %v2457 = vpack.c.b16 %v2435, %v2434
      %v2458 = vpack.c.b16 %v2437, %v2436
      %v2459 = vpack.c.b16 %v2439, %v2438
      %v2460 = vpack.c.b16 %v2441, %v2440
      %v2461 = vpack.c.b16 %v2443, %v2442
      %v2462 = vpack.c.b16 %v2445, %v2444
      %v2463 = vpack.c.b16 %v2447, %v2446
      %2480 = vst [vmem:[#allocation3 + $0x20] sm:$0xff] %v2448
      %2481 = vst [vmem:[#allocation3 + $0x68] sm:$0xff] %v2449
      %2482 = vst [vmem:[#allocation3 + $0xb0] sm:$0xff] %v2450
      %2483 = vst [vmem:[#allocation3 + $0xf8] sm:$0xff] %v2451
      %2484 = vst [vmem:[#allocation3 + $0x140] sm:$0xff] %v2452
      %2485 = vst [vmem:[#allocation3 + $0x188] sm:$0xff] %v2453
      %2486 = vst [vmem:[#allocation3 + $0x1d0] sm:$0xff] %v2454
      %2487 = vst [vmem:[#allocation3 + $0x218] sm:$0xff] %v2455
      %2488 = vst [vmem:[#allocation3 + $0x260] sm:$0xff] %v2456
      %2489 = vst [vmem:[#allocation3 + $0x2a8] sm:$0xff] %v2457
      %2490 = vst [vmem:[#allocation3 + $0x2f0] sm:$0xff] %v2458
      %2491 = vst [vmem:[#allocation3 + $0x338] sm:$0xff] %v2459
      %2492 = vst [vmem:[#allocation3 + $0x380] sm:$0xff] %v2460
      %2493 = vst [vmem:[#allocation3 + $0x3c8] sm:$0xff] %v2461
      %2494 = vst [vmem:[#allocation3 + $0x410] sm:$0xff] %v2462
      %2495 = vst [vmem:[#allocation3 + $0x458] sm:$0xff] %v2463
      %v2496 = vld [vmem:[%s775] sm:$0xe]
      %v2497 = vld [vmem:[%s775 + $0x4] sm:$0xf]
      %v2498 = vld [vmem:[%s775 + $0x8] sm:$0x1]
      %v2499 = vld [vmem:[%s775 + $0xc] sm:$0xe]
      %v2500 = vld [vmem:[%s775 + $0x10] sm:$0xf]
      %v2501 = vld [vmem:[%s775 + $0x14] sm:$0x1]
      %v2502 = vld [vmem:[%s775 + $0x18] sm:$0xe]
      %v2503 = vld [vmem:[%s775 + $0x1c] sm:$0xf]
      %v2504 = vld [vmem:[%s775 + $0x20] sm:$0x1]
      %v2505 = vld [vmem:[%s775 + $0x24] sm:$0xe]
      %v2506 = vld [vmem:[%s775 + $0x28] sm:$0xf]
      %v2507 = vld [vmem:[%s775 + $0x2c] sm:$0x1]
      %v2508 = vld [vmem:[%s775 + $0x30] sm:$0xe]
      %v2509 = vld [vmem:[%s775 + $0x34] sm:$0xf]
      %v2510 = vld [vmem:[%s775 + $0x38] sm:$0x1]
      %v2511 = vld [vmem:[%s775 + $0x3c] sm:$0xe]
      %v2512 = vld [vmem:[%s775 + $0x40] sm:$0xf]
      %v2513 = vld [vmem:[%s775 + $0x44] sm:$0x1]
      %v2514 = vld [vmem:[%s775 + $0x48] sm:$0xe]
      %v2515 = vld [vmem:[%s775 + $0x4c] sm:$0xf]
      %v2516 = vld [vmem:[%s775 + $0x50] sm:$0x1]
      %v2517 = vld [vmem:[%s775 + $0x54] sm:$0xe]
      %v2518 = vld [vmem:[%s775 + $0x58] sm:$0xf]
      %v2519 = vld [vmem:[%s775 + $0x5c] sm:$0x1]
      %v2520 = vld [vmem:[%s775 + $0x60] sm:$0xe]
      %v2521 = vld [vmem:[%s775 + $0x64] sm:$0xf]
      %v2522 = vld [vmem:[%s775 + $0x68] sm:$0x1]
      %v2523 = vld [vmem:[%s775 + $0x6c] sm:$0xe]
      %v2524 = vld [vmem:[%s775 + $0x70] sm:$0xf]
      %v2525 = vld [vmem:[%s775 + $0x74] sm:$0x1]
      %v2526 = vld [vmem:[%s775 + $0x78] sm:$0xe]
      %v2527 = vld [vmem:[%s775 + $0x7c] sm:$0xf]
      %v2528 = vld [vmem:[%s775 + $0x80] sm:$0x1]
      %v2529 = vld [vmem:[%s775 + $0x84] sm:$0xe]
      %v2530 = vld [vmem:[%s775 + $0x88] sm:$0xf]
      %v2531 = vld [vmem:[%s775 + $0x8c] sm:$0x1]
      %v2532 = vld [vmem:[%s775 + $0x90] sm:$0xe]
      %v2533 = vld [vmem:[%s775 + $0x94] sm:$0xf]
      %v2534 = vld [vmem:[%s775 + $0x98] sm:$0x1]
      %v2535 = vld [vmem:[%s775 + $0x9c] sm:$0xe]
      %v2536 = vld [vmem:[%s775 + $0xa0] sm:$0xf]
      %v2537 = vld [vmem:[%s775 + $0xa4] sm:$0x1]
      %v2538 = vld [vmem:[%s775 + $0xa8] sm:$0xe]
      %v2539 = vld [vmem:[%s775 + $0xac] sm:$0xf]
      %v2540 = vld [vmem:[%s775 + $0xb0] sm:$0x1]
      %v2541 = vld [vmem:[%s775 + $0xb4] sm:$0xe]
      %v2542 = vld [vmem:[%s775 + $0xb8] sm:$0xf]
      %v2543 = vld [vmem:[%s775 + $0xbc] sm:$0x1]
      %v2592 = vrot.slane %v2496, 5
      %v2593 = vrot.slane %v2592, 4
      %v2594 = vrot.slane %v2497, 5
      %v2595 = vsel %vm1647, %v2593, %v2594
      %v2596 = vrot.slane %v2594, 4
      %v2597 = vrot.slane %v2498, 5
      %v2598 = vsel %vm1647, %v2596, %v2597
      %v2599 = vrot.slane %v2499, 5
      %v2600 = vrot.slane %v2599, 4
      %v2601 = vrot.slane %v2500, 5
      %v2602 = vsel %vm1647, %v2600, %v2601
      %v2603 = vrot.slane %v2601, 4
      %v2604 = vrot.slane %v2501, 5
      %v2605 = vsel %vm1647, %v2603, %v2604
      %v2606 = vrot.slane %v2502, 5
      %v2607 = vrot.slane %v2606, 4
      %v2608 = vrot.slane %v2503, 5
      %v2609 = vsel %vm1647, %v2607, %v2608
      %v2610 = vrot.slane %v2608, 4
      %v2611 = vrot.slane %v2504, 5
      %v2612 = vsel %vm1647, %v2610, %v2611
      %v2613 = vrot.slane %v2505, 5
      %v2614 = vrot.slane %v2613, 4
      %v2615 = vrot.slane %v2506, 5
      %v2616 = vsel %vm1647, %v2614, %v2615
      %v2617 = vrot.slane %v2615, 4
      %v2618 = vrot.slane %v2507, 5
      %v2619 = vsel %vm1647, %v2617, %v2618
      %v2620 = vrot.slane %v2508, 5
      %v2621 = vrot.slane %v2620, 4
      %v2622 = vrot.slane %v2509, 5
      %v2623 = vsel %vm1647, %v2621, %v2622
      %v2624 = vrot.slane %v2622, 4
      %v2625 = vrot.slane %v2510, 5
      %v2626 = vsel %vm1647, %v2624, %v2625
      %v2627 = vrot.slane %v2511, 5
      %v2628 = vrot.slane %v2627, 4
      %v2629 = vrot.slane %v2512, 5
      %v2630 = vsel %vm1647, %v2628, %v2629
      %v2631 = vrot.slane %v2629, 4
      %v2632 = vrot.slane %v2513, 5
      %v2633 = vsel %vm1647, %v2631, %v2632
      %v2634 = vrot.slane %v2514, 5
      %v2635 = vrot.slane %v2634, 4
      %v2636 = vrot.slane %v2515, 5
      %v2637 = vsel %vm1647, %v2635, %v2636
      %v2638 = vrot.slane %v2636, 4
      %v2639 = vrot.slane %v2516, 5
      %v2640 = vsel %vm1647, %v2638, %v2639
      %v2641 = vrot.slane %v2517, 5
      %v2642 = vrot.slane %v2641, 4
      %v2643 = vrot.slane %v2518, 5
      %v2644 = vsel %vm1647, %v2642, %v2643
      %v2645 = vrot.slane %v2643, 4
      %v2646 = vrot.slane %v2519, 5
      %v2647 = vsel %vm1647, %v2645, %v2646
      %v2648 = vrot.slane %v2520, 5
      %v2649 = vrot.slane %v2648, 4
      %v2650 = vrot.slane %v2521, 5
      %v2651 = vsel %vm1647, %v2649, %v2650
      %v2652 = vrot.slane %v2650, 4
      %v2653 = vrot.slane %v2522, 5
      %v2654 = vsel %vm1647, %v2652, %v2653
      %v2655 = vrot.slane %v2523, 5
      %v2656 = vrot.slane %v2655, 4
      %v2657 = vrot.slane %v2524, 5
      %v2658 = vsel %vm1647, %v2656, %v2657
      %v2659 = vrot.slane %v2657, 4
      %v2660 = vrot.slane %v2525, 5
      %v2661 = vsel %vm1647, %v2659, %v2660
      %v2662 = vrot.slane %v2526, 5
      %v2663 = vrot.slane %v2662, 4
      %v2664 = vrot.slane %v2527, 5
      %v2665 = vsel %vm1647, %v2663, %v2664
      %v2666 = vrot.slane %v2664, 4
      %v2667 = vrot.slane %v2528, 5
      %v2668 = vsel %vm1647, %v2666, %v2667
      %v2669 = vrot.slane %v2529, 5
      %v2670 = vrot.slane %v2669, 4
      %v2671 = vrot.slane %v2530, 5
      %v2672 = vsel %vm1647, %v2670, %v2671
      %v2673 = vrot.slane %v2671, 4
      %v2674 = vrot.slane %v2531, 5
      %v2675 = vsel %vm1647, %v2673, %v2674
      %v2676 = vrot.slane %v2532, 5
      %v2677 = vrot.slane %v2676, 4
      %v2678 = vrot.slane %v2533, 5
      %v2679 = vsel %vm1647, %v2677, %v2678
      %v2680 = vrot.slane %v2678, 4
      %v2681 = vrot.slane %v2534, 5
      %v2682 = vsel %vm1647, %v2680, %v2681
      %v2683 = vrot.slane %v2535, 5
      %v2684 = vrot.slane %v2683, 4
      %v2685 = vrot.slane %v2536, 5
      %v2686 = vsel %vm1647, %v2684, %v2685
      %v2687 = vrot.slane %v2685, 4
      %v2688 = vrot.slane %v2537, 5
      %v2689 = vsel %vm1647, %v2687, %v2688
      %v2690 = vrot.slane %v2538, 5
      %v2691 = vrot.slane %v2690, 4
      %v2692 = vrot.slane %v2539, 5
      %v2693 = vsel %vm1647, %v2691, %v2692
      %v2694 = vrot.slane %v2692, 4
      %v2695 = vrot.slane %v2540, 5
      %v2696 = vsel %vm1647, %v2694, %v2695
      %v2697 = vrot.slane %v2541, 5
      %v2698 = vrot.slane %v2697, 4
      %v2699 = vrot.slane %v2542, 5
      %v2700 = vsel %vm1647, %v2698, %v2699
      %v2701 = vrot.slane %v2699, 4
      %v2702 = vrot.slane %v2543, 5
      %v2703 = vsel %vm1647, %v2701, %v2702
      %v2704 = vunpack.c.l.b16 %v2595
      %v2705 = vunpack.c.l.b16 %v2598
      %v2706 = vunpack.c.l.b16 %v2602
      %v2707 = vunpack.c.l.b16 %v2605
      %v2708 = vunpack.c.l.b16 %v2609
      %v2709 = vunpack.c.l.b16 %v2612
      %v2710 = vunpack.c.l.b16 %v2616
      %v2711 = vunpack.c.l.b16 %v2619
      %v2712 = vunpack.c.l.b16 %v2623
      %v2713 = vunpack.c.l.b16 %v2626
      %v2714 = vunpack.c.l.b16 %v2630
      %v2715 = vunpack.c.l.b16 %v2633
      %v2716 = vunpack.c.l.b16 %v2637
      %v2717 = vunpack.c.l.b16 %v2640
      %v2718 = vunpack.c.l.b16 %v2644
      %v2719 = vunpack.c.l.b16 %v2647
      %v2720 = vunpack.c.l.b16 %v2651
      %v2721 = vunpack.c.l.b16 %v2654
      %v2722 = vunpack.c.l.b16 %v2658
      %v2723 = vunpack.c.l.b16 %v2661
      %v2724 = vunpack.c.l.b16 %v2665
      %v2725 = vunpack.c.l.b16 %v2668
      %v2726 = vunpack.c.l.b16 %v2672
      %v2727 = vunpack.c.l.b16 %v2675
      %v2728 = vunpack.c.l.b16 %v2679
      %v2729 = vunpack.c.l.b16 %v2682
      %v2730 = vunpack.c.l.b16 %v2686
      %v2731 = vunpack.c.l.b16 %v2689
      %v2732 = vunpack.c.l.b16 %v2693
      %v2733 = vunpack.c.l.b16 %v2696
      %v2734 = vunpack.c.l.b16 %v2700
      %v2735 = vunpack.c.l.b16 %v2703
      %v2736 = vpack.c.b16 %v2705, %v2704
      %v2737 = vpack.c.b16 %v2707, %v2706
      %v2738 = vpack.c.b16 %v2709, %v2708
      %v2739 = vpack.c.b16 %v2711, %v2710
      %v2740 = vpack.c.b16 %v2713, %v2712
      %v2741 = vpack.c.b16 %v2715, %v2714
      %v2742 = vpack.c.b16 %v2717, %v2716
      %v2743 = vpack.c.b16 %v2719, %v2718
      %v2744 = vpack.c.b16 %v2721, %v2720
      %v2745 = vpack.c.b16 %v2723, %v2722
      %v2746 = vpack.c.b16 %v2725, %v2724
      %v2747 = vpack.c.b16 %v2727, %v2726
      %v2748 = vpack.c.b16 %v2729, %v2728
      %v2749 = vpack.c.b16 %v2731, %v2730
      %v2750 = vpack.c.b16 %v2733, %v2732
      %v2751 = vpack.c.b16 %v2735, %v2734
      %2768 = vst [vmem:[#allocation3 + $0x28] sm:$0xff] %v2736
      %2769 = vst [vmem:[#allocation3 + $0x70] sm:$0xff] %v2737
      %2770 = vst [vmem:[#allocation3 + $0xb8] sm:$0xff] %v2738
      %2771 = vst [vmem:[#allocation3 + $0x100] sm:$0xff] %v2739
      %2772 = vst [vmem:[#allocation3 + $0x148] sm:$0xff] %v2740
      %2773 = vst [vmem:[#allocation3 + $0x190] sm:$0xff] %v2741
      %2774 = vst [vmem:[#allocation3 + $0x1d8] sm:$0xff] %v2742
      %2775 = vst [vmem:[#allocation3 + $0x220] sm:$0xff] %v2743
      %2776 = vst [vmem:[#allocation3 + $0x268] sm:$0xff] %v2744
      %2777 = vst [vmem:[#allocation3 + $0x2b0] sm:$0xff] %v2745
      %2778 = vst [vmem:[#allocation3 + $0x2f8] sm:$0xff] %v2746
      %2779 = vst [vmem:[#allocation3 + $0x340] sm:$0xff] %v2747
      %2780 = vst [vmem:[#allocation3 + $0x388] sm:$0xff] %v2748
      %2781 = vst [vmem:[#allocation3 + $0x3d0] sm:$0xff] %v2749
      %2782 = vst [vmem:[#allocation3 + $0x418] sm:$0xff] %v2750
      %2783 = vst [vmem:[#allocation3 + $0x460] sm:$0xff] %v2751
      %s2784 = scalar_lea.vmem [#allocation2], 24
      %v2785 = vld [vmem:[%s2784] sm:$0xf]
      %v2786 = vld [vmem:[%s2784 + $0x4] sm:$0xf]
      %v2787 = vld [vmem:[%s2784 + $0xc] sm:$0xf]
      %v2788 = vld [vmem:[%s2784 + $0x10] sm:$0xf]
      %v2789 = vld [vmem:[%s2784 + $0x18] sm:$0xf]
      %v2790 = vld [vmem:[%s2784 + $0x1c] sm:$0xf]
      %v2791 = vld [vmem:[%s2784 + $0x24] sm:$0xf]
      %v2792 = vld [vmem:[%s2784 + $0x28] sm:$0xf]
      %v2793 = vld [vmem:[%s2784 + $0x30] sm:$0xf]
      %v2794 = vld [vmem:[%s2784 + $0x34] sm:$0xf]
      %v2795 = vld [vmem:[%s2784 + $0x3c] sm:$0xf]
      %v2796 = vld [vmem:[%s2784 + $0x40] sm:$0xf]
      %v2797 = vld [vmem:[%s2784 + $0x48] sm:$0xf]
      %v2798 = vld [vmem:[%s2784 + $0x4c] sm:$0xf]
      %v2799 = vld [vmem:[%s2784 + $0x54] sm:$0xf]
      %v2800 = vld [vmem:[%s2784 + $0x58] sm:$0xf]
      %v2801 = vld [vmem:[%s2784 + $0x60] sm:$0xf]
      %v2802 = vld [vmem:[%s2784 + $0x64] sm:$0xf]
      %v2803 = vld [vmem:[%s2784 + $0x6c] sm:$0xf]
      %v2804 = vld [vmem:[%s2784 + $0x70] sm:$0xf]
      %v2805 = vld [vmem:[%s2784 + $0x78] sm:$0xf]
      %v2806 = vld [vmem:[%s2784 + $0x7c] sm:$0xf]
      %v2807 = vld [vmem:[%s2784 + $0x84] sm:$0xf]
      %v2808 = vld [vmem:[%s2784 + $0x88] sm:$0xf]
      %v2809 = vld [vmem:[%s2784 + $0x90] sm:$0xf]
      %v2810 = vld [vmem:[%s2784 + $0x94] sm:$0xf]
      %v2811 = vld [vmem:[%s2784 + $0x9c] sm:$0xf]
      %v2812 = vld [vmem:[%s2784 + $0xa0] sm:$0xf]
      %v2813 = vld [vmem:[%s2784 + $0xa8] sm:$0xf]
      %v2814 = vld [vmem:[%s2784 + $0xac] sm:$0xf]
      %v2815 = vld [vmem:[%s2784 + $0xb4] sm:$0xf]
      %v2816 = vld [vmem:[%s2784 + $0xb8] sm:$0xf]
      %v2849 = vunpack.c.l.b16 %v2785
      %v2850 = vunpack.c.l.b16 %v2786
      %v2851 = vunpack.c.l.b16 %v2787
      %v2852 = vunpack.c.l.b16 %v2788
      %v2853 = vunpack.c.l.b16 %v2789
      %v2854 = vunpack.c.l.b16 %v2790
      %v2855 = vunpack.c.l.b16 %v2791
      %v2856 = vunpack.c.l.b16 %v2792
      %v2857 = vunpack.c.l.b16 %v2793
      %v2858 = vunpack.c.l.b16 %v2794
      %v2859 = vunpack.c.l.b16 %v2795
      %v2860 = vunpack.c.l.b16 %v2796
      %v2861 = vunpack.c.l.b16 %v2797
      %v2862 = vunpack.c.l.b16 %v2798
      %v2863 = vunpack.c.l.b16 %v2799
      %v2864 = vunpack.c.l.b16 %v2800
      %v2865 = vunpack.c.l.b16 %v2801
      %v2866 = vunpack.c.l.b16 %v2802
      %v2867 = vunpack.c.l.b16 %v2803
      %v2868 = vunpack.c.l.b16 %v2804
      %v2869 = vunpack.c.l.b16 %v2805
      %v2870 = vunpack.c.l.b16 %v2806
      %v2871 = vunpack.c.l.b16 %v2807
      %v2872 = vunpack.c.l.b16 %v2808
      %v2873 = vunpack.c.l.b16 %v2809
      %v2874 = vunpack.c.l.b16 %v2810
      %v2875 = vunpack.c.l.b16 %v2811
      %v2876 = vunpack.c.l.b16 %v2812
      %v2877 = vunpack.c.l.b16 %v2813
      %v2878 = vunpack.c.l.b16 %v2814
      %v2879 = vunpack.c.l.b16 %v2815
      %v2880 = vunpack.c.l.b16 %v2816
      %v2881 = vpack.c.b16 %v2850, %v2849
      %v2882 = vpack.c.b16 %v2852, %v2851
      %v2883 = vpack.c.b16 %v2854, %v2853
      %v2884 = vpack.c.b16 %v2856, %v2855
      %v2885 = vpack.c.b16 %v2858, %v2857
      %v2886 = vpack.c.b16 %v2860, %v2859
      %v2887 = vpack.c.b16 %v2862, %v2861
      %v2888 = vpack.c.b16 %v2864, %v2863
      %v2889 = vpack.c.b16 %v2866, %v2865
      %v2890 = vpack.c.b16 %v2868, %v2867
      %v2891 = vpack.c.b16 %v2870, %v2869
      %v2892 = vpack.c.b16 %v2872, %v2871
      %v2893 = vpack.c.b16 %v2874, %v2873
      %v2894 = vpack.c.b16 %v2876, %v2875
      %v2895 = vpack.c.b16 %v2878, %v2877
      %v2896 = vpack.c.b16 %v2880, %v2879
      %2913 = vst [vmem:[#allocation3 + $0x30] sm:$0xff] %v2881
      %2914 = vst [vmem:[#allocation3 + $0x78] sm:$0xff] %v2882
      %2915 = vst [vmem:[#allocation3 + $0xc0] sm:$0xff] %v2883
      %2916 = vst [vmem:[#allocation3 + $0x108] sm:$0xff] %v2884
      %2917 = vst [vmem:[#allocation3 + $0x150] sm:$0xff] %v2885
      %2918 = vst [vmem:[#allocation3 + $0x198] sm:$0xff] %v2886
      %2919 = vst [vmem:[#allocation3 + $0x1e0] sm:$0xff] %v2887
      %2920 = vst [vmem:[#allocation3 + $0x228] sm:$0xff] %v2888
      %2921 = vst [vmem:[#allocation3 + $0x270] sm:$0xff] %v2889
      %2922 = vst [vmem:[#allocation3 + $0x2b8] sm:$0xff] %v2890
      %2923 = vst [vmem:[#allocation3 + $0x300] sm:$0xff] %v2891
      %2924 = vst [vmem:[#allocation3 + $0x348] sm:$0xff] %v2892
      %2925 = vst [vmem:[#allocation3 + $0x390] sm:$0xff] %v2893
      %2926 = vst [vmem:[#allocation3 + $0x3d8] sm:$0xff] %v2894
      %2927 = vst [vmem:[#allocation3 + $0x420] sm:$0xff] %v2895
      %2928 = vst [vmem:[#allocation3 + $0x468] sm:$0xff] %v2896
      %v2929 = vld [vmem:[%s2784] sm:$0xf]
      %v2930 = vld [vmem:[%s2784 + $0x4] sm:$0xf]
      %v2931 = vld [vmem:[%s2784 + $0x8] sm:$0x1]
      %v2932 = vld [vmem:[%s2784 + $0xc] sm:$0xf]
      %v2933 = vld [vmem:[%s2784 + $0x10] sm:$0xf]
      %v2934 = vld [vmem:[%s2784 + $0x14] sm:$0x1]
      %v2935 = vld [vmem:[%s2784 + $0x18] sm:$0xf]
      %v2936 = vld [vmem:[%s2784 + $0x1c] sm:$0xf]
      %v2937 = vld [vmem:[%s2784 + $0x20] sm:$0x1]
      %v2938 = vld [vmem:[%s2784 + $0x24] sm:$0xf]
      %v2939 = vld [vmem:[%s2784 + $0x28] sm:$0xf]
      %v2940 = vld [vmem:[%s2784 + $0x2c] sm:$0x1]
      %v2941 = vld [vmem:[%s2784 + $0x30] sm:$0xf]
      %v2942 = vld [vmem:[%s2784 + $0x34] sm:$0xf]
      %v2943 = vld [vmem:[%s2784 + $0x38] sm:$0x1]
      %v2944 = vld [vmem:[%s2784 + $0x3c] sm:$0xf]
      %v2945 = vld [vmem:[%s2784 + $0x40] sm:$0xf]
      %v2946 = vld [vmem:[%s2784 + $0x44] sm:$0x1]
      %v2947 = vld [vmem:[%s2784 + $0x48] sm:$0xf]
      %v2948 = vld [vmem:[%s2784 + $0x4c] sm:$0xf]
      %v2949 = vld [vmem:[%s2784 + $0x50] sm:$0x1]
      %v2950 = vld [vmem:[%s2784 + $0x54] sm:$0xf]
      %v2951 = vld [vmem:[%s2784 + $0x58] sm:$0xf]
      %v2952 = vld [vmem:[%s2784 + $0x5c] sm:$0x1]
      %v2953 = vld [vmem:[%s2784 + $0x60] sm:$0xf]
      %v2954 = vld [vmem:[%s2784 + $0x64] sm:$0xf]
      %v2955 = vld [vmem:[%s2784 + $0x68] sm:$0x1]
      %v2956 = vld [vmem:[%s2784 + $0x6c] sm:$0xf]
      %v2957 = vld [vmem:[%s2784 + $0x70] sm:$0xf]
      %v2958 = vld [vmem:[%s2784 + $0x74] sm:$0x1]
      %v2959 = vld [vmem:[%s2784 + $0x78] sm:$0xf]
      %v2960 = vld [vmem:[%s2784 + $0x7c] sm:$0xf]
      %v2961 = vld [vmem:[%s2784 + $0x80] sm:$0x1]
      %v2962 = vld [vmem:[%s2784 + $0x84] sm:$0xf]
      %v2963 = vld [vmem:[%s2784 + $0x88] sm:$0xf]
      %v2964 = vld [vmem:[%s2784 + $0x8c] sm:$0x1]
      %v2965 = vld [vmem:[%s2784 + $0x90] sm:$0xf]
      %v2966 = vld [vmem:[%s2784 + $0x94] sm:$0xf]
      %v2967 = vld [vmem:[%s2784 + $0x98] sm:$0x1]
      %v2968 = vld [vmem:[%s2784 + $0x9c] sm:$0xf]
      %v2969 = vld [vmem:[%s2784 + $0xa0] sm:$0xf]
      %v2970 = vld [vmem:[%s2784 + $0xa4] sm:$0x1]
      %v2971 = vld [vmem:[%s2784 + $0xa8] sm:$0xf]
      %v2972 = vld [vmem:[%s2784 + $0xac] sm:$0xf]
      %v2973 = vld [vmem:[%s2784 + $0xb0] sm:$0x1]
      %v2974 = vld [vmem:[%s2784 + $0xb4] sm:$0xf]
      %v2975 = vld [vmem:[%s2784 + $0xb8] sm:$0xf]
      %v2976 = vld [vmem:[%s2784 + $0xbc] sm:$0x1]
      %v2978 = vshrl.u32 %v2929, 16
      %v2980 = vrot.slane %v2978, 4
      %v2981 = vshll.u32 %v2929, 16
      %v2983 = vrot.slane %v2981, 5
      %v2984 = vor.u32 %v2980, %v2983
      %v2985 = vrot.slane %v2984, 4
      %v2987 = vshll.u32 %v2930, 16
      %v2989 = vrot.slane %v2987, 5
      %v2990 = vsel %vm1084, %v2985, %v2989
      %v2991 = vshrl.u32 %v2930, 16
      %v2993 = vrot.slane %v2991, 4
      %v2994 = vor.u32 %v2993, %v2989
      %v2995 = vrot.slane %v2994, 4
      %v2997 = vshll.u32 %v2931, 16
      %v2999 = vrot.slane %v2997, 5
      %v3000 = vsel %vm1084, %v2995, %v2999
      %v3002 = vshrl.u32 %v2932, 16
      %v3004 = vrot.slane %v3002, 4
      %v3005 = vshll.u32 %v2932, 16
      %v3007 = vrot.slane %v3005, 5
      %v3008 = vor.u32 %v3004, %v3007
      %v3009 = vrot.slane %v3008, 4
      %v3011 = vshll.u32 %v2933, 16
      %v3013 = vrot.slane %v3011, 5
      %v3014 = vsel %vm1084, %v3009, %v3013
      %v3015 = vshrl.u32 %v2933, 16
      %v3017 = vrot.slane %v3015, 4
      %v3018 = vor.u32 %v3017, %v3013
      %v3019 = vrot.slane %v3018, 4
      %v3021 = vshll.u32 %v2934, 16
      %v3023 = vrot.slane %v3021, 5
      %v3024 = vsel %vm1084, %v3019, %v3023
      %v3026 = vshrl.u32 %v2935, 16
      %v3028 = vrot.slane %v3026, 4
      %v3029 = vshll.u32 %v2935, 16
      %v3031 = vrot.slane %v3029, 5
      %v3032 = vor.u32 %v3028, %v3031
      %v3033 = vrot.slane %v3032, 4
      %v3035 = vshll.u32 %v2936, 16
      %v3037 = vrot.slane %v3035, 5
      %v3038 = vsel %vm1084, %v3033, %v3037
      %v3039 = vshrl.u32 %v2936, 16
      %v3041 = vrot.slane %v3039, 4
      %v3042 = vor.u32 %v3041, %v3037
      %v3043 = vrot.slane %v3042, 4
      %v3045 = vshll.u32 %v2937, 16
      %v3047 = vrot.slane %v3045, 5
      %v3048 = vsel %vm1084, %v3043, %v3047
      %v3050 = vshrl.u32 %v2938, 16
      %v3052 = vrot.slane %v3050, 4
      %v3053 = vshll.u32 %v2938, 16
      %v3055 = vrot.slane %v3053, 5
      %v3056 = vor.u32 %v3052, %v3055
      %v3057 = vrot.slane %v3056, 4
      %v3059 = vshll.u32 %v2939, 16
      %v3061 = vrot.slane %v3059, 5
      %v3062 = vsel %vm1084, %v3057, %v3061
      %v3063 = vshrl.u32 %v2939, 16
      %v3065 = vrot.slane %v3063, 4
      %v3066 = vor.u32 %v3065, %v3061
      %v3067 = vrot.slane %v3066, 4
      %v3069 = vshll.u32 %v2940, 16
      %v3071 = vrot.slane %v3069, 5
      %v3072 = vsel %vm1084, %v3067, %v3071
      %v3074 = vshrl.u32 %v2941, 16
      %v3076 = vrot.slane %v3074, 4
      %v3077 = vshll.u32 %v2941, 16
      %v3079 = vrot.slane %v3077, 5
      %v3080 = vor.u32 %v3076, %v3079
      %v3081 = vrot.slane %v3080, 4
      %v3083 = vshll.u32 %v2942, 16
      %v3085 = vrot.slane %v3083, 5
      %v3086 = vsel %vm1084, %v3081, %v3085
      %v3087 = vshrl.u32 %v2942, 16
      %v3089 = vrot.slane %v3087, 4
      %v3090 = vor.u32 %v3089, %v3085
      %v3091 = vrot.slane %v3090, 4
      %v3093 = vshll.u32 %v2943, 16
      %v3095 = vrot.slane %v3093, 5
      %v3096 = vsel %vm1084, %v3091, %v3095
      %v3098 = vshrl.u32 %v2944, 16
      %v3100 = vrot.slane %v3098, 4
      %v3101 = vshll.u32 %v2944, 16
      %v3103 = vrot.slane %v3101, 5
      %v3104 = vor.u32 %v3100, %v3103
      %v3105 = vrot.slane %v3104, 4
      %v3107 = vshll.u32 %v2945, 16
      %v3109 = vrot.slane %v3107, 5
      %v3110 = vsel %vm1084, %v3105, %v3109
      %v3111 = vshrl.u32 %v2945, 16
      %v3113 = vrot.slane %v3111, 4
      %v3114 = vor.u32 %v3113, %v3109
      %v3115 = vrot.slane %v3114, 4
      %v3117 = vshll.u32 %v2946, 16
      %v3119 = vrot.slane %v3117, 5
      %v3120 = vsel %vm1084, %v3115, %v3119
      %v3122 = vshrl.u32 %v2947, 16
      %v3124 = vrot.slane %v3122, 4
      %v3125 = vshll.u32 %v2947, 16
      %v3127 = vrot.slane %v3125, 5
      %v3128 = vor.u32 %v3124, %v3127
      %v3129 = vrot.slane %v3128, 4
      %v3131 = vshll.u32 %v2948, 16
      %v3133 = vrot.slane %v3131, 5
      %v3134 = vsel %vm1084, %v3129, %v3133
      %v3135 = vshrl.u32 %v2948, 16
      %v3137 = vrot.slane %v3135, 4
      %v3138 = vor.u32 %v3137, %v3133
      %v3139 = vrot.slane %v3138, 4
      %v3141 = vshll.u32 %v2949, 16
      %v3143 = vrot.slane %v3141, 5
      %v3144 = vsel %vm1084, %v3139, %v3143
      %v3146 = vshrl.u32 %v2950, 16
      %v3148 = vrot.slane %v3146, 4
      %v3149 = vshll.u32 %v2950, 16
      %v3151 = vrot.slane %v3149, 5
      %v3152 = vor.u32 %v3148, %v3151
      %v3153 = vrot.slane %v3152, 4
      %v3155 = vshll.u32 %v2951, 16
      %v3157 = vrot.slane %v3155, 5
      %v3158 = vsel %vm1084, %v3153, %v3157
      %v3159 = vshrl.u32 %v2951, 16
      %v3161 = vrot.slane %v3159, 4
      %v3162 = vor.u32 %v3161, %v3157
      %v3163 = vrot.slane %v3162, 4
      %v3165 = vshll.u32 %v2952, 16
      %v3167 = vrot.slane %v3165, 5
      %v3168 = vsel %vm1084, %v3163, %v3167
      %v3170 = vshrl.u32 %v2953, 16
      %v3172 = vrot.slane %v3170, 4
      %v3173 = vshll.u32 %v2953, 16
      %v3175 = vrot.slane %v3173, 5
      %v3176 = vor.u32 %v3172, %v3175
      %v3177 = vrot.slane %v3176, 4
      %v3179 = vshll.u32 %v2954, 16
      %v3181 = vrot.slane %v3179, 5
      %v3182 = vsel %vm1084, %v3177, %v3181
      %v3183 = vshrl.u32 %v2954, 16
      %v3185 = vrot.slane %v3183, 4
      %v3186 = vor.u32 %v3185, %v3181
      %v3187 = vrot.slane %v3186, 4
      %v3189 = vshll.u32 %v2955, 16
      %v3191 = vrot.slane %v3189, 5
      %v3192 = vsel %vm1084, %v3187, %v3191
      %v3194 = vshrl.u32 %v2956, 16
      %v3196 = vrot.slane %v3194, 4
      %v3197 = vshll.u32 %v2956, 16
      %v3199 = vrot.slane %v3197, 5
      %v3200 = vor.u32 %v3196, %v3199
      %v3201 = vrot.slane %v3200, 4
      %v3203 = vshll.u32 %v2957, 16
      %v3205 = vrot.slane %v3203, 5
      %v3206 = vsel %vm1084, %v3201, %v3205
      %v3207 = vshrl.u32 %v2957, 16
      %v3209 = vrot.slane %v3207, 4
      %v3210 = vor.u32 %v3209, %v3205
      %v3211 = vrot.slane %v3210, 4
      %v3213 = vshll.u32 %v2958, 16
      %v3215 = vrot.slane %v3213, 5
      %v3216 = vsel %vm1084, %v3211, %v3215
      %v3218 = vshrl.u32 %v2959, 16
      %v3220 = vrot.slane %v3218, 4
      %v3221 = vshll.u32 %v2959, 16
      %v3223 = vrot.slane %v3221, 5
      %v3224 = vor.u32 %v3220, %v3223
      %v3225 = vrot.slane %v3224, 4
      %v3227 = vshll.u32 %v2960, 16
      %v3229 = vrot.slane %v3227, 5
      %v3230 = vsel %vm1084, %v3225, %v3229
      %v3231 = vshrl.u32 %v2960, 16
      %v3233 = vrot.slane %v3231, 4
      %v3234 = vor.u32 %v3233, %v3229
      %v3235 = vrot.slane %v3234, 4
      %v3237 = vshll.u32 %v2961, 16
      %v3239 = vrot.slane %v3237, 5
      %v3240 = vsel %vm1084, %v3235, %v3239
      %v3242 = vshrl.u32 %v2962, 16
      %v3244 = vrot.slane %v3242, 4
      %v3245 = vshll.u32 %v2962, 16
      %v3247 = vrot.slane %v3245, 5
      %v3248 = vor.u32 %v3244, %v3247
      %v3249 = vrot.slane %v3248, 4
      %v3251 = vshll.u32 %v2963, 16
      %v3253 = vrot.slane %v3251, 5
      %v3254 = vsel %vm1084, %v3249, %v3253
      %v3255 = vshrl.u32 %v2963, 16
      %v3257 = vrot.slane %v3255, 4
      %v3258 = vor.u32 %v3257, %v3253
      %v3259 = vrot.slane %v3258, 4
      %v3261 = vshll.u32 %v2964, 16
      %v3263 = vrot.slane %v3261, 5
      %v3264 = vsel %vm1084, %v3259, %v3263
      %v3266 = vshrl.u32 %v2965, 16
      %v3268 = vrot.slane %v3266, 4
      %v3269 = vshll.u32 %v2965, 16
      %v3271 = vrot.slane %v3269, 5
      %v3272 = vor.u32 %v3268, %v3271
      %v3273 = vrot.slane %v3272, 4
      %v3275 = vshll.u32 %v2966, 16
      %v3277 = vrot.slane %v3275, 5
      %v3278 = vsel %vm1084, %v3273, %v3277
      %v3279 = vshrl.u32 %v2966, 16
      %v3281 = vrot.slane %v3279, 4
      %v3282 = vor.u32 %v3281, %v3277
      %v3283 = vrot.slane %v3282, 4
      %v3285 = vshll.u32 %v2967, 16
      %v3287 = vrot.slane %v3285, 5
      %v3288 = vsel %vm1084, %v3283, %v3287
      %v3290 = vshrl.u32 %v2968, 16
      %v3292 = vrot.slane %v3290, 4
      %v3293 = vshll.u32 %v2968, 16
      %v3295 = vrot.slane %v3293, 5
      %v3296 = vor.u32 %v3292, %v3295
      %v3297 = vrot.slane %v3296, 4
      %v3299 = vshll.u32 %v2969, 16
      %v3301 = vrot.slane %v3299, 5
      %v3302 = vsel %vm1084, %v3297, %v3301
      %v3303 = vshrl.u32 %v2969, 16
      %v3305 = vrot.slane %v3303, 4
      %v3306 = vor.u32 %v3305, %v3301
      %v3307 = vrot.slane %v3306, 4
      %v3309 = vshll.u32 %v2970, 16
      %v3311 = vrot.slane %v3309, 5
      %v3312 = vsel %vm1084, %v3307, %v3311
      %v3314 = vshrl.u32 %v2971, 16
      %v3316 = vrot.slane %v3314, 4
      %v3317 = vshll.u32 %v2971, 16
      %v3319 = vrot.slane %v3317, 5
      %v3320 = vor.u32 %v3316, %v3319
      %v3321 = vrot.slane %v3320, 4
      %v3323 = vshll.u32 %v2972, 16
      %v3325 = vrot.slane %v3323, 5
      %v3326 = vsel %vm1084, %v3321, %v3325
      %v3327 = vshrl.u32 %v2972, 16
      %v3329 = vrot.slane %v3327, 4
      %v3330 = vor.u32 %v3329, %v3325
      %v3331 = vrot.slane %v3330, 4
      %v3333 = vshll.u32 %v2973, 16
      %v3335 = vrot.slane %v3333, 5
      %v3336 = vsel %vm1084, %v3331, %v3335
      %v3338 = vshrl.u32 %v2974, 16
      %v3340 = vrot.slane %v3338, 4
      %v3341 = vshll.u32 %v2974, 16
      %v3343 = vrot.slane %v3341, 5
      %v3344 = vor.u32 %v3340, %v3343
      %v3345 = vrot.slane %v3344, 4
      %v3347 = vshll.u32 %v2975, 16
      %v3349 = vrot.slane %v3347, 5
      %v3350 = vsel %vm1084, %v3345, %v3349
      %v3351 = vshrl.u32 %v2975, 16
      %v3353 = vrot.slane %v3351, 4
      %v3354 = vor.u32 %v3353, %v3349
      %v3355 = vrot.slane %v3354, 4
      %v3357 = vshll.u32 %v2976, 16
      %v3359 = vrot.slane %v3357, 5
      %v3360 = vsel %vm1084, %v3355, %v3359
      %v3361 = vunpack.c.l.b16 %v2990
      %v3362 = vunpack.c.l.b16 %v3000
      %v3363 = vunpack.c.l.b16 %v3014
      %v3364 = vunpack.c.l.b16 %v3024
      %v3365 = vunpack.c.l.b16 %v3038
      %v3366 = vunpack.c.l.b16 %v3048
      %v3367 = vunpack.c.l.b16 %v3062
      %v3368 = vunpack.c.l.b16 %v3072
      %v3369 = vunpack.c.l.b16 %v3086
      %v3370 = vunpack.c.l.b16 %v3096
      %v3371 = vunpack.c.l.b16 %v3110
      %v3372 = vunpack.c.l.b16 %v3120
      %v3373 = vunpack.c.l.b16 %v3134
      %v3374 = vunpack.c.l.b16 %v3144
      %v3375 = vunpack.c.l.b16 %v3158
      %v3376 = vunpack.c.l.b16 %v3168
      %v3377 = vunpack.c.l.b16 %v3182
      %v3378 = vunpack.c.l.b16 %v3192
      %v3379 = vunpack.c.l.b16 %v3206
      %v3380 = vunpack.c.l.b16 %v3216
      %v3381 = vunpack.c.l.b16 %v3230
      %v3382 = vunpack.c.l.b16 %v3240
      %v3383 = vunpack.c.l.b16 %v3254
      %v3384 = vunpack.c.l.b16 %v3264
      %v3385 = vunpack.c.l.b16 %v3278
      %v3386 = vunpack.c.l.b16 %v3288
      %v3387 = vunpack.c.l.b16 %v3302
      %v3388 = vunpack.c.l.b16 %v3312
      %v3389 = vunpack.c.l.b16 %v3326
      %v3390 = vunpack.c.l.b16 %v3336
      %v3391 = vunpack.c.l.b16 %v3350
      %v3392 = vunpack.c.l.b16 %v3360
      %v3393 = vpack.c.b16 %v3362, %v3361
      %v3394 = vpack.c.b16 %v3364, %v3363
      %v3395 = vpack.c.b16 %v3366, %v3365
      %v3396 = vpack.c.b16 %v3368, %v3367
      %v3397 = vpack.c.b16 %v3370, %v3369
      %v3398 = vpack.c.b16 %v3372, %v3371
      %v3399 = vpack.c.b16 %v3374, %v3373
      %v3400 = vpack.c.b16 %v3376, %v3375
      %v3401 = vpack.c.b16 %v3378, %v3377
      %v3402 = vpack.c.b16 %v3380, %v3379
      %v3403 = vpack.c.b16 %v3382, %v3381
      %v3404 = vpack.c.b16 %v3384, %v3383
      %v3405 = vpack.c.b16 %v3386, %v3385
      %v3406 = vpack.c.b16 %v3388, %v3387
      %v3407 = vpack.c.b16 %v3390, %v3389
      %v3408 = vpack.c.b16 %v3392, %v3391
      %3425 = vst [vmem:[#allocation3 + $0x38] sm:$0xff] %v3393
      %3426 = vst [vmem:[#allocation3 + $0x80] sm:$0xff] %v3394
      %3427 = vst [vmem:[#allocation3 + $0xc8] sm:$0xff] %v3395
      %3428 = vst [vmem:[#allocation3 + $0x110] sm:$0xff] %v3396
      %3429 = vst [vmem:[#allocation3 + $0x158] sm:$0xff] %v3397
      %3430 = vst [vmem:[#allocation3 + $0x1a0] sm:$0xff] %v3398
      %3431 = vst [vmem:[#allocation3 + $0x1e8] sm:$0xff] %v3399
      %3432 = vst [vmem:[#allocation3 + $0x230] sm:$0xff] %v3400
      %3433 = vst [vmem:[#allocation3 + $0x278] sm:$0xff] %v3401
      %3434 = vst [vmem:[#allocation3 + $0x2c0] sm:$0xff] %v3402
      %3435 = vst [vmem:[#allocation3 + $0x308] sm:$0xff] %v3403
      %3436 = vst [vmem:[#allocation3 + $0x350] sm:$0xff] %v3404
      %3437 = vst [vmem:[#allocation3 + $0x398] sm:$0xff] %v3405
      %3438 = vst [vmem:[#allocation3 + $0x3e0] sm:$0xff] %v3406
      %3439 = vst [vmem:[#allocation3 + $0x428] sm:$0xff] %v3407
      %3440 = vst [vmem:[#allocation3 + $0x470] sm:$0xff] %v3408
      %v3441 = vld [vmem:[%s2784] sm:$0xe]
      %v3442 = vld [vmem:[%s2784 + $0x4] sm:$0xf]
      %v3443 = vld [vmem:[%s2784 + $0x8] sm:$0x1]
      %v3444 = vld [vmem:[%s2784 + $0xc] sm:$0xe]
      %v3445 = vld [vmem:[%s2784 + $0x10] sm:$0xf]
      %v3446 = vld [vmem:[%s2784 + $0x14] sm:$0x1]
      %v3447 = vld [vmem:[%s2784 + $0x18] sm:$0xe]
      %v3448 = vld [vmem:[%s2784 + $0x1c] sm:$0xf]
      %v3449 = vld [vmem:[%s2784 + $0x20] sm:$0x1]
      %v3450 = vld [vmem:[%s2784 + $0x24] sm:$0xe]
      %v3451 = vld [vmem:[%s2784 + $0x28] sm:$0xf]
      %v3452 = vld [vmem:[%s2784 + $0x2c] sm:$0x1]
      %v3453 = vld [vmem:[%s2784 + $0x30] sm:$0xe]
      %v3454 = vld [vmem:[%s2784 + $0x34] sm:$0xf]
      %v3455 = vld [vmem:[%s2784 + $0x38] sm:$0x1]
      %v3456 = vld [vmem:[%s2784 + $0x3c] sm:$0xe]
      %v3457 = vld [vmem:[%s2784 + $0x40] sm:$0xf]
      %v3458 = vld [vmem:[%s2784 + $0x44] sm:$0x1]
      %v3459 = vld [vmem:[%s2784 + $0x48] sm:$0xe]
      %v3460 = vld [vmem:[%s2784 + $0x4c] sm:$0xf]
      %v3461 = vld [vmem:[%s2784 + $0x50] sm:$0x1]
      %v3462 = vld [vmem:[%s2784 + $0x54] sm:$0xe]
      %v3463 = vld [vmem:[%s2784 + $0x58] sm:$0xf]
      %v3464 = vld [vmem:[%s2784 + $0x5c] sm:$0x1]
      %v3465 = vld [vmem:[%s2784 + $0x60] sm:$0xe]
      %v3466 = vld [vmem:[%s2784 + $0x64] sm:$0xf]
      %v3467 = vld [vmem:[%s2784 + $0x68] sm:$0x1]
      %v3468 = vld [vmem:[%s2784 + $0x6c] sm:$0xe]
      %v3469 = vld [vmem:[%s2784 + $0x70] sm:$0xf]
      %v3470 = vld [vmem:[%s2784 + $0x74] sm:$0x1]
      %v3471 = vld [vmem:[%s2784 + $0x78] sm:$0xe]
      %v3472 = vld [vmem:[%s2784 + $0x7c] sm:$0xf]
      %v3473 = vld [vmem:[%s2784 + $0x80] sm:$0x1]
      %v3474 = vld [vmem:[%s2784 + $0x84] sm:$0xe]
      %v3475 = vld [vmem:[%s2784 + $0x88] sm:$0xf]
      %v3476 = vld [vmem:[%s2784 + $0x8c] sm:$0x1]
      %v3477 = vld [vmem:[%s2784 + $0x90] sm:$0xe]
      %v3478 = vld [vmem:[%s2784 + $0x94] sm:$0xf]
      %v3479 = vld [vmem:[%s2784 + $0x98] sm:$0x1]
      %v3480 = vld [vmem:[%s2784 + $0x9c] sm:$0xe]
      %v3481 = vld [vmem:[%s2784 + $0xa0] sm:$0xf]
      %v3482 = vld [vmem:[%s2784 + $0xa4] sm:$0x1]
      %v3483 = vld [vmem:[%s2784 + $0xa8] sm:$0xe]
      %v3484 = vld [vmem:[%s2784 + $0xac] sm:$0xf]
      %v3485 = vld [vmem:[%s2784 + $0xb0] sm:$0x1]
      %v3486 = vld [vmem:[%s2784 + $0xb4] sm:$0xe]
      %v3487 = vld [vmem:[%s2784 + $0xb8] sm:$0xf]
      %v3488 = vld [vmem:[%s2784 + $0xbc] sm:$0x1]
      %v3537 = vrot.slane %v3441, 5
      %v3538 = vrot.slane %v3537, 4
      %v3539 = vrot.slane %v3442, 5
      %v3540 = vsel %vm1647, %v3538, %v3539
      %v3541 = vrot.slane %v3539, 4
      %v3542 = vrot.slane %v3443, 5
      %v3543 = vsel %vm1647, %v3541, %v3542
      %v3544 = vrot.slane %v3444, 5
      %v3545 = vrot.slane %v3544, 4
      %v3546 = vrot.slane %v3445, 5
      %v3547 = vsel %vm1647, %v3545, %v3546
      %v3548 = vrot.slane %v3546, 4
      %v3549 = vrot.slane %v3446, 5
      %v3550 = vsel %vm1647, %v3548, %v3549
      %v3551 = vrot.slane %v3447, 5
      %v3552 = vrot.slane %v3551, 4
      %v3553 = vrot.slane %v3448, 5
      %v3554 = vsel %vm1647, %v3552, %v3553
      %v3555 = vrot.slane %v3553, 4
      %v3556 = vrot.slane %v3449, 5
      %v3557 = vsel %vm1647, %v3555, %v3556
      %v3558 = vrot.slane %v3450, 5
      %v3559 = vrot.slane %v3558, 4
      %v3560 = vrot.slane %v3451, 5
      %v3561 = vsel %vm1647, %v3559, %v3560
      %v3562 = vrot.slane %v3560, 4
      %v3563 = vrot.slane %v3452, 5
      %v3564 = vsel %vm1647, %v3562, %v3563
      %v3565 = vrot.slane %v3453, 5
      %v3566 = vrot.slane %v3565, 4
      %v3567 = vrot.slane %v3454, 5
      %v3568 = vsel %vm1647, %v3566, %v3567
      %v3569 = vrot.slane %v3567, 4
      %v3570 = vrot.slane %v3455, 5
      %v3571 = vsel %vm1647, %v3569, %v3570
      %v3572 = vrot.slane %v3456, 5
      %v3573 = vrot.slane %v3572, 4
      %v3574 = vrot.slane %v3457, 5
      %v3575 = vsel %vm1647, %v3573, %v3574
      %v3576 = vrot.slane %v3574, 4
      %v3577 = vrot.slane %v3458, 5
      %v3578 = vsel %vm1647, %v3576, %v3577
      %v3579 = vrot.slane %v3459, 5
      %v3580 = vrot.slane %v3579, 4
      %v3581 = vrot.slane %v3460, 5
      %v3582 = vsel %vm1647, %v3580, %v3581
      %v3583 = vrot.slane %v3581, 4
      %v3584 = vrot.slane %v3461, 5
      %v3585 = vsel %vm1647, %v3583, %v3584
      %v3586 = vrot.slane %v3462, 5
      %v3587 = vrot.slane %v3586, 4
      %v3588 = vrot.slane %v3463, 5
      %v3589 = vsel %vm1647, %v3587, %v3588
      %v3590 = vrot.slane %v3588, 4
      %v3591 = vrot.slane %v3464, 5
      %v3592 = vsel %vm1647, %v3590, %v3591
      %v3593 = vrot.slane %v3465, 5
      %v3594 = vrot.slane %v3593, 4
      %v3595 = vrot.slane %v3466, 5
      %v3596 = vsel %vm1647, %v3594, %v3595
      %v3597 = vrot.slane %v3595, 4
      %v3598 = vrot.slane %v3467, 5
      %v3599 = vsel %vm1647, %v3597, %v3598
      %v3600 = vrot.slane %v3468, 5
      %v3601 = vrot.slane %v3600, 4
      %v3602 = vrot.slane %v3469, 5
      %v3603 = vsel %vm1647, %v3601, %v3602
      %v3604 = vrot.slane %v3602, 4
      %v3605 = vrot.slane %v3470, 5
      %v3606 = vsel %vm1647, %v3604, %v3605
      %v3607 = vrot.slane %v3471, 5
      %v3608 = vrot.slane %v3607, 4
      %v3609 = vrot.slane %v3472, 5
      %v3610 = vsel %vm1647, %v3608, %v3609
      %v3611 = vrot.slane %v3609, 4
      %v3612 = vrot.slane %v3473, 5
      %v3613 = vsel %vm1647, %v3611, %v3612
      %v3614 = vrot.slane %v3474, 5
      %v3615 = vrot.slane %v3614, 4
      %v3616 = vrot.slane %v3475, 5
      %v3617 = vsel %vm1647, %v3615, %v3616
      %v3618 = vrot.slane %v3616, 4
      %v3619 = vrot.slane %v3476, 5
      %v3620 = vsel %vm1647, %v3618, %v3619
      %v3621 = vrot.slane %v3477, 5
      %v3622 = vrot.slane %v3621, 4
      %v3623 = vrot.slane %v3478, 5
      %v3624 = vsel %vm1647, %v3622, %v3623
      %v3625 = vrot.slane %v3623, 4
      %v3626 = vrot.slane %v3479, 5
      %v3627 = vsel %vm1647, %v3625, %v3626
      %v3628 = vrot.slane %v3480, 5
      %v3629 = vrot.slane %v3628, 4
      %v3630 = vrot.slane %v3481, 5
      %v3631 = vsel %vm1647, %v3629, %v3630
      %v3632 = vrot.slane %v3630, 4
      %v3633 = vrot.slane %v3482, 5
      %v3634 = vsel %vm1647, %v3632, %v3633
      %v3635 = vrot.slane %v3483, 5
      %v3636 = vrot.slane %v3635, 4
      %v3637 = vrot.slane %v3484, 5
      %v3638 = vsel %vm1647, %v3636, %v3637
      %v3639 = vrot.slane %v3637, 4
      %v3640 = vrot.slane %v3485, 5
      %v3641 = vsel %vm1647, %v3639, %v3640
      %v3642 = vrot.slane %v3486, 5
      %v3643 = vrot.slane %v3642, 4
      %v3644 = vrot.slane %v3487, 5
      %v3645 = vsel %vm1647, %v3643, %v3644
      %v3646 = vrot.slane %v3644, 4
      %v3647 = vrot.slane %v3488, 5
      %v3648 = vsel %vm1647, %v3646, %v3647
      %v3649 = vunpack.c.l.b16 %v3540
      %v3650 = vunpack.c.l.b16 %v3543
      %v3651 = vunpack.c.l.b16 %v3547
      %v3652 = vunpack.c.l.b16 %v3550
      %v3653 = vunpack.c.l.b16 %v3554
      %v3654 = vunpack.c.l.b16 %v3557
      %v3655 = vunpack.c.l.b16 %v3561
      %v3656 = vunpack.c.l.b16 %v3564
      %v3657 = vunpack.c.l.b16 %v3568
      %v3658 = vunpack.c.l.b16 %v3571
      %v3659 = vunpack.c.l.b16 %v3575
      %v3660 = vunpack.c.l.b16 %v3578
      %v3661 = vunpack.c.l.b16 %v3582
      %v3662 = vunpack.c.l.b16 %v3585
      %v3663 = vunpack.c.l.b16 %v3589
      %v3664 = vunpack.c.l.b16 %v3592
      %v3665 = vunpack.c.l.b16 %v3596
      %v3666 = vunpack.c.l.b16 %v3599
      %v3667 = vunpack.c.l.b16 %v3603
      %v3668 = vunpack.c.l.b16 %v3606
      %v3669 = vunpack.c.l.b16 %v3610
      %v3670 = vunpack.c.l.b16 %v3613
      %v3671 = vunpack.c.l.b16 %v3617
      %v3672 = vunpack.c.l.b16 %v3620
      %v3673 = vunpack.c.l.b16 %v3624
      %v3674 = vunpack.c.l.b16 %v3627
      %v3675 = vunpack.c.l.b16 %v3631
      %v3676 = vunpack.c.l.b16 %v3634
      %v3677 = vunpack.c.l.b16 %v3638
      %v3678 = vunpack.c.l.b16 %v3641
      %v3679 = vunpack.c.l.b16 %v3645
      %v3680 = vunpack.c.l.b16 %v3648
      %v3681 = vpack.c.b16 %v3650, %v3649
      %v3682 = vpack.c.b16 %v3652, %v3651
      %v3683 = vpack.c.b16 %v3654, %v3653
      %v3684 = vpack.c.b16 %v3656, %v3655
      %v3685 = vpack.c.b16 %v3658, %v3657
      %v3686 = vpack.c.b16 %v3660, %v3659
      %v3687 = vpack.c.b16 %v3662, %v3661
      %v3688 = vpack.c.b16 %v3664, %v3663
      %v3689 = vpack.c.b16 %v3666, %v3665
      %v3690 = vpack.c.b16 %v3668, %v3667
      %v3691 = vpack.c.b16 %v3670, %v3669
      %v3692 = vpack.c.b16 %v3672, %v3671
      %v3693 = vpack.c.b16 %v3674, %v3673
      %v3694 = vpack.c.b16 %v3676, %v3675
      %v3695 = vpack.c.b16 %v3678, %v3677
      %v3696 = vpack.c.b16 %v3680, %v3679
      %3713 = vst [vmem:[#allocation3 + $0x40] sm:$0xff] %v3681
      %3714 = vst [vmem:[#allocation3 + $0x88] sm:$0xff] %v3682
      %3715 = vst [vmem:[#allocation3 + $0xd0] sm:$0xff] %v3683
      %3716 = vst [vmem:[#allocation3 + $0x118] sm:$0xff] %v3684
      %3717 = vst [vmem:[#allocation3 + $0x160] sm:$0xff] %v3685
      %3718 = vst [vmem:[#allocation3 + $0x1a8] sm:$0xff] %v3686
      %3719 = vst [vmem:[#allocation3 + $0x1f0] sm:$0xff] %v3687
      %3720 = vst [vmem:[#allocation3 + $0x238] sm:$0xff] %v3688
      %3721 = vst [vmem:[#allocation3 + $0x280] sm:$0xff] %v3689
      %3722 = vst [vmem:[#allocation3 + $0x2c8] sm:$0xff] %v3690
      %3723 = vst [vmem:[#allocation3 + $0x310] sm:$0xff] %v3691
      %3724 = vst [vmem:[#allocation3 + $0x358] sm:$0xff] %v3692
      %3725 = vst [vmem:[#allocation3 + $0x3a0] sm:$0xff] %v3693
      %3726 = vst [vmem:[#allocation3 + $0x3e8] sm:$0xff] %v3694
      %3727 = vst [vmem:[#allocation3 + $0x430] sm:$0xff] %v3695
      %3728 = vst [vmem:[#allocation3 + $0x478] sm:$0xff] %v3696
      %v3729 = vld [vmem:[#allocation3] sm:$0xff]
      %v3730 = vld [vmem:[#allocation3 + $0x8] sm:$0xff]
      %v3731 = vld [vmem:[#allocation3 + $0x10] sm:$0xff]
      %v3732 = vld [vmem:[#allocation3 + $0x18] sm:$0xff]
      %v3733 = vld [vmem:[#allocation3 + $0x20] sm:$0xff]
      %v3734 = vld [vmem:[#allocation3 + $0x28] sm:$0xff]
      %v3735 = vld [vmem:[#allocation3 + $0x30] sm:$0xff]
      %v3736 = vld [vmem:[#allocation3 + $0x38] sm:$0xff]
      %v3737 = vld [vmem:[#allocation3 + $0x40] sm:$0xff]
      %v3738 = vld [vmem:[#allocation3 + $0x48] sm:$0xff]
      %v3739 = vld [vmem:[#allocation3 + $0x50] sm:$0xff]
      %v3740 = vld [vmem:[#allocation3 + $0x58] sm:$0xff]
      %v3741 = vld [vmem:[#allocation3 + $0x60] sm:$0xff]
      %v3742 = vld [vmem:[#allocation3 + $0x68] sm:$0xff]
      %v3743 = vld [vmem:[#allocation3 + $0x70] sm:$0xff]
      %v3744 = vld [vmem:[#allocation3 + $0x78] sm:$0xff]
      %v3745 = vld [vmem:[#allocation3 + $0x80] sm:$0xff]
      %v3746 = vld [vmem:[#allocation3 + $0x88] sm:$0xff]
      %v3747 = vld [vmem:[#allocation3 + $0x90] sm:$0xff]
      %v3748 = vld [vmem:[#allocation3 + $0x98] sm:$0xff]
      %v3749 = vld [vmem:[#allocation3 + $0xa0] sm:$0xff]
      %v3750 = vld [vmem:[#allocation3 + $0xa8] sm:$0xff]
      %v3751 = vld [vmem:[#allocation3 + $0xb0] sm:$0xff]
      %v3752 = vld [vmem:[#allocation3 + $0xb8] sm:$0xff]
      %v3753 = vld [vmem:[#allocation3 + $0xc0] sm:$0xff]
      %v3754 = vld [vmem:[#allocation3 + $0xc8] sm:$0xff]
      %v3755 = vld [vmem:[#allocation3 + $0xd0] sm:$0xff]
      %v3756 = vld [vmem:[#allocation3 + $0xd8] sm:$0xff]
      %v3757 = vld [vmem:[#allocation3 + $0xe0] sm:$0xff]
      %v3758 = vld [vmem:[#allocation3 + $0xe8] sm:$0xff]
      %v3759 = vld [vmem:[#allocation3 + $0xf0] sm:$0xff]
      %v3760 = vld [vmem:[#allocation3 + $0xf8] sm:$0xff]
      %v3761 = vld [vmem:[#allocation3 + $0x100] sm:$0xff]
      %v3762 = vld [vmem:[#allocation3 + $0x108] sm:$0xff]
      %v3763 = vld [vmem:[#allocation3 + $0x110] sm:$0xff]
      %v3764 = vld [vmem:[#allocation3 + $0x118] sm:$0xff]
      %v3765 = vld [vmem:[#allocation3 + $0x120] sm:$0xff]
      %v3766 = vld [vmem:[#allocation3 + $0x128] sm:$0xff]
      %v3767 = vld [vmem:[#allocation3 + $0x130] sm:$0xff]
      %v3768 = vld [vmem:[#allocation3 + $0x138] sm:$0xff]
      %v3769 = vld [vmem:[#allocation3 + $0x140] sm:$0xff]
      %v3770 = vld [vmem:[#allocation3 + $0x148] sm:$0xff]
      %v3771 = vld [vmem:[#allocation3 + $0x150] sm:$0xff]
      %v3772 = vld [vmem:[#allocation3 + $0x158] sm:$0xff]
      %v3773 = vld [vmem:[#allocation3 + $0x160] sm:$0xff]
      %v3774 = vld [vmem:[#allocation3 + $0x168] sm:$0xff]
      %v3775 = vld [vmem:[#allocation3 + $0x170] sm:$0xff]
      %v3776 = vld [vmem:[#allocation3 + $0x178] sm:$0xff]
      %v3777 = vld [vmem:[#allocation3 + $0x180] sm:$0xff]
      %v3778 = vld [vmem:[#allocation3 + $0x188] sm:$0xff]
      %v3779 = vld [vmem:[#allocation3 + $0x190] sm:$0xff]
      %v3780 = vld [vmem:[#allocation3 + $0x198] sm:$0xff]
      %v3781 = vld [vmem:[#allocation3 + $0x1a0] sm:$0xff]
      %v3782 = vld [vmem:[#allocation3 + $0x1a8] sm:$0xff]
      %v3783 = vld [vmem:[#allocation3 + $0x1b0] sm:$0xff]
      %v3784 = vld [vmem:[#allocation3 + $0x1b8] sm:$0xff]
      %v3785 = vld [vmem:[#allocation3 + $0x1c0] sm:$0xff]
      %v3786 = vld [vmem:[#allocation3 + $0x1c8] sm:$0xff]
      %v3787 = vld [vmem:[#allocation3 + $0x1d0] sm:$0xff]
      %v3788 = vld [vmem:[#allocation3 + $0x1d8] sm:$0xff]
      %v3789 = vld [vmem:[#allocation3 + $0x1e0] sm:$0xff]
      %v3790 = vld [vmem:[#allocation3 + $0x1e8] sm:$0xff]
      %v3791 = vld [vmem:[#allocation3 + $0x1f0] sm:$0xff]
      %v3792 = vld [vmem:[#allocation3 + $0x1f8] sm:$0xff]
      %v3793 = vld [vmem:[#allocation3 + $0x200] sm:$0xff]
      %v3794 = vld [vmem:[#allocation3 + $0x208] sm:$0xff]
      %v3795 = vld [vmem:[#allocation3 + $0x210] sm:$0xff]
      %v3796 = vld [vmem:[#allocation3 + $0x218] sm:$0xff]
      %v3797 = vld [vmem:[#allocation3 + $0x220] sm:$0xff]
      %v3798 = vld [vmem:[#allocation3 + $0x228] sm:$0xff]
      %v3799 = vld [vmem:[#allocation3 + $0x230] sm:$0xff]
      %v3800 = vld [vmem:[#allocation3 + $0x238] sm:$0xff]
      %v3801 = vld [vmem:[#allocation3 + $0x240] sm:$0xff]
      %v3802 = vld [vmem:[#allocation3 + $0x248] sm:$0xff]
      %v3803 = vld [vmem:[#allocation3 + $0x250] sm:$0xff]
      %v3804 = vld [vmem:[#allocation3 + $0x258] sm:$0xff]
      %v3805 = vld [vmem:[#allocation3 + $0x260] sm:$0xff]
      %v3806 = vld [vmem:[#allocation3 + $0x268] sm:$0xff]
      %v3807 = vld [vmem:[#allocation3 + $0x270] sm:$0xff]
      %v3808 = vld [vmem:[#allocation3 + $0x278] sm:$0xff]
      %v3809 = vld [vmem:[#allocation3 + $0x280] sm:$0xff]
      %v3810 = vld [vmem:[#allocation3 + $0x288] sm:$0xff]
      %v3811 = vld [vmem:[#allocation3 + $0x290] sm:$0xff]
      %v3812 = vld [vmem:[#allocation3 + $0x298] sm:$0xff]
      %v3813 = vld [vmem:[#allocation3 + $0x2a0] sm:$0xff]
      %v3814 = vld [vmem:[#allocation3 + $0x2a8] sm:$0xff]
      %v3815 = vld [vmem:[#allocation3 + $0x2b0] sm:$0xff]
      %v3816 = vld [vmem:[#allocation3 + $0x2b8] sm:$0xff]
      %v3817 = vld [vmem:[#allocation3 + $0x2c0] sm:$0xff]
      %v3818 = vld [vmem:[#allocation3 + $0x2c8] sm:$0xff]
      %v3819 = vld [vmem:[#allocation3 + $0x2d0] sm:$0xff]
      %v3820 = vld [vmem:[#allocation3 + $0x2d8] sm:$0xff]
      %v3821 = vld [vmem:[#allocation3 + $0x2e0] sm:$0xff]
      %v3822 = vld [vmem:[#allocation3 + $0x2e8] sm:$0xff]
      %v3823 = vld [vmem:[#allocation3 + $0x2f0] sm:$0xff]
      %v3824 = vld [vmem:[#allocation3 + $0x2f8] sm:$0xff]
      %v3825 = vld [vmem:[#allocation3 + $0x300] sm:$0xff]
      %v3826 = vld [vmem:[#allocation3 + $0x308] sm:$0xff]
      %v3827 = vld [vmem:[#allocation3 + $0x310] sm:$0xff]
      %v3828 = vld [vmem:[#allocation3 + $0x318] sm:$0xff]
      %v3829 = vld [vmem:[#allocation3 + $0x320] sm:$0xff]
      %v3830 = vld [vmem:[#allocation3 + $0x328] sm:$0xff]
      %v3831 = vld [vmem:[#allocation3 + $0x330] sm:$0xff]
      %v3832 = vld [vmem:[#allocation3 + $0x338] sm:$0xff]
      %v3833 = vld [vmem:[#allocation3 + $0x340] sm:$0xff]
      %v3834 = vld [vmem:[#allocation3 + $0x348] sm:$0xff]
      %v3835 = vld [vmem:[#allocation3 + $0x350] sm:$0xff]
      %v3836 = vld [vmem:[#allocation3 + $0x358] sm:$0xff]
      %v3837 = vld [vmem:[#allocation3 + $0x360] sm:$0xff]
      %v3838 = vld [vmem:[#allocation3 + $0x368] sm:$0xff]
      %v3839 = vld [vmem:[#allocation3 + $0x370] sm:$0xff]
      %v3840 = vld [vmem:[#allocation3 + $0x378] sm:$0xff]
      %v3841 = vld [vmem:[#allocation3 + $0x380] sm:$0xff]
      %v3842 = vld [vmem:[#allocation3 + $0x388] sm:$0xff]
      %v3843 = vld [vmem:[#allocation3 + $0x390] sm:$0xff]
      %v3844 = vld [vmem:[#allocation3 + $0x398] sm:$0xff]
      %v3845 = vld [vmem:[#allocation3 + $0x3a0] sm:$0xff]
      %v3846 = vld [vmem:[#allocation3 + $0x3a8] sm:$0xff]
      %v3847 = vld [vmem:[#allocation3 + $0x3b0] sm:$0xff]
      %v3848 = vld [vmem:[#allocation3 + $0x3b8] sm:$0xff]
      %v3849 = vld [vmem:[#allocation3 + $0x3c0] sm:$0xff]
      %v3850 = vld [vmem:[#allocation3 + $0x3c8] sm:$0xff]
      %v3851 = vld [vmem:[#allocation3 + $0x3d0] sm:$0xff]
      %v3852 = vld [vmem:[#allocation3 + $0x3d8] sm:$0xff]
      %v3853 = vld [vmem:[#allocation3 + $0x3e0] sm:$0xff]
      %v3854 = vld [vmem:[#allocation3 + $0x3e8] sm:$0xff]
      %v3855 = vld [vmem:[#allocation3 + $0x3f0] sm:$0xff]
      %v3856 = vld [vmem:[#allocation3 + $0x3f8] sm:$0xff]
      %v3857 = vld [vmem:[#allocation3 + $0x400] sm:$0xff]
      %v3858 = vld [vmem:[#allocation3 + $0x408] sm:$0xff]
      %v3859 = vld [vmem:[#allocation3 + $0x410] sm:$0xff]
      %v3860 = vld [vmem:[#allocation3 + $0x418] sm:$0xff]
      %v3861 = vld [vmem:[#allocation3 + $0x420] sm:$0xff]
      %v3862 = vld [vmem:[#allocation3 + $0x428] sm:$0xff]
      %v3863 = vld [vmem:[#allocation3 + $0x430] sm:$0xff]
      %v3864 = vld [vmem:[#allocation3 + $0x438] sm:$0xff]
      %v3865 = vld [vmem:[#allocation3 + $0x440] sm:$0xff]
      %v3866 = vld [vmem:[#allocation3 + $0x448] sm:$0xff]
      %v3867 = vld [vmem:[#allocation3 + $0x450] sm:$0xff]
      %v3868 = vld [vmem:[#allocation3 + $0x458] sm:$0xff]
      %v3869 = vld [vmem:[#allocation3 + $0x460] sm:$0xff]
      %v3870 = vld [vmem:[#allocation3 + $0x468] sm:$0xff]
      %v3871 = vld [vmem:[#allocation3 + $0x470] sm:$0xff]
      %v3872 = vld [vmem:[#allocation3 + $0x478] sm:$0xff]
      %v3873 = vld [vmem:[%s3] sm:$0xf]
      %v3874 = vld [vmem:[%s3 + $0x4] sm:$0xf]
      %v3875 = vld [vmem:[%s3 + $0x8] sm:$0xf]
      %v3876 = vld [vmem:[%s3 + $0xc] sm:$0xf]
      %v3877 = vld [vmem:[%s3 + $0x10] sm:$0xf]
      %v3878 = vld [vmem:[%s3 + $0x14] sm:$0xf]
      %v3879 = vld [vmem:[%s3 + $0x18] sm:$0xf]
      %v3880 = vld [vmem:[%s3 + $0x1c] sm:$0xf]
      %v3881 = vld [vmem:[%s3 + $0x20] sm:$0xf]
      %v3882 = vld [vmem:[%s3 + $0x24] sm:$0xf]
      %v3883 = vld [vmem:[%s3 + $0x28] sm:$0xf]
      %v3884 = vld [vmem:[%s3 + $0x2c] sm:$0xf]
      %v3885 = vld [vmem:[%s3 + $0x30] sm:$0xf]
      %v3886 = vld [vmem:[%s3 + $0x34] sm:$0xf]
      %v3887 = vld [vmem:[%s3 + $0x38] sm:$0xf]
      %v3888 = vld [vmem:[%s3 + $0x3c] sm:$0xf]
      %v3889 = vld [vmem:[%s3 + $0x40] sm:$0xf]
      %v3890 = vld [vmem:[%s3 + $0x44] sm:$0xf]
      %v3891 = vld [vmem:[%s3 + $0x48] sm:$0xf]
      %v3892 = vld [vmem:[%s3 + $0x4c] sm:$0xf]
      %v3893 = vld [vmem:[%s3 + $0x50] sm:$0xf]
      %v3894 = vld [vmem:[%s3 + $0x54] sm:$0xf]
      %v3895 = vld [vmem:[%s3 + $0x58] sm:$0xf]
      %v3896 = vld [vmem:[%s3 + $0x5c] sm:$0xf]
      %v3897 = vld [vmem:[%s3 + $0x60] sm:$0xf]
      %v3898 = vld [vmem:[%s3 + $0x64] sm:$0xf]
      %v3899 = vld [vmem:[%s3 + $0x68] sm:$0xf]
      %v3900 = vld [vmem:[%s3 + $0x6c] sm:$0xf]
      %v3901 = vld [vmem:[%s3 + $0x70] sm:$0xf]
      %v3902 = vld [vmem:[%s3 + $0x74] sm:$0xf]
      %v3903 = vld [vmem:[%s3 + $0x78] sm:$0xf]
      %v3904 = vld [vmem:[%s3 + $0x7c] sm:$0xf]
      %v3905 = vld [vmem:[%s3 + $0x80] sm:$0xf]
      %v3906 = vld [vmem:[%s3 + $0x84] sm:$0xf]
      %v3907 = vld [vmem:[%s3 + $0x88] sm:$0xf]
      %v3908 = vld [vmem:[%s3 + $0x8c] sm:$0xf]
      %v3909 = vld [vmem:[%s3 + $0x90] sm:$0xf]
      %v3910 = vld [vmem:[%s3 + $0x94] sm:$0xf]
      %v3911 = vld [vmem:[%s3 + $0x98] sm:$0xf]
      %v3912 = vld [vmem:[%s3 + $0x9c] sm:$0xf]
      %v3913 = vld [vmem:[%s3 + $0xa0] sm:$0xf]
      %v3914 = vld [vmem:[%s3 + $0xa4] sm:$0xf]
      %v3915 = vld [vmem:[%s3 + $0xa8] sm:$0xf]
      %v3916 = vld [vmem:[%s3 + $0xac] sm:$0xf]
      %v3917 = vld [vmem:[%s3 + $0xb0] sm:$0xf]
      %v3918 = vld [vmem:[%s3 + $0xb4] sm:$0xf]
      %v3919 = vld [vmem:[%s3 + $0xb8] sm:$0xf]
      %v3920 = vld [vmem:[%s3 + $0xbc] sm:$0xf]
      %v3921 = vld [vmem:[%s3 + $0xc0] sm:$0xf]
      %v3922 = vld [vmem:[%s3 + $0xc4] sm:$0xf]
      %v3923 = vld [vmem:[%s3 + $0xc8] sm:$0xf]
      %v3924 = vld [vmem:[%s3 + $0xcc] sm:$0xf]
      %v3925 = vld [vmem:[%s3 + $0xd0] sm:$0xf]
      %v3926 = vld [vmem:[%s3 + $0xd4] sm:$0xf]
      %v3927 = vld [vmem:[%s3 + $0xd8] sm:$0xf]
      %v3928 = vld [vmem:[%s3 + $0xdc] sm:$0xf]
      %v3929 = vld [vmem:[%s3 + $0xe0] sm:$0xf]
      %v3930 = vld [vmem:[%s3 + $0xe4] sm:$0xf]
      %v3931 = vld [vmem:[%s3 + $0xe8] sm:$0xf]
      %v3932 = vld [vmem:[%s3 + $0xec] sm:$0xf]
      %v3933 = vld [vmem:[%s3 + $0xf0] sm:$0xf]
      %v3934 = vld [vmem:[%s3 + $0xf4] sm:$0xf]
      %v3935 = vld [vmem:[%s3 + $0xf8] sm:$0xf]
      %v3936 = vld [vmem:[%s3 + $0xfc] sm:$0xf]
      %v3937 = vld [vmem:[%s3 + $0x100] sm:$0xf]
      %v3938 = vld [vmem:[%s3 + $0x104] sm:$0xf]
      %v3939 = vld [vmem:[%s3 + $0x108] sm:$0xf]
      %v3940 = vld [vmem:[%s3 + $0x10c] sm:$0xf]
      %v3941 = vld [vmem:[%s3 + $0x110] sm:$0xf]
      %v3942 = vld [vmem:[%s3 + $0x114] sm:$0xf]
      %v3943 = vld [vmem:[%s3 + $0x118] sm:$0xf]
      %v3944 = vld [vmem:[%s3 + $0x11c] sm:$0xf]
      %v3945 = vld [vmem:[%s3 + $0x120] sm:$0xf]
      %v3946 = vld [vmem:[%s3 + $0x124] sm:$0xf]
      %v3947 = vld [vmem:[%s3 + $0x128] sm:$0xf]
      %v3948 = vld [vmem:[%s3 + $0x12c] sm:$0xf]
      %v3949 = vld [vmem:[%s3 + $0x130] sm:$0xf]
      %v3950 = vld [vmem:[%s3 + $0x134] sm:$0xf]
      %v3951 = vld [vmem:[%s3 + $0x138] sm:$0xf]
      %v3952 = vld [vmem:[%s3 + $0x13c] sm:$0xf]
      %v3953 = vld [vmem:[%s3 + $0x140] sm:$0xf]
      %v3954 = vld [vmem:[%s3 + $0x144] sm:$0xf]
      %v3955 = vld [vmem:[%s3 + $0x148] sm:$0xf]
      %v3956 = vld [vmem:[%s3 + $0x14c] sm:$0xf]
      %v3957 = vld [vmem:[%s3 + $0x150] sm:$0xf]
      %v3958 = vld [vmem:[%s3 + $0x154] sm:$0xf]
      %v3959 = vld [vmem:[%s3 + $0x158] sm:$0xf]
      %v3960 = vld [vmem:[%s3 + $0x15c] sm:$0xf]
      %v3961 = vld [vmem:[%s3 + $0x160] sm:$0xf]
      %v3962 = vld [vmem:[%s3 + $0x164] sm:$0xf]
      %v3963 = vld [vmem:[%s3 + $0x168] sm:$0xf]
      %v3964 = vld [vmem:[%s3 + $0x16c] sm:$0xf]
      %v3965 = vld [vmem:[%s3 + $0x170] sm:$0xf]
      %v3966 = vld [vmem:[%s3 + $0x174] sm:$0xf]
      %v3967 = vld [vmem:[%s3 + $0x178] sm:$0xf]
      %v3968 = vld [vmem:[%s3 + $0x17c] sm:$0xf]
      %v3969 = vld [vmem:[%s3 + $0x180] sm:$0xf]
      %v3970 = vld [vmem:[%s3 + $0x184] sm:$0xf]
      %v3971 = vld [vmem:[%s3 + $0x188] sm:$0xf]
      %v3972 = vld [vmem:[%s3 + $0x18c] sm:$0xf]
      %v3973 = vld [vmem:[%s3 + $0x190] sm:$0xf]
      %v3974 = vld [vmem:[%s3 + $0x194] sm:$0xf]
      %v3975 = vld [vmem:[%s3 + $0x198] sm:$0xf]
      %v3976 = vld [vmem:[%s3 + $0x19c] sm:$0xf]
      %v3977 = vld [vmem:[%s3 + $0x1a0] sm:$0xf]
      %v3978 = vld [vmem:[%s3 + $0x1a4] sm:$0xf]
      %v3979 = vld [vmem:[%s3 + $0x1a8] sm:$0xf]
      %v3980 = vld [vmem:[%s3 + $0x1ac] sm:$0xf]
      %v3981 = vld [vmem:[%s3 + $0x1b0] sm:$0xf]
      %v3982 = vld [vmem:[%s3 + $0x1b4] sm:$0xf]
      %v3983 = vld [vmem:[%s3 + $0x1b8] sm:$0xf]
      %v3984 = vld [vmem:[%s3 + $0x1bc] sm:$0xf]
      %v3985 = vld [vmem:[%s3 + $0x1c0] sm:$0xf]
      %v3986 = vld [vmem:[%s3 + $0x1c4] sm:$0xf]
      %v3987 = vld [vmem:[%s3 + $0x1c8] sm:$0xf]
      %v3988 = vld [vmem:[%s3 + $0x1cc] sm:$0xf]
      %v3989 = vld [vmem:[%s3 + $0x1d0] sm:$0xf]
      %v3990 = vld [vmem:[%s3 + $0x1d4] sm:$0xf]
      %v3991 = vld [vmem:[%s3 + $0x1d8] sm:$0xf]
      %v3992 = vld [vmem:[%s3 + $0x1dc] sm:$0xf]
      %v3993 = vld [vmem:[%s3 + $0x1e0] sm:$0xf]
      %v3994 = vld [vmem:[%s3 + $0x1e4] sm:$0xf]
      %v3995 = vld [vmem:[%s3 + $0x1e8] sm:$0xf]
      %v3996 = vld [vmem:[%s3 + $0x1ec] sm:$0xf]
      %v3997 = vld [vmem:[%s3 + $0x1f0] sm:$0xf]
      %v3998 = vld [vmem:[%s3 + $0x1f4] sm:$0xf]
      %v3999 = vld [vmem:[%s3 + $0x1f8] sm:$0xf]
      %v4000 = vld [vmem:[%s3 + $0x1fc] sm:$0xf]
      %v4001 = vld [vmem:[%s3 + $0x200] sm:$0xf]
      %v4002 = vld [vmem:[%s3 + $0x204] sm:$0xf]
      %v4003 = vld [vmem:[%s3 + $0x208] sm:$0xf]
      %v4004 = vld [vmem:[%s3 + $0x20c] sm:$0xf]
      %v4005 = vld [vmem:[%s3 + $0x210] sm:$0xf]
      %v4006 = vld [vmem:[%s3 + $0x214] sm:$0xf]
      %v4007 = vld [vmem:[%s3 + $0x218] sm:$0xf]
      %v4008 = vld [vmem:[%s3 + $0x21c] sm:$0xf]
      %v4009 = vld [vmem:[%s3 + $0x220] sm:$0xf]
      %v4010 = vld [vmem:[%s3 + $0x224] sm:$0xf]
      %v4011 = vld [vmem:[%s3 + $0x228] sm:$0xf]
      %v4012 = vld [vmem:[%s3 + $0x22c] sm:$0xf]
      %v4013 = vld [vmem:[%s3 + $0x230] sm:$0xf]
      %v4014 = vld [vmem:[%s3 + $0x234] sm:$0xf]
      %v4015 = vld [vmem:[%s3 + $0x238] sm:$0xf]
      %v4016 = vld [vmem:[%s3 + $0x23c] sm:$0xf]
      %v4017 = vld [vmem:[%s4] sm:$0x1]
      %v4019 = vlaneseq
      %v4020 = vshrl.u32 %v4019, 7
      %v4021 = vsub.s32 0, %v4020
      %v4022 = vrot.slane %v4017, %v4021
      %v4168 = vunpack.c.l.b16 %v3873
      %v4169 = vunpack.c.l.b16 %v3874
      %v4170 = vunpack.c.l.b16 %v3875
      %v4171 = vunpack.c.l.b16 %v3876
      %v4172 = vunpack.c.l.b16 %v3877
      %v4173 = vunpack.c.l.b16 %v3878
      %v4174 = vunpack.c.l.b16 %v3879
      %v4175 = vunpack.c.l.b16 %v3880
      %v4176 = vunpack.c.l.b16 %v3881
      %v4177 = vunpack.c.l.b16 %v3882
      %v4178 = vunpack.c.l.b16 %v3883
      %v4179 = vunpack.c.l.b16 %v3884
      %v4180 = vunpack.c.l.b16 %v3885
      %v4181 = vunpack.c.l.b16 %v3886
      %v4182 = vunpack.c.l.b16 %v3887
      %v4183 = vunpack.c.l.b16 %v3888
      %v4184 = vunpack.c.l.b16 %v3889
      %v4185 = vunpack.c.l.b16 %v3890
      %v4186 = vunpack.c.l.b16 %v3891
      %v4187 = vunpack.c.l.b16 %v3892
      %v4188 = vunpack.c.l.b16 %v3893
      %v4189 = vunpack.c.l.b16 %v3894
      %v4190 = vunpack.c.l.b16 %v3895
      %v4191 = vunpack.c.l.b16 %v3896
      %v4192 = vunpack.c.l.b16 %v3897
      %v4193 = vunpack.c.l.b16 %v3898
      %v4194 = vunpack.c.l.b16 %v3899
      %v4195 = vunpack.c.l.b16 %v3900
      %v4196 = vunpack.c.l.b16 %v3901
      %v4197 = vunpack.c.l.b16 %v3902
      %v4198 = vunpack.c.l.b16 %v3903
      %v4199 = vunpack.c.l.b16 %v3904
      %v4200 = vunpack.c.l.b16 %v3905
      %v4201 = vunpack.c.l.b16 %v3906
      %v4202 = vunpack.c.l.b16 %v3907
      %v4203 = vunpack.c.l.b16 %v3908
      %v4204 = vunpack.c.l.b16 %v3909
      %v4205 = vunpack.c.l.b16 %v3910
      %v4206 = vunpack.c.l.b16 %v3911
      %v4207 = vunpack.c.l.b16 %v3912
      %v4208 = vunpack.c.l.b16 %v3913
      %v4209 = vunpack.c.l.b16 %v3914
      %v4210 = vunpack.c.l.b16 %v3915
      %v4211 = vunpack.c.l.b16 %v3916
      %v4212 = vunpack.c.l.b16 %v3917
      %v4213 = vunpack.c.l.b16 %v3918
      %v4214 = vunpack.c.l.b16 %v3919
      %v4215 = vunpack.c.l.b16 %v3920
      %v4216 = vunpack.c.l.b16 %v3921
      %v4217 = vunpack.c.l.b16 %v3922
      %v4218 = vunpack.c.l.b16 %v3923
      %v4219 = vunpack.c.l.b16 %v3924
      %v4220 = vunpack.c.l.b16 %v3925
      %v4221 = vunpack.c.l.b16 %v3926
      %v4222 = vunpack.c.l.b16 %v3927
      %v4223 = vunpack.c.l.b16 %v3928
      %v4224 = vunpack.c.l.b16 %v3929
      %v4225 = vunpack.c.l.b16 %v3930
      %v4226 = vunpack.c.l.b16 %v3931
      %v4227 = vunpack.c.l.b16 %v3932
      %v4228 = vunpack.c.l.b16 %v3933
      %v4229 = vunpack.c.l.b16 %v3934
      %v4230 = vunpack.c.l.b16 %v3935
      %v4231 = vunpack.c.l.b16 %v3936
      %v4232 = vunpack.c.l.b16 %v3937
      %v4233 = vunpack.c.l.b16 %v3938
      %v4234 = vunpack.c.l.b16 %v3939
      %v4235 = vunpack.c.l.b16 %v3940
      %v4236 = vunpack.c.l.b16 %v3941
      %v4237 = vunpack.c.l.b16 %v3942
      %v4238 = vunpack.c.l.b16 %v3943
      %v4239 = vunpack.c.l.b16 %v3944
      %v4240 = vunpack.c.l.b16 %v3945
      %v4241 = vunpack.c.l.b16 %v3946
      %v4242 = vunpack.c.l.b16 %v3947
      %v4243 = vunpack.c.l.b16 %v3948
      %v4244 = vunpack.c.l.b16 %v3949
      %v4245 = vunpack.c.l.b16 %v3950
      %v4246 = vunpack.c.l.b16 %v3951
      %v4247 = vunpack.c.l.b16 %v3952
      %v4248 = vunpack.c.l.b16 %v3953
      %v4249 = vunpack.c.l.b16 %v3954
      %v4250 = vunpack.c.l.b16 %v3955
      %v4251 = vunpack.c.l.b16 %v3956
      %v4252 = vunpack.c.l.b16 %v3957
      %v4253 = vunpack.c.l.b16 %v3958
      %v4254 = vunpack.c.l.b16 %v3959
      %v4255 = vunpack.c.l.b16 %v3960
      %v4256 = vunpack.c.l.b16 %v3961
      %v4257 = vunpack.c.l.b16 %v3962
      %v4258 = vunpack.c.l.b16 %v3963
      %v4259 = vunpack.c.l.b16 %v3964
      %v4260 = vunpack.c.l.b16 %v3965
      %v4261 = vunpack.c.l.b16 %v3966
      %v4262 = vunpack.c.l.b16 %v3967
      %v4263 = vunpack.c.l.b16 %v3968
      %v4264 = vunpack.c.l.b16 %v3969
      %v4265 = vunpack.c.l.b16 %v3970
      %v4266 = vunpack.c.l.b16 %v3971
      %v4267 = vunpack.c.l.b16 %v3972
      %v4268 = vunpack.c.l.b16 %v3973
      %v4269 = vunpack.c.l.b16 %v3974
      %v4270 = vunpack.c.l.b16 %v3975
      %v4271 = vunpack.c.l.b16 %v3976
      %v4272 = vunpack.c.l.b16 %v3977
      %v4273 = vunpack.c.l.b16 %v3978
      %v4274 = vunpack.c.l.b16 %v3979
      %v4275 = vunpack.c.l.b16 %v3980
      %v4276 = vunpack.c.l.b16 %v3981
      %v4277 = vunpack.c.l.b16 %v3982
      %v4278 = vunpack.c.l.b16 %v3983
      %v4279 = vunpack.c.l.b16 %v3984
      %v4280 = vunpack.c.l.b16 %v3985
      %v4281 = vunpack.c.l.b16 %v3986
      %v4282 = vunpack.c.l.b16 %v3987
      %v4283 = vunpack.c.l.b16 %v3988
      %v4284 = vunpack.c.l.b16 %v3989
      %v4285 = vunpack.c.l.b16 %v3990
      %v4286 = vunpack.c.l.b16 %v3991
      %v4287 = vunpack.c.l.b16 %v3992
      %v4288 = vunpack.c.l.b16 %v3993
      %v4289 = vunpack.c.l.b16 %v3994
      %v4290 = vunpack.c.l.b16 %v3995
      %v4291 = vunpack.c.l.b16 %v3996
      %v4292 = vunpack.c.l.b16 %v3997
      %v4293 = vunpack.c.l.b16 %v3998
      %v4294 = vunpack.c.l.b16 %v3999
      %v4295 = vunpack.c.l.b16 %v4000
      %v4296 = vunpack.c.l.b16 %v4001
      %v4297 = vunpack.c.l.b16 %v4002
      %v4298 = vunpack.c.l.b16 %v4003
      %v4299 = vunpack.c.l.b16 %v4004
      %v4300 = vunpack.c.l.b16 %v4005
      %v4301 = vunpack.c.l.b16 %v4006
      %v4302 = vunpack.c.l.b16 %v4007
      %v4303 = vunpack.c.l.b16 %v4008
      %v4304 = vunpack.c.l.b16 %v4009
      %v4305 = vunpack.c.l.b16 %v4010
      %v4306 = vunpack.c.l.b16 %v4011
      %v4307 = vunpack.c.l.b16 %v4012
      %v4308 = vunpack.c.l.b16 %v4013
      %v4309 = vunpack.c.l.b16 %v4014
      %v4310 = vunpack.c.l.b16 %v4015
      %v4311 = vunpack.c.l.b16 %v4016
      %v4312 = vpack.c.b16 %v4169, %v4168
      %v4313 = vpack.c.b16 %v4171, %v4170
      %v4314 = vpack.c.b16 %v4173, %v4172
      %v4315 = vpack.c.b16 %v4175, %v4174
      %v4316 = vpack.c.b16 %v4177, %v4176
      %v4317 = vpack.c.b16 %v4179, %v4178
      %v4318 = vpack.c.b16 %v4181, %v4180
      %v4319 = vpack.c.b16 %v4183, %v4182
      %v4320 = vpack.c.b16 %v4185, %v4184
      %v4321 = vpack.c.b16 %v4187, %v4186
      %v4322 = vpack.c.b16 %v4189, %v4188
      %v4323 = vpack.c.b16 %v4191, %v4190
      %v4324 = vpack.c.b16 %v4193, %v4192
      %v4325 = vpack.c.b16 %v4195, %v4194
      %v4326 = vpack.c.b16 %v4197, %v4196
      %v4327 = vpack.c.b16 %v4199, %v4198
      %v4328 = vpack.c.b16 %v4201, %v4200
      %v4329 = vpack.c.b16 %v4203, %v4202
      %v4330 = vpack.c.b16 %v4205, %v4204
      %v4331 = vpack.c.b16 %v4207, %v4206
      %v4332 = vpack.c.b16 %v4209, %v4208
      %v4333 = vpack.c.b16 %v4211, %v4210
      %v4334 = vpack.c.b16 %v4213, %v4212
      %v4335 = vpack.c.b16 %v4215, %v4214
      %v4336 = vpack.c.b16 %v4217, %v4216
      %v4337 = vpack.c.b16 %v4219, %v4218
      %v4338 = vpack.c.b16 %v4221, %v4220
      %v4339 = vpack.c.b16 %v4223, %v4222
      %v4340 = vpack.c.b16 %v4225, %v4224
      %v4341 = vpack.c.b16 %v4227, %v4226
      %v4342 = vpack.c.b16 %v4229, %v4228
      %v4343 = vpack.c.b16 %v4231, %v4230
      %v4344 = vpack.c.b16 %v4233, %v4232
      %v4345 = vpack.c.b16 %v4235, %v4234
      %v4346 = vpack.c.b16 %v4237, %v4236
      %v4347 = vpack.c.b16 %v4239, %v4238
      %v4348 = vpack.c.b16 %v4241, %v4240
      %v4349 = vpack.c.b16 %v4243, %v4242
      %v4350 = vpack.c.b16 %v4245, %v4244
      %v4351 = vpack.c.b16 %v4247, %v4246
      %v4352 = vpack.c.b16 %v4249, %v4248
      %v4353 = vpack.c.b16 %v4251, %v4250
      %v4354 = vpack.c.b16 %v4253, %v4252
      %v4355 = vpack.c.b16 %v4255, %v4254
      %v4356 = vpack.c.b16 %v4257, %v4256
      %v4357 = vpack.c.b16 %v4259, %v4258
      %v4358 = vpack.c.b16 %v4261, %v4260
      %v4359 = vpack.c.b16 %v4263, %v4262
      %v4360 = vpack.c.b16 %v4265, %v4264
      %v4361 = vpack.c.b16 %v4267, %v4266
      %v4362 = vpack.c.b16 %v4269, %v4268
      %v4363 = vpack.c.b16 %v4271, %v4270
      %v4364 = vpack.c.b16 %v4273, %v4272
      %v4365 = vpack.c.b16 %v4275, %v4274
      %v4366 = vpack.c.b16 %v4277, %v4276
      %v4367 = vpack.c.b16 %v4279, %v4278
      %v4368 = vpack.c.b16 %v4281, %v4280
      %v4369 = vpack.c.b16 %v4283, %v4282
      %v4370 = vpack.c.b16 %v4285, %v4284
      %v4371 = vpack.c.b16 %v4287, %v4286
      %v4372 = vpack.c.b16 %v4289, %v4288
      %v4373 = vpack.c.b16 %v4291, %v4290
      %v4374 = vpack.c.b16 %v4293, %v4292
      %v4375 = vpack.c.b16 %v4295, %v4294
      %v4376 = vpack.c.b16 %v4297, %v4296
      %v4377 = vpack.c.b16 %v4299, %v4298
      %v4378 = vpack.c.b16 %v4301, %v4300
      %v4379 = vpack.c.b16 %v4303, %v4302
      %v4380 = vpack.c.b16 %v4305, %v4304
      %v4381 = vpack.c.b16 %v4307, %v4306
      %v4382 = vpack.c.b16 %v4309, %v4308
      %v4383 = vpack.c.b16 %v4311, %v4310
      %4456 = vmatprep.subr.bf16.mxu0 0
      %4457 = vmatpush1.bf16.msra.mxu0 %v4312
      %4458 = vmatprep.subr.bf16.mxu0 0
      %4459 = vmatpush1.bf16.msra.mxu0 %v4313
      %4460 = vmatprep.subr.bf16.mxu0 0
      %4461 = vmatpush1.bf16.msra.mxu0 %v4314
      %4462 = vmatprep.subr.bf16.mxu0 0
      %4463 = vmatpush1.bf16.msra.mxu0 %v4315
      %4464 = vmatprep.subr.bf16.mxu0 0
      %4465 = vmatpush1.bf16.msra.mxu0 %v4316
      %4466 = vmatprep.subr.bf16.mxu0 0
      %4467 = vmatpush1.bf16.msra.mxu0 %v4317
      %4468 = vmatprep.subr.bf16.mxu0 0
      %4469 = vmatpush1.bf16.msra.mxu0 %v4318
      %4470 = vmatprep.subr.bf16.mxu0 0
      %4471 = vmatpush1.bf16.msra.mxu0 %v4319
      %4472 = vmatprep.subr.bf16.mxu0 0
      %4473 = vmatpush1.bf16.msra.mxu0 %v4320
      %4474 = vmatprep.subr.bf16.mxu0 0
      %4475 = vmatpush1.bf16.msra.mxu0 %v4321
      %4476 = vmatprep.subr.bf16.mxu0 0
      %4477 = vmatpush1.bf16.msra.mxu0 %v4322
      %4478 = vmatprep.subr.bf16.mxu0 0
      %4479 = vmatpush1.bf16.msra.mxu0 %v4323
      %4480 = vmatprep.subr.bf16.mxu0 0
      %4481 = vmatpush1.bf16.msra.mxu0 %v4324
      %4482 = vmatprep.subr.bf16.mxu0 0
      %4483 = vmatpush1.bf16.msra.mxu0 %v4325
      %4484 = vmatprep.subr.bf16.mxu0 0
      %4485 = vmatpush1.bf16.msra.mxu0 %v4326
      %4486 = vmatprep.subr.bf16.mxu0 0
      %4487 = vmatpush1.bf16.msra.mxu0 %v4327
      %4488 = vmatprep.mubr.bf16.mxu0 %v3730
      %4489 = vmatmul.mubr.bf16.gmra.mrb[0].mxu0 %v3729
      %v4490 = vpop.f32.mrb[0].mxu0
      %v4491 = vadd.f32 %v4022, %v4490
      %v4492 = vpop.f32.mrb[0].mxu0
      %v4493 = vpop.f32.mrb[0].mxu0
      %v4494 = vadd.f32 %v4022, %v4493
      %v4495 = vpop.f32.mrb[0].mxu0
      %4496 = vmatprep.mubr.bf16.mxu0 %v3739
      %4497 = vmatmul.mubr.bf16.gmra.mrb[0].mxu0 %v3738
      %v4498 = vpop.f32.mrb[0].mxu0
      %v4499 = vadd.f32 %v4022, %v4498
      %v4500 = vpop.f32.mrb[0].mxu0
      %v4501 = vpop.f32.mrb[0].mxu0
      %v4502 = vadd.f32 %v4022, %v4501
      %v4503 = vpop.f32.mrb[0].mxu0
      %4504 = vmatprep.mubr.bf16.mxu0 %v3748
      %4505 = vmatmul.mubr.bf16.gmra.mrb[0].mxu0 %v3747
      %v4506 = vpop.f32.mrb[0].mxu0
      %v4507 = vadd.f32 %v4022, %v4506
      %v4508 = vpop.f32.mrb[0].mxu0
      %v4509 = vpop.f32.mrb[0].mxu0
      %v4510 = vadd.f32 %v4022, %v4509
      %v4511 = vpop.f32.mrb[0].mxu0
      %4512 = vmatprep.mubr.bf16.mxu0 %v3757
      %4513 = vmatmul.mubr.bf16.gmra.mrb[0].mxu0 %v3756
      %v4514 = vpop.f32.mrb[0].mxu0
      %v4515 = vadd.f32 %v4022, %v4514
      %v4516 = vpop.f32.mrb[0].mxu0
      %v4517 = vpop.f32.mrb[0].mxu0
      %v4518 = vadd.f32 %v4022, %v4517
      %v4519 = vpop.f32.mrb[0].mxu0
      %4520 = vmatprep.mubr.bf16.mxu0 %v3766
      %4521 = vmatmul.mubr.bf16.gmra.mrb[0].mxu0 %v3765
      %v4522 = vpop.f32.mrb[0].mxu0
      %v4523 = vadd.f32 %v4022, %v4522
      %v4524 = vpop.f32.mrb[0].mxu0
      %v4525 = vpop.f32.mrb[0].mxu0
      %v4526 = vadd.f32 %v4022, %v4525
      %v4527 = vpop.f32.mrb[0].mxu0
      %4528 = vmatprep.mubr.bf16.mxu0 %v3775
      %4529 = vmatmul.mubr.bf16.gmra.mrb[0].mxu0 %v3774
      %v4530 = vpop.f32.mrb[0].mxu0
      %v4531 = vadd.f32 %v4022, %v4530
      %v4532 = vpop.f32.mrb[0].mxu0
      %v4533 = vpop.f32.mrb[0].mxu0
      %v4534 = vadd.f32 %v4022, %v4533
      %v4535 = vpop.f32.mrb[0].mxu0
      %4536 = vmatprep.mubr.bf16.mxu0 %v3784
      %4537 = vmatmul.mubr.bf16.gmra.mrb[0].mxu0 %v3783
      %v4538 = vpop.f32.mrb[0].mxu0
      %v4539 = vadd.f32 %v4022, %v4538
      %v4540 = vpop.f32.mrb[0].mxu0
      %v4541 = vpop.f32.mrb[0].mxu0
      %v4542 = vadd.f32 %v4022, %v4541
      %v4543 = vpop.f32.mrb[0].mxu0
      %4544 = vmatprep.mubr.bf16.mxu0 %v3793
      %4545 = vmatmul.mubr.bf16.gmra.mrb[0].mxu0 %v3792
      %v4546 = vpop.f32.mrb[0].mxu0
      %v4547 = vadd.f32 %v4022, %v4546
      %v4548 = vpop.f32.mrb[0].mxu0
      %v4549 = vpop.f32.mrb[0].mxu0
      %v4550 = vadd.f32 %v4022, %v4549
      %v4551 = vpop.f32.mrb[0].mxu0
      %4552 = vmatprep.mubr.bf16.mxu0 %v3802
      %4553 = vmatmul.mubr.bf16.gmra.mrb[0].mxu0 %v3801
      %v4554 = vpop.f32.mrb[0].mxu0
      %v4555 = vadd.f32 %v4022, %v4554
      %v4556 = vpop.f32.mrb[0].mxu0
      %v4557 = vpop.f32.mrb[0].mxu0
      %v4558 = vadd.f32 %v4022, %v4557
      %v4559 = vpop.f32.mrb[0].mxu0
      %4560 = vmatprep.mubr.bf16.mxu0 %v3811
      %4561 = vmatmul.mubr.bf16.gmra.mrb[0].mxu0 %v3810
      %v4562 = vpop.f32.mrb[0].mxu0
      %v4563 = vadd.f32 %v4022, %v4562
      %v4564 = vpop.f32.mrb[0].mxu0
      %v4565 = vpop.f32.mrb[0].mxu0
      %v4566 = vadd.f32 %v4022, %v4565
      %v4567 = vpop.f32.mrb[0].mxu0
      %4568 = vmatprep.mubr.bf16.mxu0 %v3820
      %4569 = vmatmul.mubr.bf16.gmra.mrb[0].mxu0 %v3819
      %v4570 = vpop.f32.mrb[0].mxu0
      %v4571 = vadd.f32 %v4022, %v4570
      %v4572 = vpop.f32.mrb[0].mxu0
      %v4573 = vpop.f32.mrb[0].mxu0
      %v4574 = vadd.f32 %v4022, %v4573
      %v4575 = vpop.f32.mrb[0].mxu0
      %4576 = vmatprep.mubr.bf16.mxu0 %v3829
      %4577 = vmatmul.mubr.bf16.gmra.mrb[0].mxu0 %v3828
      %v4578 = vpop.f32.mrb[0].mxu0
      %v4579 = vadd.f32 %v4022, %v4578
      %v4580 = vpop.f32.mrb[0].mxu0
      %v4581 = vpop.f32.mrb[0].mxu0
      %v4582 = vadd.f32 %v4022, %v4581
      %v4583 = vpop.f32.mrb[0].mxu0
      %4584 = vmatprep.mubr.bf16.mxu0 %v3838
      %4585 = vmatmul.mubr.bf16.gmra.mrb[0].mxu0 %v3837
      %v4586 = vpop.f32.mrb[0].mxu0
      %v4587 = vadd.f32 %v4022, %v4586
      %v4588 = vpop.f32.mrb[0].mxu0
      %v4589 = vpop.f32.mrb[0].mxu0
      %v4590 = vadd.f32 %v4022, %v4589
      %v4591 = vpop.f32.mrb[0].mxu0
      %4592 = vmatprep.mubr.bf16.mxu0 %v3847
      %4593 = vmatmul.mubr.bf16.gmra.mrb[0].mxu0 %v3846
      %v4594 = vpop.f32.mrb[0].mxu0
      %v4595 = vadd.f32 %v4022, %v4594
      %v4596 = vpop.f32.mrb[0].mxu0
      %v4597 = vpop.f32.mrb[0].mxu0
      %v4598 = vadd.f32 %v4022, %v4597
      %v4599 = vpop.f32.mrb[0].mxu0
      %4600 = vmatprep.mubr.bf16.mxu0 %v3856
      %4601 = vmatmul.mubr.bf16.gmra.mrb[0].mxu0 %v3855
      %v4602 = vpop.f32.mrb[0].mxu0
      %v4603 = vadd.f32 %v4022, %v4602
      %v4604 = vpop.f32.mrb[0].mxu0
      %v4605 = vpop.f32.mrb[0].mxu0
      %v4606 = vadd.f32 %v4022, %v4605
      %v4607 = vpop.f32.mrb[0].mxu0
      %4608 = vmatprep.mubr.bf16.mxu0 %v3865
      %4609 = vmatmul.mubr.bf16.gmra.mrb[0].mxu0 %v3864
      %v4610 = vpop.f32.mrb[0].mxu0
      %v4611 = vadd.f32 %v4022, %v4610
      %v4612 = vpop.f32.mrb[0].mxu0
      %v4613 = vpop.f32.mrb[0].mxu0
      %v4614 = vadd.f32 %v4022, %v4613
      %v4615 = vpop.f32.mrb[0].mxu0
      %4616 = vdwg.mxu0
      %4617 = vmatprep.subr.bf16.mxu0 0
      %4618 = vmatpush1.bf16.msra.mxu0 %v4328
      %4619 = vmatprep.subr.bf16.mxu0 0
      %4620 = vmatpush1.bf16.msra.mxu0 %v4329
      %4621 = vmatprep.subr.bf16.mxu0 0
      %4622 = vmatpush1.bf16.msra.mxu0 %v4330
      %4623 = vmatprep.subr.bf16.mxu0 0
      %4624 = vmatpush1.bf16.msra.mxu0 %v4331
      %4625 = vmatprep.subr.bf16.mxu0 0
      %4626 = vmatpush1.bf16.msra.mxu0 %v4332
      %4627 = vmatprep.subr.bf16.mxu0 0
      %4628 = vmatpush1.bf16.msra.mxu0 %v4333
      %4629 = vmatprep.subr.bf16.mxu0 0
      %4630 = vmatpush1.bf16.msra.mxu0 %v4334
      %4631 = vmatprep.subr.bf16.mxu0 0
      %4632 = vmatpush1.bf16.msra.mxu0 %v4335
      %4633 = vmatprep.subr.bf16.mxu0 0
      %4634 = vmatpush1.bf16.msra.mxu0 %v4336
      %4635 = vmatprep.subr.bf16.mxu0 0
      %4636 = vmatpush1.bf16.msra.mxu0 %v4337
      %4637 = vmatprep.subr.bf16.mxu0 0
      %4638 = vmatpush1.bf16.msra.mxu0 %v4338
      %4639 = vmatprep.subr.bf16.mxu0 0
      %4640 = vmatpush1.bf16.msra.mxu0 %v4339
      %4641 = vmatprep.subr.bf16.mxu0 0
      %4642 = vmatpush1.bf16.msra.mxu0 %v4340
      %4643 = vmatprep.subr.bf16.mxu0 0
      %4644 = vmatpush1.bf16.msra.mxu0 %v4341
      %4645 = vmatprep.subr.bf16.mxu0 0
      %4646 = vmatpush1.bf16.msra.mxu0 %v4342
      %4647 = vmatprep.subr.bf16.mxu0 0
      %4648 = vmatpush1.bf16.msra.mxu0 %v4343
      %4649 = vmatprep.mubr.bf16.mxu0 %v3732
      %4650 = vmatmul.mubr.bf16.gmra.mrb[0].mxu0 %v3731
      %v4651 = vpop.f32.mrb[0].mxu0
      %v4652 = vadd.f32 %v4491, %v4651
      %v4653 = vpop.f32.mrb[0].mxu0
      %v4654 = vpop.f32.mrb[0].mxu0
      %v4655 = vadd.f32 %v4494, %v4654
      %v4656 = vpop.f32.mrb[0].mxu0
      %4657 = vmatprep.mubr.bf16.mxu0 %v3741
      %4658 = vmatmul.mubr.bf16.gmra.mrb[0].mxu0 %v3740
      %v4659 = vpop.f32.mrb[0].mxu0
      %v4660 = vadd.f32 %v4499, %v4659
      %v4661 = vpop.f32.mrb[0].mxu0
      %v4662 = vpop.f32.mrb[0].mxu0
      %v4663 = vadd.f32 %v4502, %v4662
      %v4664 = vpop.f32.mrb[0].mxu0
      %4665 = vmatprep.mubr.bf16.mxu0 %v3750
      %4666 = vmatmul.mubr.bf16.gmra.mrb[0].mxu0 %v3749
      %v4667 = vpop.f32.mrb[0].mxu0
      %v4668 = vadd.f32 %v4507, %v4667
      %v4669 = vpop.f32.mrb[0].mxu0
      %v4670 = vpop.f32.mrb[0].mxu0
      %v4671 = vadd.f32 %v4510, %v4670
      %v4672 = vpop.f32.mrb[0].mxu0
      %4673 = vmatprep.mubr.bf16.mxu0 %v3759
      %4674 = vmatmul.mubr.bf16.gmra.mrb[0].mxu0 %v3758
      %v4675 = vpop.f32.mrb[0].mxu0
      %v4676 = vadd.f32 %v4515, %v4675
      %v4677 = vpop.f32.mrb[0].mxu0
      %v4678 = vpop.f32.mrb[0].mxu0
      %v4679 = vadd.f32 %v4518, %v4678
      %v4680 = vpop.f32.mrb[0].mxu0
      %4681 = vmatprep.mubr.bf16.mxu0 %v3768
      %4682 = vmatmul.mubr.bf16.gmra.mrb[0].mxu0 %v3767
      %v4683 = vpop.f32.mrb[0].mxu0
      %v4684 = vadd.f32 %v4523, %v4683
      %v4685 = vpop.f32.mrb[0].mxu0
      %v4686 = vpop.f32.mrb[0].mxu0
      %v4687 = vadd.f32 %v4526, %v4686
      %v4688 = vpop.f32.mrb[0].mxu0
      %4689 = vmatprep.mubr.bf16.mxu0 %v3777
      %4690 = vmatmul.mubr.bf16.gmra.mrb[0].mxu0 %v3776
      %v4691 = vpop.f32.mrb[0].mxu0
      %v4692 = vadd.f32 %v4531, %v4691
      %v4693 = vpop.f32.mrb[0].mxu0
      %v4694 = vpop.f32.mrb[0].mxu0
      %v4695 = vadd.f32 %v4534, %v4694
      %v4696 = vpop.f32.mrb[0].mxu0
      %4697 = vmatprep.mubr.bf16.mxu0 %v3786
      %4698 = vmatmul.mubr.bf16.gmra.mrb[0].mxu0 %v3785
      %v4699 = vpop.f32.mrb[0].mxu0
      %v4700 = vadd.f32 %v4539, %v4699
      %v4701 = vpop.f32.mrb[0].mxu0
      %v4702 = vpop.f32.mrb[0].mxu0
      %v4703 = vadd.f32 %v4542, %v4702
      %v4704 = vpop.f32.mrb[0].mxu0
      %4705 = vmatprep.mubr.bf16.mxu0 %v3795
      %4706 = vmatmul.mubr.bf16.gmra.mrb[0].mxu0 %v3794
      %v4707 = vpop.f32.mrb[0].mxu0
      %v4708 = vadd.f32 %v4547, %v4707
      %v4709 = vpop.f32.mrb[0].mxu0
      %v4710 = vpop.f32.mrb[0].mxu0
      %v4711 = vadd.f32 %v4550, %v4710
      %v4712 = vpop.f32.mrb[0].mxu0
      %4713 = vmatprep.mubr.bf16.mxu0 %v3804
      %4714 = vmatmul.mubr.bf16.gmra.mrb[0].mxu0 %v3803
      %v4715 = vpop.f32.mrb[0].mxu0
      %v4716 = vadd.f32 %v4555, %v4715
      %v4717 = vpop.f32.mrb[0].mxu0
      %v4718 = vpop.f32.mrb[0].mxu0
      %v4719 = vadd.f32 %v4558, %v4718
      %v4720 = vpop.f32.mrb[0].mxu0
      %4721 = vmatprep.mubr.bf16.mxu0 %v3813
      %4722 = vmatmul.mubr.bf16.gmra.mrb[0].mxu0 %v3812
      %v4723 = vpop.f32.mrb[0].mxu0
      %v4724 = vadd.f32 %v4563, %v4723
      %v4725 = vpop.f32.mrb[0].mxu0
      %v4726 = vpop.f32.mrb[0].mxu0
      %v4727 = vadd.f32 %v4566, %v4726
      %v4728 = vpop.f32.mrb[0].mxu0
      %4729 = vmatprep.mubr.bf16.mxu0 %v3822
      %4730 = vmatmul.mubr.bf16.gmra.mrb[0].mxu0 %v3821
      %v4731 = vpop.f32.mrb[0].mxu0
      %v4732 = vadd.f32 %v4571, %v4731
      %v4733 = vpop.f32.mrb[0].mxu0
      %v4734 = vpop.f32.mrb[0].mxu0
      %v4735 = vadd.f32 %v4574, %v4734
      %v4736 = vpop.f32.mrb[0].mxu0
      %4737 = vmatprep.mubr.bf16.mxu0 %v3831
      %4738 = vmatmul.mubr.bf16.gmra.mrb[0].mxu0 %v3830
      %v4739 = vpop.f32.mrb[0].mxu0
      %v4740 = vadd.f32 %v4579, %v4739
      %v4741 = vpop.f32.mrb[0].mxu0
      %v4742 = vpop.f32.mrb[0].mxu0
      %v4743 = vadd.f32 %v4582, %v4742
      %v4744 = vpop.f32.mrb[0].mxu0
      %4745 = vmatprep.mubr.bf16.mxu0 %v3840
      %4746 = vmatmul.mubr.bf16.gmra.mrb[0].mxu0 %v3839
      %v4747 = vpop.f32.mrb[0].mxu0
      %v4748 = vadd.f32 %v4587, %v4747
      %v4749 = vpop.f32.mrb[0].mxu0
      %v4750 = vpop.f32.mrb[0].mxu0
      %v4751 = vadd.f32 %v4590, %v4750
      %v4752 = vpop.f32.mrb[0].mxu0
      %4753 = vmatprep.mubr.bf16.mxu0 %v3849
      %4754 = vmatmul.mubr.bf16.gmra.mrb[0].mxu0 %v3848
      %v4755 = vpop.f32.mrb[0].mxu0
      %v4756 = vadd.f32 %v4595, %v4755
      %v4757 = vpop.f32.mrb[0].mxu0
      %v4758 = vpop.f32.mrb[0].mxu0
      %v4759 = vadd.f32 %v4598, %v4758
      %v4760 = vpop.f32.mrb[0].mxu0
      %4761 = vmatprep.mubr.bf16.mxu0 %v3858
      %4762 = vmatmul.mubr.bf16.gmra.mrb[0].mxu0 %v3857
      %v4763 = vpop.f32.mrb[0].mxu0
      %v4764 = vadd.f32 %v4603, %v4763
      %v4765 = vpop.f32.mrb[0].mxu0
      %v4766 = vpop.f32.mrb[0].mxu0
      %v4767 = vadd.f32 %v4606, %v4766
      %v4768 = vpop.f32.mrb[0].mxu0
      %4769 = vmatprep.mubr.bf16.mxu0 %v3867
      %4770 = vmatmul.mubr.bf16.gmra.mrb[0].mxu0 %v3866
      %v4771 = vpop.f32.mrb[0].mxu0
      %v4772 = vadd.f32 %v4611, %v4771
      %v4773 = vpop.f32.mrb[0].mxu0
      %v4774 = vpop.f32.mrb[0].mxu0
      %v4775 = vadd.f32 %v4614, %v4774
      %v4776 = vpop.f32.mrb[0].mxu0
      %4777 = vdwg.mxu0
      %4778 = vmatprep.subr.bf16.mxu0 0
      %4779 = vmatpush1.bf16.msra.mxu0 %v4344
      %4780 = vmatprep.subr.bf16.mxu0 0
      %4781 = vmatpush1.bf16.msra.mxu0 %v4345
      %4782 = vmatprep.subr.bf16.mxu0 0
      %4783 = vmatpush1.bf16.msra.mxu0 %v4346
      %4784 = vmatprep.subr.bf16.mxu0 0
      %4785 = vmatpush1.bf16.msra.mxu0 %v4347
      %4786 = vmatprep.subr.bf16.mxu0 0
      %4787 = vmatpush1.bf16.msra.mxu0 %v4348
      %4788 = vmatprep.subr.bf16.mxu0 0
      %4789 = vmatpush1.bf16.msra.mxu0 %v4349
      %4790 = vmatprep.subr.bf16.mxu0 0
      %4791 = vmatpush1.bf16.msra.mxu0 %v4350
      %4792 = vmatprep.subr.bf16.mxu0 0
      %4793 = vmatpush1.bf16.msra.mxu0 %v4351
      %4794 = vmatprep.subr.bf16.mxu0 0
      %4795 = vmatpush1.bf16.msra.mxu0 %v4352
      %4796 = vmatprep.subr.bf16.mxu0 0
      %4797 = vmatpush1.bf16.msra.mxu0 %v4353
      %4798 = vmatprep.subr.bf16.mxu0 0
      %4799 = vmatpush1.bf16.msra.mxu0 %v4354
      %4800 = vmatprep.subr.bf16.mxu0 0
      %4801 = vmatpush1.bf16.msra.mxu0 %v4355
      %4802 = vmatprep.subr.bf16.mxu0 0
      %4803 = vmatpush1.bf16.msra.mxu0 %v4356
      %4804 = vmatprep.subr.bf16.mxu0 0
      %4805 = vmatpush1.bf16.msra.mxu0 %v4357
      %4806 = vmatprep.subr.bf16.mxu0 0
      %4807 = vmatpush1.bf16.msra.mxu0 %v4358
      %4808 = vmatprep.subr.bf16.mxu0 0
      %4809 = vmatpush1.bf16.msra.mxu0 %v4359
      %4810 = vmatprep.mubr.bf16.mxu0 %v3734
      %4811 = vmatmul.mubr.bf16.gmra.mrb[0].mxu0 %v3733
      %v4812 = vpop.f32.mrb[0].mxu0
      %v4813 = vadd.f32 %v4652, %v4812
      %v4814 = vpop.f32.mrb[0].mxu0
      %v4815 = vpop.f32.mrb[0].mxu0
      %v4816 = vadd.f32 %v4655, %v4815
      %v4817 = vpop.f32.mrb[0].mxu0
      %4818 = vmatprep.mubr.bf16.mxu0 %v3743
      %4819 = vmatmul.mubr.bf16.gmra.mrb[0].mxu0 %v3742
      %v4820 = vpop.f32.mrb[0].mxu0
      %v4821 = vadd.f32 %v4660, %v4820
      %v4822 = vpop.f32.mrb[0].mxu0
      %v4823 = vpop.f32.mrb[0].mxu0
      %v4824 = vadd.f32 %v4663, %v4823
      %v4825 = vpop.f32.mrb[0].mxu0
      %4826 = vmatprep.mubr.bf16.mxu0 %v3752
      %4827 = vmatmul.mubr.bf16.gmra.mrb[0].mxu0 %v3751
      %v4828 = vpop.f32.mrb[0].mxu0
      %v4829 = vadd.f32 %v4668, %v4828
      %v4830 = vpop.f32.mrb[0].mxu0
      %v4831 = vpop.f32.mrb[0].mxu0
      %v4832 = vadd.f32 %v4671, %v4831
      %v4833 = vpop.f32.mrb[0].mxu0
      %4834 = vmatprep.mubr.bf16.mxu0 %v3761
      %4835 = vmatmul.mubr.bf16.gmra.mrb[0].mxu0 %v3760
      %v4836 = vpop.f32.mrb[0].mxu0
      %v4837 = vadd.f32 %v4676, %v4836
      %v4838 = vpop.f32.mrb[0].mxu0
      %v4839 = vpop.f32.mrb[0].mxu0
      %v4840 = vadd.f32 %v4679, %v4839
      %v4841 = vpop.f32.mrb[0].mxu0
      %4842 = vmatprep.mubr.bf16.mxu0 %v3770
      %4843 = vmatmul.mubr.bf16.gmra.mrb[0].mxu0 %v3769
      %v4844 = vpop.f32.mrb[0].mxu0
      %v4845 = vadd.f32 %v4684, %v4844
      %v4846 = vpop.f32.mrb[0].mxu0
      %v4847 = vpop.f32.mrb[0].mxu0
      %v4848 = vadd.f32 %v4687, %v4847
      %v4849 = vpop.f32.mrb[0].mxu0
      %4850 = vmatprep.mubr.bf16.mxu0 %v3779
      %4851 = vmatmul.mubr.bf16.gmra.mrb[0].mxu0 %v3778
      %v4852 = vpop.f32.mrb[0].mxu0
      %v4853 = vadd.f32 %v4692, %v4852
      %v4854 = vpop.f32.mrb[0].mxu0
      %v4855 = vpop.f32.mrb[0].mxu0
      %v4856 = vadd.f32 %v4695, %v4855
      %v4857 = vpop.f32.mrb[0].mxu0
      %4858 = vmatprep.mubr.bf16.mxu0 %v3788
      %4859 = vmatmul.mubr.bf16.gmra.mrb[0].mxu0 %v3787
      %v4860 = vpop.f32.mrb[0].mxu0
      %v4861 = vadd.f32 %v4700, %v4860
      %v4862 = vpop.f32.mrb[0].mxu0
      %v4863 = vpop.f32.mrb[0].mxu0
      %v4864 = vadd.f32 %v4703, %v4863
      %v4865 = vpop.f32.mrb[0].mxu0
      %4866 = vmatprep.mubr.bf16.mxu0 %v3797
      %4867 = vmatmul.mubr.bf16.gmra.mrb[0].mxu0 %v3796
      %v4868 = vpop.f32.mrb[0].mxu0
      %v4869 = vadd.f32 %v4708, %v4868
      %v4870 = vpop.f32.mrb[0].mxu0
      %v4871 = vpop.f32.mrb[0].mxu0
      %v4872 = vadd.f32 %v4711, %v4871
      %v4873 = vpop.f32.mrb[0].mxu0
      %4874 = vmatprep.mubr.bf16.mxu0 %v3806
      %4875 = vmatmul.mubr.bf16.gmra.mrb[0].mxu0 %v3805
      %v4876 = vpop.f32.mrb[0].mxu0
      %v4877 = vadd.f32 %v4716, %v4876
      %v4878 = vpop.f32.mrb[0].mxu0
      %v4879 = vpop.f32.mrb[0].mxu0
      %v4880 = vadd.f32 %v4719, %v4879
      %v4881 = vpop.f32.mrb[0].mxu0
      %4882 = vmatprep.mubr.bf16.mxu0 %v3815
      %4883 = vmatmul.mubr.bf16.gmra.mrb[0].mxu0 %v3814
      %v4884 = vpop.f32.mrb[0].mxu0
      %v4885 = vadd.f32 %v4724, %v4884
      %v4886 = vpop.f32.mrb[0].mxu0
      %v4887 = vpop.f32.mrb[0].mxu0
      %v4888 = vadd.f32 %v4727, %v4887
      %v4889 = vpop.f32.mrb[0].mxu0
      %4890 = vmatprep.mubr.bf16.mxu0 %v3824
      %4891 = vmatmul.mubr.bf16.gmra.mrb[0].mxu0 %v3823
      %v4892 = vpop.f32.mrb[0].mxu0
      %v4893 = vadd.f32 %v4732, %v4892
      %v4894 = vpop.f32.mrb[0].mxu0
      %v4895 = vpop.f32.mrb[0].mxu0
      %v4896 = vadd.f32 %v4735, %v4895
      %v4897 = vpop.f32.mrb[0].mxu0
      %4898 = vmatprep.mubr.bf16.mxu0 %v3833
      %4899 = vmatmul.mubr.bf16.gmra.mrb[0].mxu0 %v3832
      %v4900 = vpop.f32.mrb[0].mxu0
      %v4901 = vadd.f32 %v4740, %v4900
      %v4902 = vpop.f32.mrb[0].mxu0
      %v4903 = vpop.f32.mrb[0].mxu0
      %v4904 = vadd.f32 %v4743, %v4903
      %v4905 = vpop.f32.mrb[0].mxu0
      %4906 = vmatprep.mubr.bf16.mxu0 %v3842
      %4907 = vmatmul.mubr.bf16.gmra.mrb[0].mxu0 %v3841
      %v4908 = vpop.f32.mrb[0].mxu0
      %v4909 = vadd.f32 %v4748, %v4908
      %v4910 = vpop.f32.mrb[0].mxu0
      %v4911 = vpop.f32.mrb[0].mxu0
      %v4912 = vadd.f32 %v4751, %v4911
      %v4913 = vpop.f32.mrb[0].mxu0
      %4914 = vmatprep.mubr.bf16.mxu0 %v3851
      %4915 = vmatmul.mubr.bf16.gmra.mrb[0].mxu0 %v3850
      %v4916 = vpop.f32.mrb[0].mxu0
      %v4917 = vadd.f32 %v4756, %v4916
      %v4918 = vpop.f32.mrb[0].mxu0
      %v4919 = vpop.f32.mrb[0].mxu0
      %v4920 = vadd.f32 %v4759, %v4919
      %v4921 = vpop.f32.mrb[0].mxu0
      %4922 = vmatprep.mubr.bf16.mxu0 %v3860
      %4923 = vmatmul.mubr.bf16.gmra.mrb[0].mxu0 %v3859
      %v4924 = vpop.f32.mrb[0].mxu0
      %v4925 = vadd.f32 %v4764, %v4924
      %v4926 = vpop.f32.mrb[0].mxu0
      %v4927 = vpop.f32.mrb[0].mxu0
      %v4928 = vadd.f32 %v4767, %v4927
      %v4929 = vpop.f32.mrb[0].mxu0
      %4930 = vmatprep.mubr.bf16.mxu0 %v3869
      %4931 = vmatmul.mubr.bf16.gmra.mrb[0].mxu0 %v3868
      %v4932 = vpop.f32.mrb[0].mxu0
      %v4933 = vadd.f32 %v4772, %v4932
      %v4934 = vpop.f32.mrb[0].mxu0
      %v4935 = vpop.f32.mrb[0].mxu0
      %v4936 = vadd.f32 %v4775, %v4935
      %v4937 = vpop.f32.mrb[0].mxu0
      %4938 = vdwg.mxu0
      %4939 = vmatprep.subr.bf16.mxu0 0
      %4940 = vmatpush1.bf16.msra.mxu0 %v4360
      %4941 = vmatprep.subr.bf16.mxu0 0
      %4942 = vmatpush1.bf16.msra.mxu0 %v4361
      %4943 = vmatprep.subr.bf16.mxu0 0
      %4944 = vmatpush1.bf16.msra.mxu0 %v4362
      %4945 = vmatprep.subr.bf16.mxu0 0
      %4946 = vmatpush1.bf16.msra.mxu0 %v4363
      %4947 = vmatprep.subr.bf16.mxu0 0
      %4948 = vmatpush1.bf16.msra.mxu0 %v4364
      %4949 = vmatprep.subr.bf16.mxu0 0
      %4950 = vmatpush1.bf16.msra.mxu0 %v4365
      %4951 = vmatprep.subr.bf16.mxu0 0
      %4952 = vmatpush1.bf16.msra.mxu0 %v4366
      %4953 = vmatprep.subr.bf16.mxu0 0
      %4954 = vmatpush1.bf16.msra.mxu0 %v4367
      %4955 = vmatprep.subr.bf16.mxu0 0
      %4956 = vmatpush1.bf16.msra.mxu0 %v4368
      %4957 = vmatprep.subr.bf16.mxu0 0
      %4958 = vmatpush1.bf16.msra.mxu0 %v4369
      %4959 = vmatprep.subr.bf16.mxu0 0
      %4960 = vmatpush1.bf16.msra.mxu0 %v4370
      %4961 = vmatprep.subr.bf16.mxu0 0
      %4962 = vmatpush1.bf16.msra.mxu0 %v4371
      %4963 = vmatprep.subr.bf16.mxu0 0
      %4964 = vmatpush1.bf16.msra.mxu0 %v4372
      %4965 = vmatprep.subr.bf16.mxu0 0
      %4966 = vmatpush1.bf16.msra.mxu0 %v4373
      %4967 = vmatprep.subr.bf16.mxu0 0
      %4968 = vmatpush1.bf16.msra.mxu0 %v4374
      %4969 = vmatprep.subr.bf16.mxu0 0
      %4970 = vmatpush1.bf16.msra.mxu0 %v4375
      %4971 = vmatprep.mubr.bf16.mxu0 %v3736
      %4972 = vmatmul.mubr.bf16.gmra.mrb[0].mxu0 %v3735
      %v4973 = vpop.f32.mrb[0].mxu0
      %v4974 = vadd.f32 %v4813, %v4973
      %v4975 = vpop.f32.mrb[0].mxu0
      %v4976 = vpop.f32.mrb[0].mxu0
      %v4977 = vadd.f32 %v4816, %v4976
      %v4978 = vpop.f32.mrb[0].mxu0
      %4979 = vmatprep.mubr.bf16.mxu0 %v3745
      %4980 = vmatmul.mubr.bf16.gmra.mrb[0].mxu0 %v3744
      %v4981 = vpop.f32.mrb[0].mxu0
      %v4982 = vadd.f32 %v4821, %v4981
      %v4983 = vpop.f32.mrb[0].mxu0
      %v4984 = vpop.f32.mrb[0].mxu0
      %v4985 = vadd.f32 %v4824, %v4984
      %v4986 = vpop.f32.mrb[0].mxu0
      %4987 = vmatprep.mubr.bf16.mxu0 %v3754
      %4988 = vmatmul.mubr.bf16.gmra.mrb[0].mxu0 %v3753
      %v4989 = vpop.f32.mrb[0].mxu0
      %v4990 = vadd.f32 %v4829, %v4989
      %v4991 = vpop.f32.mrb[0].mxu0
      %v4992 = vpop.f32.mrb[0].mxu0
      %v4993 = vadd.f32 %v4832, %v4992
      %v4994 = vpop.f32.mrb[0].mxu0
      %4995 = vmatprep.mubr.bf16.mxu0 %v3763
      %4996 = vmatmul.mubr.bf16.gmra.mrb[0].mxu0 %v3762
      %v4997 = vpop.f32.mrb[0].mxu0
      %v4998 = vadd.f32 %v4837, %v4997
      %v4999 = vpop.f32.mrb[0].mxu0
      %v5000 = vpop.f32.mrb[0].mxu0
      %v5001 = vadd.f32 %v4840, %v5000
      %v5002 = vpop.f32.mrb[0].mxu0
      %5003 = vmatprep.mubr.bf16.mxu0 %v3772
      %5004 = vmatmul.mubr.bf16.gmra.mrb[0].mxu0 %v3771
      %v5005 = vpop.f32.mrb[0].mxu0
      %v5006 = vadd.f32 %v4845, %v5005
      %v5007 = vpop.f32.mrb[0].mxu0
      %v5008 = vpop.f32.mrb[0].mxu0
      %v5009 = vadd.f32 %v4848, %v5008
      %v5010 = vpop.f32.mrb[0].mxu0
      %5011 = vmatprep.mubr.bf16.mxu0 %v3781
      %5012 = vmatmul.mubr.bf16.gmra.mrb[0].mxu0 %v3780
      %v5013 = vpop.f32.mrb[0].mxu0
      %v5014 = vadd.f32 %v4853, %v5013
      %v5015 = vpop.f32.mrb[0].mxu0
      %v5016 = vpop.f32.mrb[0].mxu0
      %v5017 = vadd.f32 %v4856, %v5016
      %v5018 = vpop.f32.mrb[0].mxu0
      %5019 = vmatprep.mubr.bf16.mxu0 %v3790
      %5020 = vmatmul.mubr.bf16.gmra.mrb[0].mxu0 %v3789
      %v5021 = vpop.f32.mrb[0].mxu0
      %v5022 = vadd.f32 %v4861, %v5021
      %v5023 = vpop.f32.mrb[0].mxu0
      %v5024 = vpop.f32.mrb[0].mxu0
      %v5025 = vadd.f32 %v4864, %v5024
      %v5026 = vpop.f32.mrb[0].mxu0
      %5027 = vmatprep.mubr.bf16.mxu0 %v3799
      %5028 = vmatmul.mubr.bf16.gmra.mrb[0].mxu0 %v3798
      %v5029 = vpop.f32.mrb[0].mxu0
      %v5030 = vadd.f32 %v4869, %v5029
      %v5031 = vpop.f32.mrb[0].mxu0
      %v5032 = vpop.f32.mrb[0].mxu0
      %v5033 = vadd.f32 %v4872, %v5032
      %v5034 = vpop.f32.mrb[0].mxu0
      %5035 = vmatprep.mubr.bf16.mxu0 %v3808
      %5036 = vmatmul.mubr.bf16.gmra.mrb[0].mxu0 %v3807
      %v5037 = vpop.f32.mrb[0].mxu0
      %v5038 = vadd.f32 %v4877, %v5037
      %v5039 = vpop.f32.mrb[0].mxu0
      %v5040 = vpop.f32.mrb[0].mxu0
      %v5041 = vadd.f32 %v4880, %v5040
      %v5042 = vpop.f32.mrb[0].mxu0
      %5043 = vmatprep.mubr.bf16.mxu0 %v3817
      %5044 = vmatmul.mubr.bf16.gmra.mrb[0].mxu0 %v3816
      %v5045 = vpop.f32.mrb[0].mxu0
      %v5046 = vadd.f32 %v4885, %v5045
      %v5047 = vpop.f32.mrb[0].mxu0
      %v5048 = vpop.f32.mrb[0].mxu0
      %v5049 = vadd.f32 %v4888, %v5048
      %v5050 = vpop.f32.mrb[0].mxu0
      %5051 = vmatprep.mubr.bf16.mxu0 %v3826
      %5052 = vmatmul.mubr.bf16.gmra.mrb[0].mxu0 %v3825
      %v5053 = vpop.f32.mrb[0].mxu0
      %v5054 = vadd.f32 %v4893, %v5053
      %v5055 = vpop.f32.mrb[0].mxu0
      %v5056 = vpop.f32.mrb[0].mxu0
      %v5057 = vadd.f32 %v4896, %v5056
      %v5058 = vpop.f32.mrb[0].mxu0
      %5059 = vmatprep.mubr.bf16.mxu0 %v3835
      %5060 = vmatmul.mubr.bf16.gmra.mrb[0].mxu0 %v3834
      %v5061 = vpop.f32.mrb[0].mxu0
      %v5062 = vadd.f32 %v4901, %v5061
      %v5063 = vpop.f32.mrb[0].mxu0
      %v5064 = vpop.f32.mrb[0].mxu0
      %v5065 = vadd.f32 %v4904, %v5064
      %v5066 = vpop.f32.mrb[0].mxu0
      %5067 = vmatprep.mubr.bf16.mxu0 %v3844
      %5068 = vmatmul.mubr.bf16.gmra.mrb[0].mxu0 %v3843
      %v5069 = vpop.f32.mrb[0].mxu0
      %v5070 = vadd.f32 %v4909, %v5069
      %v5071 = vpop.f32.mrb[0].mxu0
      %v5072 = vpop.f32.mrb[0].mxu0
      %v5073 = vadd.f32 %v4912, %v5072
      %v5074 = vpop.f32.mrb[0].mxu0
      %5075 = vmatprep.mubr.bf16.mxu0 %v3853
      %5076 = vmatmul.mubr.bf16.gmra.mrb[0].mxu0 %v3852
      %v5077 = vpop.f32.mrb[0].mxu0
      %v5078 = vadd.f32 %v4917, %v5077
      %v5079 = vpop.f32.mrb[0].mxu0
      %v5080 = vpop.f32.mrb[0].mxu0
      %v5081 = vadd.f32 %v4920, %v5080
      %v5082 = vpop.f32.mrb[0].mxu0
      %5083 = vmatprep.mubr.bf16.mxu0 %v3862
      %5084 = vmatmul.mubr.bf16.gmra.mrb[0].mxu0 %v3861
      %v5085 = vpop.f32.mrb[0].mxu0
      %v5086 = vadd.f32 %v4925, %v5085
      %v5087 = vpop.f32.mrb[0].mxu0
      %v5088 = vpop.f32.mrb[0].mxu0
      %v5089 = vadd.f32 %v4928, %v5088
      %v5090 = vpop.f32.mrb[0].mxu0
      %5091 = vmatprep.mubr.bf16.mxu0 %v3871
      %5092 = vmatmul.mubr.bf16.gmra.mrb[0].mxu0 %v3870
      %v5093 = vpop.f32.mrb[0].mxu0
      %v5094 = vadd.f32 %v4933, %v5093
      %v5095 = vpop.f32.mrb[0].mxu0
      %v5096 = vpop.f32.mrb[0].mxu0
      %v5097 = vadd.f32 %v4936, %v5096
      %v5098 = vpop.f32.mrb[0].mxu0
      %5099 = vdwg.mxu0
      %5100 = vmatprep.subr.bf16.mxu0 0
      %5101 = vmatpush1.bf16.msra.mxu0 %v4376
      %5102 = vmatprep.subr.bf16.mxu0 0
      %5103 = vmatpush1.bf16.msra.mxu0 %v4377
      %5104 = vmatprep.subr.bf16.mxu0 0
      %5105 = vmatpush1.bf16.msra.mxu0 %v4378
      %5106 = vmatprep.subr.bf16.mxu0 0
      %5107 = vmatpush1.bf16.msra.mxu0 %v4379
      %5108 = vmatprep.subr.bf16.mxu0 0
      %5109 = vmatpush1.bf16.msra.mxu0 %v4380
      %5110 = vmatprep.subr.bf16.mxu0 0
      %5111 = vmatpush1.bf16.msra.mxu0 %v4381
      %5112 = vmatprep.subr.bf16.mxu0 0
      %5113 = vmatpush1.bf16.msra.mxu0 %v4382
      %5114 = vmatprep.subr.bf16.mxu0 0
      %5115 = vmatpush1.bf16.msra.mxu0 %v4383
      %5116 = vmatprep.subr.bf16.mxu0 0
      %5117 = vmatpush1.bf16.msra.mxu0 0
      %5118 = vmatprep.subr.bf16.mxu0 0
      %5119 = vmatpush1.bf16.msra.mxu0 0
      %5120 = vmatprep.subr.bf16.mxu0 0
      %5121 = vmatpush1.bf16.msra.mxu0 0
      %5122 = vmatprep.subr.bf16.mxu0 0
      %5123 = vmatpush1.bf16.msra.mxu0 0
      %5124 = vmatprep.subr.bf16.mxu0 0
      %5125 = vmatpush1.bf16.msra.mxu0 0
      %5126 = vmatprep.subr.bf16.mxu0 0
      %5127 = vmatpush1.bf16.msra.mxu0 0
      %5128 = vmatprep.subr.bf16.mxu0 0
      %5129 = vmatpush1.bf16.msra.mxu0 0
      %5130 = vmatprep.subr.bf16.mxu0 0
      %5131 = vmatpush1.bf16.msra.mxu0 0
      %5132 = vmatprep.mubr.bf16.mxu0 0
      %5133 = vmatmul.mubr.bf16.gmra.mrb[0].mxu0 %v3737
      %v5134 = vpop.f32.mrb[0].mxu0
      %v5135 = vadd.f32 %v4974, %v5134
      %v5136 = vpop.f32.mrb[0].mxu0
      %v5137 = vpop.f32.mrb[0].mxu0
      %v5138 = vadd.f32 %v4977, %v5137
      %v5139 = vpop.f32.mrb[0].mxu0
      %5140 = vmatprep.mubr.bf16.mxu0 0
      %5141 = vmatmul.mubr.bf16.gmra.mrb[0].mxu0 %v3746
      %v5142 = vpop.f32.mrb[0].mxu0
      %v5143 = vadd.f32 %v4982, %v5142
      %v5144 = vpop.f32.mrb[0].mxu0
      %v5145 = vpop.f32.mrb[0].mxu0
      %v5146 = vadd.f32 %v4985, %v5145
      %v5147 = vpop.f32.mrb[0].mxu0
      %5148 = vmatprep.mubr.bf16.mxu0 0
      %5149 = vmatmul.mubr.bf16.gmra.mrb[0].mxu0 %v3755
      %v5150 = vpop.f32.mrb[0].mxu0
      %v5151 = vadd.f32 %v4990, %v5150
      %v5152 = vpop.f32.mrb[0].mxu0
      %v5153 = vpop.f32.mrb[0].mxu0
      %v5154 = vadd.f32 %v4993, %v5153
      %v5155 = vpop.f32.mrb[0].mxu0
      %5156 = vmatprep.mubr.bf16.mxu0 0
      %5157 = vmatmul.mubr.bf16.gmra.mrb[0].mxu0 %v3764
      %v5158 = vpop.f32.mrb[0].mxu0
      %v5159 = vadd.f32 %v4998, %v5158
      %v5160 = vpop.f32.mrb[0].mxu0
      %v5161 = vpop.f32.mrb[0].mxu0
      %v5162 = vadd.f32 %v5001, %v5161
      %v5163 = vpop.f32.mrb[0].mxu0
      %5164 = vmatprep.mubr.bf16.mxu0 0
      %5165 = vmatmul.mubr.bf16.gmra.mrb[0].mxu0 %v3773
      %v5166 = vpop.f32.mrb[0].mxu0
      %v5167 = vadd.f32 %v5006, %v5166
      %v5168 = vpop.f32.mrb[0].mxu0
      %v5169 = vpop.f32.mrb[0].mxu0
      %v5170 = vadd.f32 %v5009, %v5169
      %v5171 = vpop.f32.mrb[0].mxu0
      %5172 = vmatprep.mubr.bf16.mxu0 0
      %5173 = vmatmul.mubr.bf16.gmra.mrb[0].mxu0 %v3782
      %v5174 = vpop.f32.mrb[0].mxu0
      %v5175 = vadd.f32 %v5014, %v5174
      %v5176 = vpop.f32.mrb[0].mxu0
      %v5177 = vpop.f32.mrb[0].mxu0
      %v5178 = vadd.f32 %v5017, %v5177
      %v5179 = vpop.f32.mrb[0].mxu0
      %5180 = vmatprep.mubr.bf16.mxu0 0
      %5181 = vmatmul.mubr.bf16.gmra.mrb[0].mxu0 %v3791
      %v5182 = vpop.f32.mrb[0].mxu0
      %v5183 = vadd.f32 %v5022, %v5182
      %v5184 = vpop.f32.mrb[0].mxu0
      %v5185 = vpop.f32.mrb[0].mxu0
      %v5186 = vadd.f32 %v5025, %v5185
      %v5187 = vpop.f32.mrb[0].mxu0
      %5188 = vmatprep.mubr.bf16.mxu0 0
      %5189 = vmatmul.mubr.bf16.gmra.mrb[0].mxu0 %v3800
      %v5190 = vpop.f32.mrb[0].mxu0
      %v5191 = vadd.f32 %v5030, %v5190
      %v5192 = vpop.f32.mrb[0].mxu0
      %v5193 = vpop.f32.mrb[0].mxu0
      %v5194 = vadd.f32 %v5033, %v5193
      %v5195 = vpop.f32.mrb[0].mxu0
      %5196 = vmatprep.mubr.bf16.mxu0 0
      %5197 = vmatmul.mubr.bf16.gmra.mrb[0].mxu0 %v3809
      %v5198 = vpop.f32.mrb[0].mxu0
      %v5199 = vadd.f32 %v5038, %v5198
      %v5200 = vpop.f32.mrb[0].mxu0
      %v5201 = vpop.f32.mrb[0].mxu0
      %v5202 = vadd.f32 %v5041, %v5201
      %v5203 = vpop.f32.mrb[0].mxu0
      %5204 = vmatprep.mubr.bf16.mxu0 0
      %5205 = vmatmul.mubr.bf16.gmra.mrb[0].mxu0 %v3818
      %v5206 = vpop.f32.mrb[0].mxu0
      %v5207 = vadd.f32 %v5046, %v5206
      %v5208 = vpop.f32.mrb[0].mxu0
      %v5209 = vpop.f32.mrb[0].mxu0
      %v5210 = vadd.f32 %v5049, %v5209
      %v5211 = vpop.f32.mrb[0].mxu0
      %5212 = vmatprep.mubr.bf16.mxu0 0
      %5213 = vmatmul.mubr.bf16.gmra.mrb[0].mxu0 %v3827
      %v5214 = vpop.f32.mrb[0].mxu0
      %v5215 = vadd.f32 %v5054, %v5214
      %v5216 = vpop.f32.mrb[0].mxu0
      %v5217 = vpop.f32.mrb[0].mxu0
      %v5218 = vadd.f32 %v5057, %v5217
      %v5219 = vpop.f32.mrb[0].mxu0
      %5220 = vmatprep.mubr.bf16.mxu0 0
      %5221 = vmatmul.mubr.bf16.gmra.mrb[0].mxu0 %v3836
      %v5222 = vpop.f32.mrb[0].mxu0
      %v5223 = vadd.f32 %v5062, %v5222
      %v5224 = vpop.f32.mrb[0].mxu0
      %v5225 = vpop.f32.mrb[0].mxu0
      %v5226 = vadd.f32 %v5065, %v5225
      %v5227 = vpop.f32.mrb[0].mxu0
      %5228 = vmatprep.mubr.bf16.mxu0 0
      %5229 = vmatmul.mubr.bf16.gmra.mrb[0].mxu0 %v3845
      %v5230 = vpop.f32.mrb[0].mxu0
      %v5231 = vadd.f32 %v5070, %v5230
      %v5232 = vpop.f32.mrb[0].mxu0
      %v5233 = vpop.f32.mrb[0].mxu0
      %v5234 = vadd.f32 %v5073, %v5233
      %v5235 = vpop.f32.mrb[0].mxu0
      %5236 = vmatprep.mubr.bf16.mxu0 0
      %5237 = vmatmul.mubr.bf16.gmra.mrb[0].mxu0 %v3854
      %v5238 = vpop.f32.mrb[0].mxu0
      %v5239 = vadd.f32 %v5078, %v5238
      %v5240 = vpop.f32.mrb[0].mxu0
      %v5241 = vpop.f32.mrb[0].mxu0
      %v5242 = vadd.f32 %v5081, %v5241
      %v5243 = vpop.f32.mrb[0].mxu0
      %5244 = vmatprep.mubr.bf16.mxu0 0
      %5245 = vmatmul.mubr.bf16.gmra.mrb[0].mxu0 %v3863
      %v5246 = vpop.f32.mrb[0].mxu0
      %v5247 = vadd.f32 %v5086, %v5246
      %v5248 = vpop.f32.mrb[0].mxu0
      %v5249 = vpop.f32.mrb[0].mxu0
      %v5250 = vadd.f32 %v5089, %v5249
      %v5251 = vpop.f32.mrb[0].mxu0
      %5252 = vmatprep.mubr.bf16.mxu0 0
      %5253 = vmatmul.mubr.bf16.gmra.mrb[0].mxu0 %v3872
      %v5254 = vpop.f32.mrb[0].mxu0
      %v5255 = vadd.f32 %v5094, %v5254
      %v5256 = vpop.f32.mrb[0].mxu0
      %v5257 = vpop.f32.mrb[0].mxu0
      %v5258 = vadd.f32 %v5097, %v5257
      %v5259 = vpop.f32.mrb[0].mxu0
      %5260 = vdwg.mxu0
      %v5261 = vpack.c.bf16 %v5138, %v5135
      %v5262 = vpack.c.bf16 %v5146, %v5143
      %v5263 = vpack.c.bf16 %v5154, %v5151
      %v5264 = vpack.c.bf16 %v5162, %v5159
      %v5265 = vpack.c.bf16 %v5170, %v5167
      %v5266 = vpack.c.bf16 %v5178, %v5175
      %v5267 = vpack.c.bf16 %v5186, %v5183
      %v5268 = vpack.c.bf16 %v5194, %v5191
      %v5269 = vpack.c.bf16 %v5202, %v5199
      %v5270 = vpack.c.bf16 %v5210, %v5207
      %v5271 = vpack.c.bf16 %v5218, %v5215
      %v5272 = vpack.c.bf16 %v5226, %v5223
      %v5273 = vpack.c.bf16 %v5234, %v5231
      %v5274 = vpack.c.bf16 %v5242, %v5239
      %v5275 = vpack.c.bf16 %v5250, %v5247
      %v5276 = vpack.c.bf16 %v5258, %v5255
      %v5293 = vunpack.c.l.b16 %v5261
      %v5294 = vunpack.c.h.b16 %v5261
      %v5295 = vunpack.c.l.b16 %v5262
      %v5296 = vunpack.c.h.b16 %v5262
      %v5297 = vunpack.c.l.b16 %v5263
      %v5298 = vunpack.c.h.b16 %v5263
      %v5299 = vunpack.c.l.b16 %v5264
      %v5300 = vunpack.c.h.b16 %v5264
      %v5301 = vunpack.c.l.b16 %v5265
      %v5302 = vunpack.c.h.b16 %v5265
      %v5303 = vunpack.c.l.b16 %v5266
      %v5304 = vunpack.c.h.b16 %v5266
      %v5305 = vunpack.c.l.b16 %v5267
      %v5306 = vunpack.c.h.b16 %v5267
      %v5307 = vunpack.c.l.b16 %v5268
      %v5308 = vunpack.c.h.b16 %v5268
      %v5309 = vunpack.c.l.b16 %v5269
      %v5310 = vunpack.c.h.b16 %v5269
      %v5311 = vunpack.c.l.b16 %v5270
      %v5312 = vunpack.c.h.b16 %v5270
      %v5313 = vunpack.c.l.b16 %v5271
      %v5314 = vunpack.c.h.b16 %v5271
      %v5315 = vunpack.c.l.b16 %v5272
      %v5316 = vunpack.c.h.b16 %v5272
      %v5317 = vunpack.c.l.b16 %v5273
      %v5318 = vunpack.c.h.b16 %v5273
      %v5319 = vunpack.c.l.b16 %v5274
      %v5320 = vunpack.c.h.b16 %v5274
      %v5321 = vunpack.c.l.b16 %v5275
      %v5322 = vunpack.c.h.b16 %v5275
      %v5323 = vunpack.c.l.b16 %v5276
      %v5324 = vunpack.c.h.b16 %v5276
      %v5325 = vpack.c.b16 %v5293, %v5293
      %v5326 = vpack.c.b16 %v5294, %v5294
      %v5327 = vpack.c.b16 %v5295, %v5295
      %v5328 = vpack.c.b16 %v5296, %v5296
      %v5329 = vpack.c.b16 %v5297, %v5297
      %v5330 = vpack.c.b16 %v5298, %v5298
      %v5331 = vpack.c.b16 %v5299, %v5299
      %v5332 = vpack.c.b16 %v5300, %v5300
      %v5333 = vpack.c.b16 %v5301, %v5301
      %v5334 = vpack.c.b16 %v5302, %v5302
      %v5335 = vpack.c.b16 %v5303, %v5303
      %v5336 = vpack.c.b16 %v5304, %v5304
      %v5337 = vpack.c.b16 %v5305, %v5305
      %v5338 = vpack.c.b16 %v5306, %v5306
      %v5339 = vpack.c.b16 %v5307, %v5307
      %v5340 = vpack.c.b16 %v5308, %v5308
      %v5341 = vpack.c.b16 %v5309, %v5309
      %v5342 = vpack.c.b16 %v5310, %v5310
      %v5343 = vpack.c.b16 %v5311, %v5311
      %v5344 = vpack.c.b16 %v5312, %v5312
      %v5345 = vpack.c.b16 %v5313, %v5313
      %v5346 = vpack.c.b16 %v5314, %v5314
      %v5347 = vpack.c.b16 %v5315, %v5315
      %v5348 = vpack.c.b16 %v5316, %v5316
      %v5349 = vpack.c.b16 %v5317, %v5317
      %v5350 = vpack.c.b16 %v5318, %v5318
      %v5351 = vpack.c.b16 %v5319, %v5319
      %v5352 = vpack.c.b16 %v5320, %v5320
      %v5353 = vpack.c.b16 %v5321, %v5321
      %v5354 = vpack.c.b16 %v5322, %v5322
      %v5355 = vpack.c.b16 %v5323, %v5323
      %v5356 = vpack.c.b16 %v5324, %v5324
      %5389 = vst [vmem:[%s291] sm:$0xf] %v5325
      %5390 = vst [vmem:[%s291 + $0x4] sm:$0xf] %v5326
      %5391 = vst [vmem:[%s291 + $0x8] sm:$0xf] %v5327
      %5392 = vst [vmem:[%s291 + $0xc] sm:$0xf] %v5328
      %5393 = vst [vmem:[%s291 + $0x10] sm:$0xf] %v5329
      %5394 = vst [vmem:[%s291 + $0x14] sm:$0xf] %v5330
      %5395 = vst [vmem:[%s291 + $0x18] sm:$0xf] %v5331
      %5396 = vst [vmem:[%s291 + $0x1c] sm:$0xf] %v5332
      %5397 = vst [vmem:[%s291 + $0x20] sm:$0xf] %v5333
      %5398 = vst [vmem:[%s291 + $0x24] sm:$0xf] %v5334
      %5399 = vst [vmem:[%s291 + $0x28] sm:$0xf] %v5335
      %5400 = vst [vmem:[%s291 + $0x2c] sm:$0xf] %v5336
      %5401 = vst [vmem:[%s291 + $0x30] sm:$0xf] %v5337
      %5402 = vst [vmem:[%s291 + $0x34] sm:$0xf] %v5338
      %5403 = vst [vmem:[%s291 + $0x38] sm:$0xf] %v5339
      %5404 = vst [vmem:[%s291 + $0x3c] sm:$0xf] %v5340
      %5405 = vst [vmem:[%s291 + $0x40] sm:$0xf] %v5341
      %5406 = vst [vmem:[%s291 + $0x44] sm:$0xf] %v5342
      %5407 = vst [vmem:[%s291 + $0x48] sm:$0xf] %v5343
      %5408 = vst [vmem:[%s291 + $0x4c] sm:$0xf] %v5344
      %5409 = vst [vmem:[%s291 + $0x50] sm:$0xf] %v5345
      %5410 = vst [vmem:[%s291 + $0x54] sm:$0xf] %v5346
      %5411 = vst [vmem:[%s291 + $0x58] sm:$0xf] %v5347
      %5412 = vst [vmem:[%s291 + $0x5c] sm:$0xf] %v5348
      %5413 = vst [vmem:[%s291 + $0x60] sm:$0xf] %v5349
      %5414 = vst [vmem:[%s291 + $0x64] sm:$0xf] %v5350
      %5415 = vst [vmem:[%s291 + $0x68] sm:$0xf] %v5351
      %5416 = vst [vmem:[%s291 + $0x6c] sm:$0xf] %v5352
      %5417 = vst [vmem:[%s291 + $0x70] sm:$0xf] %v5353
      %5418 = vst [vmem:[%s291 + $0x74] sm:$0xf] %v5354
      %5419 = vst [vmem:[%s291 + $0x78] sm:$0xf] %v5355
      %5420 = vst [vmem:[%s291 + $0x7c] sm:$0xf] %v5356
      %v5421 = vadd.f32 %v5135, %v5138
      %v5422 = vadd.f32 %v5421, %v5143
      %v5423 = vadd.f32 %v5422, %v5146
      %v5424 = vadd.f32 %v5423, %v5151
      %v5425 = vadd.f32 %v5424, %v5154
      %v5426 = vadd.f32 %v5425, %v5159
      %v5427 = vadd.f32 %v5426, %v5162
      %v5428 = vadd.f32 %v5427, %v5167
      %v5429 = vadd.f32 %v5428, %v5170
      %v5430 = vadd.f32 %v5429, %v5175
      %v5431 = vadd.f32 %v5430, %v5178
      %v5432 = vadd.f32 %v5431, %v5183
      %v5433 = vadd.f32 %v5432, %v5186
      %v5434 = vadd.f32 %v5433, %v5191
      %v5435 = vadd.f32 %v5434, %v5194
      %v5436 = vadd.f32 %v5435, %v5199
      %v5437 = vadd.f32 %v5436, %v5202
      %v5438 = vadd.f32 %v5437, %v5207
      %v5439 = vadd.f32 %v5438, %v5210
      %v5440 = vadd.f32 %v5439, %v5215
      %v5441 = vadd.f32 %v5440, %v5218
      %v5442 = vadd.f32 %v5441, %v5223
      %v5443 = vadd.f32 %v5442, %v5226
      %v5444 = vadd.f32 %v5443, %v5231
      %v5445 = vadd.f32 %v5444, %v5234
      %v5446 = vadd.f32 %v5445, %v5239
      %v5447 = vadd.f32 %v5446, %v5242
      %v5448 = vadd.f32 %v5447, %v5247
      %v5449 = vadd.f32 %v5448, %v5250
      %v5450 = vadd.f32 %v5449, %v5255
      %v5451 = vadd.f32 %v5450, %v5258
      %v5452 = vrot.slane %v5451, 4
      %v5453 = vadd.f32 %v5451, %v5452
      %v5454 = vrot.slane %v5453, 2
      %v5455 = vadd.f32 %v5453, %v5454
      %v5456 = vrot.slane %v5455, 1
      %v5457 = vadd.f32 %v5455, %v5456
      %5458 = vst [vmem:[%s295] sm:$0xff] %v5457
      %v5459 = vmul.f32 %v5135, %v5135
      %v5460 = vmul.f32 %v5138, %v5138
      %v5461 = vmul.f32 %v5143, %v5143
      %v5462 = vmul.f32 %v5146, %v5146
      %v5463 = vmul.f32 %v5151, %v5151
      %v5464 = vmul.f32 %v5154, %v5154
      %v5465 = vmul.f32 %v5159, %v5159
      %v5466 = vmul.f32 %v5162, %v5162
      %v5467 = vmul.f32 %v5167, %v5167
      %v5468 = vmul.f32 %v5170, %v5170
      %v5469 = vmul.f32 %v5175, %v5175
      %v5470 = vmul.f32 %v5178, %v5178
      %v5471 = vmul.f32 %v5183, %v5183
      %v5472 = vmul.f32 %v5186, %v5186
      %v5473 = vmul.f32 %v5191, %v5191
      %v5474 = vmul.f32 %v5194, %v5194
      %v5475 = vmul.f32 %v5199, %v5199
      %v5476 = vmul.f32 %v5202, %v5202
      %v5477 = vmul.f32 %v5207, %v5207
      %v5478 = vmul.f32 %v5210, %v5210
      %v5479 = vmul.f32 %v5215, %v5215
      %v5480 = vmul.f32 %v5218, %v5218
      %v5481 = vmul.f32 %v5223, %v5223
      %v5482 = vmul.f32 %v5226, %v5226
      %v5483 = vmul.f32 %v5231, %v5231
      %v5484 = vmul.f32 %v5234, %v5234
      %v5485 = vmul.f32 %v5239, %v5239
      %v5486 = vmul.f32 %v5242, %v5242
      %v5487 = vmul.f32 %v5247, %v5247
      %v5488 = vmul.f32 %v5250, %v5250
      %v5489 = vmul.f32 %v5255, %v5255
      %v5490 = vmul.f32 %v5258, %v5258
      %v5491 = vadd.f32 %v5459, %v5460
      %v5492 = vadd.f32 %v5491, %v5461
      %v5493 = vadd.f32 %v5492, %v5462
      %v5494 = vadd.f32 %v5493, %v5463
      %v5495 = vadd.f32 %v5494, %v5464
      %v5496 = vadd.f32 %v5495, %v5465
      %v5497 = vadd.f32 %v5496, %v5466
      %v5498 = vadd.f32 %v5497, %v5467
      %v5499 = vadd.f32 %v5498, %v5468
      %v5500 = vadd.f32 %v5499, %v5469
      %v5501 = vadd.f32 %v5500, %v5470
      %v5502 = vadd.f32 %v5501, %v5471
      %v5503 = vadd.f32 %v5502, %v5472
      %v5504 = vadd.f32 %v5503, %v5473
      %v5505 = vadd.f32 %v5504, %v5474
      %v5506 = vadd.f32 %v5505, %v5475
      %v5507 = vadd.f32 %v5506, %v5476
      %v5508 = vadd.f32 %v5507, %v5477
      %v5509 = vadd.f32 %v5508, %v5478
      %v5510 = vadd.f32 %v5509, %v5479
      %v5511 = vadd.f32 %v5510, %v5480
      %v5512 = vadd.f32 %v5511, %v5481
      %v5513 = vadd.f32 %v5512, %v5482
      %v5514 = vadd.f32 %v5513, %v5483
      %v5515 = vadd.f32 %v5514, %v5484
      %v5516 = vadd.f32 %v5515, %v5485
      %v5517 = vadd.f32 %v5516, %v5486
      %v5518 = vadd.f32 %v5517, %v5487
      %v5519 = vadd.f32 %v5518, %v5488
      %v5520 = vadd.f32 %v5519, %v5489
      %v5521 = vadd.f32 %v5520, %v5490
      %v5522 = vrot.slane %v5521, 4
      %v5523 = vadd.f32 %v5521, %v5522
      %v5524 = vrot.slane %v5523, 2
      %v5525 = vadd.f32 %v5523, %v5524
      %v5526 = vrot.slane %v5525, 1
      %v5527 = vadd.f32 %v5525, %v5526
      %5528 = vst [vmem:[%s299] sm:$0xff] %v5527
      %p5529 = scmp.lt.s32.totalorder %s19, 1
      %s5530 = scalar_select %p5529, %s19, 1
      %s5531 = smul.addr %s5530, 32
      %s5532 = smul.addr %s5531, 4
      %s5533 = scalar_lea.vmem %s5, %s5532
      %p5534 = scmp.lt.s32.totalorder %s19, 1
      %s5535 = scalar_select %p5534, %s19, 1
      %s5536 = smul.addr %s5535, 8
      %s5537 = scalar_lea.vmem %s6, %s5536
      %p5538 = scmp.lt.s32.totalorder %s19, 1
      %s5539 = scalar_select %p5538, %s19, 1
      %s5540 = smul.addr %s5539, 8
      %s5541 = scalar_lea.vmem %s7, %s5540
      // Predicated region
      $region41: #{double_conv_forward.3} parent=39 // pred_check
        %p5542 = pneg %p147
      $region42: #{double_conv_forward.3} parent=39 // pred_check_branch
        %5544 = sbr.rel (%p5542) target = $region44
      $region43: #{double_conv_forward.3} parent=39 // pred_region
        _
      $region44: #{double_conv_forward.3} parent=39 // pred_fallthru
        _
      // Predicated region
      $region45: #{double_conv_forward.3} parent=39 // pred_check
        %p5545 = pneg %p173
      $region46: #{double_conv_forward.3} parent=39 // pred_check_branch
        %5547 = sbr.rel (%p5545) target = $region48
      $region47: #{double_conv_forward.3} parent=39 // pred_region
        _
      $region48: #{double_conv_forward.3} parent=39 // pred_fallthru
        _
      // Predicated region
      $region49: #{double_conv_forward.3} parent=39 // pred_check
        %p5548 = pneg %p199
      $region50: #{double_conv_forward.3} parent=39 // pred_check_branch
        %5550 = sbr.rel (%p5548) target = $region52
      $region51: #{double_conv_forward.3} parent=39 // pred_region
        _
      $region52: #{double_conv_forward.3} parent=39 // pred_fallthru
        _
    $region40: #{double_conv_forward.3} parent=5 // pred_fallthru
      _
    %p5551 = scmp.le.s32.totalorder 2, %s14
    // Predicated region
    $region53: #{double_conv_forward.3} parent=5 // pred_check
      %p5552 = pneg %p5551
    $region54: #{double_conv_forward.3} parent=5 // pred_check_branch
      %5554 = sbr.rel (%p5552) target = $region56
    $region55: #{double_conv_forward.3} parent=5 // pred_region
      %s5555 = ssub.s32 %s14, 2
      // Predicated region
      $region57: #{double_conv_forward.3} parent=55 // pred_check
        %p5556 = pneg %p153
      $region58: #{double_conv_forward.3} parent=55 // pred_check_branch
        %5558 = sbr.rel (%p5556) target = $region60
      $region59: #{double_conv_forward.3} parent=55 // pred_region
        %p5559 = scmp.lt.s32.totalorder %s20, 1
        %s5560 = scalar_select %p5559, %s20, 1
        %s5561 = smul.addr %s5560, 32
        %s5562 = smul.addr %s5561, 4
        %s5563 = scalar_lea.vmem %s5, %s5562
      $region60: #{double_conv_forward.3} parent=55 // pred_fallthru
        _
      // Predicated region
      $region61: #{double_conv_forward.3} parent=55 // pred_check
        %p5564 = pneg %p179
      $region62: #{double_conv_forward.3} parent=55 // pred_check_branch
        %5566 = sbr.rel (%p5564) target = $region64
      $region63: #{double_conv_forward.3} parent=55 // pred_region
        %p5567 = scmp.lt.s32.totalorder %s20, 1
        %s5568 = scalar_select %p5567, %s20, 1
        %s5569 = smul.addr %s5568, 8
        %s5570 = scalar_lea.vmem %s6, %s5569
      $region64: #{double_conv_forward.3} parent=55 // pred_fallthru
        _
      // Predicated region
      $region65: #{double_conv_forward.3} parent=55 // pred_check
        %p5571 = pneg %p205
      $region66: #{double_conv_forward.3} parent=55 // pred_check_branch
        %5573 = sbr.rel (%p5571) target = $region68
      $region67: #{double_conv_forward.3} parent=55 // pred_region
        %p5574 = scmp.lt.s32.totalorder %s20, 1
        %s5575 = scalar_select %p5574, %s20, 1
        %s5576 = smul.addr %s5575, 8
        %s5577 = scalar_lea.vmem %s7, %s5576
      $region68: #{double_conv_forward.3} parent=55 // pred_fallthru
        _
    $region56: #{double_conv_forward.3} parent=5 // pred_fallthru
      _
  $region6: #{double_conv_forward.3} parent=0 // loop_footer
    %s18 = sadd.s32 1, %s14
  $region7: #{double_conv_forward.3} parent=0 // loop_footer_branch
    %13 = sbr.rel target = $region3
  $region8: #{double_conv_forward.3} parent=0 // loop_exit
    _

// kernel: double_conv_forward.4
$region0: #{double_conv_forward.4}
  #allocation0 [shape = 'u32[]', space=smem, size = 0x4, offset = 0x4, fixed_abs, tag = 'smem constant byte address 0x4 - core index']
  #allocation1 [shape = 'u32[144,128]{1,0:T(1,128)}', space=vmem, size = 0x12000, scoped, tag = 'internal scratch']
  #allocation2 [shape = 'bf16[18,18,128]{2,1,0:T(8,128)(2,1)}', space=vmem, size = 0x1b000, scoped, tag = 'scratch operand']
  #allocation3 [shape = 'bf16[256,1152]{1,0:T(16,128)(2,1)}', space=vmem, size = 0x90000, scoped, tag = 'scratch operand']
  %s0 = inlined_call_operand.vmem [shape: bf16[2,16,16,128], index: 0, kind: input, shape index: {}]
  %s1 = inlined_call_operand.vmem [shape: f32[1,128], index: 1, kind: input, shape index: {}]
  %s2 = inlined_call_operand.vmem [shape: f32[1,128], index: 2, kind: input, shape index: {}]
  %s3 = inlined_call_operand.vmem [shape: bf16[1152,128], index: 3, kind: input, shape index: {}]
  %s4 = inlined_call_operand.vmem [shape: f32[1,128], index: 4, kind: input, shape index: {}]
  %s5 = inlined_call_operand.vmem [shape: bf16[2,16,16,128], index: 5, kind: output, shape index: {0}]
  %s6 = inlined_call_operand.vmem [shape: f32[2,8,128], index: 6, kind: output, shape index: {1}]
  %s7 = inlined_call_operand.vmem [shape: f32[2,8,128], index: 7, kind: output, shape index: {2}]
  %8 = xla_tuple %s5, %s6, %s7
  %s9 = sld [smem:[#allocation0]]
  $region69: #{double_conv_forward.4} parent=0
    _
  %s11 = ssub.s32 1, %s9
  %s12 = scalar_select 0, %s11, %s9
  loop: start=0, step=1, limit=4
  $region2: #{double_conv_forward.4} parent=0 // loop_pre_header
    _
  $region3: #{double_conv_forward.4} parent=0 // loop_header
    %s14 = sphi 0, %s18
    %p15 = scmp.ge.s32.totalorder %s14, 4
    %s24 = sphi 0, %s26
    %s27 = sphi 0, %s24
    %s28 = sphi 0, %s27
    %s44 = sphi 0, %s28
    %s48 = sphi 0, %s48
    %s50 = sphi 0, %s48
    %s51 = sphi 0, %s50
    %s65 = sphi 0, %s51
    %s69 = sphi 0, %s69
    %s71 = sphi 0, %s69
    %s72 = sphi 0, %s71
    %s86 = sphi 0, %s72
    %s90 = sphi 0, %s90
    %s92 = sphi 0, %s90
    %s93 = sphi 0, %s92
    %s107 = sphi 0, %s93
    %s111 = sphi 0, %s111
    %s113 = sphi 0, %s111
    %s114 = sphi 0, %s113
    %s128 = sphi 0, %s114
    %s134 = sphi 0, %s136
    %s137 = sphi 0, %s134
    %s138 = sphi 0, %s137
    %s154 = sphi 0, %s138
    %s160 = sphi 0, %s162
    %s163 = sphi 0, %s160
    %s164 = sphi 0, %s163
    %s180 = sphi 0, %s164
    %s186 = sphi 0, %s188
    %s189 = sphi 0, %s186
    %s190 = sphi 0, %s189
    %s206 = sphi 0, %s190
  $region4: #{double_conv_forward.4} parent=0 // loop_header_branch
    %17 = sbr.rel (%p15) target = $region8
  $region5: #{double_conv_forward.4} parent=0 // loop_body
    %s19 = ssub.s32 %s14, 1
    %s20 = ssub.s32 %s14, 2
    %s21 = sadd.s32 %s14, 1
    %s22 = ssub.s32 %s14, %s21
    %p23 = scmp.eq.s32.totalorder %s22, 0
    %s25 = sadd.s32 %s24, 1
    %s26 = scalar_select %p23, %s24, %s25
    %p29 = pneg %p23
    %p30 = scmp.eq.s32.totalorder %s14, 1
    %p31 = por %p29, %p30
    %p32 = scmp.ne.s32.totalorder %s24, %s27
    %p33 = scmp.eq.s32.totalorder %s14, 0
    %p34 = por %p32, %p33
    %p35 = scmp.ne.s32.totalorder %s24, %s27
    %p36 = scmp.eq.s32.totalorder %s19, 1
    %p37 = por %p35, %p36
    %p38 = scmp.ne.s32.totalorder %s27, %s28
    %p39 = scmp.eq.s32.totalorder %s19, 0
    %p40 = por %p38, %p39
    %p41 = scmp.ne.s32.totalorder %s27, %s28
    %p42 = scmp.eq.s32.totalorder %s20, 1
    %p43 = por %p41, %p42
    %p45 = scmp.ne.s32.totalorder %s28, %s44
    %p46 = scmp.eq.s32.totalorder %s20, 0
    %p47 = por %p45, %p46
    %s49 = sadd.s32 %s48, 1
    %p52 = scmp.eq.s32.totalorder %s14, 1
    %p53 = scmp.ne.s32.totalorder %s48, %s50
    %p54 = scmp.eq.s32.totalorder %s14, 0
    %p55 = por %p53, %p54
    %p56 = scmp.ne.s32.totalorder %s48, %s50
    %p57 = scmp.eq.s32.totalorder %s19, 1
    %p58 = por %p56, %p57
    %p59 = scmp.ne.s32.totalorder %s50, %s51
    %p60 = scmp.eq.s32.totalorder %s19, 0
    %p61 = por %p59, %p60
    %p62 = scmp.ne.s32.totalorder %s50, %s51
    %p63 = scmp.eq.s32.totalorder %s20, 1
    %p64 = por %p62, %p63
    %p66 = scmp.ne.s32.totalorder %s51, %s65
    %p67 = scmp.eq.s32.totalorder %s20, 0
    %p68 = por %p66, %p67
    %s70 = sadd.s32 %s69, 1
    %p73 = scmp.eq.s32.totalorder %s14, 1
    %p74 = scmp.ne.s32.totalorder %s69, %s71
    %p75 = scmp.eq.s32.totalorder %s14, 0
    %p76 = por %p74, %p75
    %p77 = scmp.ne.s32.totalorder %s69, %s71
    %p78 = scmp.eq.s32.totalorder %s19, 1
    %p79 = por %p77, %p78
    %p80 = scmp.ne.s32.totalorder %s71, %s72
    %p81 = scmp.eq.s32.totalorder %s19, 0
    %p82 = por %p80, %p81
    %p83 = scmp.ne.s32.totalorder %s71, %s72
    %p84 = scmp.eq.s32.totalorder %s20, 1
    %p85 = por %p83, %p84
    %p87 = scmp.ne.s32.totalorder %s72, %s86
    %p88 = scmp.eq.s32.totalorder %s20, 0
    %p89 = por %p87, %p88
    %s91 = sadd.s32 %s90, 1
    %p94 = scmp.eq.s32.totalorder %s14, 1
    %p95 = scmp.ne.s32.totalorder %s90, %s92
    %p96 = scmp.eq.s32.totalorder %s14, 0
    %p97 = por %p95, %p96
    %p98 = scmp.ne.s32.totalorder %s90, %s92
    %p99 = scmp.eq.s32.totalorder %s19, 1
    %p100 = por %p98, %p99
    %p101 = scmp.ne.s32.totalorder %s92, %s93
    %p102 = scmp.eq.s32.totalorder %s19, 0
    %p103 = por %p101, %p102
    %p104 = scmp.ne.s32.totalorder %s92, %s93
    %p105 = scmp.eq.s32.totalorder %s20, 1
    %p106 = por %p104, %p105
    %p108 = scmp.ne.s32.totalorder %s93, %s107
    %p109 = scmp.eq.s32.totalorder %s20, 0
    %p110 = por %p108, %p109
    %s112 = sadd.s32 %s111, 1
    %p115 = scmp.eq.s32.totalorder %s14, 1
    %p116 = scmp.ne.s32.totalorder %s111, %s113
    %p117 = scmp.eq.s32.totalorder %s14, 0
    %p118 = por %p116, %p117
    %p119 = scmp.ne.s32.totalorder %s111, %s113
    %p120 = scmp.eq.s32.totalorder %s19, 1
    %p121 = por %p119, %p120
    %p122 = scmp.ne.s32.totalorder %s113, %s114
    %p123 = scmp.eq.s32.totalorder %s19, 0
    %p124 = por %p122, %p123
    %p125 = scmp.ne.s32.totalorder %s113, %s114
    %p126 = scmp.eq.s32.totalorder %s20, 1
    %p127 = por %p125, %p126
    %p129 = scmp.ne.s32.totalorder %s114, %s128
    %p130 = scmp.eq.s32.totalorder %s20, 0
    %p131 = por %p129, %p130
    %s132 = ssub.s32 %s14, %s21
    %p133 = scmp.eq.s32.totalorder %s132, 0
    %s135 = sadd.s32 %s134, 1
    %s136 = scalar_select %p133, %s134, %s135
    %p139 = pneg %p133
    %p140 = scmp.eq.s32.totalorder %s14, 1
    %p141 = por %p139, %p140
    %p142 = scmp.ne.s32.totalorder %s134, %s137
    %p143 = scmp.eq.s32.totalorder %s14, 0
    %p144 = por %p142, %p143
    %p145 = scmp.ne.s32.totalorder %s134, %s137
    %p146 = scmp.eq.s32.totalorder %s19, 1
    %p147 = por %p145, %p146
    %p148 = scmp.ne.s32.totalorder %s137, %s138
    %p149 = scmp.eq.s32.totalorder %s19, 0
    %p150 = por %p148, %p149
    %p151 = scmp.ne.s32.totalorder %s137, %s138
    %p152 = scmp.eq.s32.totalorder %s20, 1
    %p153 = por %p151, %p152
    %p155 = scmp.ne.s32.totalorder %s138, %s154
    %p156 = scmp.eq.s32.totalorder %s20, 0
    %p157 = por %p155, %p156
    %s158 = ssub.s32 %s14, %s21
    %p159 = scmp.eq.s32.totalorder %s158, 0
    %s161 = sadd.s32 %s160, 1
    %s162 = scalar_select %p159, %s160, %s161
    %p165 = pneg %p159
    %p166 = scmp.eq.s32.totalorder %s14, 1
    %p167 = por %p165, %p166
    %p168 = scmp.ne.s32.totalorder %s160, %s163
    %p169 = scmp.eq.s32.totalorder %s14, 0
    %p170 = por %p168, %p169
    %p171 = scmp.ne.s32.totalorder %s160, %s163
    %p172 = scmp.eq.s32.totalorder %s19, 1
    %p173 = por %p171, %p172
    %p174 = scmp.ne.s32.totalorder %s163, %s164
    %p175 = scmp.eq.s32.totalorder %s19, 0
    %p176 = por %p174, %p175
    %p177 = scmp.ne.s32.totalorder %s163, %s164
    %p178 = scmp.eq.s32.totalorder %s20, 1
    %p179 = por %p177, %p178
    %p181 = scmp.ne.s32.totalorder %s164, %s180
    %p182 = scmp.eq.s32.totalorder %s20, 0
    %p183 = por %p181, %p182
    %s184 = ssub.s32 %s14, %s21
    %p185 = scmp.eq.s32.totalorder %s184, 0
    %s187 = sadd.s32 %s186, 1
    %s188 = scalar_select %p185, %s186, %s187
    %p191 = pneg %p185
    %p192 = scmp.eq.s32.totalorder %s14, 1
    %p193 = por %p191, %p192
    %p194 = scmp.ne.s32.totalorder %s186, %s189
    %p195 = scmp.eq.s32.totalorder %s14, 0
    %p196 = por %p194, %p195
    %p197 = scmp.ne.s32.totalorder %s186, %s189
    %p198 = scmp.eq.s32.totalorder %s19, 1
    %p199 = por %p197, %p198
    %p200 = scmp.ne.s32.totalorder %s189, %s190
    %p201 = scmp.eq.s32.totalorder %s19, 0
    %p202 = por %p200, %p201
    %p203 = scmp.ne.s32.totalorder %s189, %s190
    %p204 = scmp.eq.s32.totalorder %s20, 1
    %p205 = por %p203, %p204
    %p207 = scmp.ne.s32.totalorder %s190, %s206
    %p208 = scmp.eq.s32.totalorder %s20, 0
    %p209 = por %p207, %p208
    %p210 = scmp.le.s32.totalorder 1, %s14
    %p211 = scmp.lt.s32.totalorder %s14, 3
    %p212 = pnand %p210, %p211
    %p213 = pneg %p212
    // Predicated region
    $region9: #{double_conv_forward.4} parent=5 // pred_check
      _
    $region10: #{double_conv_forward.4} parent=5 // pred_check_branch
      %215 = sbr.rel (%p212) target = $region12
    $region11: #{double_conv_forward.4} parent=5 // pred_region
      %s216 = ssub.s32 %s14, 1
      // Predicated region
      $region13: #{double_conv_forward.4} parent=11 // pred_check
        %p217 = pneg %p61
      $region14: #{double_conv_forward.4} parent=11 // pred_check_branch
        %219 = sbr.rel (%p217) target = $region16
      $region15: #{double_conv_forward.4} parent=11 // pred_region
        _
      $region16: #{double_conv_forward.4} parent=11 // pred_fallthru
        _
      // Predicated region
      $region17: #{double_conv_forward.4} parent=11 // pred_check
        %p220 = pneg %p82
      $region18: #{double_conv_forward.4} parent=11 // pred_check_branch
        %222 = sbr.rel (%p220) target = $region20
      $region19: #{double_conv_forward.4} parent=11 // pred_region
        _
      $region20: #{double_conv_forward.4} parent=11 // pred_fallthru
        _
      // Predicated region
      $region21: #{double_conv_forward.4} parent=11 // pred_check
        %p223 = pneg %p103
      $region22: #{double_conv_forward.4} parent=11 // pred_check_branch
        %225 = sbr.rel (%p223) target = $region24
      $region23: #{double_conv_forward.4} parent=11 // pred_region
        _
      $region24: #{double_conv_forward.4} parent=11 // pred_fallthru
        _
      // Predicated region
      $region25: #{double_conv_forward.4} parent=11 // pred_check
        %p226 = pneg %p124
      $region26: #{double_conv_forward.4} parent=11 // pred_check_branch
        %228 = sbr.rel (%p226) target = $region28
      $region27: #{double_conv_forward.4} parent=11 // pred_region
        _
      $region28: #{double_conv_forward.4} parent=11 // pred_fallthru
        _
    $region12: #{double_conv_forward.4} parent=5 // pred_fallthru
      _
    %p229 = scmp.lt.s32.totalorder %s14, 2
    // Predicated region
    $region29: #{double_conv_forward.4} parent=5 // pred_check
      %p230 = pneg %p229
    $region30: #{double_conv_forward.4} parent=5 // pred_check_branch
      %232 = sbr.rel (%p230) target = $region32
    $region31: #{double_conv_forward.4} parent=5 // pred_region
      // Predicated region
      $region33: #{double_conv_forward.4} parent=31 // pred_check
        %p233 = pneg %p34
      $region34: #{double_conv_forward.4} parent=31 // pred_check_branch
        %235 = sbr.rel (%p233) target = $region36
      $region35: #{double_conv_forward.4} parent=31 // pred_region
        %p236 = scmp.lt.s32.totalorder %s14, 1
        %s237 = scalar_select %p236, %s14, 1
        %s238 = smul.addr %s237, 32
        %s239 = smul.addr %s238, 4
        %s240 = scalar_lea.vmem %s0, %s239
      $region36: #{double_conv_forward.4} parent=31 // pred_fallthru
        _
    $region32: #{double_conv_forward.4} parent=5 // pred_fallthru
      _
    %p241 = scmp.le.s32.totalorder 1, %s14
    %p242 = scmp.lt.s32.totalorder %s14, 3
    %p243 = pnand %p241, %p242
    %p244 = pneg %p243
    // Predicated region
    $region37: #{double_conv_forward.4} parent=5 // pred_check
      _
    $region38: #{double_conv_forward.4} parent=5 // pred_check_branch
      %246 = sbr.rel (%p243) target = $region40
    $region39: #{double_conv_forward.4} parent=5 // pred_region
      %s247 = ssub.s32 %s14, 1
      %p248 = scmp.lt.s32.totalorder %s19, 1
      %s249 = scalar_select %p248, %s19, 1
      %s250 = smul.addr %s249, 32
      %s251 = smul.addr %s250, 4
      %s252 = scalar_lea.vmem %s0, %s251
      %p253 = pneg %p40
      %p254 = pneg %p37
      %p255 = pneg %p61
      %p256 = pneg %p58
      %p257 = pneg %p82
      %p258 = pneg %p79
      %p259 = pneg %p103
      %p260 = pneg %p100
      %p261 = pneg %p124
      %p262 = pneg %p121
      %p263 = pneg %p150
      %p264 = pneg %p147
      %p265 = scmp.lt.s32.totalorder %s19, 1
      %s266 = scalar_select %p265, %s19, 1
      %s267 = smul.addr %s266, 32
      %s268 = smul.addr %s267, 4
      %s269 = scalar_lea.vmem %s5, %s268
      %p270 = pneg %p176
      %p271 = pneg %p173
      %p272 = scmp.lt.s32.totalorder %s19, 1
      %s273 = scalar_select %p272, %s19, 1
      %s274 = smul.addr %s273, 8
      %s275 = scalar_lea.vmem %s6, %s274
      %p276 = pneg %p202
      %p277 = pneg %p199
      %p278 = scmp.lt.s32.totalorder %s19, 1
      %s279 = scalar_select %p278, %s19, 1
      %s280 = smul.addr %s279, 8
      %s281 = scalar_lea.vmem %s7, %s280
      %p282 = scmp.lt.s32.totalorder %s19, 1
      %s283 = scalar_select %p282, %s19, 1
      %s284 = smul.addr %s283, 32
      %s285 = smul.addr %s284, 4
      %s286 = scalar_lea.vmem %s0, %s285
      %p287 = scmp.lt.s32.totalorder %s19, 1
      %s288 = scalar_select %p287, %s19, 1
      %s289 = smul.addr %s288, 32
      %s290 = smul.addr %s289, 4
      %s291 = scalar_lea.vmem %s5, %s290
      %p292 = scmp.lt.s32.totalorder %s19, 1
      %s293 = scalar_select %p292, %s19, 1
      %s294 = smul.addr %s293, 8
      %s295 = scalar_lea.vmem %s6, %s294
      %p296 = scmp.lt.s32.totalorder %s19, 1
      %s297 = scalar_select %p296, %s19, 1
      %s298 = smul.addr %s297, 8
      %s299 = scalar_lea.vmem %s7, %s298
      %v301 = vld [vmem:[%s286] sm:$0xf]
      %v302 = vld [vmem:[%s286 + $0x4] sm:$0xf]
      %v303 = vld [vmem:[%s286 + $0x8] sm:$0xf]
      %v304 = vld [vmem:[%s286 + $0xc] sm:$0xf]
      %v305 = vld [vmem:[%s286 + $0x10] sm:$0xf]
      %v306 = vld [vmem:[%s286 + $0x14] sm:$0xf]
      %v307 = vld [vmem:[%s286 + $0x18] sm:$0xf]
      %v308 = vld [vmem:[%s286 + $0x1c] sm:$0xf]
      %v309 = vld [vmem:[%s286 + $0x20] sm:$0xf]
      %v310 = vld [vmem:[%s286 + $0x24] sm:$0xf]
      %v311 = vld [vmem:[%s286 + $0x28] sm:$0xf]
      %v312 = vld [vmem:[%s286 + $0x2c] sm:$0xf]
      %v313 = vld [vmem:[%s286 + $0x30] sm:$0xf]
      %v314 = vld [vmem:[%s286 + $0x34] sm:$0xf]
      %v315 = vld [vmem:[%s286 + $0x38] sm:$0xf]
      %v316 = vld [vmem:[%s286 + $0x3c] sm:$0xf]
      %v317 = vld [vmem:[%s286 + $0x40] sm:$0xf]
      %v318 = vld [vmem:[%s286 + $0x44] sm:$0xf]
      %v319 = vld [vmem:[%s286 + $0x48] sm:$0xf]
      %v320 = vld [vmem:[%s286 + $0x4c] sm:$0xf]
      %v321 = vld [vmem:[%s286 + $0x50] sm:$0xf]
      %v322 = vld [vmem:[%s286 + $0x54] sm:$0xf]
      %v323 = vld [vmem:[%s286 + $0x58] sm:$0xf]
      %v324 = vld [vmem:[%s286 + $0x5c] sm:$0xf]
      %v325 = vld [vmem:[%s286 + $0x60] sm:$0xf]
      %v326 = vld [vmem:[%s286 + $0x64] sm:$0xf]
      %v327 = vld [vmem:[%s286 + $0x68] sm:$0xf]
      %v328 = vld [vmem:[%s286 + $0x6c] sm:$0xf]
      %v329 = vld [vmem:[%s286 + $0x70] sm:$0xf]
      %v330 = vld [vmem:[%s286 + $0x74] sm:$0xf]
      %v331 = vld [vmem:[%s286 + $0x78] sm:$0xf]
      %v332 = vld [vmem:[%s286 + $0x7c] sm:$0xf]
      %v333 = vunpack.c.l.bf16 %v301
      %v334 = vunpack.c.l.bf16 %v302
      %v335 = vunpack.c.l.bf16 %v303
      %v336 = vunpack.c.l.bf16 %v304
      %v337 = vunpack.c.l.bf16 %v305
      %v338 = vunpack.c.l.bf16 %v306
      %v339 = vunpack.c.l.bf16 %v307
      %v340 = vunpack.c.l.bf16 %v308
      %v341 = vunpack.c.l.bf16 %v309
      %v342 = vunpack.c.l.bf16 %v310
      %v343 = vunpack.c.l.bf16 %v311
      %v344 = vunpack.c.l.bf16 %v312
      %v345 = vunpack.c.l.bf16 %v313
      %v346 = vunpack.c.l.bf16 %v314
      %v347 = vunpack.c.l.bf16 %v315
      %v348 = vunpack.c.l.bf16 %v316
      %v349 = vunpack.c.l.bf16 %v317
      %v350 = vunpack.c.l.bf16 %v318
      %v351 = vunpack.c.l.bf16 %v319
      %v352 = vunpack.c.l.bf16 %v320
      %v353 = vunpack.c.l.bf16 %v321
      %v354 = vunpack.c.l.bf16 %v322
      %v355 = vunpack.c.l.bf16 %v323
      %v356 = vunpack.c.l.bf16 %v324
      %v357 = vunpack.c.l.bf16 %v325
      %v358 = vunpack.c.l.bf16 %v326
      %v359 = vunpack.c.l.bf16 %v327
      %v360 = vunpack.c.l.bf16 %v328
      %v361 = vunpack.c.l.bf16 %v329
      %v362 = vunpack.c.l.bf16 %v330
      %v363 = vunpack.c.l.bf16 %v331
      %v364 = vunpack.c.l.bf16 %v332
      %v365 = vld [vmem:[%s1] sm:$0x1]
      %v367 = vlaneseq
      %v368 = vshrl.u32 %v367, 7
      %v369 = vsub.s32 0, %v368
      %v370 = vrot.slane %v365, %v369
      %v372 = vmul.f32 %v333, %v370
      %v373 = vmul.f32 %v334, %v370
      %v374 = vmul.f32 %v335, %v370
      %v375 = vmul.f32 %v336, %v370
      %v376 = vmul.f32 %v337, %v370
      %v377 = vmul.f32 %v338, %v370
      %v378 = vmul.f32 %v339, %v370
      %v379 = vmul.f32 %v340, %v370
      %v380 = vmul.f32 %v341, %v370
      %v381 = vmul.f32 %v342, %v370
      %v382 = vmul.f32 %v343, %v370
      %v383 = vmul.f32 %v344, %v370
      %v384 = vmul.f32 %v345, %v370
      %v385 = vmul.f32 %v346, %v370
      %v386 = vmul.f32 %v347, %v370
      %v387 = vmul.f32 %v348, %v370
      %v388 = vmul.f32 %v349, %v370
      %v389 = vmul.f32 %v350, %v370
      %v390 = vmul.f32 %v351, %v370
      %v391 = vmul.f32 %v352, %v370
      %v392 = vmul.f32 %v353, %v370
      %v393 = vmul.f32 %v354, %v370
      %v394 = vmul.f32 %v355, %v370
      %v395 = vmul.f32 %v356, %v370
      %v396 = vmul.f32 %v357, %v370
      %v397 = vmul.f32 %v358, %v370
      %v398 = vmul.f32 %v359, %v370
      %v399 = vmul.f32 %v360, %v370
      %v400 = vmul.f32 %v361, %v370
      %v401 = vmul.f32 %v362, %v370
      %v402 = vmul.f32 %v363, %v370
      %v403 = vmul.f32 %v364, %v370
      %v404 = vld [vmem:[%s2] sm:$0x1]
      %v406 = vlaneseq
      %v407 = vshrl.u32 %v406, 7
      %v408 = vsub.s32 0, %v407
      %v409 = vrot.slane %v404, %v408
      %v411 = vadd.f32 %v372, %v409
      %v412 = vadd.f32 %v373, %v409
      %v413 = vadd.f32 %v374, %v409
      %v414 = vadd.f32 %v375, %v409
      %v415 = vadd.f32 %v376, %v409
      %v416 = vadd.f32 %v377, %v409
      %v417 = vadd.f32 %v378, %v409
      %v418 = vadd.f32 %v379, %v409
      %v419 = vadd.f32 %v380, %v409
      %v420 = vadd.f32 %v381, %v409
      %v421 = vadd.f32 %v382, %v409
      %v422 = vadd.f32 %v383, %v409
      %v423 = vadd.f32 %v384, %v409
      %v424 = vadd.f32 %v385, %v409
      %v425 = vadd.f32 %v386, %v409
      %v426 = vadd.f32 %v387, %v409
      %v427 = vadd.f32 %v388, %v409
      %v428 = vadd.f32 %v389, %v409
      %v429 = vadd.f32 %v390, %v409
      %v430 = vadd.f32 %v391, %v409
      %v431 = vadd.f32 %v392, %v409
      %v432 = vadd.f32 %v393, %v409
      %v433 = vadd.f32 %v394, %v409
      %v434 = vadd.f32 %v395, %v409
      %v435 = vadd.f32 %v396, %v409
      %v436 = vadd.f32 %v397, %v409
      %v437 = vadd.f32 %v398, %v409
      %v438 = vadd.f32 %v399, %v409
      %v439 = vadd.f32 %v400, %v409
      %v440 = vadd.f32 %v401, %v409
      %v441 = vadd.f32 %v402, %v409
      %v442 = vadd.f32 %v403, %v409
      %v443 = vxor.u32 %v411, 2147483648
      %v444 = vxor.u32 %v412, 2147483648
      %v445 = vxor.u32 %v413, 2147483648
      %v446 = vxor.u32 %v414, 2147483648
      %v447 = vxor.u32 %v415, 2147483648
      %v448 = vxor.u32 %v416, 2147483648
      %v449 = vxor.u32 %v417, 2147483648
      %v450 = vxor.u32 %v418, 2147483648
      %v451 = vxor.u32 %v419, 2147483648
      %v452 = vxor.u32 %v420, 2147483648
      %v453 = vxor.u32 %v421, 2147483648
      %v454 = vxor.u32 %v422, 2147483648
      %v455 = vxor.u32 %v423, 2147483648
      %v456 = vxor.u32 %v424, 2147483648
      %v457 = vxor.u32 %v425, 2147483648
      %v458 = vxor.u32 %v426, 2147483648
      %v459 = vxor.u32 %v427, 2147483648
      %v460 = vxor.u32 %v428, 2147483648
      %v461 = vxor.u32 %v429, 2147483648
      %v462 = vxor.u32 %v430, 2147483648
      %v463 = vxor.u32 %v431, 2147483648
      %v464 = vxor.u32 %v432, 2147483648
      %v465 = vxor.u32 %v433, 2147483648
      %v466 = vxor.u32 %v434, 2147483648
      %v467 = vxor.u32 %v435, 2147483648
      %v468 = vxor.u32 %v436, 2147483648
      %v469 = vxor.u32 %v437, 2147483648
      %v470 = vxor.u32 %v438, 2147483648
      %v471 = vxor.u32 %v439, 2147483648
      %v472 = vxor.u32 %v440, 2147483648
      %v473 = vxor.u32 %v441, 2147483648
      %v474 = vxor.u32 %v442, 2147483648
      %v475 = vmul.f32 %v443, 1.442695
      %v476 = vpow.pop %v475
      %v477 = vmul.f32 %v444, 1.442695
      %v478 = vpow.pop %v477
      %v479 = vmul.f32 %v445, 1.442695
      %v480 = vpow.pop %v479
      %v481 = vmul.f32 %v446, 1.442695
      %v482 = vpow.pop %v481
      %v483 = vmul.f32 %v447, 1.442695
      %v484 = vpow.pop %v483
      %v485 = vmul.f32 %v448, 1.442695
      %v486 = vpow.pop %v485
      %v487 = vmul.f32 %v449, 1.442695
      %v488 = vpow.pop %v487
      %v489 = vmul.f32 %v450, 1.442695
      %v490 = vpow.pop %v489
      %v491 = vmul.f32 %v451, 1.442695
      %v492 = vpow.pop %v491
      %v493 = vmul.f32 %v452, 1.442695
      %v494 = vpow.pop %v493
      %v495 = vmul.f32 %v453, 1.442695
      %v496 = vpow.pop %v495
      %v497 = vmul.f32 %v454, 1.442695
      %v498 = vpow.pop %v497
      %v499 = vmul.f32 %v455, 1.442695
      %v500 = vpow.pop %v499
      %v501 = vmul.f32 %v456, 1.442695
      %v502 = vpow.pop %v501
      %v503 = vmul.f32 %v457, 1.442695
      %v504 = vpow.pop %v503
      %v505 = vmul.f32 %v458, 1.442695
      %v506 = vpow.pop %v505
      %v507 = vmul.f32 %v459, 1.442695
      %v508 = vpow.pop %v507
      %v509 = vmul.f32 %v460, 1.442695
      %v510 = vpow.pop %v509
      %v511 = vmul.f32 %v461, 1.442695
      %v512 = vpow.pop %v511
      %v513 = vmul.f32 %v462, 1.442695
      %v514 = vpow.pop %v513
      %v515 = vmul.f32 %v463, 1.442695
      %v516 = vpow.pop %v515
      %v517 = vmul.f32 %v464, 1.442695
      %v518 = vpow.pop %v517
      %v519 = vmul.f32 %v465, 1.442695
      %v520 = vpow.pop %v519
      %v521 = vmul.f32 %v466, 1.442695
      %v522 = vpow.pop %v521
      %v523 = vmul.f32 %v467, 1.442695
      %v524 = vpow.pop %v523
      %v525 = vmul.f32 %v468, 1.442695
      %v526 = vpow.pop %v525
      %v527 = vmul.f32 %v469, 1.442695
      %v528 = vpow.pop %v527
      %v529 = vmul.f32 %v470, 1.442695
      %v530 = vpow.pop %v529
      %v531 = vmul.f32 %v471, 1.442695
      %v532 = vpow.pop %v531
      %v533 = vmul.f32 %v472, 1.442695
      %v534 = vpow.pop %v533
      %v535 = vmul.f32 %v473, 1.442695
      %v536 = vpow.pop %v535
      %v537 = vmul.f32 %v474, 1.442695
      %v538 = vpow.pop %v537
      %v539 = vadd.f32 %v476, 1.0
      %v540 = vadd.f32 %v478, 1.0
      %v541 = vadd.f32 %v480, 1.0
      %v542 = vadd.f32 %v482, 1.0
      %v543 = vadd.f32 %v484, 1.0
      %v544 = vadd.f32 %v486, 1.0
      %v545 = vadd.f32 %v488, 1.0
      %v546 = vadd.f32 %v490, 1.0
      %v547 = vadd.f32 %v492, 1.0
      %v548 = vadd.f32 %v494, 1.0
      %v549 = vadd.f32 %v496, 1.0
      %v550 = vadd.f32 %v498, 1.0
      %v551 = vadd.f32 %v500, 1.0
      %v552 = vadd.f32 %v502, 1.0
      %v553 = vadd.f32 %v504, 1.0
      %v554 = vadd.f32 %v506, 1.0
      %v555 = vadd.f32 %v508, 1.0
      %v556 = vadd.f32 %v510, 1.0
      %v557 = vadd.f32 %v512, 1.0
      %v558 = vadd.f32 %v514, 1.0
      %v559 = vadd.f32 %v516, 1.0
      %v560 = vadd.f32 %v518, 1.0
      %v561 = vadd.f32 %v520, 1.0
      %v562 = vadd.f32 %v522, 1.0
      %v563 = vadd.f32 %v524, 1.0
      %v564 = vadd.f32 %v526, 1.0
      %v565 = vadd.f32 %v528, 1.0
      %v566 = vadd.f32 %v530, 1.0
      %v567 = vadd.f32 %v532, 1.0
      %v568 = vadd.f32 %v534, 1.0
      %v569 = vadd.f32 %v536, 1.0
      %v570 = vadd.f32 %v538, 1.0
      %v571 = vrcp.pop %v539
      %v572 = vmul.f32 1.0, %v571
      %v573 = vrcp.pop %v540
      %v574 = vmul.f32 1.0, %v573
      %v575 = vrcp.pop %v541
      %v576 = vmul.f32 1.0, %v575
      %v577 = vrcp.pop %v542
      %v578 = vmul.f32 1.0, %v577
      %v579 = vrcp.pop %v543
      %v580 = vmul.f32 1.0, %v579
      %v581 = vrcp.pop %v544
      %v582 = vmul.f32 1.0, %v581
      %v583 = vrcp.pop %v545
      %v584 = vmul.f32 1.0, %v583
      %v585 = vrcp.pop %v546
      %v586 = vmul.f32 1.0, %v585
      %v587 = vrcp.pop %v547
      %v588 = vmul.f32 1.0, %v587
      %v589 = vrcp.pop %v548
      %v590 = vmul.f32 1.0, %v589
      %v591 = vrcp.pop %v549
      %v592 = vmul.f32 1.0, %v591
      %v593 = vrcp.pop %v550
      %v594 = vmul.f32 1.0, %v593
      %v595 = vrcp.pop %v551
      %v596 = vmul.f32 1.0, %v595
      %v597 = vrcp.pop %v552
      %v598 = vmul.f32 1.0, %v597
      %v599 = vrcp.pop %v553
      %v600 = vmul.f32 1.0, %v599
      %v601 = vrcp.pop %v554
      %v602 = vmul.f32 1.0, %v601
      %v603 = vrcp.pop %v555
      %v604 = vmul.f32 1.0, %v603
      %v605 = vrcp.pop %v556
      %v606 = vmul.f32 1.0, %v605
      %v607 = vrcp.pop %v557
      %v608 = vmul.f32 1.0, %v607
      %v609 = vrcp.pop %v558
      %v610 = vmul.f32 1.0, %v609
      %v611 = vrcp.pop %v559
      %v612 = vmul.f32 1.0, %v611
      %v613 = vrcp.pop %v560
      %v614 = vmul.f32 1.0, %v613
      %v615 = vrcp.pop %v561
      %v616 = vmul.f32 1.0, %v615
      %v617 = vrcp.pop %v562
      %v618 = vmul.f32 1.0, %v617
      %v619 = vrcp.pop %v563
      %v620 = vmul.f32 1.0, %v619
      %v621 = vrcp.pop %v564
      %v622 = vmul.f32 1.0, %v621
      %v623 = vrcp.pop %v565
      %v624 = vmul.f32 1.0, %v623
      %v625 = vrcp.pop %v566
      %v626 = vmul.f32 1.0, %v625
      %v627 = vrcp.pop %v567
      %v628 = vmul.f32 1.0, %v627
      %v629 = vrcp.pop %v568
      %v630 = vmul.f32 1.0, %v629
      %v631 = vrcp.pop %v569
      %v632 = vmul.f32 1.0, %v631
      %v633 = vrcp.pop %v570
      %v634 = vmul.f32 1.0, %v633
      %v635 = vmul.f32 %v411, %v572
      %v636 = vmul.f32 %v412, %v574
      %v637 = vmul.f32 %v413, %v576
      %v638 = vmul.f32 %v414, %v578
      %v639 = vmul.f32 %v415, %v580
      %v640 = vmul.f32 %v416, %v582
      %v641 = vmul.f32 %v417, %v584
      %v642 = vmul.f32 %v418, %v586
      %v643 = vmul.f32 %v419, %v588
      %v644 = vmul.f32 %v420, %v590
      %v645 = vmul.f32 %v421, %v592
      %v646 = vmul.f32 %v422, %v594
      %v647 = vmul.f32 %v423, %v596
      %v648 = vmul.f32 %v424, %v598
      %v649 = vmul.f32 %v425, %v600
      %v650 = vmul.f32 %v426, %v602
      %v651 = vmul.f32 %v427, %v604
      %v652 = vmul.f32 %v428, %v606
      %v653 = vmul.f32 %v429, %v608
      %v654 = vmul.f32 %v430, %v610
      %v655 = vmul.f32 %v431, %v612
      %v656 = vmul.f32 %v432, %v614
      %v657 = vmul.f32 %v433, %v616
      %v658 = vmul.f32 %v434, %v618
      %v659 = vmul.f32 %v435, %v620
      %v660 = vmul.f32 %v436, %v622
      %v661 = vmul.f32 %v437, %v624
      %v662 = vmul.f32 %v438, %v626
      %v663 = vmul.f32 %v439, %v628
      %v664 = vmul.f32 %v440, %v630
      %v665 = vmul.f32 %v441, %v632
      %v666 = vmul.f32 %v442, %v634
      %v667 = vpack.c.bf16 %v636, %v635
      %v668 = vpack.c.bf16 %v638, %v637
      %v669 = vpack.c.bf16 %v640, %v639
      %v670 = vpack.c.bf16 %v642, %v641
      %v671 = vpack.c.bf16 %v644, %v643
      %v672 = vpack.c.bf16 %v646, %v645
      %v673 = vpack.c.bf16 %v648, %v647
      %v674 = vpack.c.bf16 %v650, %v649
      %v675 = vpack.c.bf16 %v652, %v651
      %v676 = vpack.c.bf16 %v654, %v653
      %v677 = vpack.c.bf16 %v656, %v655
      %v678 = vpack.c.bf16 %v658, %v657
      %v679 = vpack.c.bf16 %v660, %v659
      %v680 = vpack.c.bf16 %v662, %v661
      %v681 = vpack.c.bf16 %v664, %v663
      %v682 = vpack.c.bf16 %v666, %v665
      %683 = vst [vmem:[#allocation2] sm:$0xf] 0
      %684 = vst [vmem:[#allocation2 + $0x4] sm:$0xf] 0
      %685 = vst [vmem:[#allocation2 + $0x8] sm:$0x1] 0
      %s686 = scalar_lea.vmem [#allocation2], 204
      %687 = vst [vmem:[%s686] sm:$0xf] 0
      %688 = vst [vmem:[%s686 + $0x4] sm:$0xf] 0
      %689 = vst [vmem:[%s686 + $0x8] sm:$0x1] 0
      %vm690 = vcmask 1040384
      %vm691 = vsmask.f32 256
      %vm692 = vmand %vm690, %vm691
      %v693 = vld [vmem:[#allocation2] sm:$0x1]
      %v694 = vsel %vm692, 0, %v693
      %695 = vst [vmem:[#allocation2] sm:$0x1] %v694
      %v696 = vld [vmem:[#allocation2 + $0xc] sm:$0x1]
      %v697 = vsel %vm692, 0, %v696
      %698 = vst [vmem:[#allocation2 + $0xc] sm:$0x1] %v697
      %v699 = vld [vmem:[#allocation2 + $0x18] sm:$0x1]
      %v700 = vsel %vm692, 0, %v699
      %701 = vst [vmem:[#allocation2 + $0x18] sm:$0x1] %v700
      %v702 = vld [vmem:[#allocation2 + $0x24] sm:$0x1]
      %v703 = vsel %vm692, 0, %v702
      %704 = vst [vmem:[#allocation2 + $0x24] sm:$0x1] %v703
      %v705 = vld [vmem:[#allocation2 + $0x30] sm:$0x1]
      %v706 = vsel %vm692, 0, %v705
      %707 = vst [vmem:[#allocation2 + $0x30] sm:$0x1] %v706
      %v708 = vld [vmem:[#allocation2 + $0x3c] sm:$0x1]
      %v709 = vsel %vm692, 0, %v708
      %710 = vst [vmem:[#allocation2 + $0x3c] sm:$0x1] %v709
      %v711 = vld [vmem:[#allocation2 + $0x48] sm:$0x1]
      %v712 = vsel %vm692, 0, %v711
      %713 = vst [vmem:[#allocation2 + $0x48] sm:$0x1] %v712
      %v714 = vld [vmem:[#allocation2 + $0x54] sm:$0x1]
      %v715 = vsel %vm692, 0, %v714
      %716 = vst [vmem:[#allocation2 + $0x54] sm:$0x1] %v715
      %v717 = vld [vmem:[#allocation2 + $0x60] sm:$0x1]
      %v718 = vsel %vm692, 0, %v717
      %719 = vst [vmem:[#allocation2 + $0x60] sm:$0x1] %v718
      %v720 = vld [vmem:[#allocation2 + $0x6c] sm:$0x1]
      %v721 = vsel %vm692, 0, %v720
      %722 = vst [vmem:[#allocation2 + $0x6c] sm:$0x1] %v721
      %v723 = vld [vmem:[#allocation2 + $0x78] sm:$0x1]
      %v724 = vsel %vm692, 0, %v723
      %725 = vst [vmem:[#allocation2 + $0x78] sm:$0x1] %v724
      %v726 = vld [vmem:[#allocation2 + $0x84] sm:$0x1]
      %v727 = vsel %vm692, 0, %v726
      %728 = vst [vmem:[#allocation2 + $0x84] sm:$0x1] %v727
      %v729 = vld [vmem:[#allocation2 + $0x90] sm:$0x1]
      %v730 = vsel %vm692, 0, %v729
      %731 = vst [vmem:[#allocation2 + $0x90] sm:$0x1] %v730
      %v732 = vld [vmem:[#allocation2 + $0x9c] sm:$0x1]
      %v733 = vsel %vm692, 0, %v732
      %734 = vst [vmem:[#allocation2 + $0x9c] sm:$0x1] %v733
      %v735 = vld [vmem:[#allocation2 + $0xa8] sm:$0x1]
      %v736 = vsel %vm692, 0, %v735
      %737 = vst [vmem:[#allocation2 + $0xa8] sm:$0x1] %v736
      %v738 = vld [vmem:[#allocation2 + $0xb4] sm:$0x1]
      %v739 = vsel %vm692, 0, %v738
      %740 = vst [vmem:[#allocation2 + $0xb4] sm:$0x1] %v739
      %v741 = vld [vmem:[#allocation2 + $0xc0] sm:$0x1]
      %v742 = vsel %vm692, 0, %v741
      %743 = vst [vmem:[#allocation2 + $0xc0] sm:$0x1] %v742
      %v744 = vld [vmem:[#allocation2 + $0xcc] sm:$0x1]
      %v745 = vsel %vm692, 0, %v744
      %746 = vst [vmem:[#allocation2 + $0xcc] sm:$0x1] %v745
      %vm747 = vsmask.f32 7938
      %vm748 = vmand %vm690, %vm747
      %v749 = vld [vmem:[#allocation2 + $0x8] sm:$0x1]
      %v750 = vsel %vm748, 0, %v749
      %751 = vst [vmem:[#allocation2 + $0x8] sm:$0x1] %v750
      %v752 = vld [vmem:[#allocation2 + $0x14] sm:$0x1]
      %v753 = vsel %vm748, 0, %v752
      %754 = vst [vmem:[#allocation2 + $0x14] sm:$0x1] %v753
      %v755 = vld [vmem:[#allocation2 + $0x20] sm:$0x1]
      %v756 = vsel %vm748, 0, %v755
      %757 = vst [vmem:[#allocation2 + $0x20] sm:$0x1] %v756
      %v758 = vld [vmem:[#allocation2 + $0x2c] sm:$0x1]
      %v759 = vsel %vm748, 0, %v758
      %760 = vst [vmem:[#allocation2 + $0x2c] sm:$0x1] %v759
      %v761 = vld [vmem:[#allocation2 + $0x38] sm:$0x1]
      %v762 = vsel %vm748, 0, %v761
      %763 = vst [vmem:[#allocation2 + $0x38] sm:$0x1] %v762
      %v764 = vld [vmem:[#allocation2 + $0x44] sm:$0x1]
      %v765 = vsel %vm748, 0, %v764
      %766 = vst [vmem:[#allocation2 + $0x44] sm:$0x1] %v765
      %v767 = vld [vmem:[#allocation2 + $0x50] sm:$0x1]
      %v768 = vsel %vm748, 0, %v767
      %769 = vst [vmem:[#allocation2 + $0x50] sm:$0x1] %v768
      %v770 = vld [vmem:[#allocation2 + $0x5c] sm:$0x1]
      %v771 = vsel %vm748, 0, %v770
      %772 = vst [vmem:[#allocation2 + $0x5c] sm:$0x1] %v771
      %v773 = vld [vmem:[#allocation2 + $0x68] sm:$0x1]
      %v774 = vsel %vm748, 0, %v773
      %775 = vst [vmem:[#allocation2 + $0x68] sm:$0x1] %v774
      %v776 = vld [vmem:[#allocation2 + $0x74] sm:$0x1]
      %v777 = vsel %vm748, 0, %v776
      %778 = vst [vmem:[#allocation2 + $0x74] sm:$0x1] %v777
      %v779 = vld [vmem:[#allocation2 + $0x80] sm:$0x1]
      %v780 = vsel %vm748, 0, %v779
      %781 = vst [vmem:[#allocation2 + $0x80] sm:$0x1] %v780
      %v782 = vld [vmem:[#allocation2 + $0x8c] sm:$0x1]
      %v783 = vsel %vm748, 0, %v782
      %784 = vst [vmem:[#allocation2 + $0x8c] sm:$0x1] %v783
      %v785 = vld [vmem:[#allocation2 + $0x98] sm:$0x1]
      %v786 = vsel %vm748, 0, %v785
      %787 = vst [vmem:[#allocation2 + $0x98] sm:$0x1] %v786
      %v788 = vld [vmem:[#allocation2 + $0xa4] sm:$0x1]
      %v789 = vsel %vm748, 0, %v788
      %790 = vst [vmem:[#allocation2 + $0xa4] sm:$0x1] %v789
      %v791 = vld [vmem:[#allocation2 + $0xb0] sm:$0x1]
      %v792 = vsel %vm748, 0, %v791
      %793 = vst [vmem:[#allocation2 + $0xb0] sm:$0x1] %v792
      %v794 = vld [vmem:[#allocation2 + $0xbc] sm:$0x1]
      %v795 = vsel %vm748, 0, %v794
      %796 = vst [vmem:[#allocation2 + $0xbc] sm:$0x1] %v795
      %v797 = vld [vmem:[#allocation2 + $0xc8] sm:$0x1]
      %v798 = vsel %vm748, 0, %v797
      %799 = vst [vmem:[#allocation2 + $0xc8] sm:$0x1] %v798
      %v800 = vld [vmem:[#allocation2 + $0xd4] sm:$0x1]
      %v801 = vsel %vm748, 0, %v800
      %802 = vst [vmem:[#allocation2 + $0xd4] sm:$0x1] %v801
      %v819 = vunpack.c.l.b16 %v667
      %v820 = vunpack.c.h.b16 %v667
      %v821 = vunpack.c.l.b16 %v668
      %v822 = vunpack.c.h.b16 %v668
      %v823 = vunpack.c.l.b16 %v669
      %v824 = vunpack.c.h.b16 %v669
      %v825 = vunpack.c.l.b16 %v670
      %v826 = vunpack.c.h.b16 %v670
      %v827 = vunpack.c.l.b16 %v671
      %v828 = vunpack.c.h.b16 %v671
      %v829 = vunpack.c.l.b16 %v672
      %v830 = vunpack.c.h.b16 %v672
      %v831 = vunpack.c.l.b16 %v673
      %v832 = vunpack.c.h.b16 %v673
      %v833 = vunpack.c.l.b16 %v674
      %v834 = vunpack.c.h.b16 %v674
      %v835 = vunpack.c.l.b16 %v675
      %v836 = vunpack.c.h.b16 %v675
      %v837 = vunpack.c.l.b16 %v676
      %v838 = vunpack.c.h.b16 %v676
      %v839 = vunpack.c.l.b16 %v677
      %v840 = vunpack.c.h.b16 %v677
      %v841 = vunpack.c.l.b16 %v678
      %v842 = vunpack.c.h.b16 %v678
      %v843 = vunpack.c.l.b16 %v679
      %v844 = vunpack.c.h.b16 %v679
      %v845 = vunpack.c.l.b16 %v680
      %v846 = vunpack.c.h.b16 %v680
      %v847 = vunpack.c.l.b16 %v681
      %v848 = vunpack.c.h.b16 %v681
      %v849 = vunpack.c.l.b16 %v682
      %v850 = vunpack.c.h.b16 %v682
      %v851 = vpack.c.b16 %v819, %v819
      %v852 = vpack.c.b16 %v820, %v820
      %v853 = vpack.c.b16 %v821, %v821
      %v854 = vpack.c.b16 %v822, %v822
      %v855 = vpack.c.b16 %v823, %v823
      %v856 = vpack.c.b16 %v824, %v824
      %v857 = vpack.c.b16 %v825, %v825
      %v858 = vpack.c.b16 %v826, %v826
      %v859 = vpack.c.b16 %v827, %v827
      %v860 = vpack.c.b16 %v828, %v828
      %v861 = vpack.c.b16 %v829, %v829
      %v862 = vpack.c.b16 %v830, %v830
      %v863 = vpack.c.b16 %v831, %v831
      %v864 = vpack.c.b16 %v832, %v832
      %v865 = vpack.c.b16 %v833, %v833
      %v866 = vpack.c.b16 %v834, %v834
      %v867 = vpack.c.b16 %v835, %v835
      %v868 = vpack.c.b16 %v836, %v836
      %v869 = vpack.c.b16 %v837, %v837
      %v870 = vpack.c.b16 %v838, %v838
      %v871 = vpack.c.b16 %v839, %v839
      %v872 = vpack.c.b16 %v840, %v840
      %v873 = vpack.c.b16 %v841, %v841
      %v874 = vpack.c.b16 %v842, %v842
      %v875 = vpack.c.b16 %v843, %v843
      %v876 = vpack.c.b16 %v844, %v844
      %v877 = vpack.c.b16 %v845, %v845
      %v878 = vpack.c.b16 %v846, %v846
      %v879 = vpack.c.b16 %v847, %v847
      %v880 = vpack.c.b16 %v848, %v848
      %v881 = vpack.c.b16 %v849, %v849
      %v882 = vpack.c.b16 %v850, %v850
      %vm883 = vsmask.f32 4368
      %vm884 = vmor %vm691, %vm883
      %v886 = vshrl.u32 %v851, 16
      %v888 = vrot.slane %v886, 7
      %v889 = vshll.u32 %v851, 16
      %v891 = vor.u32 %v888, %v889
      %v892 = vrot.slane %v888, 4
      %v894 = vshrl.u32 %v852, 16
      %v896 = vrot.slane %v894, 7
      %v897 = vshll.u32 %v852, 16
      %v899 = vor.u32 %v896, %v897
      %v900 = vsel %vm884, %v892, %v899
      %v901 = vrot.slane %v896, 4
      %v903 = vshrl.u32 %v853, 16
      %v905 = vrot.slane %v903, 7
      %v906 = vshll.u32 %v853, 16
      %v908 = vor.u32 %v905, %v906
      %v909 = vrot.slane %v905, 4
      %v911 = vshrl.u32 %v854, 16
      %v913 = vrot.slane %v911, 7
      %v914 = vshll.u32 %v854, 16
      %v916 = vor.u32 %v913, %v914
      %v917 = vsel %vm884, %v909, %v916
      %v918 = vrot.slane %v913, 4
      %v920 = vshrl.u32 %v855, 16
      %v922 = vrot.slane %v920, 7
      %v923 = vshll.u32 %v855, 16
      %v925 = vor.u32 %v922, %v923
      %v926 = vrot.slane %v922, 4
      %v928 = vshrl.u32 %v856, 16
      %v930 = vrot.slane %v928, 7
      %v931 = vshll.u32 %v856, 16
      %v933 = vor.u32 %v930, %v931
      %v934 = vsel %vm884, %v926, %v933
      %v935 = vrot.slane %v930, 4
      %v937 = vshrl.u32 %v857, 16
      %v939 = vrot.slane %v937, 7
      %v940 = vshll.u32 %v857, 16
      %v942 = vor.u32 %v939, %v940
      %v943 = vrot.slane %v939, 4
      %v945 = vshrl.u32 %v858, 16
      %v947 = vrot.slane %v945, 7
      %v948 = vshll.u32 %v858, 16
      %v950 = vor.u32 %v947, %v948
      %v951 = vsel %vm884, %v943, %v950
      %v952 = vrot.slane %v947, 4
      %v954 = vshrl.u32 %v859, 16
      %v956 = vrot.slane %v954, 7
      %v957 = vshll.u32 %v859, 16
      %v959 = vor.u32 %v956, %v957
      %v960 = vrot.slane %v956, 4
      %v962 = vshrl.u32 %v860, 16
      %v964 = vrot.slane %v962, 7
      %v965 = vshll.u32 %v860, 16
      %v967 = vor.u32 %v964, %v965
      %v968 = vsel %vm884, %v960, %v967
      %v969 = vrot.slane %v964, 4
      %v971 = vshrl.u32 %v861, 16
      %v973 = vrot.slane %v971, 7
      %v974 = vshll.u32 %v861, 16
      %v976 = vor.u32 %v973, %v974
      %v977 = vrot.slane %v973, 4
      %v979 = vshrl.u32 %v862, 16
      %v981 = vrot.slane %v979, 7
      %v982 = vshll.u32 %v862, 16
      %v984 = vor.u32 %v981, %v982
      %v985 = vsel %vm884, %v977, %v984
      %v986 = vrot.slane %v981, 4
      %v988 = vshrl.u32 %v863, 16
      %v990 = vrot.slane %v988, 7
      %v991 = vshll.u32 %v863, 16
      %v993 = vor.u32 %v990, %v991
      %v994 = vrot.slane %v990, 4
      %v996 = vshrl.u32 %v864, 16
      %v998 = vrot.slane %v996, 7
      %v999 = vshll.u32 %v864, 16
      %v1001 = vor.u32 %v998, %v999
      %v1002 = vsel %vm884, %v994, %v1001
      %v1003 = vrot.slane %v998, 4
      %v1005 = vshrl.u32 %v865, 16
      %v1007 = vrot.slane %v1005, 7
      %v1008 = vshll.u32 %v865, 16
      %v1010 = vor.u32 %v1007, %v1008
      %v1011 = vrot.slane %v1007, 4
      %v1013 = vshrl.u32 %v866, 16
      %v1015 = vrot.slane %v1013, 7
      %v1016 = vshll.u32 %v866, 16
      %v1018 = vor.u32 %v1015, %v1016
      %v1019 = vsel %vm884, %v1011, %v1018
      %v1020 = vrot.slane %v1015, 4
      %v1022 = vshrl.u32 %v867, 16
      %v1024 = vrot.slane %v1022, 7
      %v1025 = vshll.u32 %v867, 16
      %v1027 = vor.u32 %v1024, %v1025
      %v1028 = vrot.slane %v1024, 4
      %v1030 = vshrl.u32 %v868, 16
      %v1032 = vrot.slane %v1030, 7
      %v1033 = vshll.u32 %v868, 16
      %v1035 = vor.u32 %v1032, %v1033
      %v1036 = vsel %vm884, %v1028, %v1035
      %v1037 = vrot.slane %v1032, 4
      %v1039 = vshrl.u32 %v869, 16
      %v1041 = vrot.slane %v1039, 7
      %v1042 = vshll.u32 %v869, 16
      %v1044 = vor.u32 %v1041, %v1042
      %v1045 = vrot.slane %v1041, 4
      %v1047 = vshrl.u32 %v870, 16
      %v1049 = vrot.slane %v1047, 7
      %v1050 = vshll.u32 %v870, 16
      %v1052 = vor.u32 %v1049, %v1050
      %v1053 = vsel %vm884, %v1045, %v1052
      %v1054 = vrot.slane %v1049, 4
      %v1056 = vshrl.u32 %v871, 16
      %v1058 = vrot.slane %v1056, 7
      %v1059 = vshll.u32 %v871, 16
      %v1061 = vor.u32 %v1058, %v1059
      %v1062 = vrot.slane %v1058, 4
      %v1064 = vshrl.u32 %v872, 16
      %v1066 = vrot.slane %v1064, 7
      %v1067 = vshll.u32 %v872, 16
      %v1069 = vor.u32 %v1066, %v1067
      %v1070 = vsel %vm884, %v1062, %v1069
      %v1071 = vrot.slane %v1066, 4
      %v1073 = vshrl.u32 %v873, 16
      %v1075 = vrot.slane %v1073, 7
      %v1076 = vshll.u32 %v873, 16
      %v1078 = vor.u32 %v1075, %v1076
      %v1079 = vrot.slane %v1075, 4
      %v1081 = vshrl.u32 %v874, 16
      %v1083 = vrot.slane %v1081, 7
      %v1084 = vshll.u32 %v874, 16
      %v1086 = vor.u32 %v1083, %v1084
      %v1087 = vsel %vm884, %v1079, %v1086
      %v1088 = vrot.slane %v1083, 4
      %v1090 = vshrl.u32 %v875, 16
      %v1092 = vrot.slane %v1090, 7
      %v1093 = vshll.u32 %v875, 16
      %v1095 = vor.u32 %v1092, %v1093
      %v1096 = vrot.slane %v1092, 4
      %v1098 = vshrl.u32 %v876, 16
      %v1100 = vrot.slane %v1098, 7
      %v1101 = vshll.u32 %v876, 16
      %v1103 = vor.u32 %v1100, %v1101
      %v1104 = vsel %vm884, %v1096, %v1103
      %v1105 = vrot.slane %v1100, 4
      %v1107 = vshrl.u32 %v877, 16
      %v1109 = vrot.slane %v1107, 7
      %v1110 = vshll.u32 %v877, 16
      %v1112 = vor.u32 %v1109, %v1110
      %v1113 = vrot.slane %v1109, 4
      %v1115 = vshrl.u32 %v878, 16
      %v1117 = vrot.slane %v1115, 7
      %v1118 = vshll.u32 %v878, 16
      %v1120 = vor.u32 %v1117, %v1118
      %v1121 = vsel %vm884, %v1113, %v1120
      %v1122 = vrot.slane %v1117, 4
      %v1124 = vshrl.u32 %v879, 16
      %v1126 = vrot.slane %v1124, 7
      %v1127 = vshll.u32 %v879, 16
      %v1129 = vor.u32 %v1126, %v1127
      %v1130 = vrot.slane %v1126, 4
      %v1132 = vshrl.u32 %v880, 16
      %v1134 = vrot.slane %v1132, 7
      %v1135 = vshll.u32 %v880, 16
      %v1137 = vor.u32 %v1134, %v1135
      %v1138 = vsel %vm884, %v1130, %v1137
      %v1139 = vrot.slane %v1134, 4
      %v1141 = vshrl.u32 %v881, 16
      %v1143 = vrot.slane %v1141, 7
      %v1144 = vshll.u32 %v881, 16
      %v1146 = vor.u32 %v1143, %v1144
      %v1147 = vrot.slane %v1143, 4
      %v1149 = vshrl.u32 %v882, 16
      %v1151 = vrot.slane %v1149, 7
      %v1152 = vshll.u32 %v882, 16
      %v1154 = vor.u32 %v1151, %v1152
      %v1155 = vsel %vm884, %v1147, %v1154
      %v1156 = vrot.slane %v1151, 4
      %s1205 = scalar_lea.vmem [#allocation2], 12
      %vm1206 = vcmask 1043456
      %vm1207 = vmand %vm1206, %vm747
      %v1208 = vld [vmem:[%s1205] sm:$0xf]
      %v1209 = vsel %vm1207, %v891, %v1208
      %1210 = vst [vmem:[%s1205] sm:$0xf] %v1209
      %1211 = vst [vmem:[%s1205 + $0x4] sm:$0xf] %v900
      %v1212 = vld [vmem:[%s1205 + $0x8] sm:$0x1]
      %v1213 = vsel %vm692, %v901, %v1212
      %1214 = vst [vmem:[%s1205 + $0x8] sm:$0x1] %v1213
      %v1215 = vld [vmem:[%s1205 + $0xc] sm:$0xf]
      %v1216 = vsel %vm1207, %v908, %v1215
      %1217 = vst [vmem:[%s1205 + $0xc] sm:$0xf] %v1216
      %1218 = vst [vmem:[%s1205 + $0x10] sm:$0xf] %v917
      %v1219 = vld [vmem:[%s1205 + $0x14] sm:$0x1]
      %v1220 = vsel %vm692, %v918, %v1219
      %1221 = vst [vmem:[%s1205 + $0x14] sm:$0x1] %v1220
      %v1222 = vld [vmem:[%s1205 + $0x18] sm:$0xf]
      %v1223 = vsel %vm1207, %v925, %v1222
      %1224 = vst [vmem:[%s1205 + $0x18] sm:$0xf] %v1223
      %1225 = vst [vmem:[%s1205 + $0x1c] sm:$0xf] %v934
      %v1226 = vld [vmem:[%s1205 + $0x20] sm:$0x1]
      %v1227 = vsel %vm692, %v935, %v1226
      %1228 = vst [vmem:[%s1205 + $0x20] sm:$0x1] %v1227
      %v1229 = vld [vmem:[%s1205 + $0x24] sm:$0xf]
      %v1230 = vsel %vm1207, %v942, %v1229
      %1231 = vst [vmem:[%s1205 + $0x24] sm:$0xf] %v1230
      %1232 = vst [vmem:[%s1205 + $0x28] sm:$0xf] %v951
      %v1233 = vld [vmem:[%s1205 + $0x2c] sm:$0x1]
      %v1234 = vsel %vm692, %v952, %v1233
      %1235 = vst [vmem:[%s1205 + $0x2c] sm:$0x1] %v1234
      %v1236 = vld [vmem:[%s1205 + $0x30] sm:$0xf]
      %v1237 = vsel %vm1207, %v959, %v1236
      %1238 = vst [vmem:[%s1205 + $0x30] sm:$0xf] %v1237
      %1239 = vst [vmem:[%s1205 + $0x34] sm:$0xf] %v968
      %v1240 = vld [vmem:[%s1205 + $0x38] sm:$0x1]
      %v1241 = vsel %vm692, %v969, %v1240
      %1242 = vst [vmem:[%s1205 + $0x38] sm:$0x1] %v1241
      %v1243 = vld [vmem:[%s1205 + $0x3c] sm:$0xf]
      %v1244 = vsel %vm1207, %v976, %v1243
      %1245 = vst [vmem:[%s1205 + $0x3c] sm:$0xf] %v1244
      %1246 = vst [vmem:[%s1205 + $0x40] sm:$0xf] %v985
      %v1247 = vld [vmem:[%s1205 + $0x44] sm:$0x1]
      %v1248 = vsel %vm692, %v986, %v1247
      %1249 = vst [vmem:[%s1205 + $0x44] sm:$0x1] %v1248
      %v1250 = vld [vmem:[%s1205 + $0x48] sm:$0xf]
      %v1251 = vsel %vm1207, %v993, %v1250
      %1252 = vst [vmem:[%s1205 + $0x48] sm:$0xf] %v1251
      %1253 = vst [vmem:[%s1205 + $0x4c] sm:$0xf] %v1002
      %v1254 = vld [vmem:[%s1205 + $0x50] sm:$0x1]
      %v1255 = vsel %vm692, %v1003, %v1254
      %1256 = vst [vmem:[%s1205 + $0x50] sm:$0x1] %v1255
      %v1257 = vld [vmem:[%s1205 + $0x54] sm:$0xf]
      %v1258 = vsel %vm1207, %v1010, %v1257
      %1259 = vst [vmem:[%s1205 + $0x54] sm:$0xf] %v1258
      %1260 = vst [vmem:[%s1205 + $0x58] sm:$0xf] %v1019
      %v1261 = vld [vmem:[%s1205 + $0x5c] sm:$0x1]
      %v1262 = vsel %vm692, %v1020, %v1261
      %1263 = vst [vmem:[%s1205 + $0x5c] sm:$0x1] %v1262
      %v1264 = vld [vmem:[%s1205 + $0x60] sm:$0xf]
      %v1265 = vsel %vm1207, %v1027, %v1264
      %1266 = vst [vmem:[%s1205 + $0x60] sm:$0xf] %v1265
      %1267 = vst [vmem:[%s1205 + $0x64] sm:$0xf] %v1036
      %v1268 = vld [vmem:[%s1205 + $0x68] sm:$0x1]
      %v1269 = vsel %vm692, %v1037, %v1268
      %1270 = vst [vmem:[%s1205 + $0x68] sm:$0x1] %v1269
      %v1271 = vld [vmem:[%s1205 + $0x6c] sm:$0xf]
      %v1272 = vsel %vm1207, %v1044, %v1271
      %1273 = vst [vmem:[%s1205 + $0x6c] sm:$0xf] %v1272
      %1274 = vst [vmem:[%s1205 + $0x70] sm:$0xf] %v1053
      %v1275 = vld [vmem:[%s1205 + $0x74] sm:$0x1]
      %v1276 = vsel %vm692, %v1054, %v1275
      %1277 = vst [vmem:[%s1205 + $0x74] sm:$0x1] %v1276
      %v1278 = vld [vmem:[%s1205 + $0x78] sm:$0xf]
      %v1279 = vsel %vm1207, %v1061, %v1278
      %1280 = vst [vmem:[%s1205 + $0x78] sm:$0xf] %v1279
      %1281 = vst [vmem:[%s1205 + $0x7c] sm:$0xf] %v1070
      %v1282 = vld [vmem:[%s1205 + $0x80] sm:$0x1]
      %v1283 = vsel %vm692, %v1071, %v1282
      %1284 = vst [vmem:[%s1205 + $0x80] sm:$0x1] %v1283
      %v1285 = vld [vmem:[%s1205 + $0x84] sm:$0xf]
      %v1286 = vsel %vm1207, %v1078, %v1285
      %1287 = vst [vmem:[%s1205 + $0x84] sm:$0xf] %v1286
      %1288 = vst [vmem:[%s1205 + $0x88] sm:$0xf] %v1087
      %v1289 = vld [vmem:[%s1205 + $0x8c] sm:$0x1]
      %v1290 = vsel %vm692, %v1088, %v1289
      %1291 = vst [vmem:[%s1205 + $0x8c] sm:$0x1] %v1290
      %v1292 = vld [vmem:[%s1205 + $0x90] sm:$0xf]
      %v1293 = vsel %vm1207, %v1095, %v1292
      %1294 = vst [vmem:[%s1205 + $0x90] sm:$0xf] %v1293
      %1295 = vst [vmem:[%s1205 + $0x94] sm:$0xf] %v1104
      %v1296 = vld [vmem:[%s1205 + $0x98] sm:$0x1]
      %v1297 = vsel %vm692, %v1105, %v1296
      %1298 = vst [vmem:[%s1205 + $0x98] sm:$0x1] %v1297
      %v1299 = vld [vmem:[%s1205 + $0x9c] sm:$0xf]
      %v1300 = vsel %vm1207, %v1112, %v1299
      %1301 = vst [vmem:[%s1205 + $0x9c] sm:$0xf] %v1300
      %1302 = vst [vmem:[%s1205 + $0xa0] sm:$0xf] %v1121
      %v1303 = vld [vmem:[%s1205 + $0xa4] sm:$0x1]
      %v1304 = vsel %vm692, %v1122, %v1303
      %1305 = vst [vmem:[%s1205 + $0xa4] sm:$0x1] %v1304
      %v1306 = vld [vmem:[%s1205 + $0xa8] sm:$0xf]
      %v1307 = vsel %vm1207, %v1129, %v1306
      %1308 = vst [vmem:[%s1205 + $0xa8] sm:$0xf] %v1307
      %1309 = vst [vmem:[%s1205 + $0xac] sm:$0xf] %v1138
      %v1310 = vld [vmem:[%s1205 + $0xb0] sm:$0x1]
      %v1311 = vsel %vm692, %v1139, %v1310
      %1312 = vst [vmem:[%s1205 + $0xb0] sm:$0x1] %v1311
      %v1313 = vld [vmem:[%s1205 + $0xb4] sm:$0xf]
      %v1314 = vsel %vm1207, %v1146, %v1313
      %1315 = vst [vmem:[%s1205 + $0xb4] sm:$0xf] %v1314
      %1316 = vst [vmem:[%s1205 + $0xb8] sm:$0xf] %v1155
      %v1317 = vld [vmem:[%s1205 + $0xbc] sm:$0x1]
      %v1318 = vsel %vm692, %v1156, %v1317
      %1319 = vst [vmem:[%s1205 + $0xbc] sm:$0x1] %v1318
      %v1320 = vld [vmem:[#allocation2] sm:$0xf]
      %v1321 = vld [vmem:[#allocation2 + $0x4] sm:$0xf]
      %v1322 = vld [vmem:[#allocation2 + $0xc] sm:$0xf]
      %v1323 = vld [vmem:[#allocation2 + $0x10] sm:$0xf]
      %v1324 = vld [vmem:[#allocation2 + $0x18] sm:$0xf]
      %v1325 = vld [vmem:[#allocation2 + $0x1c] sm:$0xf]
      %v1326 = vld [vmem:[#allocation2 + $0x24] sm:$0xf]
      %v1327 = vld [vmem:[#allocation2 + $0x28] sm:$0xf]
      %v1328 = vld [vmem:[#allocation2 + $0x30] sm:$0xf]
      %v1329 = vld [vmem:[#allocation2 + $0x34] sm:$0xf]
      %v1330 = vld [vmem:[#allocation2 + $0x3c] sm:$0xf]
      %v1331 = vld [vmem:[#allocation2 + $0x40] sm:$0xf]
      %v1332 = vld [vmem:[#allocation2 + $0x48] sm:$0xf]
      %v1333 = vld [vmem:[#allocation2 + $0x4c] sm:$0xf]
      %v1334 = vld [vmem:[#allocation2 + $0x54] sm:$0xf]
      %v1335 = vld [vmem:[#allocation2 + $0x58] sm:$0xf]
      %v1336 = vld [vmem:[#allocation2 + $0x60] sm:$0xf]
      %v1337 = vld [vmem:[#allocation2 + $0x64] sm:$0xf]
      %v1338 = vld [vmem:[#allocation2 + $0x6c] sm:$0xf]
      %v1339 = vld [vmem:[#allocation2 + $0x70] sm:$0xf]
      %v1340 = vld [vmem:[#allocation2 + $0x78] sm:$0xf]
      %v1341 = vld [vmem:[#allocation2 + $0x7c] sm:$0xf]
      %v1342 = vld [vmem:[#allocation2 + $0x84] sm:$0xf]
      %v1343 = vld [vmem:[#allocation2 + $0x88] sm:$0xf]
      %v1344 = vld [vmem:[#allocation2 + $0x90] sm:$0xf]
      %v1345 = vld [vmem:[#allocation2 + $0x94] sm:$0xf]
      %v1346 = vld [vmem:[#allocation2 + $0x9c] sm:$0xf]
      %v1347 = vld [vmem:[#allocation2 + $0xa0] sm:$0xf]
      %v1348 = vld [vmem:[#allocation2 + $0xa8] sm:$0xf]
      %v1349 = vld [vmem:[#allocation2 + $0xac] sm:$0xf]
      %v1350 = vld [vmem:[#allocation2 + $0xb4] sm:$0xf]
      %v1351 = vld [vmem:[#allocation2 + $0xb8] sm:$0xf]
      %v1384 = vunpack.c.l.b16 %v1320
      %v1385 = vunpack.c.l.b16 %v1321
      %v1386 = vunpack.c.l.b16 %v1322
      %v1387 = vunpack.c.l.b16 %v1323
      %v1388 = vunpack.c.l.b16 %v1324
      %v1389 = vunpack.c.l.b16 %v1325
      %v1390 = vunpack.c.l.b16 %v1326
      %v1391 = vunpack.c.l.b16 %v1327
      %v1392 = vunpack.c.l.b16 %v1328
      %v1393 = vunpack.c.l.b16 %v1329
      %v1394 = vunpack.c.l.b16 %v1330
      %v1395 = vunpack.c.l.b16 %v1331
      %v1396 = vunpack.c.l.b16 %v1332
      %v1397 = vunpack.c.l.b16 %v1333
      %v1398 = vunpack.c.l.b16 %v1334
      %v1399 = vunpack.c.l.b16 %v1335
      %v1400 = vunpack.c.l.b16 %v1336
      %v1401 = vunpack.c.l.b16 %v1337
      %v1402 = vunpack.c.l.b16 %v1338
      %v1403 = vunpack.c.l.b16 %v1339
      %v1404 = vunpack.c.l.b16 %v1340
      %v1405 = vunpack.c.l.b16 %v1341
      %v1406 = vunpack.c.l.b16 %v1342
      %v1407 = vunpack.c.l.b16 %v1343
      %v1408 = vunpack.c.l.b16 %v1344
      %v1409 = vunpack.c.l.b16 %v1345
      %v1410 = vunpack.c.l.b16 %v1346
      %v1411 = vunpack.c.l.b16 %v1347
      %v1412 = vunpack.c.l.b16 %v1348
      %v1413 = vunpack.c.l.b16 %v1349
      %v1414 = vunpack.c.l.b16 %v1350
      %v1415 = vunpack.c.l.b16 %v1351
      %v1416 = vpack.c.b16 %v1385, %v1384
      %v1417 = vpack.c.b16 %v1387, %v1386
      %v1418 = vpack.c.b16 %v1389, %v1388
      %v1419 = vpack.c.b16 %v1391, %v1390
      %v1420 = vpack.c.b16 %v1393, %v1392
      %v1421 = vpack.c.b16 %v1395, %v1394
      %v1422 = vpack.c.b16 %v1397, %v1396
      %v1423 = vpack.c.b16 %v1399, %v1398
      %v1424 = vpack.c.b16 %v1401, %v1400
      %v1425 = vpack.c.b16 %v1403, %v1402
      %v1426 = vpack.c.b16 %v1405, %v1404
      %v1427 = vpack.c.b16 %v1407, %v1406
      %v1428 = vpack.c.b16 %v1409, %v1408
      %v1429 = vpack.c.b16 %v1411, %v1410
      %v1430 = vpack.c.b16 %v1413, %v1412
      %v1431 = vpack.c.b16 %v1415, %v1414
      %1448 = vst [vmem:[#allocation3] sm:$0xff] %v1416
      %1449 = vst [vmem:[#allocation3 + $0x48] sm:$0xff] %v1417
      %1450 = vst [vmem:[#allocation3 + $0x90] sm:$0xff] %v1418
      %1451 = vst [vmem:[#allocation3 + $0xd8] sm:$0xff] %v1419
      %1452 = vst [vmem:[#allocation3 + $0x120] sm:$0xff] %v1420
      %1453 = vst [vmem:[#allocation3 + $0x168] sm:$0xff] %v1421
      %1454 = vst [vmem:[#allocation3 + $0x1b0] sm:$0xff] %v1422
      %1455 = vst [vmem:[#allocation3 + $0x1f8] sm:$0xff] %v1423
      %1456 = vst [vmem:[#allocation3 + $0x240] sm:$0xff] %v1424
      %1457 = vst [vmem:[#allocation3 + $0x288] sm:$0xff] %v1425
      %1458 = vst [vmem:[#allocation3 + $0x2d0] sm:$0xff] %v1426
      %1459 = vst [vmem:[#allocation3 + $0x318] sm:$0xff] %v1427
      %1460 = vst [vmem:[#allocation3 + $0x360] sm:$0xff] %v1428
      %1461 = vst [vmem:[#allocation3 + $0x3a8] sm:$0xff] %v1429
      %1462 = vst [vmem:[#allocation3 + $0x3f0] sm:$0xff] %v1430
      %1463 = vst [vmem:[#allocation3 + $0x438] sm:$0xff] %v1431
      %v1464 = vld [vmem:[#allocation2] sm:$0xf]
      %v1465 = vld [vmem:[#allocation2 + $0x4] sm:$0xf]
      %v1466 = vld [vmem:[#allocation2 + $0x8] sm:$0x1]
      %v1467 = vld [vmem:[#allocation2 + $0xc] sm:$0xf]
      %v1468 = vld [vmem:[#allocation2 + $0x10] sm:$0xf]
      %v1469 = vld [vmem:[#allocation2 + $0x14] sm:$0x1]
      %v1470 = vld [vmem:[#allocation2 + $0x18] sm:$0xf]
      %v1471 = vld [vmem:[#allocation2 + $0x1c] sm:$0xf]
      %v1472 = vld [vmem:[#allocation2 + $0x20] sm:$0x1]
      %v1473 = vld [vmem:[#allocation2 + $0x24] sm:$0xf]
      %v1474 = vld [vmem:[#allocation2 + $0x28] sm:$0xf]
      %v1475 = vld [vmem:[#allocation2 + $0x2c] sm:$0x1]
      %v1476 = vld [vmem:[#allocation2 + $0x30] sm:$0xf]
      %v1477 = vld [vmem:[#allocation2 + $0x34] sm:$0xf]
      %v1478 = vld [vmem:[#allocation2 + $0x38] sm:$0x1]
      %v1479 = vld [vmem:[#allocation2 + $0x3c] sm:$0xf]
      %v1480 = vld [vmem:[#allocation2 + $0x40] sm:$0xf]
      %v1481 = vld [vmem:[#allocation2 + $0x44] sm:$0x1]
      %v1482 = vld [vmem:[#allocation2 + $0x48] sm:$0xf]
      %v1483 = vld [vmem:[#allocation2 + $0x4c] sm:$0xf]
      %v1484 = vld [vmem:[#allocation2 + $0x50] sm:$0x1]
      %v1485 = vld [vmem:[#allocation2 + $0x54] sm:$0xf]
      %v1486 = vld [vmem:[#allocation2 + $0x58] sm:$0xf]
      %v1487 = vld [vmem:[#allocation2 + $0x5c] sm:$0x1]
      %v1488 = vld [vmem:[#allocation2 + $0x60] sm:$0xf]
      %v1489 = vld [vmem:[#allocation2 + $0x64] sm:$0xf]
      %v1490 = vld [vmem:[#allocation2 + $0x68] sm:$0x1]
      %v1491 = vld [vmem:[#allocation2 + $0x6c] sm:$0xf]
      %v1492 = vld [vmem:[#allocation2 + $0x70] sm:$0xf]
      %v1493 = vld [vmem:[#allocation2 + $0x74] sm:$0x1]
      %v1494 = vld [vmem:[#allocation2 + $0x78] sm:$0xf]
      %v1495 = vld [vmem:[#allocation2 + $0x7c] sm:$0xf]
      %v1496 = vld [vmem:[#allocation2 + $0x80] sm:$0x1]
      %v1497 = vld [vmem:[#allocation2 + $0x84] sm:$0xf]
      %v1498 = vld [vmem:[#allocation2 + $0x88] sm:$0xf]
      %v1499 = vld [vmem:[#allocation2 + $0x8c] sm:$0x1]
      %v1500 = vld [vmem:[#allocation2 + $0x90] sm:$0xf]
      %v1501 = vld [vmem:[#allocation2 + $0x94] sm:$0xf]
      %v1502 = vld [vmem:[#allocation2 + $0x98] sm:$0x1]
      %v1503 = vld [vmem:[#allocation2 + $0x9c] sm:$0xf]
      %v1504 = vld [vmem:[#allocation2 + $0xa0] sm:$0xf]
      %v1505 = vld [vmem:[#allocation2 + $0xa4] sm:$0x1]
      %v1506 = vld [vmem:[#allocation2 + $0xa8] sm:$0xf]
      %v1507 = vld [vmem:[#allocation2 + $0xac] sm:$0xf]
      %v1508 = vld [vmem:[#allocation2 + $0xb0] sm:$0x1]
      %v1509 = vld [vmem:[#allocation2 + $0xb4] sm:$0xf]
      %v1510 = vld [vmem:[#allocation2 + $0xb8] sm:$0xf]
      %v1511 = vld [vmem:[#allocation2 + $0xbc] sm:$0x1]
      %vm1512 = vsmask.f32 3328
      %vm1513 = vsmask.f32 7440
      %vm1514 = vmor %vm1512, %vm1513
      %v1516 = vshrl.u32 %v1464, 16
      %v1518 = vrot.slane %v1516, 4
      %v1519 = vshll.u32 %v1464, 16
      %v1521 = vrot.slane %v1519, 5
      %v1522 = vor.u32 %v1518, %v1521
      %v1523 = vrot.slane %v1522, 4
      %v1525 = vshll.u32 %v1465, 16
      %v1527 = vrot.slane %v1525, 5
      %v1528 = vsel %vm1514, %v1523, %v1527
      %v1529 = vshrl.u32 %v1465, 16
      %v1531 = vrot.slane %v1529, 4
      %v1532 = vor.u32 %v1531, %v1527
      %v1533 = vrot.slane %v1532, 4
      %v1535 = vshll.u32 %v1466, 16
      %v1537 = vrot.slane %v1535, 5
      %v1538 = vsel %vm1514, %v1533, %v1537
      %v1540 = vshrl.u32 %v1467, 16
      %v1542 = vrot.slane %v1540, 4
      %v1543 = vshll.u32 %v1467, 16
      %v1545 = vrot.slane %v1543, 5
      %v1546 = vor.u32 %v1542, %v1545
      %v1547 = vrot.slane %v1546, 4
      %v1549 = vshll.u32 %v1468, 16
      %v1551 = vrot.slane %v1549, 5
      %v1552 = vsel %vm1514, %v1547, %v1551
      %v1553 = vshrl.u32 %v1468, 16
      %v1555 = vrot.slane %v1553, 4
      %v1556 = vor.u32 %v1555, %v1551
      %v1557 = vrot.slane %v1556, 4
      %v1559 = vshll.u32 %v1469, 16
      %v1561 = vrot.slane %v1559, 5
      %v1562 = vsel %vm1514, %v1557, %v1561
      %v1564 = vshrl.u32 %v1470, 16
      %v1566 = vrot.slane %v1564, 4
      %v1567 = vshll.u32 %v1470, 16
      %v1569 = vrot.slane %v1567, 5
      %v1570 = vor.u32 %v1566, %v1569
      %v1571 = vrot.slane %v1570, 4
      %v1573 = vshll.u32 %v1471, 16
      %v1575 = vrot.slane %v1573, 5
      %v1576 = vsel %vm1514, %v1571, %v1575
      %v1577 = vshrl.u32 %v1471, 16
      %v1579 = vrot.slane %v1577, 4
      %v1580 = vor.u32 %v1579, %v1575
      %v1581 = vrot.slane %v1580, 4
      %v1583 = vshll.u32 %v1472, 16
      %v1585 = vrot.slane %v1583, 5
      %v1586 = vsel %vm1514, %v1581, %v1585
      %v1588 = vshrl.u32 %v1473, 16
      %v1590 = vrot.slane %v1588, 4
      %v1591 = vshll.u32 %v1473, 16
      %v1593 = vrot.slane %v1591, 5
      %v1594 = vor.u32 %v1590, %v1593
      %v1595 = vrot.slane %v1594, 4
      %v1597 = vshll.u32 %v1474, 16
      %v1599 = vrot.slane %v1597, 5
      %v1600 = vsel %vm1514, %v1595, %v1599
      %v1601 = vshrl.u32 %v1474, 16
      %v1603 = vrot.slane %v1601, 4
      %v1604 = vor.u32 %v1603, %v1599
      %v1605 = vrot.slane %v1604, 4
      %v1607 = vshll.u32 %v1475, 16
      %v1609 = vrot.slane %v1607, 5
      %v1610 = vsel %vm1514, %v1605, %v1609
      %v1612 = vshrl.u32 %v1476, 16
      %v1614 = vrot.slane %v1612, 4
      %v1615 = vshll.u32 %v1476, 16
      %v1617 = vrot.slane %v1615, 5
      %v1618 = vor.u32 %v1614, %v1617
      %v1619 = vrot.slane %v1618, 4
      %v1621 = vshll.u32 %v1477, 16
      %v1623 = vrot.slane %v1621, 5
      %v1624 = vsel %vm1514, %v1619, %v1623
      %v1625 = vshrl.u32 %v1477, 16
      %v1627 = vrot.slane %v1625, 4
      %v1628 = vor.u32 %v1627, %v1623
      %v1629 = vrot.slane %v1628, 4
      %v1631 = vshll.u32 %v1478, 16
      %v1633 = vrot.slane %v1631, 5
      %v1634 = vsel %vm1514, %v1629, %v1633
      %v1636 = vshrl.u32 %v1479, 16
      %v1638 = vrot.slane %v1636, 4
      %v1639 = vshll.u32 %v1479, 16
      %v1641 = vrot.slane %v1639, 5
      %v1642 = vor.u32 %v1638, %v1641
      %v1643 = vrot.slane %v1642, 4
      %v1645 = vshll.u32 %v1480, 16
      %v1647 = vrot.slane %v1645, 5
      %v1648 = vsel %vm1514, %v1643, %v1647
      %v1649 = vshrl.u32 %v1480, 16
      %v1651 = vrot.slane %v1649, 4
      %v1652 = vor.u32 %v1651, %v1647
      %v1653 = vrot.slane %v1652, 4
      %v1655 = vshll.u32 %v1481, 16
      %v1657 = vrot.slane %v1655, 5
      %v1658 = vsel %vm1514, %v1653, %v1657
      %v1660 = vshrl.u32 %v1482, 16
      %v1662 = vrot.slane %v1660, 4
      %v1663 = vshll.u32 %v1482, 16
      %v1665 = vrot.slane %v1663, 5
      %v1666 = vor.u32 %v1662, %v1665
      %v1667 = vrot.slane %v1666, 4
      %v1669 = vshll.u32 %v1483, 16
      %v1671 = vrot.slane %v1669, 5
      %v1672 = vsel %vm1514, %v1667, %v1671
      %v1673 = vshrl.u32 %v1483, 16
      %v1675 = vrot.slane %v1673, 4
      %v1676 = vor.u32 %v1675, %v1671
      %v1677 = vrot.slane %v1676, 4
      %v1679 = vshll.u32 %v1484, 16
      %v1681 = vrot.slane %v1679, 5
      %v1682 = vsel %vm1514, %v1677, %v1681
      %v1684 = vshrl.u32 %v1485, 16
      %v1686 = vrot.slane %v1684, 4
      %v1687 = vshll.u32 %v1485, 16
      %v1689 = vrot.slane %v1687, 5
      %v1690 = vor.u32 %v1686, %v1689
      %v1691 = vrot.slane %v1690, 4
      %v1693 = vshll.u32 %v1486, 16
      %v1695 = vrot.slane %v1693, 5
      %v1696 = vsel %vm1514, %v1691, %v1695
      %v1697 = vshrl.u32 %v1486, 16
      %v1699 = vrot.slane %v1697, 4
      %v1700 = vor.u32 %v1699, %v1695
      %v1701 = vrot.slane %v1700, 4
      %v1703 = vshll.u32 %v1487, 16
      %v1705 = vrot.slane %v1703, 5
      %v1706 = vsel %vm1514, %v1701, %v1705
      %v1708 = vshrl.u32 %v1488, 16
      %v1710 = vrot.slane %v1708, 4
      %v1711 = vshll.u32 %v1488, 16
      %v1713 = vrot.slane %v1711, 5
      %v1714 = vor.u32 %v1710, %v1713
      %v1715 = vrot.slane %v1714, 4
      %v1717 = vshll.u32 %v1489, 16
      %v1719 = vrot.slane %v1717, 5
      %v1720 = vsel %vm1514, %v1715, %v1719
      %v1721 = vshrl.u32 %v1489, 16
      %v1723 = vrot.slane %v1721, 4
      %v1724 = vor.u32 %v1723, %v1719
      %v1725 = vrot.slane %v1724, 4
      %v1727 = vshll.u32 %v1490, 16
      %v1729 = vrot.slane %v1727, 5
      %v1730 = vsel %vm1514, %v1725, %v1729
      %v1732 = vshrl.u32 %v1491, 16
      %v1734 = vrot.slane %v1732, 4
      %v1735 = vshll.u32 %v1491, 16
      %v1737 = vrot.slane %v1735, 5
      %v1738 = vor.u32 %v1734, %v1737
      %v1739 = vrot.slane %v1738, 4
      %v1741 = vshll.u32 %v1492, 16
      %v1743 = vrot.slane %v1741, 5
      %v1744 = vsel %vm1514, %v1739, %v1743
      %v1745 = vshrl.u32 %v1492, 16
      %v1747 = vrot.slane %v1745, 4
      %v1748 = vor.u32 %v1747, %v1743
      %v1749 = vrot.slane %v1748, 4
      %v1751 = vshll.u32 %v1493, 16
      %v1753 = vrot.slane %v1751, 5
      %v1754 = vsel %vm1514, %v1749, %v1753
      %v1756 = vshrl.u32 %v1494, 16
      %v1758 = vrot.slane %v1756, 4
      %v1759 = vshll.u32 %v1494, 16
      %v1761 = vrot.slane %v1759, 5
      %v1762 = vor.u32 %v1758, %v1761
      %v1763 = vrot.slane %v1762, 4
      %v1765 = vshll.u32 %v1495, 16
      %v1767 = vrot.slane %v1765, 5
      %v1768 = vsel %vm1514, %v1763, %v1767
      %v1769 = vshrl.u32 %v1495, 16
      %v1771 = vrot.slane %v1769, 4
      %v1772 = vor.u32 %v1771, %v1767
      %v1773 = vrot.slane %v1772, 4
      %v1775 = vshll.u32 %v1496, 16
      %v1777 = vrot.slane %v1775, 5
      %v1778 = vsel %vm1514, %v1773, %v1777
      %v1780 = vshrl.u32 %v1497, 16
      %v1782 = vrot.slane %v1780, 4
      %v1783 = vshll.u32 %v1497, 16
      %v1785 = vrot.slane %v1783, 5
      %v1786 = vor.u32 %v1782, %v1785
      %v1787 = vrot.slane %v1786, 4
      %v1789 = vshll.u32 %v1498, 16
      %v1791 = vrot.slane %v1789, 5
      %v1792 = vsel %vm1514, %v1787, %v1791
      %v1793 = vshrl.u32 %v1498, 16
      %v1795 = vrot.slane %v1793, 4
      %v1796 = vor.u32 %v1795, %v1791
      %v1797 = vrot.slane %v1796, 4
      %v1799 = vshll.u32 %v1499, 16
      %v1801 = vrot.slane %v1799, 5
      %v1802 = vsel %vm1514, %v1797, %v1801
      %v1804 = vshrl.u32 %v1500, 16
      %v1806 = vrot.slane %v1804, 4
      %v1807 = vshll.u32 %v1500, 16
      %v1809 = vrot.slane %v1807, 5
      %v1810 = vor.u32 %v1806, %v1809
      %v1811 = vrot.slane %v1810, 4
      %v1813 = vshll.u32 %v1501, 16
      %v1815 = vrot.slane %v1813, 5
      %v1816 = vsel %vm1514, %v1811, %v1815
      %v1817 = vshrl.u32 %v1501, 16
      %v1819 = vrot.slane %v1817, 4
      %v1820 = vor.u32 %v1819, %v1815
      %v1821 = vrot.slane %v1820, 4
      %v1823 = vshll.u32 %v1502, 16
      %v1825 = vrot.slane %v1823, 5
      %v1826 = vsel %vm1514, %v1821, %v1825
      %v1828 = vshrl.u32 %v1503, 16
      %v1830 = vrot.slane %v1828, 4
      %v1831 = vshll.u32 %v1503, 16
      %v1833 = vrot.slane %v1831, 5
      %v1834 = vor.u32 %v1830, %v1833
      %v1835 = vrot.slane %v1834, 4
      %v1837 = vshll.u32 %v1504, 16
      %v1839 = vrot.slane %v1837, 5
      %v1840 = vsel %vm1514, %v1835, %v1839
      %v1841 = vshrl.u32 %v1504, 16
      %v1843 = vrot.slane %v1841, 4
      %v1844 = vor.u32 %v1843, %v1839
      %v1845 = vrot.slane %v1844, 4
      %v1847 = vshll.u32 %v1505, 16
      %v1849 = vrot.slane %v1847, 5
      %v1850 = vsel %vm1514, %v1845, %v1849
      %v1852 = vshrl.u32 %v1506, 16
      %v1854 = vrot.slane %v1852, 4
      %v1855 = vshll.u32 %v1506, 16
      %v1857 = vrot.slane %v1855, 5
      %v1858 = vor.u32 %v1854, %v1857
      %v1859 = vrot.slane %v1858, 4
      %v1861 = vshll.u32 %v1507, 16
      %v1863 = vrot.slane %v1861, 5
      %v1864 = vsel %vm1514, %v1859, %v1863
      %v1865 = vshrl.u32 %v1507, 16
      %v1867 = vrot.slane %v1865, 4
      %v1868 = vor.u32 %v1867, %v1863
      %v1869 = vrot.slane %v1868, 4
      %v1871 = vshll.u32 %v1508, 16
      %v1873 = vrot.slane %v1871, 5
      %v1874 = vsel %vm1514, %v1869, %v1873
      %v1876 = vshrl.u32 %v1509, 16
      %v1878 = vrot.slane %v1876, 4
      %v1879 = vshll.u32 %v1509, 16
      %v1881 = vrot.slane %v1879, 5
      %v1882 = vor.u32 %v1878, %v1881
      %v1883 = vrot.slane %v1882, 4
      %v1885 = vshll.u32 %v1510, 16
      %v1887 = vrot.slane %v1885, 5
      %v1888 = vsel %vm1514, %v1883, %v1887
      %v1889 = vshrl.u32 %v1510, 16
      %v1891 = vrot.slane %v1889, 4
      %v1892 = vor.u32 %v1891, %v1887
      %v1893 = vrot.slane %v1892, 4
      %v1895 = vshll.u32 %v1511, 16
      %v1897 = vrot.slane %v1895, 5
      %v1898 = vsel %vm1514, %v1893, %v1897
      %v1899 = vunpack.c.l.b16 %v1528
      %v1900 = vunpack.c.l.b16 %v1538
      %v1901 = vunpack.c.l.b16 %v1552
      %v1902 = vunpack.c.l.b16 %v1562
      %v1903 = vunpack.c.l.b16 %v1576
      %v1904 = vunpack.c.l.b16 %v1586
      %v1905 = vunpack.c.l.b16 %v1600
      %v1906 = vunpack.c.l.b16 %v1610
      %v1907 = vunpack.c.l.b16 %v1624
      %v1908 = vunpack.c.l.b16 %v1634
      %v1909 = vunpack.c.l.b16 %v1648
      %v1910 = vunpack.c.l.b16 %v1658
      %v1911 = vunpack.c.l.b16 %v1672
      %v1912 = vunpack.c.l.b16 %v1682
      %v1913 = vunpack.c.l.b16 %v1696
      %v1914 = vunpack.c.l.b16 %v1706
      %v1915 = vunpack.c.l.b16 %v1720
      %v1916 = vunpack.c.l.b16 %v1730
      %v1917 = vunpack.c.l.b16 %v1744
      %v1918 = vunpack.c.l.b16 %v1754
      %v1919 = vunpack.c.l.b16 %v1768
      %v1920 = vunpack.c.l.b16 %v1778
      %v1921 = vunpack.c.l.b16 %v1792
      %v1922 = vunpack.c.l.b16 %v1802
      %v1923 = vunpack.c.l.b16 %v1816
      %v1924 = vunpack.c.l.b16 %v1826
      %v1925 = vunpack.c.l.b16 %v1840
      %v1926 = vunpack.c.l.b16 %v1850
      %v1927 = vunpack.c.l.b16 %v1864
      %v1928 = vunpack.c.l.b16 %v1874
      %v1929 = vunpack.c.l.b16 %v1888
      %v1930 = vunpack.c.l.b16 %v1898
      %v1931 = vpack.c.b16 %v1900, %v1899
      %v1932 = vpack.c.b16 %v1902, %v1901
      %v1933 = vpack.c.b16 %v1904, %v1903
      %v1934 = vpack.c.b16 %v1906, %v1905
      %v1935 = vpack.c.b16 %v1908, %v1907
      %v1936 = vpack.c.b16 %v1910, %v1909
      %v1937 = vpack.c.b16 %v1912, %v1911
      %v1938 = vpack.c.b16 %v1914, %v1913
      %v1939 = vpack.c.b16 %v1916, %v1915
      %v1940 = vpack.c.b16 %v1918, %v1917
      %v1941 = vpack.c.b16 %v1920, %v1919
      %v1942 = vpack.c.b16 %v1922, %v1921
      %v1943 = vpack.c.b16 %v1924, %v1923
      %v1944 = vpack.c.b16 %v1926, %v1925
      %v1945 = vpack.c.b16 %v1928, %v1927
      %v1946 = vpack.c.b16 %v1930, %v1929
      %1963 = vst [vmem:[#allocation3 + $0x8] sm:$0xff] %v1931
      %1964 = vst [vmem:[#allocation3 + $0x50] sm:$0xff] %v1932
      %1965 = vst [vmem:[#allocation3 + $0x98] sm:$0xff] %v1933
      %1966 = vst [vmem:[#allocation3 + $0xe0] sm:$0xff] %v1934
      %1967 = vst [vmem:[#allocation3 + $0x128] sm:$0xff] %v1935
      %1968 = vst [vmem:[#allocation3 + $0x170] sm:$0xff] %v1936
      %1969 = vst [vmem:[#allocation3 + $0x1b8] sm:$0xff] %v1937
      %1970 = vst [vmem:[#allocation3 + $0x200] sm:$0xff] %v1938
      %1971 = vst [vmem:[#allocation3 + $0x248] sm:$0xff] %v1939
      %1972 = vst [vmem:[#allocation3 + $0x290] sm:$0xff] %v1940
      %1973 = vst [vmem:[#allocation3 + $0x2d8] sm:$0xff] %v1941
      %1974 = vst [vmem:[#allocation3 + $0x320] sm:$0xff] %v1942
      %1975 = vst [vmem:[#allocation3 + $0x368] sm:$0xff] %v1943
      %1976 = vst [vmem:[#allocation3 + $0x3b0] sm:$0xff] %v1944
      %1977 = vst [vmem:[#allocation3 + $0x3f8] sm:$0xff] %v1945
      %1978 = vst [vmem:[#allocation3 + $0x440] sm:$0xff] %v1946
      %v1979 = vld [vmem:[#allocation2] sm:$0xe]
      %v1980 = vld [vmem:[#allocation2 + $0x4] sm:$0xf]
      %v1981 = vld [vmem:[#allocation2 + $0x8] sm:$0x1]
      %v1982 = vld [vmem:[#allocation2 + $0xc] sm:$0xe]
      %v1983 = vld [vmem:[#allocation2 + $0x10] sm:$0xf]
      %v1984 = vld [vmem:[#allocation2 + $0x14] sm:$0x1]
      %v1985 = vld [vmem:[#allocation2 + $0x18] sm:$0xe]
      %v1986 = vld [vmem:[#allocation2 + $0x1c] sm:$0xf]
      %v1987 = vld [vmem:[#allocation2 + $0x20] sm:$0x1]
      %v1988 = vld [vmem:[#allocation2 + $0x24] sm:$0xe]
      %v1989 = vld [vmem:[#allocation2 + $0x28] sm:$0xf]
      %v1990 = vld [vmem:[#allocation2 + $0x2c] sm:$0x1]
      %v1991 = vld [vmem:[#allocation2 + $0x30] sm:$0xe]
      %v1992 = vld [vmem:[#allocation2 + $0x34] sm:$0xf]
      %v1993 = vld [vmem:[#allocation2 + $0x38] sm:$0x1]
      %v1994 = vld [vmem:[#allocation2 + $0x3c] sm:$0xe]
      %v1995 = vld [vmem:[#allocation2 + $0x40] sm:$0xf]
      %v1996 = vld [vmem:[#allocation2 + $0x44] sm:$0x1]
      %v1997 = vld [vmem:[#allocation2 + $0x48] sm:$0xe]
      %v1998 = vld [vmem:[#allocation2 + $0x4c] sm:$0xf]
      %v1999 = vld [vmem:[#allocation2 + $0x50] sm:$0x1]
      %v2000 = vld [vmem:[#allocation2 + $0x54] sm:$0xe]
      %v2001 = vld [vmem:[#allocation2 + $0x58] sm:$0xf]
      %v2002 = vld [vmem:[#allocation2 + $0x5c] sm:$0x1]
      %v2003 = vld [vmem:[#allocation2 + $0x60] sm:$0xe]
      %v2004 = vld [vmem:[#allocation2 + $0x64] sm:$0xf]
      %v2005 = vld [vmem:[#allocation2 + $0x68] sm:$0x1]
      %v2006 = vld [vmem:[#allocation2 + $0x6c] sm:$0xe]
      %v2007 = vld [vmem:[#allocation2 + $0x70] sm:$0xf]
      %v2008 = vld [vmem:[#allocation2 + $0x74] sm:$0x1]
      %v2009 = vld [vmem:[#allocation2 + $0x78] sm:$0xe]
      %v2010 = vld [vmem:[#allocation2 + $0x7c] sm:$0xf]
      %v2011 = vld [vmem:[#allocation2 + $0x80] sm:$0x1]
      %v2012 = vld [vmem:[#allocation2 + $0x84] sm:$0xe]
      %v2013 = vld [vmem:[#allocation2 + $0x88] sm:$0xf]
      %v2014 = vld [vmem:[#allocation2 + $0x8c] sm:$0x1]
      %v2015 = vld [vmem:[#allocation2 + $0x90] sm:$0xe]
      %v2016 = vld [vmem:[#allocation2 + $0x94] sm:$0xf]
      %v2017 = vld [vmem:[#allocation2 + $0x98] sm:$0x1]
      %v2018 = vld [vmem:[#allocation2 + $0x9c] sm:$0xe]
      %v2019 = vld [vmem:[#allocation2 + $0xa0] sm:$0xf]
      %v2020 = vld [vmem:[#allocation2 + $0xa4] sm:$0x1]
      %v2021 = vld [vmem:[#allocation2 + $0xa8] sm:$0xe]
      %v2022 = vld [vmem:[#allocation2 + $0xac] sm:$0xf]
      %v2023 = vld [vmem:[#allocation2 + $0xb0] sm:$0x1]
      %v2024 = vld [vmem:[#allocation2 + $0xb4] sm:$0xe]
      %v2025 = vld [vmem:[#allocation2 + $0xb8] sm:$0xf]
      %v2026 = vld [vmem:[#allocation2 + $0xbc] sm:$0x1]
      %vm2075 = vcmask 1042432
      %vm2076 = vcmask 1046532
      %vm2077 = vmor %vm2075, %vm2076
      %v2078 = vrot.slane %v1979, 5
      %v2079 = vrot.slane %v2078, 4
      %v2080 = vrot.slane %v1980, 5
      %v2081 = vsel %vm2077, %v2079, %v2080
      %v2082 = vrot.slane %v2080, 4
      %v2083 = vrot.slane %v1981, 5
      %v2084 = vsel %vm2077, %v2082, %v2083
      %v2085 = vrot.slane %v1982, 5
      %v2086 = vrot.slane %v2085, 4
      %v2087 = vrot.slane %v1983, 5
      %v2088 = vsel %vm2077, %v2086, %v2087
      %v2089 = vrot.slane %v2087, 4
      %v2090 = vrot.slane %v1984, 5
      %v2091 = vsel %vm2077, %v2089, %v2090
      %v2092 = vrot.slane %v1985, 5
      %v2093 = vrot.slane %v2092, 4
      %v2094 = vrot.slane %v1986, 5
      %v2095 = vsel %vm2077, %v2093, %v2094
      %v2096 = vrot.slane %v2094, 4
      %v2097 = vrot.slane %v1987, 5
      %v2098 = vsel %vm2077, %v2096, %v2097
      %v2099 = vrot.slane %v1988, 5
      %v2100 = vrot.slane %v2099, 4
      %v2101 = vrot.slane %v1989, 5
      %v2102 = vsel %vm2077, %v2100, %v2101
      %v2103 = vrot.slane %v2101, 4
      %v2104 = vrot.slane %v1990, 5
      %v2105 = vsel %vm2077, %v2103, %v2104
      %v2106 = vrot.slane %v1991, 5
      %v2107 = vrot.slane %v2106, 4
      %v2108 = vrot.slane %v1992, 5
      %v2109 = vsel %vm2077, %v2107, %v2108
      %v2110 = vrot.slane %v2108, 4
      %v2111 = vrot.slane %v1993, 5
      %v2112 = vsel %vm2077, %v2110, %v2111
      %v2113 = vrot.slane %v1994, 5
      %v2114 = vrot.slane %v2113, 4
      %v2115 = vrot.slane %v1995, 5
      %v2116 = vsel %vm2077, %v2114, %v2115
      %v2117 = vrot.slane %v2115, 4
      %v2118 = vrot.slane %v1996, 5
      %v2119 = vsel %vm2077, %v2117, %v2118
      %v2120 = vrot.slane %v1997, 5
      %v2121 = vrot.slane %v2120, 4
      %v2122 = vrot.slane %v1998, 5
      %v2123 = vsel %vm2077, %v2121, %v2122
      %v2124 = vrot.slane %v2122, 4
      %v2125 = vrot.slane %v1999, 5
      %v2126 = vsel %vm2077, %v2124, %v2125
      %v2127 = vrot.slane %v2000, 5
      %v2128 = vrot.slane %v2127, 4
      %v2129 = vrot.slane %v2001, 5
      %v2130 = vsel %vm2077, %v2128, %v2129
      %v2131 = vrot.slane %v2129, 4
      %v2132 = vrot.slane %v2002, 5
      %v2133 = vsel %vm2077, %v2131, %v2132
      %v2134 = vrot.slane %v2003, 5
      %v2135 = vrot.slane %v2134, 4
      %v2136 = vrot.slane %v2004, 5
      %v2137 = vsel %vm2077, %v2135, %v2136
      %v2138 = vrot.slane %v2136, 4
      %v2139 = vrot.slane %v2005, 5
      %v2140 = vsel %vm2077, %v2138, %v2139
      %v2141 = vrot.slane %v2006, 5
      %v2142 = vrot.slane %v2141, 4
      %v2143 = vrot.slane %v2007, 5
      %v2144 = vsel %vm2077, %v2142, %v2143
      %v2145 = vrot.slane %v2143, 4
      %v2146 = vrot.slane %v2008, 5
      %v2147 = vsel %vm2077, %v2145, %v2146
      %v2148 = vrot.slane %v2009, 5
      %v2149 = vrot.slane %v2148, 4
      %v2150 = vrot.slane %v2010, 5
      %v2151 = vsel %vm2077, %v2149, %v2150
      %v2152 = vrot.slane %v2150, 4
      %v2153 = vrot.slane %v2011, 5
      %v2154 = vsel %vm2077, %v2152, %v2153
      %v2155 = vrot.slane %v2012, 5
      %v2156 = vrot.slane %v2155, 4
      %v2157 = vrot.slane %v2013, 5
      %v2158 = vsel %vm2077, %v2156, %v2157
      %v2159 = vrot.slane %v2157, 4
      %v2160 = vrot.slane %v2014, 5
      %v2161 = vsel %vm2077, %v2159, %v2160
      %v2162 = vrot.slane %v2015, 5
      %v2163 = vrot.slane %v2162, 4
      %v2164 = vrot.slane %v2016, 5
      %v2165 = vsel %vm2077, %v2163, %v2164
      %v2166 = vrot.slane %v2164, 4
      %v2167 = vrot.slane %v2017, 5
      %v2168 = vsel %vm2077, %v2166, %v2167
      %v2169 = vrot.slane %v2018, 5
      %v2170 = vrot.slane %v2169, 4
      %v2171 = vrot.slane %v2019, 5
      %v2172 = vsel %vm2077, %v2170, %v2171
      %v2173 = vrot.slane %v2171, 4
      %v2174 = vrot.slane %v2020, 5
      %v2175 = vsel %vm2077, %v2173, %v2174
      %v2176 = vrot.slane %v2021, 5
      %v2177 = vrot.slane %v2176, 4
      %v2178 = vrot.slane %v2022, 5
      %v2179 = vsel %vm2077, %v2177, %v2178
      %v2180 = vrot.slane %v2178, 4
      %v2181 = vrot.slane %v2023, 5
      %v2182 = vsel %vm2077, %v2180, %v2181
      %v2183 = vrot.slane %v2024, 5
      %v2184 = vrot.slane %v2183, 4
      %v2185 = vrot.slane %v2025, 5
      %v2186 = vsel %vm2077, %v2184, %v2185
      %v2187 = vrot.slane %v2185, 4
      %v2188 = vrot.slane %v2026, 5
      %v2189 = vsel %vm2077, %v2187, %v2188
      %v2190 = vunpack.c.l.b16 %v2081
      %v2191 = vunpack.c.l.b16 %v2084
      %v2192 = vunpack.c.l.b16 %v2088
      %v2193 = vunpack.c.l.b16 %v2091
      %v2194 = vunpack.c.l.b16 %v2095
      %v2195 = vunpack.c.l.b16 %v2098
      %v2196 = vunpack.c.l.b16 %v2102
      %v2197 = vunpack.c.l.b16 %v2105
      %v2198 = vunpack.c.l.b16 %v2109
      %v2199 = vunpack.c.l.b16 %v2112
      %v2200 = vunpack.c.l.b16 %v2116
      %v2201 = vunpack.c.l.b16 %v2119
      %v2202 = vunpack.c.l.b16 %v2123
      %v2203 = vunpack.c.l.b16 %v2126
      %v2204 = vunpack.c.l.b16 %v2130
      %v2205 = vunpack.c.l.b16 %v2133
      %v2206 = vunpack.c.l.b16 %v2137
      %v2207 = vunpack.c.l.b16 %v2140
      %v2208 = vunpack.c.l.b16 %v2144
      %v2209 = vunpack.c.l.b16 %v2147
      %v2210 = vunpack.c.l.b16 %v2151
      %v2211 = vunpack.c.l.b16 %v2154
      %v2212 = vunpack.c.l.b16 %v2158
      %v2213 = vunpack.c.l.b16 %v2161
      %v2214 = vunpack.c.l.b16 %v2165
      %v2215 = vunpack.c.l.b16 %v2168
      %v2216 = vunpack.c.l.b16 %v2172
      %v2217 = vunpack.c.l.b16 %v2175
      %v2218 = vunpack.c.l.b16 %v2179
      %v2219 = vunpack.c.l.b16 %v2182
      %v2220 = vunpack.c.l.b16 %v2186
      %v2221 = vunpack.c.l.b16 %v2189
      %v2222 = vpack.c.b16 %v2191, %v2190
      %v2223 = vpack.c.b16 %v2193, %v2192
      %v2224 = vpack.c.b16 %v2195, %v2194
      %v2225 = vpack.c.b16 %v2197, %v2196
      %v2226 = vpack.c.b16 %v2199, %v2198
      %v2227 = vpack.c.b16 %v2201, %v2200
      %v2228 = vpack.c.b16 %v2203, %v2202
      %v2229 = vpack.c.b16 %v2205, %v2204
      %v2230 = vpack.c.b16 %v2207, %v2206
      %v2231 = vpack.c.b16 %v2209, %v2208
      %v2232 = vpack.c.b16 %v2211, %v2210
      %v2233 = vpack.c.b16 %v2213, %v2212
      %v2234 = vpack.c.b16 %v2215, %v2214
      %v2235 = vpack.c.b16 %v2217, %v2216
      %v2236 = vpack.c.b16 %v2219, %v2218
      %v2237 = vpack.c.b16 %v2221, %v2220
      %2254 = vst [vmem:[#allocation3 + $0x10] sm:$0xff] %v2222
      %2255 = vst [vmem:[#allocation3 + $0x58] sm:$0xff] %v2223
      %2256 = vst [vmem:[#allocation3 + $0xa0] sm:$0xff] %v2224
      %2257 = vst [vmem:[#allocation3 + $0xe8] sm:$0xff] %v2225
      %2258 = vst [vmem:[#allocation3 + $0x130] sm:$0xff] %v2226
      %2259 = vst [vmem:[#allocation3 + $0x178] sm:$0xff] %v2227
      %2260 = vst [vmem:[#allocation3 + $0x1c0] sm:$0xff] %v2228
      %2261 = vst [vmem:[#allocation3 + $0x208] sm:$0xff] %v2229
      %2262 = vst [vmem:[#allocation3 + $0x250] sm:$0xff] %v2230
      %2263 = vst [vmem:[#allocation3 + $0x298] sm:$0xff] %v2231
      %2264 = vst [vmem:[#allocation3 + $0x2e0] sm:$0xff] %v2232
      %2265 = vst [vmem:[#allocation3 + $0x328] sm:$0xff] %v2233
      %2266 = vst [vmem:[#allocation3 + $0x370] sm:$0xff] %v2234
      %2267 = vst [vmem:[#allocation3 + $0x3b8] sm:$0xff] %v2235
      %2268 = vst [vmem:[#allocation3 + $0x400] sm:$0xff] %v2236
      %2269 = vst [vmem:[#allocation3 + $0x448] sm:$0xff] %v2237
      %v2270 = vld [vmem:[%s1205] sm:$0xf]
      %v2271 = vld [vmem:[%s1205 + $0x4] sm:$0xf]
      %v2272 = vld [vmem:[%s1205 + $0xc] sm:$0xf]
      %v2273 = vld [vmem:[%s1205 + $0x10] sm:$0xf]
      %v2274 = vld [vmem:[%s1205 + $0x18] sm:$0xf]
      %v2275 = vld [vmem:[%s1205 + $0x1c] sm:$0xf]
      %v2276 = vld [vmem:[%s1205 + $0x24] sm:$0xf]
      %v2277 = vld [vmem:[%s1205 + $0x28] sm:$0xf]
      %v2278 = vld [vmem:[%s1205 + $0x30] sm:$0xf]
      %v2279 = vld [vmem:[%s1205 + $0x34] sm:$0xf]
      %v2280 = vld [vmem:[%s1205 + $0x3c] sm:$0xf]
      %v2281 = vld [vmem:[%s1205 + $0x40] sm:$0xf]
      %v2282 = vld [vmem:[%s1205 + $0x48] sm:$0xf]
      %v2283 = vld [vmem:[%s1205 + $0x4c] sm:$0xf]
      %v2284 = vld [vmem:[%s1205 + $0x54] sm:$0xf]
      %v2285 = vld [vmem:[%s1205 + $0x58] sm:$0xf]
      %v2286 = vld [vmem:[%s1205 + $0x60] sm:$0xf]
      %v2287 = vld [vmem:[%s1205 + $0x64] sm:$0xf]
      %v2288 = vld [vmem:[%s1205 + $0x6c] sm:$0xf]
      %v2289 = vld [vmem:[%s1205 + $0x70] sm:$0xf]
      %v2290 = vld [vmem:[%s1205 + $0x78] sm:$0xf]
      %v2291 = vld [vmem:[%s1205 + $0x7c] sm:$0xf]
      %v2292 = vld [vmem:[%s1205 + $0x84] sm:$0xf]
      %v2293 = vld [vmem:[%s1205 + $0x88] sm:$0xf]
      %v2294 = vld [vmem:[%s1205 + $0x90] sm:$0xf]
      %v2295 = vld [vmem:[%s1205 + $0x94] sm:$0xf]
      %v2296 = vld [vmem:[%s1205 + $0x9c] sm:$0xf]
      %v2297 = vld [vmem:[%s1205 + $0xa0] sm:$0xf]
      %v2298 = vld [vmem:[%s1205 + $0xa8] sm:$0xf]
      %v2299 = vld [vmem:[%s1205 + $0xac] sm:$0xf]
      %v2300 = vld [vmem:[%s1205 + $0xb4] sm:$0xf]
      %v2301 = vld [vmem:[%s1205 + $0xb8] sm:$0xf]
      %v2334 = vunpack.c.l.b16 %v2270
      %v2335 = vunpack.c.l.b16 %v2271
      %v2336 = vunpack.c.l.b16 %v2272
      %v2337 = vunpack.c.l.b16 %v2273
      %v2338 = vunpack.c.l.b16 %v2274
      %v2339 = vunpack.c.l.b16 %v2275
      %v2340 = vunpack.c.l.b16 %v2276
      %v2341 = vunpack.c.l.b16 %v2277
      %v2342 = vunpack.c.l.b16 %v2278
      %v2343 = vunpack.c.l.b16 %v2279
      %v2344 = vunpack.c.l.b16 %v2280
      %v2345 = vunpack.c.l.b16 %v2281
      %v2346 = vunpack.c.l.b16 %v2282
      %v2347 = vunpack.c.l.b16 %v2283
      %v2348 = vunpack.c.l.b16 %v2284
      %v2349 = vunpack.c.l.b16 %v2285
      %v2350 = vunpack.c.l.b16 %v2286
      %v2351 = vunpack.c.l.b16 %v2287
      %v2352 = vunpack.c.l.b16 %v2288
      %v2353 = vunpack.c.l.b16 %v2289
      %v2354 = vunpack.c.l.b16 %v2290
      %v2355 = vunpack.c.l.b16 %v2291
      %v2356 = vunpack.c.l.b16 %v2292
      %v2357 = vunpack.c.l.b16 %v2293
      %v2358 = vunpack.c.l.b16 %v2294
      %v2359 = vunpack.c.l.b16 %v2295
      %v2360 = vunpack.c.l.b16 %v2296
      %v2361 = vunpack.c.l.b16 %v2297
      %v2362 = vunpack.c.l.b16 %v2298
      %v2363 = vunpack.c.l.b16 %v2299
      %v2364 = vunpack.c.l.b16 %v2300
      %v2365 = vunpack.c.l.b16 %v2301
      %v2366 = vpack.c.b16 %v2335, %v2334
      %v2367 = vpack.c.b16 %v2337, %v2336
      %v2368 = vpack.c.b16 %v2339, %v2338
      %v2369 = vpack.c.b16 %v2341, %v2340
      %v2370 = vpack.c.b16 %v2343, %v2342
      %v2371 = vpack.c.b16 %v2345, %v2344
      %v2372 = vpack.c.b16 %v2347, %v2346
      %v2373 = vpack.c.b16 %v2349, %v2348
      %v2374 = vpack.c.b16 %v2351, %v2350
      %v2375 = vpack.c.b16 %v2353, %v2352
      %v2376 = vpack.c.b16 %v2355, %v2354
      %v2377 = vpack.c.b16 %v2357, %v2356
      %v2378 = vpack.c.b16 %v2359, %v2358
      %v2379 = vpack.c.b16 %v2361, %v2360
      %v2380 = vpack.c.b16 %v2363, %v2362
      %v2381 = vpack.c.b16 %v2365, %v2364
      %2398 = vst [vmem:[#allocation3 + $0x18] sm:$0xff] %v2366
      %2399 = vst [vmem:[#allocation3 + $0x60] sm:$0xff] %v2367
      %2400 = vst [vmem:[#allocation3 + $0xa8] sm:$0xff] %v2368
      %2401 = vst [vmem:[#allocation3 + $0xf0] sm:$0xff] %v2369
      %2402 = vst [vmem:[#allocation3 + $0x138] sm:$0xff] %v2370
      %2403 = vst [vmem:[#allocation3 + $0x180] sm:$0xff] %v2371
      %2404 = vst [vmem:[#allocation3 + $0x1c8] sm:$0xff] %v2372
      %2405 = vst [vmem:[#allocation3 + $0x210] sm:$0xff] %v2373
      %2406 = vst [vmem:[#allocation3 + $0x258] sm:$0xff] %v2374
      %2407 = vst [vmem:[#allocation3 + $0x2a0] sm:$0xff] %v2375
      %2408 = vst [vmem:[#allocation3 + $0x2e8] sm:$0xff] %v2376
      %2409 = vst [vmem:[#allocation3 + $0x330] sm:$0xff] %v2377
      %2410 = vst [vmem:[#allocation3 + $0x378] sm:$0xff] %v2378
      %2411 = vst [vmem:[#allocation3 + $0x3c0] sm:$0xff] %v2379
      %2412 = vst [vmem:[#allocation3 + $0x408] sm:$0xff] %v2380
      %2413 = vst [vmem:[#allocation3 + $0x450] sm:$0xff] %v2381
      %v2414 = vld [vmem:[%s1205] sm:$0xf]
      %v2415 = vld [vmem:[%s1205 + $0x4] sm:$0xf]
      %v2416 = vld [vmem:[%s1205 + $0x8] sm:$0x1]
      %v2417 = vld [vmem:[%s1205 + $0xc] sm:$0xf]
      %v2418 = vld [vmem:[%s1205 + $0x10] sm:$0xf]
      %v2419 = vld [vmem:[%s1205 + $0x14] sm:$0x1]
      %v2420 = vld [vmem:[%s1205 + $0x18] sm:$0xf]
      %v2421 = vld [vmem:[%s1205 + $0x1c] sm:$0xf]
      %v2422 = vld [vmem:[%s1205 + $0x20] sm:$0x1]
      %v2423 = vld [vmem:[%s1205 + $0x24] sm:$0xf]
      %v2424 = vld [vmem:[%s1205 + $0x28] sm:$0xf]
      %v2425 = vld [vmem:[%s1205 + $0x2c] sm:$0x1]
      %v2426 = vld [vmem:[%s1205 + $0x30] sm:$0xf]
      %v2427 = vld [vmem:[%s1205 + $0x34] sm:$0xf]
      %v2428 = vld [vmem:[%s1205 + $0x38] sm:$0x1]
      %v2429 = vld [vmem:[%s1205 + $0x3c] sm:$0xf]
      %v2430 = vld [vmem:[%s1205 + $0x40] sm:$0xf]
      %v2431 = vld [vmem:[%s1205 + $0x44] sm:$0x1]
      %v2432 = vld [vmem:[%s1205 + $0x48] sm:$0xf]
      %v2433 = vld [vmem:[%s1205 + $0x4c] sm:$0xf]
      %v2434 = vld [vmem:[%s1205 + $0x50] sm:$0x1]
      %v2435 = vld [vmem:[%s1205 + $0x54] sm:$0xf]
      %v2436 = vld [vmem:[%s1205 + $0x58] sm:$0xf]
      %v2437 = vld [vmem:[%s1205 + $0x5c] sm:$0x1]
      %v2438 = vld [vmem:[%s1205 + $0x60] sm:$0xf]
      %v2439 = vld [vmem:[%s1205 + $0x64] sm:$0xf]
      %v2440 = vld [vmem:[%s1205 + $0x68] sm:$0x1]
      %v2441 = vld [vmem:[%s1205 + $0x6c] sm:$0xf]
      %v2442 = vld [vmem:[%s1205 + $0x70] sm:$0xf]
      %v2443 = vld [vmem:[%s1205 + $0x74] sm:$0x1]
      %v2444 = vld [vmem:[%s1205 + $0x78] sm:$0xf]
      %v2445 = vld [vmem:[%s1205 + $0x7c] sm:$0xf]
      %v2446 = vld [vmem:[%s1205 + $0x80] sm:$0x1]
      %v2447 = vld [vmem:[%s1205 + $0x84] sm:$0xf]
      %v2448 = vld [vmem:[%s1205 + $0x88] sm:$0xf]
      %v2449 = vld [vmem:[%s1205 + $0x8c] sm:$0x1]
      %v2450 = vld [vmem:[%s1205 + $0x90] sm:$0xf]
      %v2451 = vld [vmem:[%s1205 + $0x94] sm:$0xf]
      %v2452 = vld [vmem:[%s1205 + $0x98] sm:$0x1]
      %v2453 = vld [vmem:[%s1205 + $0x9c] sm:$0xf]
      %v2454 = vld [vmem:[%s1205 + $0xa0] sm:$0xf]
      %v2455 = vld [vmem:[%s1205 + $0xa4] sm:$0x1]
      %v2456 = vld [vmem:[%s1205 + $0xa8] sm:$0xf]
      %v2457 = vld [vmem:[%s1205 + $0xac] sm:$0xf]
      %v2458 = vld [vmem:[%s1205 + $0xb0] sm:$0x1]
      %v2459 = vld [vmem:[%s1205 + $0xb4] sm:$0xf]
      %v2460 = vld [vmem:[%s1205 + $0xb8] sm:$0xf]
      %v2461 = vld [vmem:[%s1205 + $0xbc] sm:$0x1]
      %v2463 = vshrl.u32 %v2414, 16
      %v2465 = vrot.slane %v2463, 4
      %v2466 = vshll.u32 %v2414, 16
      %v2468 = vrot.slane %v2466, 5
      %v2469 = vor.u32 %v2465, %v2468
      %v2470 = vrot.slane %v2469, 4
      %v2472 = vshll.u32 %v2415, 16
      %v2474 = vrot.slane %v2472, 5
      %v2475 = vsel %vm1514, %v2470, %v2474
      %v2476 = vshrl.u32 %v2415, 16
      %v2478 = vrot.slane %v2476, 4
      %v2479 = vor.u32 %v2478, %v2474
      %v2480 = vrot.slane %v2479, 4
      %v2482 = vshll.u32 %v2416, 16
      %v2484 = vrot.slane %v2482, 5
      %v2485 = vsel %vm1514, %v2480, %v2484
      %v2487 = vshrl.u32 %v2417, 16
      %v2489 = vrot.slane %v2487, 4
      %v2490 = vshll.u32 %v2417, 16
      %v2492 = vrot.slane %v2490, 5
      %v2493 = vor.u32 %v2489, %v2492
      %v2494 = vrot.slane %v2493, 4
      %v2496 = vshll.u32 %v2418, 16
      %v2498 = vrot.slane %v2496, 5
      %v2499 = vsel %vm1514, %v2494, %v2498
      %v2500 = vshrl.u32 %v2418, 16
      %v2502 = vrot.slane %v2500, 4
      %v2503 = vor.u32 %v2502, %v2498
      %v2504 = vrot.slane %v2503, 4
      %v2506 = vshll.u32 %v2419, 16
      %v2508 = vrot.slane %v2506, 5
      %v2509 = vsel %vm1514, %v2504, %v2508
      %v2511 = vshrl.u32 %v2420, 16
      %v2513 = vrot.slane %v2511, 4
      %v2514 = vshll.u32 %v2420, 16
      %v2516 = vrot.slane %v2514, 5
      %v2517 = vor.u32 %v2513, %v2516
      %v2518 = vrot.slane %v2517, 4
      %v2520 = vshll.u32 %v2421, 16
      %v2522 = vrot.slane %v2520, 5
      %v2523 = vsel %vm1514, %v2518, %v2522
      %v2524 = vshrl.u32 %v2421, 16
      %v2526 = vrot.slane %v2524, 4
      %v2527 = vor.u32 %v2526, %v2522
      %v2528 = vrot.slane %v2527, 4
      %v2530 = vshll.u32 %v2422, 16
      %v2532 = vrot.slane %v2530, 5
      %v2533 = vsel %vm1514, %v2528, %v2532
      %v2535 = vshrl.u32 %v2423, 16
      %v2537 = vrot.slane %v2535, 4
      %v2538 = vshll.u32 %v2423, 16
      %v2540 = vrot.slane %v2538, 5
      %v2541 = vor.u32 %v2537, %v2540
      %v2542 = vrot.slane %v2541, 4
      %v2544 = vshll.u32 %v2424, 16
      %v2546 = vrot.slane %v2544, 5
      %v2547 = vsel %vm1514, %v2542, %v2546
      %v2548 = vshrl.u32 %v2424, 16
      %v2550 = vrot.slane %v2548, 4
      %v2551 = vor.u32 %v2550, %v2546
      %v2552 = vrot.slane %v2551, 4
      %v2554 = vshll.u32 %v2425, 16
      %v2556 = vrot.slane %v2554, 5
      %v2557 = vsel %vm1514, %v2552, %v2556
      %v2559 = vshrl.u32 %v2426, 16
      %v2561 = vrot.slane %v2559, 4
      %v2562 = vshll.u32 %v2426, 16
      %v2564 = vrot.slane %v2562, 5
      %v2565 = vor.u32 %v2561, %v2564
      %v2566 = vrot.slane %v2565, 4
      %v2568 = vshll.u32 %v2427, 16
      %v2570 = vrot.slane %v2568, 5
      %v2571 = vsel %vm1514, %v2566, %v2570
      %v2572 = vshrl.u32 %v2427, 16
      %v2574 = vrot.slane %v2572, 4
      %v2575 = vor.u32 %v2574, %v2570
      %v2576 = vrot.slane %v2575, 4
      %v2578 = vshll.u32 %v2428, 16
      %v2580 = vrot.slane %v2578, 5
      %v2581 = vsel %vm1514, %v2576, %v2580
      %v2583 = vshrl.u32 %v2429, 16
      %v2585 = vrot.slane %v2583, 4
      %v2586 = vshll.u32 %v2429, 16
      %v2588 = vrot.slane %v2586, 5
      %v2589 = vor.u32 %v2585, %v2588
      %v2590 = vrot.slane %v2589, 4
      %v2592 = vshll.u32 %v2430, 16
      %v2594 = vrot.slane %v2592, 5
      %v2595 = vsel %vm1514, %v2590, %v2594
      %v2596 = vshrl.u32 %v2430, 16
      %v2598 = vrot.slane %v2596, 4
      %v2599 = vor.u32 %v2598, %v2594
      %v2600 = vrot.slane %v2599, 4
      %v2602 = vshll.u32 %v2431, 16
      %v2604 = vrot.slane %v2602, 5
      %v2605 = vsel %vm1514, %v2600, %v2604
      %v2607 = vshrl.u32 %v2432, 16
      %v2609 = vrot.slane %v2607, 4
      %v2610 = vshll.u32 %v2432, 16
      %v2612 = vrot.slane %v2610, 5
      %v2613 = vor.u32 %v2609, %v2612
      %v2614 = vrot.slane %v2613, 4
      %v2616 = vshll.u32 %v2433, 16
      %v2618 = vrot.slane %v2616, 5
      %v2619 = vsel %vm1514, %v2614, %v2618
      %v2620 = vshrl.u32 %v2433, 16
      %v2622 = vrot.slane %v2620, 4
      %v2623 = vor.u32 %v2622, %v2618
      %v2624 = vrot.slane %v2623, 4
      %v2626 = vshll.u32 %v2434, 16
      %v2628 = vrot.slane %v2626, 5
      %v2629 = vsel %vm1514, %v2624, %v2628
      %v2631 = vshrl.u32 %v2435, 16
      %v2633 = vrot.slane %v2631, 4
      %v2634 = vshll.u32 %v2435, 16
      %v2636 = vrot.slane %v2634, 5
      %v2637 = vor.u32 %v2633, %v2636
      %v2638 = vrot.slane %v2637, 4
      %v2640 = vshll.u32 %v2436, 16
      %v2642 = vrot.slane %v2640, 5
      %v2643 = vsel %vm1514, %v2638, %v2642
      %v2644 = vshrl.u32 %v2436, 16
      %v2646 = vrot.slane %v2644, 4
      %v2647 = vor.u32 %v2646, %v2642
      %v2648 = vrot.slane %v2647, 4
      %v2650 = vshll.u32 %v2437, 16
      %v2652 = vrot.slane %v2650, 5
      %v2653 = vsel %vm1514, %v2648, %v2652
      %v2655 = vshrl.u32 %v2438, 16
      %v2657 = vrot.slane %v2655, 4
      %v2658 = vshll.u32 %v2438, 16
      %v2660 = vrot.slane %v2658, 5
      %v2661 = vor.u32 %v2657, %v2660
      %v2662 = vrot.slane %v2661, 4
      %v2664 = vshll.u32 %v2439, 16
      %v2666 = vrot.slane %v2664, 5
      %v2667 = vsel %vm1514, %v2662, %v2666
      %v2668 = vshrl.u32 %v2439, 16
      %v2670 = vrot.slane %v2668, 4
      %v2671 = vor.u32 %v2670, %v2666
      %v2672 = vrot.slane %v2671, 4
      %v2674 = vshll.u32 %v2440, 16
      %v2676 = vrot.slane %v2674, 5
      %v2677 = vsel %vm1514, %v2672, %v2676
      %v2679 = vshrl.u32 %v2441, 16
      %v2681 = vrot.slane %v2679, 4
      %v2682 = vshll.u32 %v2441, 16
      %v2684 = vrot.slane %v2682, 5
      %v2685 = vor.u32 %v2681, %v2684
      %v2686 = vrot.slane %v2685, 4
      %v2688 = vshll.u32 %v2442, 16
      %v2690 = vrot.slane %v2688, 5
      %v2691 = vsel %vm1514, %v2686, %v2690
      %v2692 = vshrl.u32 %v2442, 16
      %v2694 = vrot.slane %v2692, 4
      %v2695 = vor.u32 %v2694, %v2690
      %v2696 = vrot.slane %v2695, 4
      %v2698 = vshll.u32 %v2443, 16
      %v2700 = vrot.slane %v2698, 5
      %v2701 = vsel %vm1514, %v2696, %v2700
      %v2703 = vshrl.u32 %v2444, 16
      %v2705 = vrot.slane %v2703, 4
      %v2706 = vshll.u32 %v2444, 16
      %v2708 = vrot.slane %v2706, 5
      %v2709 = vor.u32 %v2705, %v2708
      %v2710 = vrot.slane %v2709, 4
      %v2712 = vshll.u32 %v2445, 16
      %v2714 = vrot.slane %v2712, 5
      %v2715 = vsel %vm1514, %v2710, %v2714
      %v2716 = vshrl.u32 %v2445, 16
      %v2718 = vrot.slane %v2716, 4
      %v2719 = vor.u32 %v2718, %v2714
      %v2720 = vrot.slane %v2719, 4
      %v2722 = vshll.u32 %v2446, 16
      %v2724 = vrot.slane %v2722, 5
      %v2725 = vsel %vm1514, %v2720, %v2724
      %v2727 = vshrl.u32 %v2447, 16
      %v2729 = vrot.slane %v2727, 4
      %v2730 = vshll.u32 %v2447, 16
      %v2732 = vrot.slane %v2730, 5
      %v2733 = vor.u32 %v2729, %v2732
      %v2734 = vrot.slane %v2733, 4
      %v2736 = vshll.u32 %v2448, 16
      %v2738 = vrot.slane %v2736, 5
      %v2739 = vsel %vm1514, %v2734, %v2738
      %v2740 = vshrl.u32 %v2448, 16
      %v2742 = vrot.slane %v2740, 4
      %v2743 = vor.u32 %v2742, %v2738
      %v2744 = vrot.slane %v2743, 4
      %v2746 = vshll.u32 %v2449, 16
      %v2748 = vrot.slane %v2746, 5
      %v2749 = vsel %vm1514, %v2744, %v2748
      %v2751 = vshrl.u32 %v2450, 16
      %v2753 = vrot.slane %v2751, 4
      %v2754 = vshll.u32 %v2450, 16
      %v2756 = vrot.slane %v2754, 5
      %v2757 = vor.u32 %v2753, %v2756
      %v2758 = vrot.slane %v2757, 4
      %v2760 = vshll.u32 %v2451, 16
      %v2762 = vrot.slane %v2760, 5
      %v2763 = vsel %vm1514, %v2758, %v2762
      %v2764 = vshrl.u32 %v2451, 16
      %v2766 = vrot.slane %v2764, 4
      %v2767 = vor.u32 %v2766, %v2762
      %v2768 = vrot.slane %v2767, 4
      %v2770 = vshll.u32 %v2452, 16
      %v2772 = vrot.slane %v2770, 5
      %v2773 = vsel %vm1514, %v2768, %v2772
      %v2775 = vshrl.u32 %v2453, 16
      %v2777 = vrot.slane %v2775, 4
      %v2778 = vshll.u32 %v2453, 16
      %v2780 = vrot.slane %v2778, 5
      %v2781 = vor.u32 %v2777, %v2780
      %v2782 = vrot.slane %v2781, 4
      %v2784 = vshll.u32 %v2454, 16
      %v2786 = vrot.slane %v2784, 5
      %v2787 = vsel %vm1514, %v2782, %v2786
      %v2788 = vshrl.u32 %v2454, 16
      %v2790 = vrot.slane %v2788, 4
      %v2791 = vor.u32 %v2790, %v2786
      %v2792 = vrot.slane %v2791, 4
      %v2794 = vshll.u32 %v2455, 16
      %v2796 = vrot.slane %v2794, 5
      %v2797 = vsel %vm1514, %v2792, %v2796
      %v2799 = vshrl.u32 %v2456, 16
      %v2801 = vrot.slane %v2799, 4
      %v2802 = vshll.u32 %v2456, 16
      %v2804 = vrot.slane %v2802, 5
      %v2805 = vor.u32 %v2801, %v2804
      %v2806 = vrot.slane %v2805, 4
      %v2808 = vshll.u32 %v2457, 16
      %v2810 = vrot.slane %v2808, 5
      %v2811 = vsel %vm1514, %v2806, %v2810
      %v2812 = vshrl.u32 %v2457, 16
      %v2814 = vrot.slane %v2812, 4
      %v2815 = vor.u32 %v2814, %v2810
      %v2816 = vrot.slane %v2815, 4
      %v2818 = vshll.u32 %v2458, 16
      %v2820 = vrot.slane %v2818, 5
      %v2821 = vsel %vm1514, %v2816, %v2820
      %v2823 = vshrl.u32 %v2459, 16
      %v2825 = vrot.slane %v2823, 4
      %v2826 = vshll.u32 %v2459, 16
      %v2828 = vrot.slane %v2826, 5
      %v2829 = vor.u32 %v2825, %v2828
      %v2830 = vrot.slane %v2829, 4
      %v2832 = vshll.u32 %v2460, 16
      %v2834 = vrot.slane %v2832, 5
      %v2835 = vsel %vm1514, %v2830, %v2834
      %v2836 = vshrl.u32 %v2460, 16
      %v2838 = vrot.slane %v2836, 4
      %v2839 = vor.u32 %v2838, %v2834
      %v2840 = vrot.slane %v2839, 4
      %v2842 = vshll.u32 %v2461, 16
      %v2844 = vrot.slane %v2842, 5
      %v2845 = vsel %vm1514, %v2840, %v2844
      %v2846 = vunpack.c.l.b16 %v2475
      %v2847 = vunpack.c.l.b16 %v2485
      %v2848 = vunpack.c.l.b16 %v2499
      %v2849 = vunpack.c.l.b16 %v2509
      %v2850 = vunpack.c.l.b16 %v2523
      %v2851 = vunpack.c.l.b16 %v2533
      %v2852 = vunpack.c.l.b16 %v2547
      %v2853 = vunpack.c.l.b16 %v2557
      %v2854 = vunpack.c.l.b16 %v2571
      %v2855 = vunpack.c.l.b16 %v2581
      %v2856 = vunpack.c.l.b16 %v2595
      %v2857 = vunpack.c.l.b16 %v2605
      %v2858 = vunpack.c.l.b16 %v2619
      %v2859 = vunpack.c.l.b16 %v2629
      %v2860 = vunpack.c.l.b16 %v2643
      %v2861 = vunpack.c.l.b16 %v2653
      %v2862 = vunpack.c.l.b16 %v2667
      %v2863 = vunpack.c.l.b16 %v2677
      %v2864 = vunpack.c.l.b16 %v2691
      %v2865 = vunpack.c.l.b16 %v2701
      %v2866 = vunpack.c.l.b16 %v2715
      %v2867 = vunpack.c.l.b16 %v2725
      %v2868 = vunpack.c.l.b16 %v2739
      %v2869 = vunpack.c.l.b16 %v2749
      %v2870 = vunpack.c.l.b16 %v2763
      %v2871 = vunpack.c.l.b16 %v2773
      %v2872 = vunpack.c.l.b16 %v2787
      %v2873 = vunpack.c.l.b16 %v2797
      %v2874 = vunpack.c.l.b16 %v2811
      %v2875 = vunpack.c.l.b16 %v2821
      %v2876 = vunpack.c.l.b16 %v2835
      %v2877 = vunpack.c.l.b16 %v2845
      %v2878 = vpack.c.b16 %v2847, %v2846
      %v2879 = vpack.c.b16 %v2849, %v2848
      %v2880 = vpack.c.b16 %v2851, %v2850
      %v2881 = vpack.c.b16 %v2853, %v2852
      %v2882 = vpack.c.b16 %v2855, %v2854
      %v2883 = vpack.c.b16 %v2857, %v2856
      %v2884 = vpack.c.b16 %v2859, %v2858
      %v2885 = vpack.c.b16 %v2861, %v2860
      %v2886 = vpack.c.b16 %v2863, %v2862
      %v2887 = vpack.c.b16 %v2865, %v2864
      %v2888 = vpack.c.b16 %v2867, %v2866
      %v2889 = vpack.c.b16 %v2869, %v2868
      %v2890 = vpack.c.b16 %v2871, %v2870
      %v2891 = vpack.c.b16 %v2873, %v2872
      %v2892 = vpack.c.b16 %v2875, %v2874
      %v2893 = vpack.c.b16 %v2877, %v2876
      %2910 = vst [vmem:[#allocation3 + $0x20] sm:$0xff] %v2878
      %2911 = vst [vmem:[#allocation3 + $0x68] sm:$0xff] %v2879
      %2912 = vst [vmem:[#allocation3 + $0xb0] sm:$0xff] %v2880
      %2913 = vst [vmem:[#allocation3 + $0xf8] sm:$0xff] %v2881
      %2914 = vst [vmem:[#allocation3 + $0x140] sm:$0xff] %v2882
      %2915 = vst [vmem:[#allocation3 + $0x188] sm:$0xff] %v2883
      %2916 = vst [vmem:[#allocation3 + $0x1d0] sm:$0xff] %v2884
      %2917 = vst [vmem:[#allocation3 + $0x218] sm:$0xff] %v2885
      %2918 = vst [vmem:[#allocation3 + $0x260] sm:$0xff] %v2886
      %2919 = vst [vmem:[#allocation3 + $0x2a8] sm:$0xff] %v2887
      %2920 = vst [vmem:[#allocation3 + $0x2f0] sm:$0xff] %v2888
      %2921 = vst [vmem:[#allocation3 + $0x338] sm:$0xff] %v2889
      %2922 = vst [vmem:[#allocation3 + $0x380] sm:$0xff] %v2890
      %2923 = vst [vmem:[#allocation3 + $0x3c8] sm:$0xff] %v2891
      %2924 = vst [vmem:[#allocation3 + $0x410] sm:$0xff] %v2892
      %2925 = vst [vmem:[#allocation3 + $0x458] sm:$0xff] %v2893
      %v2926 = vld [vmem:[%s1205] sm:$0xe]
      %v2927 = vld [vmem:[%s1205 + $0x4] sm:$0xf]
      %v2928 = vld [vmem:[%s1205 + $0x8] sm:$0x1]
      %v2929 = vld [vmem:[%s1205 + $0xc] sm:$0xe]
      %v2930 = vld [vmem:[%s1205 + $0x10] sm:$0xf]
      %v2931 = vld [vmem:[%s1205 + $0x14] sm:$0x1]
      %v2932 = vld [vmem:[%s1205 + $0x18] sm:$0xe]
      %v2933 = vld [vmem:[%s1205 + $0x1c] sm:$0xf]
      %v2934 = vld [vmem:[%s1205 + $0x20] sm:$0x1]
      %v2935 = vld [vmem:[%s1205 + $0x24] sm:$0xe]
      %v2936 = vld [vmem:[%s1205 + $0x28] sm:$0xf]
      %v2937 = vld [vmem:[%s1205 + $0x2c] sm:$0x1]
      %v2938 = vld [vmem:[%s1205 + $0x30] sm:$0xe]
      %v2939 = vld [vmem:[%s1205 + $0x34] sm:$0xf]
      %v2940 = vld [vmem:[%s1205 + $0x38] sm:$0x1]
      %v2941 = vld [vmem:[%s1205 + $0x3c] sm:$0xe]
      %v2942 = vld [vmem:[%s1205 + $0x40] sm:$0xf]
      %v2943 = vld [vmem:[%s1205 + $0x44] sm:$0x1]
      %v2944 = vld [vmem:[%s1205 + $0x48] sm:$0xe]
      %v2945 = vld [vmem:[%s1205 + $0x4c] sm:$0xf]
      %v2946 = vld [vmem:[%s1205 + $0x50] sm:$0x1]
      %v2947 = vld [vmem:[%s1205 + $0x54] sm:$0xe]
      %v2948 = vld [vmem:[%s1205 + $0x58] sm:$0xf]
      %v2949 = vld [vmem:[%s1205 + $0x5c] sm:$0x1]
      %v2950 = vld [vmem:[%s1205 + $0x60] sm:$0xe]
      %v2951 = vld [vmem:[%s1205 + $0x64] sm:$0xf]
      %v2952 = vld [vmem:[%s1205 + $0x68] sm:$0x1]
      %v2953 = vld [vmem:[%s1205 + $0x6c] sm:$0xe]
      %v2954 = vld [vmem:[%s1205 + $0x70] sm:$0xf]
      %v2955 = vld [vmem:[%s1205 + $0x74] sm:$0x1]
      %v2956 = vld [vmem:[%s1205 + $0x78] sm:$0xe]
      %v2957 = vld [vmem:[%s1205 + $0x7c] sm:$0xf]
      %v2958 = vld [vmem:[%s1205 + $0x80] sm:$0x1]
      %v2959 = vld [vmem:[%s1205 + $0x84] sm:$0xe]
      %v2960 = vld [vmem:[%s1205 + $0x88] sm:$0xf]
      %v2961 = vld [vmem:[%s1205 + $0x8c] sm:$0x1]
      %v2962 = vld [vmem:[%s1205 + $0x90] sm:$0xe]
      %v2963 = vld [vmem:[%s1205 + $0x94] sm:$0xf]
      %v2964 = vld [vmem:[%s1205 + $0x98] sm:$0x1]
      %v2965 = vld [vmem:[%s1205 + $0x9c] sm:$0xe]
      %v2966 = vld [vmem:[%s1205 + $0xa0] sm:$0xf]
      %v2967 = vld [vmem:[%s1205 + $0xa4] sm:$0x1]
      %v2968 = vld [vmem:[%s1205 + $0xa8] sm:$0xe]
      %v2969 = vld [vmem:[%s1205 + $0xac] sm:$0xf]
      %v2970 = vld [vmem:[%s1205 + $0xb0] sm:$0x1]
      %v2971 = vld [vmem:[%s1205 + $0xb4] sm:$0xe]
      %v2972 = vld [vmem:[%s1205 + $0xb8] sm:$0xf]
      %v2973 = vld [vmem:[%s1205 + $0xbc] sm:$0x1]
      %v3022 = vrot.slane %v2926, 5
      %v3023 = vrot.slane %v3022, 4
      %v3024 = vrot.slane %v2927, 5
      %v3025 = vsel %vm2077, %v3023, %v3024
      %v3026 = vrot.slane %v3024, 4
      %v3027 = vrot.slane %v2928, 5
      %v3028 = vsel %vm2077, %v3026, %v3027
      %v3029 = vrot.slane %v2929, 5
      %v3030 = vrot.slane %v3029, 4
      %v3031 = vrot.slane %v2930, 5
      %v3032 = vsel %vm2077, %v3030, %v3031
      %v3033 = vrot.slane %v3031, 4
      %v3034 = vrot.slane %v2931, 5
      %v3035 = vsel %vm2077, %v3033, %v3034
      %v3036 = vrot.slane %v2932, 5
      %v3037 = vrot.slane %v3036, 4
      %v3038 = vrot.slane %v2933, 5
      %v3039 = vsel %vm2077, %v3037, %v3038
      %v3040 = vrot.slane %v3038, 4
      %v3041 = vrot.slane %v2934, 5
      %v3042 = vsel %vm2077, %v3040, %v3041
      %v3043 = vrot.slane %v2935, 5
      %v3044 = vrot.slane %v3043, 4
      %v3045 = vrot.slane %v2936, 5
      %v3046 = vsel %vm2077, %v3044, %v3045
      %v3047 = vrot.slane %v3045, 4
      %v3048 = vrot.slane %v2937, 5
      %v3049 = vsel %vm2077, %v3047, %v3048
      %v3050 = vrot.slane %v2938, 5
      %v3051 = vrot.slane %v3050, 4
      %v3052 = vrot.slane %v2939, 5
      %v3053 = vsel %vm2077, %v3051, %v3052
      %v3054 = vrot.slane %v3052, 4
      %v3055 = vrot.slane %v2940, 5
      %v3056 = vsel %vm2077, %v3054, %v3055
      %v3057 = vrot.slane %v2941, 5
      %v3058 = vrot.slane %v3057, 4
      %v3059 = vrot.slane %v2942, 5
      %v3060 = vsel %vm2077, %v3058, %v3059
      %v3061 = vrot.slane %v3059, 4
      %v3062 = vrot.slane %v2943, 5
      %v3063 = vsel %vm2077, %v3061, %v3062
      %v3064 = vrot.slane %v2944, 5
      %v3065 = vrot.slane %v3064, 4
      %v3066 = vrot.slane %v2945, 5
      %v3067 = vsel %vm2077, %v3065, %v3066
      %v3068 = vrot.slane %v3066, 4
      %v3069 = vrot.slane %v2946, 5
      %v3070 = vsel %vm2077, %v3068, %v3069
      %v3071 = vrot.slane %v2947, 5
      %v3072 = vrot.slane %v3071, 4
      %v3073 = vrot.slane %v2948, 5
      %v3074 = vsel %vm2077, %v3072, %v3073
      %v3075 = vrot.slane %v3073, 4
      %v3076 = vrot.slane %v2949, 5
      %v3077 = vsel %vm2077, %v3075, %v3076
      %v3078 = vrot.slane %v2950, 5
      %v3079 = vrot.slane %v3078, 4
      %v3080 = vrot.slane %v2951, 5
      %v3081 = vsel %vm2077, %v3079, %v3080
      %v3082 = vrot.slane %v3080, 4
      %v3083 = vrot.slane %v2952, 5
      %v3084 = vsel %vm2077, %v3082, %v3083
      %v3085 = vrot.slane %v2953, 5
      %v3086 = vrot.slane %v3085, 4
      %v3087 = vrot.slane %v2954, 5
      %v3088 = vsel %vm2077, %v3086, %v3087
      %v3089 = vrot.slane %v3087, 4
      %v3090 = vrot.slane %v2955, 5
      %v3091 = vsel %vm2077, %v3089, %v3090
      %v3092 = vrot.slane %v2956, 5
      %v3093 = vrot.slane %v3092, 4
      %v3094 = vrot.slane %v2957, 5
      %v3095 = vsel %vm2077, %v3093, %v3094
      %v3096 = vrot.slane %v3094, 4
      %v3097 = vrot.slane %v2958, 5
      %v3098 = vsel %vm2077, %v3096, %v3097
      %v3099 = vrot.slane %v2959, 5
      %v3100 = vrot.slane %v3099, 4
      %v3101 = vrot.slane %v2960, 5
      %v3102 = vsel %vm2077, %v3100, %v3101
      %v3103 = vrot.slane %v3101, 4
      %v3104 = vrot.slane %v2961, 5
      %v3105 = vsel %vm2077, %v3103, %v3104
      %v3106 = vrot.slane %v2962, 5
      %v3107 = vrot.slane %v3106, 4
      %v3108 = vrot.slane %v2963, 5
      %v3109 = vsel %vm2077, %v3107, %v3108
      %v3110 = vrot.slane %v3108, 4
      %v3111 = vrot.slane %v2964, 5
      %v3112 = vsel %vm2077, %v3110, %v3111
      %v3113 = vrot.slane %v2965, 5
      %v3114 = vrot.slane %v3113, 4
      %v3115 = vrot.slane %v2966, 5
      %v3116 = vsel %vm2077, %v3114, %v3115
      %v3117 = vrot.slane %v3115, 4
      %v3118 = vrot.slane %v2967, 5
      %v3119 = vsel %vm2077, %v3117, %v3118
      %v3120 = vrot.slane %v2968, 5
      %v3121 = vrot.slane %v3120, 4
      %v3122 = vrot.slane %v2969, 5
      %v3123 = vsel %vm2077, %v3121, %v3122
      %v3124 = vrot.slane %v3122, 4
      %v3125 = vrot.slane %v2970, 5
      %v3126 = vsel %vm2077, %v3124, %v3125
      %v3127 = vrot.slane %v2971, 5
      %v3128 = vrot.slane %v3127, 4
      %v3129 = vrot.slane %v2972, 5
      %v3130 = vsel %vm2077, %v3128, %v3129
      %v3131 = vrot.slane %v3129, 4
      %v3132 = vrot.slane %v2973, 5
      %v3133 = vsel %vm2077, %v3131, %v3132
      %v3134 = vunpack.c.l.b16 %v3025
      %v3135 = vunpack.c.l.b16 %v3028
      %v3136 = vunpack.c.l.b16 %v3032
      %v3137 = vunpack.c.l.b16 %v3035
      %v3138 = vunpack.c.l.b16 %v3039
      %v3139 = vunpack.c.l.b16 %v3042
      %v3140 = vunpack.c.l.b16 %v3046
      %v3141 = vunpack.c.l.b16 %v3049
      %v3142 = vunpack.c.l.b16 %v3053
      %v3143 = vunpack.c.l.b16 %v3056
      %v3144 = vunpack.c.l.b16 %v3060
      %v3145 = vunpack.c.l.b16 %v3063
      %v3146 = vunpack.c.l.b16 %v3067
      %v3147 = vunpack.c.l.b16 %v3070
      %v3148 = vunpack.c.l.b16 %v3074
      %v3149 = vunpack.c.l.b16 %v3077
      %v3150 = vunpack.c.l.b16 %v3081
      %v3151 = vunpack.c.l.b16 %v3084
      %v3152 = vunpack.c.l.b16 %v3088
      %v3153 = vunpack.c.l.b16 %v3091
      %v3154 = vunpack.c.l.b16 %v3095
      %v3155 = vunpack.c.l.b16 %v3098
      %v3156 = vunpack.c.l.b16 %v3102
      %v3157 = vunpack.c.l.b16 %v3105
      %v3158 = vunpack.c.l.b16 %v3109
      %v3159 = vunpack.c.l.b16 %v3112
      %v3160 = vunpack.c.l.b16 %v3116
      %v3161 = vunpack.c.l.b16 %v3119
      %v3162 = vunpack.c.l.b16 %v3123
      %v3163 = vunpack.c.l.b16 %v3126
      %v3164 = vunpack.c.l.b16 %v3130
      %v3165 = vunpack.c.l.b16 %v3133
      %v3166 = vpack.c.b16 %v3135, %v3134
      %v3167 = vpack.c.b16 %v3137, %v3136
      %v3168 = vpack.c.b16 %v3139, %v3138
      %v3169 = vpack.c.b16 %v3141, %v3140
      %v3170 = vpack.c.b16 %v3143, %v3142
      %v3171 = vpack.c.b16 %v3145, %v3144
      %v3172 = vpack.c.b16 %v3147, %v3146
      %v3173 = vpack.c.b16 %v3149, %v3148
      %v3174 = vpack.c.b16 %v3151, %v3150
      %v3175 = vpack.c.b16 %v3153, %v3152
      %v3176 = vpack.c.b16 %v3155, %v3154
      %v3177 = vpack.c.b16 %v3157, %v3156
      %v3178 = vpack.c.b16 %v3159, %v3158
      %v3179 = vpack.c.b16 %v3161, %v3160
      %v3180 = vpack.c.b16 %v3163, %v3162
      %v3181 = vpack.c.b16 %v3165, %v3164
      %3198 = vst [vmem:[#allocation3 + $0x28] sm:$0xff] %v3166
      %3199 = vst [vmem:[#allocation3 + $0x70] sm:$0xff] %v3167
      %3200 = vst [vmem:[#allocation3 + $0xb8] sm:$0xff] %v3168
      %3201 = vst [vmem:[#allocation3 + $0x100] sm:$0xff] %v3169
      %3202 = vst [vmem:[#allocation3 + $0x148] sm:$0xff] %v3170
      %3203 = vst [vmem:[#allocation3 + $0x190] sm:$0xff] %v3171
      %3204 = vst [vmem:[#allocation3 + $0x1d8] sm:$0xff] %v3172
      %3205 = vst [vmem:[#allocation3 + $0x220] sm:$0xff] %v3173
      %3206 = vst [vmem:[#allocation3 + $0x268] sm:$0xff] %v3174
      %3207 = vst [vmem:[#allocation3 + $0x2b0] sm:$0xff] %v3175
      %3208 = vst [vmem:[#allocation3 + $0x2f8] sm:$0xff] %v3176
      %3209 = vst [vmem:[#allocation3 + $0x340] sm:$0xff] %v3177
      %3210 = vst [vmem:[#allocation3 + $0x388] sm:$0xff] %v3178
      %3211 = vst [vmem:[#allocation3 + $0x3d0] sm:$0xff] %v3179
      %3212 = vst [vmem:[#allocation3 + $0x418] sm:$0xff] %v3180
      %3213 = vst [vmem:[#allocation3 + $0x460] sm:$0xff] %v3181
      %s3214 = scalar_lea.vmem [#allocation2], 24
      %v3215 = vld [vmem:[%s3214] sm:$0xf]
      %v3216 = vld [vmem:[%s3214 + $0x4] sm:$0xf]
      %v3217 = vld [vmem:[%s3214 + $0xc] sm:$0xf]
      %v3218 = vld [vmem:[%s3214 + $0x10] sm:$0xf]
      %v3219 = vld [vmem:[%s3214 + $0x18] sm:$0xf]
      %v3220 = vld [vmem:[%s3214 + $0x1c] sm:$0xf]
      %v3221 = vld [vmem:[%s3214 + $0x24] sm:$0xf]
      %v3222 = vld [vmem:[%s3214 + $0x28] sm:$0xf]
      %v3223 = vld [vmem:[%s3214 + $0x30] sm:$0xf]
      %v3224 = vld [vmem:[%s3214 + $0x34] sm:$0xf]
      %v3225 = vld [vmem:[%s3214 + $0x3c] sm:$0xf]
      %v3226 = vld [vmem:[%s3214 + $0x40] sm:$0xf]
      %v3227 = vld [vmem:[%s3214 + $0x48] sm:$0xf]
      %v3228 = vld [vmem:[%s3214 + $0x4c] sm:$0xf]
      %v3229 = vld [vmem:[%s3214 + $0x54] sm:$0xf]
      %v3230 = vld [vmem:[%s3214 + $0x58] sm:$0xf]
      %v3231 = vld [vmem:[%s3214 + $0x60] sm:$0xf]
      %v3232 = vld [vmem:[%s3214 + $0x64] sm:$0xf]
      %v3233 = vld [vmem:[%s3214 + $0x6c] sm:$0xf]
      %v3234 = vld [vmem:[%s3214 + $0x70] sm:$0xf]
      %v3235 = vld [vmem:[%s3214 + $0x78] sm:$0xf]
      %v3236 = vld [vmem:[%s3214 + $0x7c] sm:$0xf]
      %v3237 = vld [vmem:[%s3214 + $0x84] sm:$0xf]
      %v3238 = vld [vmem:[%s3214 + $0x88] sm:$0xf]
      %v3239 = vld [vmem:[%s3214 + $0x90] sm:$0xf]
      %v3240 = vld [vmem:[%s3214 + $0x94] sm:$0xf]
      %v3241 = vld [vmem:[%s3214 + $0x9c] sm:$0xf]
      %v3242 = vld [vmem:[%s3214 + $0xa0] sm:$0xf]
      %v3243 = vld [vmem:[%s3214 + $0xa8] sm:$0xf]
      %v3244 = vld [vmem:[%s3214 + $0xac] sm:$0xf]
      %v3245 = vld [vmem:[%s3214 + $0xb4] sm:$0xf]
      %v3246 = vld [vmem:[%s3214 + $0xb8] sm:$0xf]
      %v3279 = vunpack.c.l.b16 %v3215
      %v3280 = vunpack.c.l.b16 %v3216
      %v3281 = vunpack.c.l.b16 %v3217
      %v3282 = vunpack.c.l.b16 %v3218
      %v3283 = vunpack.c.l.b16 %v3219
      %v3284 = vunpack.c.l.b16 %v3220
      %v3285 = vunpack.c.l.b16 %v3221
      %v3286 = vunpack.c.l.b16 %v3222
      %v3287 = vunpack.c.l.b16 %v3223
      %v3288 = vunpack.c.l.b16 %v3224
      %v3289 = vunpack.c.l.b16 %v3225
      %v3290 = vunpack.c.l.b16 %v3226
      %v3291 = vunpack.c.l.b16 %v3227
      %v3292 = vunpack.c.l.b16 %v3228
      %v3293 = vunpack.c.l.b16 %v3229
      %v3294 = vunpack.c.l.b16 %v3230
      %v3295 = vunpack.c.l.b16 %v3231
      %v3296 = vunpack.c.l.b16 %v3232
      %v3297 = vunpack.c.l.b16 %v3233
      %v3298 = vunpack.c.l.b16 %v3234
      %v3299 = vunpack.c.l.b16 %v3235
      %v3300 = vunpack.c.l.b16 %v3236
      %v3301 = vunpack.c.l.b16 %v3237
      %v3302 = vunpack.c.l.b16 %v3238
      %v3303 = vunpack.c.l.b16 %v3239
      %v3304 = vunpack.c.l.b16 %v3240
      %v3305 = vunpack.c.l.b16 %v3241
      %v3306 = vunpack.c.l.b16 %v3242
      %v3307 = vunpack.c.l.b16 %v3243
      %v3308 = vunpack.c.l.b16 %v3244
      %v3309 = vunpack.c.l.b16 %v3245
      %v3310 = vunpack.c.l.b16 %v3246
      %v3311 = vpack.c.b16 %v3280, %v3279
      %v3312 = vpack.c.b16 %v3282, %v3281
      %v3313 = vpack.c.b16 %v3284, %v3283
      %v3314 = vpack.c.b16 %v3286, %v3285
      %v3315 = vpack.c.b16 %v3288, %v3287
      %v3316 = vpack.c.b16 %v3290, %v3289
      %v3317 = vpack.c.b16 %v3292, %v3291
      %v3318 = vpack.c.b16 %v3294, %v3293
      %v3319 = vpack.c.b16 %v3296, %v3295
      %v3320 = vpack.c.b16 %v3298, %v3297
      %v3321 = vpack.c.b16 %v3300, %v3299
      %v3322 = vpack.c.b16 %v3302, %v3301
      %v3323 = vpack.c.b16 %v3304, %v3303
      %v3324 = vpack.c.b16 %v3306, %v3305
      %v3325 = vpack.c.b16 %v3308, %v3307
      %v3326 = vpack.c.b16 %v3310, %v3309
      %3343 = vst [vmem:[#allocation3 + $0x30] sm:$0xff] %v3311
      %3344 = vst [vmem:[#allocation3 + $0x78] sm:$0xff] %v3312
      %3345 = vst [vmem:[#allocation3 + $0xc0] sm:$0xff] %v3313
      %3346 = vst [vmem:[#allocation3 + $0x108] sm:$0xff] %v3314
      %3347 = vst [vmem:[#allocation3 + $0x150] sm:$0xff] %v3315
      %3348 = vst [vmem:[#allocation3 + $0x198] sm:$0xff] %v3316
      %3349 = vst [vmem:[#allocation3 + $0x1e0] sm:$0xff] %v3317
      %3350 = vst [vmem:[#allocation3 + $0x228] sm:$0xff] %v3318
      %3351 = vst [vmem:[#allocation3 + $0x270] sm:$0xff] %v3319
      %3352 = vst [vmem:[#allocation3 + $0x2b8] sm:$0xff] %v3320
      %3353 = vst [vmem:[#allocation3 + $0x300] sm:$0xff] %v3321
      %3354 = vst [vmem:[#allocation3 + $0x348] sm:$0xff] %v3322
      %3355 = vst [vmem:[#allocation3 + $0x390] sm:$0xff] %v3323
      %3356 = vst [vmem:[#allocation3 + $0x3d8] sm:$0xff] %v3324
      %3357 = vst [vmem:[#allocation3 + $0x420] sm:$0xff] %v3325
      %3358 = vst [vmem:[#allocation3 + $0x468] sm:$0xff] %v3326
      %v3359 = vld [vmem:[%s3214] sm:$0xf]
      %v3360 = vld [vmem:[%s3214 + $0x4] sm:$0xf]
      %v3361 = vld [vmem:[%s3214 + $0x8] sm:$0x1]
      %v3362 = vld [vmem:[%s3214 + $0xc] sm:$0xf]
      %v3363 = vld [vmem:[%s3214 + $0x10] sm:$0xf]
      %v3364 = vld [vmem:[%s3214 + $0x14] sm:$0x1]
      %v3365 = vld [vmem:[%s3214 + $0x18] sm:$0xf]
      %v3366 = vld [vmem:[%s3214 + $0x1c] sm:$0xf]
      %v3367 = vld [vmem:[%s3214 + $0x20] sm:$0x1]
      %v3368 = vld [vmem:[%s3214 + $0x24] sm:$0xf]
      %v3369 = vld [vmem:[%s3214 + $0x28] sm:$0xf]
      %v3370 = vld [vmem:[%s3214 + $0x2c] sm:$0x1]
      %v3371 = vld [vmem:[%s3214 + $0x30] sm:$0xf]
      %v3372 = vld [vmem:[%s3214 + $0x34] sm:$0xf]
      %v3373 = vld [vmem:[%s3214 + $0x38] sm:$0x1]
      %v3374 = vld [vmem:[%s3214 + $0x3c] sm:$0xf]
      %v3375 = vld [vmem:[%s3214 + $0x40] sm:$0xf]
      %v3376 = vld [vmem:[%s3214 + $0x44] sm:$0x1]
      %v3377 = vld [vmem:[%s3214 + $0x48] sm:$0xf]
      %v3378 = vld [vmem:[%s3214 + $0x4c] sm:$0xf]
      %v3379 = vld [vmem:[%s3214 + $0x50] sm:$0x1]
      %v3380 = vld [vmem:[%s3214 + $0x54] sm:$0xf]
      %v3381 = vld [vmem:[%s3214 + $0x58] sm:$0xf]
      %v3382 = vld [vmem:[%s3214 + $0x5c] sm:$0x1]
      %v3383 = vld [vmem:[%s3214 + $0x60] sm:$0xf]
      %v3384 = vld [vmem:[%s3214 + $0x64] sm:$0xf]
      %v3385 = vld [vmem:[%s3214 + $0x68] sm:$0x1]
      %v3386 = vld [vmem:[%s3214 + $0x6c] sm:$0xf]
      %v3387 = vld [vmem:[%s3214 + $0x70] sm:$0xf]
      %v3388 = vld [vmem:[%s3214 + $0x74] sm:$0x1]
      %v3389 = vld [vmem:[%s3214 + $0x78] sm:$0xf]
      %v3390 = vld [vmem:[%s3214 + $0x7c] sm:$0xf]
      %v3391 = vld [vmem:[%s3214 + $0x80] sm:$0x1]
      %v3392 = vld [vmem:[%s3214 + $0x84] sm:$0xf]
      %v3393 = vld [vmem:[%s3214 + $0x88] sm:$0xf]
      %v3394 = vld [vmem:[%s3214 + $0x8c] sm:$0x1]
      %v3395 = vld [vmem:[%s3214 + $0x90] sm:$0xf]
      %v3396 = vld [vmem:[%s3214 + $0x94] sm:$0xf]
      %v3397 = vld [vmem:[%s3214 + $0x98] sm:$0x1]
      %v3398 = vld [vmem:[%s3214 + $0x9c] sm:$0xf]
      %v3399 = vld [vmem:[%s3214 + $0xa0] sm:$0xf]
      %v3400 = vld [vmem:[%s3214 + $0xa4] sm:$0x1]
      %v3401 = vld [vmem:[%s3214 + $0xa8] sm:$0xf]
      %v3402 = vld [vmem:[%s3214 + $0xac] sm:$0xf]
      %v3403 = vld [vmem:[%s3214 + $0xb0] sm:$0x1]
      %v3404 = vld [vmem:[%s3214 + $0xb4] sm:$0xf]
      %v3405 = vld [vmem:[%s3214 + $0xb8] sm:$0xf]
      %v3406 = vld [vmem:[%s3214 + $0xbc] sm:$0x1]
      %v3408 = vshrl.u32 %v3359, 16
      %v3410 = vrot.slane %v3408, 4
      %v3411 = vshll.u32 %v3359, 16
      %v3413 = vrot.slane %v3411, 5
      %v3414 = vor.u32 %v3410, %v3413
      %v3415 = vrot.slane %v3414, 4
      %v3417 = vshll.u32 %v3360, 16
      %v3419 = vrot.slane %v3417, 5
      %v3420 = vsel %vm1514, %v3415, %v3419
      %v3421 = vshrl.u32 %v3360, 16
      %v3423 = vrot.slane %v3421, 4
      %v3424 = vor.u32 %v3423, %v3419
      %v3425 = vrot.slane %v3424, 4
      %v3427 = vshll.u32 %v3361, 16
      %v3429 = vrot.slane %v3427, 5
      %v3430 = vsel %vm1514, %v3425, %v3429
      %v3432 = vshrl.u32 %v3362, 16
      %v3434 = vrot.slane %v3432, 4
      %v3435 = vshll.u32 %v3362, 16
      %v3437 = vrot.slane %v3435, 5
      %v3438 = vor.u32 %v3434, %v3437
      %v3439 = vrot.slane %v3438, 4
      %v3441 = vshll.u32 %v3363, 16
      %v3443 = vrot.slane %v3441, 5
      %v3444 = vsel %vm1514, %v3439, %v3443
      %v3445 = vshrl.u32 %v3363, 16
      %v3447 = vrot.slane %v3445, 4
      %v3448 = vor.u32 %v3447, %v3443
      %v3449 = vrot.slane %v3448, 4
      %v3451 = vshll.u32 %v3364, 16
      %v3453 = vrot.slane %v3451, 5
      %v3454 = vsel %vm1514, %v3449, %v3453
      %v3456 = vshrl.u32 %v3365, 16
      %v3458 = vrot.slane %v3456, 4
      %v3459 = vshll.u32 %v3365, 16
      %v3461 = vrot.slane %v3459, 5
      %v3462 = vor.u32 %v3458, %v3461
      %v3463 = vrot.slane %v3462, 4
      %v3465 = vshll.u32 %v3366, 16
      %v3467 = vrot.slane %v3465, 5
      %v3468 = vsel %vm1514, %v3463, %v3467
      %v3469 = vshrl.u32 %v3366, 16
      %v3471 = vrot.slane %v3469, 4
      %v3472 = vor.u32 %v3471, %v3467
      %v3473 = vrot.slane %v3472, 4
      %v3475 = vshll.u32 %v3367, 16
      %v3477 = vrot.slane %v3475, 5
      %v3478 = vsel %vm1514, %v3473, %v3477
      %v3480 = vshrl.u32 %v3368, 16
      %v3482 = vrot.slane %v3480, 4
      %v3483 = vshll.u32 %v3368, 16
      %v3485 = vrot.slane %v3483, 5
      %v3486 = vor.u32 %v3482, %v3485
      %v3487 = vrot.slane %v3486, 4
      %v3489 = vshll.u32 %v3369, 16
      %v3491 = vrot.slane %v3489, 5
      %v3492 = vsel %vm1514, %v3487, %v3491
      %v3493 = vshrl.u32 %v3369, 16
      %v3495 = vrot.slane %v3493, 4
      %v3496 = vor.u32 %v3495, %v3491
      %v3497 = vrot.slane %v3496, 4
      %v3499 = vshll.u32 %v3370, 16
      %v3501 = vrot.slane %v3499, 5
      %v3502 = vsel %vm1514, %v3497, %v3501
      %v3504 = vshrl.u32 %v3371, 16
      %v3506 = vrot.slane %v3504, 4
      %v3507 = vshll.u32 %v3371, 16
      %v3509 = vrot.slane %v3507, 5
      %v3510 = vor.u32 %v3506, %v3509
      %v3511 = vrot.slane %v3510, 4
      %v3513 = vshll.u32 %v3372, 16
      %v3515 = vrot.slane %v3513, 5
      %v3516 = vsel %vm1514, %v3511, %v3515
      %v3517 = vshrl.u32 %v3372, 16
      %v3519 = vrot.slane %v3517, 4
      %v3520 = vor.u32 %v3519, %v3515
      %v3521 = vrot.slane %v3520, 4
      %v3523 = vshll.u32 %v3373, 16
      %v3525 = vrot.slane %v3523, 5
      %v3526 = vsel %vm1514, %v3521, %v3525
      %v3528 = vshrl.u32 %v3374, 16
      %v3530 = vrot.slane %v3528, 4
      %v3531 = vshll.u32 %v3374, 16
      %v3533 = vrot.slane %v3531, 5
      %v3534 = vor.u32 %v3530, %v3533
      %v3535 = vrot.slane %v3534, 4
      %v3537 = vshll.u32 %v3375, 16
      %v3539 = vrot.slane %v3537, 5
      %v3540 = vsel %vm1514, %v3535, %v3539
      %v3541 = vshrl.u32 %v3375, 16
      %v3543 = vrot.slane %v3541, 4
      %v3544 = vor.u32 %v3543, %v3539
      %v3545 = vrot.slane %v3544, 4
      %v3547 = vshll.u32 %v3376, 16
      %v3549 = vrot.slane %v3547, 5
      %v3550 = vsel %vm1514, %v3545, %v3549
      %v3552 = vshrl.u32 %v3377, 16
      %v3554 = vrot.slane %v3552, 4
      %v3555 = vshll.u32 %v3377, 16
      %v3557 = vrot.slane %v3555, 5
      %v3558 = vor.u32 %v3554, %v3557
      %v3559 = vrot.slane %v3558, 4
      %v3561 = vshll.u32 %v3378, 16
      %v3563 = vrot.slane %v3561, 5
      %v3564 = vsel %vm1514, %v3559, %v3563
      %v3565 = vshrl.u32 %v3378, 16
      %v3567 = vrot.slane %v3565, 4
      %v3568 = vor.u32 %v3567, %v3563
      %v3569 = vrot.slane %v3568, 4
      %v3571 = vshll.u32 %v3379, 16
      %v3573 = vrot.slane %v3571, 5
      %v3574 = vsel %vm1514, %v3569, %v3573
      %v3576 = vshrl.u32 %v3380, 16
      %v3578 = vrot.slane %v3576, 4
      %v3579 = vshll.u32 %v3380, 16
      %v3581 = vrot.slane %v3579, 5
      %v3582 = vor.u32 %v3578, %v3581
      %v3583 = vrot.slane %v3582, 4
      %v3585 = vshll.u32 %v3381, 16
      %v3587 = vrot.slane %v3585, 5
      %v3588 = vsel %vm1514, %v3583, %v3587
      %v3589 = vshrl.u32 %v3381, 16
      %v3591 = vrot.slane %v3589, 4
      %v3592 = vor.u32 %v3591, %v3587
      %v3593 = vrot.slane %v3592, 4
      %v3595 = vshll.u32 %v3382, 16
      %v3597 = vrot.slane %v3595, 5
      %v3598 = vsel %vm1514, %v3593, %v3597
      %v3600 = vshrl.u32 %v3383, 16
      %v3602 = vrot.slane %v3600, 4
      %v3603 = vshll.u32 %v3383, 16
      %v3605 = vrot.slane %v3603, 5
      %v3606 = vor.u32 %v3602, %v3605
      %v3607 = vrot.slane %v3606, 4
      %v3609 = vshll.u32 %v3384, 16
      %v3611 = vrot.slane %v3609, 5
      %v3612 = vsel %vm1514, %v3607, %v3611
      %v3613 = vshrl.u32 %v3384, 16
      %v3615 = vrot.slane %v3613, 4
      %v3616 = vor.u32 %v3615, %v3611
      %v3617 = vrot.slane %v3616, 4
      %v3619 = vshll.u32 %v3385, 16
      %v3621 = vrot.slane %v3619, 5
      %v3622 = vsel %vm1514, %v3617, %v3621
      %v3624 = vshrl.u32 %v3386, 16
      %v3626 = vrot.slane %v3624, 4
      %v3627 = vshll.u32 %v3386, 16
      %v3629 = vrot.slane %v3627, 5
      %v3630 = vor.u32 %v3626, %v3629
      %v3631 = vrot.slane %v3630, 4
      %v3633 = vshll.u32 %v3387, 16
      %v3635 = vrot.slane %v3633, 5
      %v3636 = vsel %vm1514, %v3631, %v3635
      %v3637 = vshrl.u32 %v3387, 16
      %v3639 = vrot.slane %v3637, 4
      %v3640 = vor.u32 %v3639, %v3635
      %v3641 = vrot.slane %v3640, 4
      %v3643 = vshll.u32 %v3388, 16
      %v3645 = vrot.slane %v3643, 5
      %v3646 = vsel %vm1514, %v3641, %v3645
      %v3648 = vshrl.u32 %v3389, 16
      %v3650 = vrot.slane %v3648, 4
      %v3651 = vshll.u32 %v3389, 16
      %v3653 = vrot.slane %v3651, 5
      %v3654 = vor.u32 %v3650, %v3653
      %v3655 = vrot.slane %v3654, 4
      %v3657 = vshll.u32 %v3390, 16
      %v3659 = vrot.slane %v3657, 5
      %v3660 = vsel %vm1514, %v3655, %v3659
      %v3661 = vshrl.u32 %v3390, 16
      %v3663 = vrot.slane %v3661, 4
      %v3664 = vor.u32 %v3663, %v3659
      %v3665 = vrot.slane %v3664, 4
      %v3667 = vshll.u32 %v3391, 16
      %v3669 = vrot.slane %v3667, 5
      %v3670 = vsel %vm1514, %v3665, %v3669
      %v3672 = vshrl.u32 %v3392, 16
      %v3674 = vrot.slane %v3672, 4
      %v3675 = vshll.u32 %v3392, 16
      %v3677 = vrot.slane %v3675, 5
      %v3678 = vor.u32 %v3674, %v3677
      %v3679 = vrot.slane %v3678, 4
      %v3681 = vshll.u32 %v3393, 16
      %v3683 = vrot.slane %v3681, 5
      %v3684 = vsel %vm1514, %v3679, %v3683
      %v3685 = vshrl.u32 %v3393, 16
      %v3687 = vrot.slane %v3685, 4
      %v3688 = vor.u32 %v3687, %v3683
      %v3689 = vrot.slane %v3688, 4
      %v3691 = vshll.u32 %v3394, 16
      %v3693 = vrot.slane %v3691, 5
      %v3694 = vsel %vm1514, %v3689, %v3693
      %v3696 = vshrl.u32 %v3395, 16
      %v3698 = vrot.slane %v3696, 4
      %v3699 = vshll.u32 %v3395, 16
      %v3701 = vrot.slane %v3699, 5
      %v3702 = vor.u32 %v3698, %v3701
      %v3703 = vrot.slane %v3702, 4
      %v3705 = vshll.u32 %v3396, 16
      %v3707 = vrot.slane %v3705, 5
      %v3708 = vsel %vm1514, %v3703, %v3707
      %v3709 = vshrl.u32 %v3396, 16
      %v3711 = vrot.slane %v3709, 4
      %v3712 = vor.u32 %v3711, %v3707
      %v3713 = vrot.slane %v3712, 4
      %v3715 = vshll.u32 %v3397, 16
      %v3717 = vrot.slane %v3715, 5
      %v3718 = vsel %vm1514, %v3713, %v3717
      %v3720 = vshrl.u32 %v3398, 16
      %v3722 = vrot.slane %v3720, 4
      %v3723 = vshll.u32 %v3398, 16
      %v3725 = vrot.slane %v3723, 5
      %v3726 = vor.u32 %v3722, %v3725
      %v3727 = vrot.slane %v3726, 4
      %v3729 = vshll.u32 %v3399, 16
      %v3731 = vrot.slane %v3729, 5
      %v3732 = vsel %vm1514, %v3727, %v3731
      %v3733 = vshrl.u32 %v3399, 16
      %v3735 = vrot.slane %v3733, 4
      %v3736 = vor.u32 %v3735, %v3731
      %v3737 = vrot.slane %v3736, 4
      %v3739 = vshll.u32 %v3400, 16
      %v3741 = vrot.slane %v3739, 5
      %v3742 = vsel %vm1514, %v3737, %v3741
      %v3744 = vshrl.u32 %v3401, 16
      %v3746 = vrot.slane %v3744, 4
      %v3747 = vshll.u32 %v3401, 16
      %v3749 = vrot.slane %v3747, 5
      %v3750 = vor.u32 %v3746, %v3749
      %v3751 = vrot.slane %v3750, 4
      %v3753 = vshll.u32 %v3402, 16
      %v3755 = vrot.slane %v3753, 5
      %v3756 = vsel %vm1514, %v3751, %v3755
      %v3757 = vshrl.u32 %v3402, 16
      %v3759 = vrot.slane %v3757, 4
      %v3760 = vor.u32 %v3759, %v3755
      %v3761 = vrot.slane %v3760, 4
      %v3763 = vshll.u32 %v3403, 16
      %v3765 = vrot.slane %v3763, 5
      %v3766 = vsel %vm1514, %v3761, %v3765
      %v3768 = vshrl.u32 %v3404, 16
      %v3770 = vrot.slane %v3768, 4
      %v3771 = vshll.u32 %v3404, 16
      %v3773 = vrot.slane %v3771, 5
      %v3774 = vor.u32 %v3770, %v3773
      %v3775 = vrot.slane %v3774, 4
      %v3777 = vshll.u32 %v3405, 16
      %v3779 = vrot.slane %v3777, 5
      %v3780 = vsel %vm1514, %v3775, %v3779
      %v3781 = vshrl.u32 %v3405, 16
      %v3783 = vrot.slane %v3781, 4
      %v3784 = vor.u32 %v3783, %v3779
      %v3785 = vrot.slane %v3784, 4
      %v3787 = vshll.u32 %v3406, 16
      %v3789 = vrot.slane %v3787, 5
      %v3790 = vsel %vm1514, %v3785, %v3789
      %v3791 = vunpack.c.l.b16 %v3420
      %v3792 = vunpack.c.l.b16 %v3430
      %v3793 = vunpack.c.l.b16 %v3444
      %v3794 = vunpack.c.l.b16 %v3454
      %v3795 = vunpack.c.l.b16 %v3468
      %v3796 = vunpack.c.l.b16 %v3478
      %v3797 = vunpack.c.l.b16 %v3492
      %v3798 = vunpack.c.l.b16 %v3502
      %v3799 = vunpack.c.l.b16 %v3516
      %v3800 = vunpack.c.l.b16 %v3526
      %v3801 = vunpack.c.l.b16 %v3540
      %v3802 = vunpack.c.l.b16 %v3550
      %v3803 = vunpack.c.l.b16 %v3564
      %v3804 = vunpack.c.l.b16 %v3574
      %v3805 = vunpack.c.l.b16 %v3588
      %v3806 = vunpack.c.l.b16 %v3598
      %v3807 = vunpack.c.l.b16 %v3612
      %v3808 = vunpack.c.l.b16 %v3622
      %v3809 = vunpack.c.l.b16 %v3636
      %v3810 = vunpack.c.l.b16 %v3646
      %v3811 = vunpack.c.l.b16 %v3660
      %v3812 = vunpack.c.l.b16 %v3670
      %v3813 = vunpack.c.l.b16 %v3684
      %v3814 = vunpack.c.l.b16 %v3694
      %v3815 = vunpack.c.l.b16 %v3708
      %v3816 = vunpack.c.l.b16 %v3718
      %v3817 = vunpack.c.l.b16 %v3732
      %v3818 = vunpack.c.l.b16 %v3742
      %v3819 = vunpack.c.l.b16 %v3756
      %v3820 = vunpack.c.l.b16 %v3766
      %v3821 = vunpack.c.l.b16 %v3780
      %v3822 = vunpack.c.l.b16 %v3790
      %v3823 = vpack.c.b16 %v3792, %v3791
      %v3824 = vpack.c.b16 %v3794, %v3793
      %v3825 = vpack.c.b16 %v3796, %v3795
      %v3826 = vpack.c.b16 %v3798, %v3797
      %v3827 = vpack.c.b16 %v3800, %v3799
      %v3828 = vpack.c.b16 %v3802, %v3801
      %v3829 = vpack.c.b16 %v3804, %v3803
      %v3830 = vpack.c.b16 %v3806, %v3805
      %v3831 = vpack.c.b16 %v3808, %v3807
      %v3832 = vpack.c.b16 %v3810, %v3809
      %v3833 = vpack.c.b16 %v3812, %v3811
      %v3834 = vpack.c.b16 %v3814, %v3813
      %v3835 = vpack.c.b16 %v3816, %v3815
      %v3836 = vpack.c.b16 %v3818, %v3817
      %v3837 = vpack.c.b16 %v3820, %v3819
      %v3838 = vpack.c.b16 %v3822, %v3821
      %3855 = vst [vmem:[#allocation3 + $0x38] sm:$0xff] %v3823
      %3856 = vst [vmem:[#allocation3 + $0x80] sm:$0xff] %v3824
      %3857 = vst [vmem:[#allocation3 + $0xc8] sm:$0xff] %v3825
      %3858 = vst [vmem:[#allocation3 + $0x110] sm:$0xff] %v3826
      %3859 = vst [vmem:[#allocation3 + $0x158] sm:$0xff] %v3827
      %3860 = vst [vmem:[#allocation3 + $0x1a0] sm:$0xff] %v3828
      %3861 = vst [vmem:[#allocation3 + $0x1e8] sm:$0xff] %v3829
      %3862 = vst [vmem:[#allocation3 + $0x230] sm:$0xff] %v3830
      %3863 = vst [vmem:[#allocation3 + $0x278] sm:$0xff] %v3831
      %3864 = vst [vmem:[#allocation3 + $0x2c0] sm:$0xff] %v3832
      %3865 = vst [vmem:[#allocation3 + $0x308] sm:$0xff] %v3833
      %3866 = vst [vmem:[#allocation3 + $0x350] sm:$0xff] %v3834
      %3867 = vst [vmem:[#allocation3 + $0x398] sm:$0xff] %v3835
      %3868 = vst [vmem:[#allocation3 + $0x3e0] sm:$0xff] %v3836
      %3869 = vst [vmem:[#allocation3 + $0x428] sm:$0xff] %v3837
      %3870 = vst [vmem:[#allocation3 + $0x470] sm:$0xff] %v3838
      %v3871 = vld [vmem:[%s3214] sm:$0xe]
      %v3872 = vld [vmem:[%s3214 + $0x4] sm:$0xf]
      %v3873 = vld [vmem:[%s3214 + $0x8] sm:$0x1]
      %v3874 = vld [vmem:[%s3214 + $0xc] sm:$0xe]
      %v3875 = vld [vmem:[%s3214 + $0x10] sm:$0xf]
      %v3876 = vld [vmem:[%s3214 + $0x14] sm:$0x1]
      %v3877 = vld [vmem:[%s3214 + $0x18] sm:$0xe]
      %v3878 = vld [vmem:[%s3214 + $0x1c] sm:$0xf]
      %v3879 = vld [vmem:[%s3214 + $0x20] sm:$0x1]
      %v3880 = vld [vmem:[%s3214 + $0x24] sm:$0xe]
      %v3881 = vld [vmem:[%s3214 + $0x28] sm:$0xf]
      %v3882 = vld [vmem:[%s3214 + $0x2c] sm:$0x1]
      %v3883 = vld [vmem:[%s3214 + $0x30] sm:$0xe]
      %v3884 = vld [vmem:[%s3214 + $0x34] sm:$0xf]
      %v3885 = vld [vmem:[%s3214 + $0x38] sm:$0x1]
      %v3886 = vld [vmem:[%s3214 + $0x3c] sm:$0xe]
      %v3887 = vld [vmem:[%s3214 + $0x40] sm:$0xf]
      %v3888 = vld [vmem:[%s3214 + $0x44] sm:$0x1]
      %v3889 = vld [vmem:[%s3214 + $0x48] sm:$0xe]
      %v3890 = vld [vmem:[%s3214 + $0x4c] sm:$0xf]
      %v3891 = vld [vmem:[%s3214 + $0x50] sm:$0x1]
      %v3892 = vld [vmem:[%s3214 + $0x54] sm:$0xe]
      %v3893 = vld [vmem:[%s3214 + $0x58] sm:$0xf]
      %v3894 = vld [vmem:[%s3214 + $0x5c] sm:$0x1]
      %v3895 = vld [vmem:[%s3214 + $0x60] sm:$0xe]
      %v3896 = vld [vmem:[%s3214 + $0x64] sm:$0xf]
      %v3897 = vld [vmem:[%s3214 + $0x68] sm:$0x1]
      %v3898 = vld [vmem:[%s3214 + $0x6c] sm:$0xe]
      %v3899 = vld [vmem:[%s3214 + $0x70] sm:$0xf]
      %v3900 = vld [vmem:[%s3214 + $0x74] sm:$0x1]
      %v3901 = vld [vmem:[%s3214 + $0x78] sm:$0xe]
      %v3902 = vld [vmem:[%s3214 + $0x7c] sm:$0xf]
      %v3903 = vld [vmem:[%s3214 + $0x80] sm:$0x1]
      %v3904 = vld [vmem:[%s3214 + $0x84] sm:$0xe]
      %v3905 = vld [vmem:[%s3214 + $0x88] sm:$0xf]
      %v3906 = vld [vmem:[%s3214 + $0x8c] sm:$0x1]
      %v3907 = vld [vmem:[%s3214 + $0x90] sm:$0xe]
      %v3908 = vld [vmem:[%s3214 + $0x94] sm:$0xf]
      %v3909 = vld [vmem:[%s3214 + $0x98] sm:$0x1]
      %v3910 = vld [vmem:[%s3214 + $0x9c] sm:$0xe]
      %v3911 = vld [vmem:[%s3214 + $0xa0] sm:$0xf]
      %v3912 = vld [vmem:[%s3214 + $0xa4] sm:$0x1]
      %v3913 = vld [vmem:[%s3214 + $0xa8] sm:$0xe]
      %v3914 = vld [vmem:[%s3214 + $0xac] sm:$0xf]
      %v3915 = vld [vmem:[%s3214 + $0xb0] sm:$0x1]
      %v3916 = vld [vmem:[%s3214 + $0xb4] sm:$0xe]
      %v3917 = vld [vmem:[%s3214 + $0xb8] sm:$0xf]
      %v3918 = vld [vmem:[%s3214 + $0xbc] sm:$0x1]
      %v3967 = vrot.slane %v3871, 5
      %v3968 = vrot.slane %v3967, 4
      %v3969 = vrot.slane %v3872, 5
      %v3970 = vsel %vm2077, %v3968, %v3969
      %v3971 = vrot.slane %v3969, 4
      %v3972 = vrot.slane %v3873, 5
      %v3973 = vsel %vm2077, %v3971, %v3972
      %v3974 = vrot.slane %v3874, 5
      %v3975 = vrot.slane %v3974, 4
      %v3976 = vrot.slane %v3875, 5
      %v3977 = vsel %vm2077, %v3975, %v3976
      %v3978 = vrot.slane %v3976, 4
      %v3979 = vrot.slane %v3876, 5
      %v3980 = vsel %vm2077, %v3978, %v3979
      %v3981 = vrot.slane %v3877, 5
      %v3982 = vrot.slane %v3981, 4
      %v3983 = vrot.slane %v3878, 5
      %v3984 = vsel %vm2077, %v3982, %v3983
      %v3985 = vrot.slane %v3983, 4
      %v3986 = vrot.slane %v3879, 5
      %v3987 = vsel %vm2077, %v3985, %v3986
      %v3988 = vrot.slane %v3880, 5
      %v3989 = vrot.slane %v3988, 4
      %v3990 = vrot.slane %v3881, 5
      %v3991 = vsel %vm2077, %v3989, %v3990
      %v3992 = vrot.slane %v3990, 4
      %v3993 = vrot.slane %v3882, 5
      %v3994 = vsel %vm2077, %v3992, %v3993
      %v3995 = vrot.slane %v3883, 5
      %v3996 = vrot.slane %v3995, 4
      %v3997 = vrot.slane %v3884, 5
      %v3998 = vsel %vm2077, %v3996, %v3997
      %v3999 = vrot.slane %v3997, 4
      %v4000 = vrot.slane %v3885, 5
      %v4001 = vsel %vm2077, %v3999, %v4000
      %v4002 = vrot.slane %v3886, 5
      %v4003 = vrot.slane %v4002, 4
      %v4004 = vrot.slane %v3887, 5
      %v4005 = vsel %vm2077, %v4003, %v4004
      %v4006 = vrot.slane %v4004, 4
      %v4007 = vrot.slane %v3888, 5
      %v4008 = vsel %vm2077, %v4006, %v4007
      %v4009 = vrot.slane %v3889, 5
      %v4010 = vrot.slane %v4009, 4
      %v4011 = vrot.slane %v3890, 5
      %v4012 = vsel %vm2077, %v4010, %v4011
      %v4013 = vrot.slane %v4011, 4
      %v4014 = vrot.slane %v3891, 5
      %v4015 = vsel %vm2077, %v4013, %v4014
      %v4016 = vrot.slane %v3892, 5
      %v4017 = vrot.slane %v4016, 4
      %v4018 = vrot.slane %v3893, 5
      %v4019 = vsel %vm2077, %v4017, %v4018
      %v4020 = vrot.slane %v4018, 4
      %v4021 = vrot.slane %v3894, 5
      %v4022 = vsel %vm2077, %v4020, %v4021
      %v4023 = vrot.slane %v3895, 5
      %v4024 = vrot.slane %v4023, 4
      %v4025 = vrot.slane %v3896, 5
      %v4026 = vsel %vm2077, %v4024, %v4025
      %v4027 = vrot.slane %v4025, 4
      %v4028 = vrot.slane %v3897, 5
      %v4029 = vsel %vm2077, %v4027, %v4028
      %v4030 = vrot.slane %v3898, 5
      %v4031 = vrot.slane %v4030, 4
      %v4032 = vrot.slane %v3899, 5
      %v4033 = vsel %vm2077, %v4031, %v4032
      %v4034 = vrot.slane %v4032, 4
      %v4035 = vrot.slane %v3900, 5
      %v4036 = vsel %vm2077, %v4034, %v4035
      %v4037 = vrot.slane %v3901, 5
      %v4038 = vrot.slane %v4037, 4
      %v4039 = vrot.slane %v3902, 5
      %v4040 = vsel %vm2077, %v4038, %v4039
      %v4041 = vrot.slane %v4039, 4
      %v4042 = vrot.slane %v3903, 5
      %v4043 = vsel %vm2077, %v4041, %v4042
      %v4044 = vrot.slane %v3904, 5
      %v4045 = vrot.slane %v4044, 4
      %v4046 = vrot.slane %v3905, 5
      %v4047 = vsel %vm2077, %v4045, %v4046
      %v4048 = vrot.slane %v4046, 4
      %v4049 = vrot.slane %v3906, 5
      %v4050 = vsel %vm2077, %v4048, %v4049
      %v4051 = vrot.slane %v3907, 5
      %v4052 = vrot.slane %v4051, 4
      %v4053 = vrot.slane %v3908, 5
      %v4054 = vsel %vm2077, %v4052, %v4053
      %v4055 = vrot.slane %v4053, 4
      %v4056 = vrot.slane %v3909, 5
      %v4057 = vsel %vm2077, %v4055, %v4056
      %v4058 = vrot.slane %v3910, 5
      %v4059 = vrot.slane %v4058, 4
      %v4060 = vrot.slane %v3911, 5
      %v4061 = vsel %vm2077, %v4059, %v4060
      %v4062 = vrot.slane %v4060, 4
      %v4063 = vrot.slane %v3912, 5
      %v4064 = vsel %vm2077, %v4062, %v4063
      %v4065 = vrot.slane %v3913, 5
      %v4066 = vrot.slane %v4065, 4
      %v4067 = vrot.slane %v3914, 5
      %v4068 = vsel %vm2077, %v4066, %v4067
      %v4069 = vrot.slane %v4067, 4
      %v4070 = vrot.slane %v3915, 5
      %v4071 = vsel %vm2077, %v4069, %v4070
      %v4072 = vrot.slane %v3916, 5
      %v4073 = vrot.slane %v4072, 4
      %v4074 = vrot.slane %v3917, 5
      %v4075 = vsel %vm2077, %v4073, %v4074
      %v4076 = vrot.slane %v4074, 4
      %v4077 = vrot.slane %v3918, 5
      %v4078 = vsel %vm2077, %v4076, %v4077
      %v4079 = vunpack.c.l.b16 %v3970
      %v4080 = vunpack.c.l.b16 %v3973
      %v4081 = vunpack.c.l.b16 %v3977
      %v4082 = vunpack.c.l.b16 %v3980
      %v4083 = vunpack.c.l.b16 %v3984
      %v4084 = vunpack.c.l.b16 %v3987
      %v4085 = vunpack.c.l.b16 %v3991
      %v4086 = vunpack.c.l.b16 %v3994
      %v4087 = vunpack.c.l.b16 %v3998
      %v4088 = vunpack.c.l.b16 %v4001
      %v4089 = vunpack.c.l.b16 %v4005
      %v4090 = vunpack.c.l.b16 %v4008
      %v4091 = vunpack.c.l.b16 %v4012
      %v4092 = vunpack.c.l.b16 %v4015
      %v4093 = vunpack.c.l.b16 %v4019
      %v4094 = vunpack.c.l.b16 %v4022
      %v4095 = vunpack.c.l.b16 %v4026
      %v4096 = vunpack.c.l.b16 %v4029
      %v4097 = vunpack.c.l.b16 %v4033
      %v4098 = vunpack.c.l.b16 %v4036
      %v4099 = vunpack.c.l.b16 %v4040
      %v4100 = vunpack.c.l.b16 %v4043
      %v4101 = vunpack.c.l.b16 %v4047
      %v4102 = vunpack.c.l.b16 %v4050
      %v4103 = vunpack.c.l.b16 %v4054
      %v4104 = vunpack.c.l.b16 %v4057
      %v4105 = vunpack.c.l.b16 %v4061
      %v4106 = vunpack.c.l.b16 %v4064
      %v4107 = vunpack.c.l.b16 %v4068
      %v4108 = vunpack.c.l.b16 %v4071
      %v4109 = vunpack.c.l.b16 %v4075
      %v4110 = vunpack.c.l.b16 %v4078
      %v4111 = vpack.c.b16 %v4080, %v4079
      %v4112 = vpack.c.b16 %v4082, %v4081
      %v4113 = vpack.c.b16 %v4084, %v4083
      %v4114 = vpack.c.b16 %v4086, %v4085
      %v4115 = vpack.c.b16 %v4088, %v4087
      %v4116 = vpack.c.b16 %v4090, %v4089
      %v4117 = vpack.c.b16 %v4092, %v4091
      %v4118 = vpack.c.b16 %v4094, %v4093
      %v4119 = vpack.c.b16 %v4096, %v4095
      %v4120 = vpack.c.b16 %v4098, %v4097
      %v4121 = vpack.c.b16 %v4100, %v4099
      %v4122 = vpack.c.b16 %v4102, %v4101
      %v4123 = vpack.c.b16 %v4104, %v4103
      %v4124 = vpack.c.b16 %v4106, %v4105
      %v4125 = vpack.c.b16 %v4108, %v4107
      %v4126 = vpack.c.b16 %v4110, %v4109
      %4143 = vst [vmem:[#allocation3 + $0x40] sm:$0xff] %v4111
      %4144 = vst [vmem:[#allocation3 + $0x88] sm:$0xff] %v4112
      %4145 = vst [vmem:[#allocation3 + $0xd0] sm:$0xff] %v4113
      %4146 = vst [vmem:[#allocation3 + $0x118] sm:$0xff] %v4114
      %4147 = vst [vmem:[#allocation3 + $0x160] sm:$0xff] %v4115
      %4148 = vst [vmem:[#allocation3 + $0x1a8] sm:$0xff] %v4116
      %4149 = vst [vmem:[#allocation3 + $0x1f0] sm:$0xff] %v4117
      %4150 = vst [vmem:[#allocation3 + $0x238] sm:$0xff] %v4118
      %4151 = vst [vmem:[#allocation3 + $0x280] sm:$0xff] %v4119
      %4152 = vst [vmem:[#allocation3 + $0x2c8] sm:$0xff] %v4120
      %4153 = vst [vmem:[#allocation3 + $0x310] sm:$0xff] %v4121
      %4154 = vst [vmem:[#allocation3 + $0x358] sm:$0xff] %v4122
      %4155 = vst [vmem:[#allocation3 + $0x3a0] sm:$0xff] %v4123
      %4156 = vst [vmem:[#allocation3 + $0x3e8] sm:$0xff] %v4124
      %4157 = vst [vmem:[#allocation3 + $0x430] sm:$0xff] %v4125
      %4158 = vst [vmem:[#allocation3 + $0x478] sm:$0xff] %v4126
      %v4159 = vld [vmem:[#allocation3] sm:$0xff]
      %v4160 = vld [vmem:[#allocation3 + $0x8] sm:$0xff]
      %v4161 = vld [vmem:[#allocation3 + $0x10] sm:$0xff]
      %v4162 = vld [vmem:[#allocation3 + $0x18] sm:$0xff]
      %v4163 = vld [vmem:[#allocation3 + $0x20] sm:$0xff]
      %v4164 = vld [vmem:[#allocation3 + $0x28] sm:$0xff]
      %v4165 = vld [vmem:[#allocation3 + $0x30] sm:$0xff]
      %v4166 = vld [vmem:[#allocation3 + $0x38] sm:$0xff]
      %v4167 = vld [vmem:[#allocation3 + $0x40] sm:$0xff]
      %v4168 = vld [vmem:[#allocation3 + $0x48] sm:$0xff]
      %v4169 = vld [vmem:[#allocation3 + $0x50] sm:$0xff]
      %v4170 = vld [vmem:[#allocation3 + $0x58] sm:$0xff]
      %v4171 = vld [vmem:[#allocation3 + $0x60] sm:$0xff]
      %v4172 = vld [vmem:[#allocation3 + $0x68] sm:$0xff]
      %v4173 = vld [vmem:[#allocation3 + $0x70] sm:$0xff]
      %v4174 = vld [vmem:[#allocation3 + $0x78] sm:$0xff]
      %v4175 = vld [vmem:[#allocation3 + $0x80] sm:$0xff]
      %v4176 = vld [vmem:[#allocation3 + $0x88] sm:$0xff]
      %v4177 = vld [vmem:[#allocation3 + $0x90] sm:$0xff]
      %v4178 = vld [vmem:[#allocation3 + $0x98] sm:$0xff]
      %v4179 = vld [vmem:[#allocation3 + $0xa0] sm:$0xff]
      %v4180 = vld [vmem:[#allocation3 + $0xa8] sm:$0xff]
      %v4181 = vld [vmem:[#allocation3 + $0xb0] sm:$0xff]
      %v4182 = vld [vmem:[#allocation3 + $0xb8] sm:$0xff]
      %v4183 = vld [vmem:[#allocation3 + $0xc0] sm:$0xff]
      %v4184 = vld [vmem:[#allocation3 + $0xc8] sm:$0xff]
      %v4185 = vld [vmem:[#allocation3 + $0xd0] sm:$0xff]
      %v4186 = vld [vmem:[#allocation3 + $0xd8] sm:$0xff]
      %v4187 = vld [vmem:[#allocation3 + $0xe0] sm:$0xff]
      %v4188 = vld [vmem:[#allocation3 + $0xe8] sm:$0xff]
      %v4189 = vld [vmem:[#allocation3 + $0xf0] sm:$0xff]
      %v4190 = vld [vmem:[#allocation3 + $0xf8] sm:$0xff]
      %v4191 = vld [vmem:[#allocation3 + $0x100] sm:$0xff]
      %v4192 = vld [vmem:[#allocation3 + $0x108] sm:$0xff]
      %v4193 = vld [vmem:[#allocation3 + $0x110] sm:$0xff]
      %v4194 = vld [vmem:[#allocation3 + $0x118] sm:$0xff]
      %v4195 = vld [vmem:[#allocation3 + $0x120] sm:$0xff]
      %v4196 = vld [vmem:[#allocation3 + $0x128] sm:$0xff]
      %v4197 = vld [vmem:[#allocation3 + $0x130] sm:$0xff]
      %v4198 = vld [vmem:[#allocation3 + $0x138] sm:$0xff]
      %v4199 = vld [vmem:[#allocation3 + $0x140] sm:$0xff]
      %v4200 = vld [vmem:[#allocation3 + $0x148] sm:$0xff]
      %v4201 = vld [vmem:[#allocation3 + $0x150] sm:$0xff]
      %v4202 = vld [vmem:[#allocation3 + $0x158] sm:$0xff]
      %v4203 = vld [vmem:[#allocation3 + $0x160] sm:$0xff]
      %v4204 = vld [vmem:[#allocation3 + $0x168] sm:$0xff]
      %v4205 = vld [vmem:[#allocation3 + $0x170] sm:$0xff]
      %v4206 = vld [vmem:[#allocation3 + $0x178] sm:$0xff]
      %v4207 = vld [vmem:[#allocation3 + $0x180] sm:$0xff]
      %v4208 = vld [vmem:[#allocation3 + $0x188] sm:$0xff]
      %v4209 = vld [vmem:[#allocation3 + $0x190] sm:$0xff]
      %v4210 = vld [vmem:[#allocation3 + $0x198] sm:$0xff]
      %v4211 = vld [vmem:[#allocation3 + $0x1a0] sm:$0xff]
      %v4212 = vld [vmem:[#allocation3 + $0x1a8] sm:$0xff]
      %v4213 = vld [vmem:[#allocation3 + $0x1b0] sm:$0xff]
      %v4214 = vld [vmem:[#allocation3 + $0x1b8] sm:$0xff]
      %v4215 = vld [vmem:[#allocation3 + $0x1c0] sm:$0xff]
      %v4216 = vld [vmem:[#allocation3 + $0x1c8] sm:$0xff]
      %v4217 = vld [vmem:[#allocation3 + $0x1d0] sm:$0xff]
      %v4218 = vld [vmem:[#allocation3 + $0x1d8] sm:$0xff]
      %v4219 = vld [vmem:[#allocation3 + $0x1e0] sm:$0xff]
      %v4220 = vld [vmem:[#allocation3 + $0x1e8] sm:$0xff]
      %v4221 = vld [vmem:[#allocation3 + $0x1f0] sm:$0xff]
      %v4222 = vld [vmem:[#allocation3 + $0x1f8] sm:$0xff]
      %v4223 = vld [vmem:[#allocation3 + $0x200] sm:$0xff]
      %v4224 = vld [vmem:[#allocation3 + $0x208] sm:$0xff]
      %v4225 = vld [vmem:[#allocation3 + $0x210] sm:$0xff]
      %v4226 = vld [vmem:[#allocation3 + $0x218] sm:$0xff]
      %v4227 = vld [vmem:[#allocation3 + $0x220] sm:$0xff]
      %v4228 = vld [vmem:[#allocation3 + $0x228] sm:$0xff]
      %v4229 = vld [vmem:[#allocation3 + $0x230] sm:$0xff]
      %v4230 = vld [vmem:[#allocation3 + $0x238] sm:$0xff]
      %v4231 = vld [vmem:[#allocation3 + $0x240] sm:$0xff]
      %v4232 = vld [vmem:[#allocation3 + $0x248] sm:$0xff]
      %v4233 = vld [vmem:[#allocation3 + $0x250] sm:$0xff]
      %v4234 = vld [vmem:[#allocation3 + $0x258] sm:$0xff]
      %v4235 = vld [vmem:[#allocation3 + $0x260] sm:$0xff]
      %v4236 = vld [vmem:[#allocation3 + $0x268] sm:$0xff]
      %v4237 = vld [vmem:[#allocation3 + $0x270] sm:$0xff]
      %v4238 = vld [vmem:[#allocation3 + $0x278] sm:$0xff]
      %v4239 = vld [vmem:[#allocation3 + $0x280] sm:$0xff]
      %v4240 = vld [vmem:[#allocation3 + $0x288] sm:$0xff]
      %v4241 = vld [vmem:[#allocation3 + $0x290] sm:$0xff]
      %v4242 = vld [vmem:[#allocation3 + $0x298] sm:$0xff]
      %v4243 = vld [vmem:[#allocation3 + $0x2a0] sm:$0xff]
      %v4244 = vld [vmem:[#allocation3 + $0x2a8] sm:$0xff]
      %v4245 = vld [vmem:[#allocation3 + $0x2b0] sm:$0xff]
      %v4246 = vld [vmem:[#allocation3 + $0x2b8] sm:$0xff]
      %v4247 = vld [vmem:[#allocation3 + $0x2c0] sm:$0xff]
      %v4248 = vld [vmem:[#allocation3 + $0x2c8] sm:$0xff]
      %v4249 = vld [vmem:[#allocation3 + $0x2d0] sm:$0xff]
      %v4250 = vld [vmem:[#allocation3 + $0x2d8] sm:$0xff]
      %v4251 = vld [vmem:[#allocation3 + $0x2e0] sm:$0xff]
      %v4252 = vld [vmem:[#allocation3 + $0x2e8] sm:$0xff]
      %v4253 = vld [vmem:[#allocation3 + $0x2f0] sm:$0xff]
      %v4254 = vld [vmem:[#allocation3 + $0x2f8] sm:$0xff]
      %v4255 = vld [vmem:[#allocation3 + $0x300] sm:$0xff]
      %v4256 = vld [vmem:[#allocation3 + $0x308] sm:$0xff]
      %v4257 = vld [vmem:[#allocation3 + $0x310] sm:$0xff]
      %v4258 = vld [vmem:[#allocation3 + $0x318] sm:$0xff]
      %v4259 = vld [vmem:[#allocation3 + $0x320] sm:$0xff]
      %v4260 = vld [vmem:[#allocation3 + $0x328] sm:$0xff]
      %v4261 = vld [vmem:[#allocation3 + $0x330] sm:$0xff]
      %v4262 = vld [vmem:[#allocation3 + $0x338] sm:$0xff]
      %v4263 = vld [vmem:[#allocation3 + $0x340] sm:$0xff]
      %v4264 = vld [vmem:[#allocation3 + $0x348] sm:$0xff]
      %v4265 = vld [vmem:[#allocation3 + $0x350] sm:$0xff]
      %v4266 = vld [vmem:[#allocation3 + $0x358] sm:$0xff]
      %v4267 = vld [vmem:[#allocation3 + $0x360] sm:$0xff]
      %v4268 = vld [vmem:[#allocation3 + $0x368] sm:$0xff]
      %v4269 = vld [vmem:[#allocation3 + $0x370] sm:$0xff]
      %v4270 = vld [vmem:[#allocation3 + $0x378] sm:$0xff]
      %v4271 = vld [vmem:[#allocation3 + $0x380] sm:$0xff]
      %v4272 = vld [vmem:[#allocation3 + $0x388] sm:$0xff]
      %v4273 = vld [vmem:[#allocation3 + $0x390] sm:$0xff]
      %v4274 = vld [vmem:[#allocation3 + $0x398] sm:$0xff]
      %v4275 = vld [vmem:[#allocation3 + $0x3a0] sm:$0xff]
      %v4276 = vld [vmem:[#allocation3 + $0x3a8] sm:$0xff]
      %v4277 = vld [vmem:[#allocation3 + $0x3b0] sm:$0xff]
      %v4278 = vld [vmem:[#allocation3 + $0x3b8] sm:$0xff]
      %v4279 = vld [vmem:[#allocation3 + $0x3c0] sm:$0xff]
      %v4280 = vld [vmem:[#allocation3 + $0x3c8] sm:$0xff]
      %v4281 = vld [vmem:[#allocation3 + $0x3d0] sm:$0xff]
      %v4282 = vld [vmem:[#allocation3 + $0x3d8] sm:$0xff]
      %v4283 = vld [vmem:[#allocation3 + $0x3e0] sm:$0xff]
      %v4284 = vld [vmem:[#allocation3 + $0x3e8] sm:$0xff]
      %v4285 = vld [vmem:[#allocation3 + $0x3f0] sm:$0xff]
      %v4286 = vld [vmem:[#allocation3 + $0x3f8] sm:$0xff]
      %v4287 = vld [vmem:[#allocation3 + $0x400] sm:$0xff]
      %v4288 = vld [vmem:[#allocation3 + $0x408] sm:$0xff]
      %v4289 = vld [vmem:[#allocation3 + $0x410] sm:$0xff]
      %v4290 = vld [vmem:[#allocation3 + $0x418] sm:$0xff]
      %v4291 = vld [vmem:[#allocation3 + $0x420] sm:$0xff]
      %v4292 = vld [vmem:[#allocation3 + $0x428] sm:$0xff]
      %v4293 = vld [vmem:[#allocation3 + $0x430] sm:$0xff]
      %v4294 = vld [vmem:[#allocation3 + $0x438] sm:$0xff]
      %v4295 = vld [vmem:[#allocation3 + $0x440] sm:$0xff]
      %v4296 = vld [vmem:[#allocation3 + $0x448] sm:$0xff]
      %v4297 = vld [vmem:[#allocation3 + $0x450] sm:$0xff]
      %v4298 = vld [vmem:[#allocation3 + $0x458] sm:$0xff]
      %v4299 = vld [vmem:[#allocation3 + $0x460] sm:$0xff]
      %v4300 = vld [vmem:[#allocation3 + $0x468] sm:$0xff]
      %v4301 = vld [vmem:[#allocation3 + $0x470] sm:$0xff]
      %v4302 = vld [vmem:[#allocation3 + $0x478] sm:$0xff]
      %v4303 = vld [vmem:[%s3] sm:$0xf]
      %v4304 = vld [vmem:[%s3 + $0x4] sm:$0xf]
      %v4305 = vld [vmem:[%s3 + $0x8] sm:$0xf]
      %v4306 = vld [vmem:[%s3 + $0xc] sm:$0xf]
      %v4307 = vld [vmem:[%s3 + $0x10] sm:$0xf]
      %v4308 = vld [vmem:[%s3 + $0x14] sm:$0xf]
      %v4309 = vld [vmem:[%s3 + $0x18] sm:$0xf]
      %v4310 = vld [vmem:[%s3 + $0x1c] sm:$0xf]
      %v4311 = vld [vmem:[%s3 + $0x20] sm:$0xf]
      %v4312 = vld [vmem:[%s3 + $0x24] sm:$0xf]
      %v4313 = vld [vmem:[%s3 + $0x28] sm:$0xf]
      %v4314 = vld [vmem:[%s3 + $0x2c] sm:$0xf]
      %v4315 = vld [vmem:[%s3 + $0x30] sm:$0xf]
      %v4316 = vld [vmem:[%s3 + $0x34] sm:$0xf]
      %v4317 = vld [vmem:[%s3 + $0x38] sm:$0xf]
      %v4318 = vld [vmem:[%s3 + $0x3c] sm:$0xf]
      %v4319 = vld [vmem:[%s3 + $0x40] sm:$0xf]
      %v4320 = vld [vmem:[%s3 + $0x44] sm:$0xf]
      %v4321 = vld [vmem:[%s3 + $0x48] sm:$0xf]
      %v4322 = vld [vmem:[%s3 + $0x4c] sm:$0xf]
      %v4323 = vld [vmem:[%s3 + $0x50] sm:$0xf]
      %v4324 = vld [vmem:[%s3 + $0x54] sm:$0xf]
      %v4325 = vld [vmem:[%s3 + $0x58] sm:$0xf]
      %v4326 = vld [vmem:[%s3 + $0x5c] sm:$0xf]
      %v4327 = vld [vmem:[%s3 + $0x60] sm:$0xf]
      %v4328 = vld [vmem:[%s3 + $0x64] sm:$0xf]
      %v4329 = vld [vmem:[%s3 + $0x68] sm:$0xf]
      %v4330 = vld [vmem:[%s3 + $0x6c] sm:$0xf]
      %v4331 = vld [vmem:[%s3 + $0x70] sm:$0xf]
      %v4332 = vld [vmem:[%s3 + $0x74] sm:$0xf]
      %v4333 = vld [vmem:[%s3 + $0x78] sm:$0xf]
      %v4334 = vld [vmem:[%s3 + $0x7c] sm:$0xf]
      %v4335 = vld [vmem:[%s3 + $0x80] sm:$0xf]
      %v4336 = vld [vmem:[%s3 + $0x84] sm:$0xf]
      %v4337 = vld [vmem:[%s3 + $0x88] sm:$0xf]
      %v4338 = vld [vmem:[%s3 + $0x8c] sm:$0xf]
      %v4339 = vld [vmem:[%s3 + $0x90] sm:$0xf]
      %v4340 = vld [vmem:[%s3 + $0x94] sm:$0xf]
      %v4341 = vld [vmem:[%s3 + $0x98] sm:$0xf]
      %v4342 = vld [vmem:[%s3 + $0x9c] sm:$0xf]
      %v4343 = vld [vmem:[%s3 + $0xa0] sm:$0xf]
      %v4344 = vld [vmem:[%s3 + $0xa4] sm:$0xf]
      %v4345 = vld [vmem:[%s3 + $0xa8] sm:$0xf]
      %v4346 = vld [vmem:[%s3 + $0xac] sm:$0xf]
      %v4347 = vld [vmem:[%s3 + $0xb0] sm:$0xf]
      %v4348 = vld [vmem:[%s3 + $0xb4] sm:$0xf]
      %v4349 = vld [vmem:[%s3 + $0xb8] sm:$0xf]
      %v4350 = vld [vmem:[%s3 + $0xbc] sm:$0xf]
      %v4351 = vld [vmem:[%s3 + $0xc0] sm:$0xf]
      %v4352 = vld [vmem:[%s3 + $0xc4] sm:$0xf]
      %v4353 = vld [vmem:[%s3 + $0xc8] sm:$0xf]
      %v4354 = vld [vmem:[%s3 + $0xcc] sm:$0xf]
      %v4355 = vld [vmem:[%s3 + $0xd0] sm:$0xf]
      %v4356 = vld [vmem:[%s3 + $0xd4] sm:$0xf]
      %v4357 = vld [vmem:[%s3 + $0xd8] sm:$0xf]
      %v4358 = vld [vmem:[%s3 + $0xdc] sm:$0xf]
      %v4359 = vld [vmem:[%s3 + $0xe0] sm:$0xf]
      %v4360 = vld [vmem:[%s3 + $0xe4] sm:$0xf]
      %v4361 = vld [vmem:[%s3 + $0xe8] sm:$0xf]
      %v4362 = vld [vmem:[%s3 + $0xec] sm:$0xf]
      %v4363 = vld [vmem:[%s3 + $0xf0] sm:$0xf]
      %v4364 = vld [vmem:[%s3 + $0xf4] sm:$0xf]
      %v4365 = vld [vmem:[%s3 + $0xf8] sm:$0xf]
      %v4366 = vld [vmem:[%s3 + $0xfc] sm:$0xf]
      %v4367 = vld [vmem:[%s3 + $0x100] sm:$0xf]
      %v4368 = vld [vmem:[%s3 + $0x104] sm:$0xf]
      %v4369 = vld [vmem:[%s3 + $0x108] sm:$0xf]
      %v4370 = vld [vmem:[%s3 + $0x10c] sm:$0xf]
      %v4371 = vld [vmem:[%s3 + $0x110] sm:$0xf]
      %v4372 = vld [vmem:[%s3 + $0x114] sm:$0xf]
      %v4373 = vld [vmem:[%s3 + $0x118] sm:$0xf]
      %v4374 = vld [vmem:[%s3 + $0x11c] sm:$0xf]
      %v4375 = vld [vmem:[%s3 + $0x120] sm:$0xf]
      %v4376 = vld [vmem:[%s3 + $0x124] sm:$0xf]
      %v4377 = vld [vmem:[%s3 + $0x128] sm:$0xf]
      %v4378 = vld [vmem:[%s3 + $0x12c] sm:$0xf]
      %v4379 = vld [vmem:[%s3 + $0x130] sm:$0xf]
      %v4380 = vld [vmem:[%s3 + $0x134] sm:$0xf]
      %v4381 = vld [vmem:[%s3 + $0x138] sm:$0xf]
      %v4382 = vld [vmem:[%s3 + $0x13c] sm:$0xf]
      %v4383 = vld [vmem:[%s3 + $0x140] sm:$0xf]
      %v4384 = vld [vmem:[%s3 + $0x144] sm:$0xf]
      %v4385 = vld [vmem:[%s3 + $0x148] sm:$0xf]
      %v4386 = vld [vmem:[%s3 + $0x14c] sm:$0xf]
      %v4387 = vld [vmem:[%s3 + $0x150] sm:$0xf]
      %v4388 = vld [vmem:[%s3 + $0x154] sm:$0xf]
      %v4389 = vld [vmem:[%s3 + $0x158] sm:$0xf]
      %v4390 = vld [vmem:[%s3 + $0x15c] sm:$0xf]
      %v4391 = vld [vmem:[%s3 + $0x160] sm:$0xf]
      %v4392 = vld [vmem:[%s3 + $0x164] sm:$0xf]
      %v4393 = vld [vmem:[%s3 + $0x168] sm:$0xf]
      %v4394 = vld [vmem:[%s3 + $0x16c] sm:$0xf]
      %v4395 = vld [vmem:[%s3 + $0x170] sm:$0xf]
      %v4396 = vld [vmem:[%s3 + $0x174] sm:$0xf]
      %v4397 = vld [vmem:[%s3 + $0x178] sm:$0xf]
      %v4398 = vld [vmem:[%s3 + $0x17c] sm:$0xf]
      %v4399 = vld [vmem:[%s3 + $0x180] sm:$0xf]
      %v4400 = vld [vmem:[%s3 + $0x184] sm:$0xf]
      %v4401 = vld [vmem:[%s3 + $0x188] sm:$0xf]
      %v4402 = vld [vmem:[%s3 + $0x18c] sm:$0xf]
      %v4403 = vld [vmem:[%s3 + $0x190] sm:$0xf]
      %v4404 = vld [vmem:[%s3 + $0x194] sm:$0xf]
      %v4405 = vld [vmem:[%s3 + $0x198] sm:$0xf]
      %v4406 = vld [vmem:[%s3 + $0x19c] sm:$0xf]
      %v4407 = vld [vmem:[%s3 + $0x1a0] sm:$0xf]
      %v4408 = vld [vmem:[%s3 + $0x1a4] sm:$0xf]
      %v4409 = vld [vmem:[%s3 + $0x1a8] sm:$0xf]
      %v4410 = vld [vmem:[%s3 + $0x1ac] sm:$0xf]
      %v4411 = vld [vmem:[%s3 + $0x1b0] sm:$0xf]
      %v4412 = vld [vmem:[%s3 + $0x1b4] sm:$0xf]
      %v4413 = vld [vmem:[%s3 + $0x1b8] sm:$0xf]
      %v4414 = vld [vmem:[%s3 + $0x1bc] sm:$0xf]
      %v4415 = vld [vmem:[%s3 + $0x1c0] sm:$0xf]
      %v4416 = vld [vmem:[%s3 + $0x1c4] sm:$0xf]
      %v4417 = vld [vmem:[%s3 + $0x1c8] sm:$0xf]
      %v4418 = vld [vmem:[%s3 + $0x1cc] sm:$0xf]
      %v4419 = vld [vmem:[%s3 + $0x1d0] sm:$0xf]
      %v4420 = vld [vmem:[%s3 + $0x1d4] sm:$0xf]
      %v4421 = vld [vmem:[%s3 + $0x1d8] sm:$0xf]
      %v4422 = vld [vmem:[%s3 + $0x1dc] sm:$0xf]
      %v4423 = vld [vmem:[%s3 + $0x1e0] sm:$0xf]
      %v4424 = vld [vmem:[%s3 + $0x1e4] sm:$0xf]
      %v4425 = vld [vmem:[%s3 + $0x1e8] sm:$0xf]
      %v4426 = vld [vmem:[%s3 + $0x1ec] sm:$0xf]
      %v4427 = vld [vmem:[%s3 + $0x1f0] sm:$0xf]
      %v4428 = vld [vmem:[%s3 + $0x1f4] sm:$0xf]
      %v4429 = vld [vmem:[%s3 + $0x1f8] sm:$0xf]
      %v4430 = vld [vmem:[%s3 + $0x1fc] sm:$0xf]
      %v4431 = vld [vmem:[%s3 + $0x200] sm:$0xf]
      %v4432 = vld [vmem:[%s3 + $0x204] sm:$0xf]
      %v4433 = vld [vmem:[%s3 + $0x208] sm:$0xf]
      %v4434 = vld [vmem:[%s3 + $0x20c] sm:$0xf]
      %v4435 = vld [vmem:[%s3 + $0x210] sm:$0xf]
      %v4436 = vld [vmem:[%s3 + $0x214] sm:$0xf]
      %v4437 = vld [vmem:[%s3 + $0x218] sm:$0xf]
      %v4438 = vld [vmem:[%s3 + $0x21c] sm:$0xf]
      %v4439 = vld [vmem:[%s3 + $0x220] sm:$0xf]
      %v4440 = vld [vmem:[%s3 + $0x224] sm:$0xf]
      %v4441 = vld [vmem:[%s3 + $0x228] sm:$0xf]
      %v4442 = vld [vmem:[%s3 + $0x22c] sm:$0xf]
      %v4443 = vld [vmem:[%s3 + $0x230] sm:$0xf]
      %v4444 = vld [vmem:[%s3 + $0x234] sm:$0xf]
      %v4445 = vld [vmem:[%s3 + $0x238] sm:$0xf]
      %v4446 = vld [vmem:[%s3 + $0x23c] sm:$0xf]
      %v4447 = vld [vmem:[%s4] sm:$0x1]
      %v4449 = vlaneseq
      %v4450 = vshrl.u32 %v4449, 7
      %v4451 = vsub.s32 0, %v4450
      %v4452 = vrot.slane %v4447, %v4451
      %v4598 = vunpack.c.l.b16 %v4303
      %v4599 = vunpack.c.l.b16 %v4304
      %v4600 = vunpack.c.l.b16 %v4305
      %v4601 = vunpack.c.l.b16 %v4306
      %v4602 = vunpack.c.l.b16 %v4307
      %v4603 = vunpack.c.l.b16 %v4308
      %v4604 = vunpack.c.l.b16 %v4309
      %v4605 = vunpack.c.l.b16 %v4310
      %v4606 = vunpack.c.l.b16 %v4311
      %v4607 = vunpack.c.l.b16 %v4312
      %v4608 = vunpack.c.l.b16 %v4313
      %v4609 = vunpack.c.l.b16 %v4314
      %v4610 = vunpack.c.l.b16 %v4315
      %v4611 = vunpack.c.l.b16 %v4316
      %v4612 = vunpack.c.l.b16 %v4317
      %v4613 = vunpack.c.l.b16 %v4318
      %v4614 = vunpack.c.l.b16 %v4319
      %v4615 = vunpack.c.l.b16 %v4320
      %v4616 = vunpack.c.l.b16 %v4321
      %v4617 = vunpack.c.l.b16 %v4322
      %v4618 = vunpack.c.l.b16 %v4323
      %v4619 = vunpack.c.l.b16 %v4324
      %v4620 = vunpack.c.l.b16 %v4325
      %v4621 = vunpack.c.l.b16 %v4326
      %v4622 = vunpack.c.l.b16 %v4327
      %v4623 = vunpack.c.l.b16 %v4328
      %v4624 = vunpack.c.l.b16 %v4329
      %v4625 = vunpack.c.l.b16 %v4330
      %v4626 = vunpack.c.l.b16 %v4331
      %v4627 = vunpack.c.l.b16 %v4332
      %v4628 = vunpack.c.l.b16 %v4333
      %v4629 = vunpack.c.l.b16 %v4334
      %v4630 = vunpack.c.l.b16 %v4335
      %v4631 = vunpack.c.l.b16 %v4336
      %v4632 = vunpack.c.l.b16 %v4337
      %v4633 = vunpack.c.l.b16 %v4338
      %v4634 = vunpack.c.l.b16 %v4339
      %v4635 = vunpack.c.l.b16 %v4340
      %v4636 = vunpack.c.l.b16 %v4341
      %v4637 = vunpack.c.l.b16 %v4342
      %v4638 = vunpack.c.l.b16 %v4343
      %v4639 = vunpack.c.l.b16 %v4344
      %v4640 = vunpack.c.l.b16 %v4345
      %v4641 = vunpack.c.l.b16 %v4346
      %v4642 = vunpack.c.l.b16 %v4347
      %v4643 = vunpack.c.l.b16 %v4348
      %v4644 = vunpack.c.l.b16 %v4349
      %v4645 = vunpack.c.l.b16 %v4350
      %v4646 = vunpack.c.l.b16 %v4351
      %v4647 = vunpack.c.l.b16 %v4352
      %v4648 = vunpack.c.l.b16 %v4353
      %v4649 = vunpack.c.l.b16 %v4354
      %v4650 = vunpack.c.l.b16 %v4355
      %v4651 = vunpack.c.l.b16 %v4356
      %v4652 = vunpack.c.l.b16 %v4357
      %v4653 = vunpack.c.l.b16 %v4358
      %v4654 = vunpack.c.l.b16 %v4359
      %v4655 = vunpack.c.l.b16 %v4360
      %v4656 = vunpack.c.l.b16 %v4361
      %v4657 = vunpack.c.l.b16 %v4362
      %v4658 = vunpack.c.l.b16 %v4363
      %v4659 = vunpack.c.l.b16 %v4364
      %v4660 = vunpack.c.l.b16 %v4365
      %v4661 = vunpack.c.l.b16 %v4366
      %v4662 = vunpack.c.l.b16 %v4367
      %v4663 = vunpack.c.l.b16 %v4368
      %v4664 = vunpack.c.l.b16 %v4369
      %v4665 = vunpack.c.l.b16 %v4370
      %v4666 = vunpack.c.l.b16 %v4371
      %v4667 = vunpack.c.l.b16 %v4372
      %v4668 = vunpack.c.l.b16 %v4373
      %v4669 = vunpack.c.l.b16 %v4374
      %v4670 = vunpack.c.l.b16 %v4375
      %v4671 = vunpack.c.l.b16 %v4376
      %v4672 = vunpack.c.l.b16 %v4377
      %v4673 = vunpack.c.l.b16 %v4378
      %v4674 = vunpack.c.l.b16 %v4379
      %v4675 = vunpack.c.l.b16 %v4380
      %v4676 = vunpack.c.l.b16 %v4381
      %v4677 = vunpack.c.l.b16 %v4382
      %v4678 = vunpack.c.l.b16 %v4383
      %v4679 = vunpack.c.l.b16 %v4384
      %v4680 = vunpack.c.l.b16 %v4385
      %v4681 = vunpack.c.l.b16 %v4386
      %v4682 = vunpack.c.l.b16 %v4387
      %v4683 = vunpack.c.l.b16 %v4388
      %v4684 = vunpack.c.l.b16 %v4389
      %v4685 = vunpack.c.l.b16 %v4390
      %v4686 = vunpack.c.l.b16 %v4391
      %v4687 = vunpack.c.l.b16 %v4392
      %v4688 = vunpack.c.l.b16 %v4393
      %v4689 = vunpack.c.l.b16 %v4394
      %v4690 = vunpack.c.l.b16 %v4395
      %v4691 = vunpack.c.l.b16 %v4396
      %v4692 = vunpack.c.l.b16 %v4397
      %v4693 = vunpack.c.l.b16 %v4398
      %v4694 = vunpack.c.l.b16 %v4399
      %v4695 = vunpack.c.l.b16 %v4400
      %v4696 = vunpack.c.l.b16 %v4401
      %v4697 = vunpack.c.l.b16 %v4402
      %v4698 = vunpack.c.l.b16 %v4403
      %v4699 = vunpack.c.l.b16 %v4404
      %v4700 = vunpack.c.l.b16 %v4405
      %v4701 = vunpack.c.l.b16 %v4406
      %v4702 = vunpack.c.l.b16 %v4407
      %v4703 = vunpack.c.l.b16 %v4408
      %v4704 = vunpack.c.l.b16 %v4409
      %v4705 = vunpack.c.l.b16 %v4410
      %v4706 = vunpack.c.l.b16 %v4411
      %v4707 = vunpack.c.l.b16 %v4412
      %v4708 = vunpack.c.l.b16 %v4413
      %v4709 = vunpack.c.l.b16 %v4414
      %v4710 = vunpack.c.l.b16 %v4415
      %v4711 = vunpack.c.l.b16 %v4416
      %v4712 = vunpack.c.l.b16 %v4417
      %v4713 = vunpack.c.l.b16 %v4418
      %v4714 = vunpack.c.l.b16 %v4419
      %v4715 = vunpack.c.l.b16 %v4420
      %v4716 = vunpack.c.l.b16 %v4421
      %v4717 = vunpack.c.l.b16 %v4422
      %v4718 = vunpack.c.l.b16 %v4423
      %v4719 = vunpack.c.l.b16 %v4424
      %v4720 = vunpack.c.l.b16 %v4425
      %v4721 = vunpack.c.l.b16 %v4426
      %v4722 = vunpack.c.l.b16 %v4427
      %v4723 = vunpack.c.l.b16 %v4428
      %v4724 = vunpack.c.l.b16 %v4429
      %v4725 = vunpack.c.l.b16 %v4430
      %v4726 = vunpack.c.l.b16 %v4431
      %v4727 = vunpack.c.l.b16 %v4432
      %v4728 = vunpack.c.l.b16 %v4433
      %v4729 = vunpack.c.l.b16 %v4434
      %v4730 = vunpack.c.l.b16 %v4435
      %v4731 = vunpack.c.l.b16 %v4436
      %v4732 = vunpack.c.l.b16 %v4437
      %v4733 = vunpack.c.l.b16 %v4438
      %v4734 = vunpack.c.l.b16 %v4439
      %v4735 = vunpack.c.l.b16 %v4440
      %v4736 = vunpack.c.l.b16 %v4441
      %v4737 = vunpack.c.l.b16 %v4442
      %v4738 = vunpack.c.l.b16 %v4443
      %v4739 = vunpack.c.l.b16 %v4444
      %v4740 = vunpack.c.l.b16 %v4445
      %v4741 = vunpack.c.l.b16 %v4446
      %v4742 = vpack.c.b16 %v4599, %v4598
      %v4743 = vpack.c.b16 %v4601, %v4600
      %v4744 = vpack.c.b16 %v4603, %v4602
      %v4745 = vpack.c.b16 %v4605, %v4604
      %v4746 = vpack.c.b16 %v4607, %v4606
      %v4747 = vpack.c.b16 %v4609, %v4608
      %v4748 = vpack.c.b16 %v4611, %v4610
      %v4749 = vpack.c.b16 %v4613, %v4612
      %v4750 = vpack.c.b16 %v4615, %v4614
      %v4751 = vpack.c.b16 %v4617, %v4616
      %v4752 = vpack.c.b16 %v4619, %v4618
      %v4753 = vpack.c.b16 %v4621, %v4620
      %v4754 = vpack.c.b16 %v4623, %v4622
      %v4755 = vpack.c.b16 %v4625, %v4624
      %v4756 = vpack.c.b16 %v4627, %v4626
      %v4757 = vpack.c.b16 %v4629, %v4628
      %v4758 = vpack.c.b16 %v4631, %v4630
      %v4759 = vpack.c.b16 %v4633, %v4632
      %v4760 = vpack.c.b16 %v4635, %v4634
      %v4761 = vpack.c.b16 %v4637, %v4636
      %v4762 = vpack.c.b16 %v4639, %v4638
      %v4763 = vpack.c.b16 %v4641, %v4640
      %v4764 = vpack.c.b16 %v4643, %v4642
      %v4765 = vpack.c.b16 %v4645, %v4644
      %v4766 = vpack.c.b16 %v4647, %v4646
      %v4767 = vpack.c.b16 %v4649, %v4648
      %v4768 = vpack.c.b16 %v4651, %v4650
      %v4769 = vpack.c.b16 %v4653, %v4652
      %v4770 = vpack.c.b16 %v4655, %v4654
      %v4771 = vpack.c.b16 %v4657, %v4656
      %v4772 = vpack.c.b16 %v4659, %v4658
      %v4773 = vpack.c.b16 %v4661, %v4660
      %v4774 = vpack.c.b16 %v4663, %v4662
      %v4775 = vpack.c.b16 %v4665, %v4664
      %v4776 = vpack.c.b16 %v4667, %v4666
      %v4777 = vpack.c.b16 %v4669, %v4668
      %v4778 = vpack.c.b16 %v4671, %v4670
      %v4779 = vpack.c.b16 %v4673, %v4672
      %v4780 = vpack.c.b16 %v4675, %v4674
      %v4781 = vpack.c.b16 %v4677, %v4676
      %v4782 = vpack.c.b16 %v4679, %v4678
      %v4783 = vpack.c.b16 %v4681, %v4680
      %v4784 = vpack.c.b16 %v4683, %v4682
      %v4785 = vpack.c.b16 %v4685, %v4684
      %v4786 = vpack.c.b16 %v4687, %v4686
      %v4787 = vpack.c.b16 %v4689, %v4688
      %v4788 = vpack.c.b16 %v4691, %v4690
      %v4789 = vpack.c.b16 %v4693, %v4692
      %v4790 = vpack.c.b16 %v4695, %v4694
      %v4791 = vpack.c.b16 %v4697, %v4696
      %v4792 = vpack.c.b16 %v4699, %v4698
      %v4793 = vpack.c.b16 %v4701, %v4700
      %v4794 = vpack.c.b16 %v4703, %v4702
      %v4795 = vpack.c.b16 %v4705, %v4704
      %v4796 = vpack.c.b16 %v4707, %v4706
      %v4797 = vpack.c.b16 %v4709, %v4708
      %v4798 = vpack.c.b16 %v4711, %v4710
      %v4799 = vpack.c.b16 %v4713, %v4712
      %v4800 = vpack.c.b16 %v4715, %v4714
      %v4801 = vpack.c.b16 %v4717, %v4716
      %v4802 = vpack.c.b16 %v4719, %v4718
      %v4803 = vpack.c.b16 %v4721, %v4720
      %v4804 = vpack.c.b16 %v4723, %v4722
      %v4805 = vpack.c.b16 %v4725, %v4724
      %v4806 = vpack.c.b16 %v4727, %v4726
      %v4807 = vpack.c.b16 %v4729, %v4728
      %v4808 = vpack.c.b16 %v4731, %v4730
      %v4809 = vpack.c.b16 %v4733, %v4732
      %v4810 = vpack.c.b16 %v4735, %v4734
      %v4811 = vpack.c.b16 %v4737, %v4736
      %v4812 = vpack.c.b16 %v4739, %v4738
      %v4813 = vpack.c.b16 %v4741, %v4740
      %4886 = vmatprep.subr.bf16.mxu0 0
      %4887 = vmatpush1.bf16.msra.mxu0 %v4742
      %4888 = vmatprep.subr.bf16.mxu0 0
      %4889 = vmatpush1.bf16.msra.mxu0 %v4743
      %4890 = vmatprep.subr.bf16.mxu0 0
      %4891 = vmatpush1.bf16.msra.mxu0 %v4744
      %4892 = vmatprep.subr.bf16.mxu0 0
      %4893 = vmatpush1.bf16.msra.mxu0 %v4745
      %4894 = vmatprep.subr.bf16.mxu0 0
      %4895 = vmatpush1.bf16.msra.mxu0 %v4746
      %4896 = vmatprep.subr.bf16.mxu0 0
      %4897 = vmatpush1.bf16.msra.mxu0 %v4747
      %4898 = vmatprep.subr.bf16.mxu0 0
      %4899 = vmatpush1.bf16.msra.mxu0 %v4748
      %4900 = vmatprep.subr.bf16.mxu0 0
      %4901 = vmatpush1.bf16.msra.mxu0 %v4749
      %4902 = vmatprep.subr.bf16.mxu0 0
      %4903 = vmatpush1.bf16.msra.mxu0 %v4750
      %4904 = vmatprep.subr.bf16.mxu0 0
      %4905 = vmatpush1.bf16.msra.mxu0 %v4751
      %4906 = vmatprep.subr.bf16.mxu0 0
      %4907 = vmatpush1.bf16.msra.mxu0 %v4752
      %4908 = vmatprep.subr.bf16.mxu0 0
      %4909 = vmatpush1.bf16.msra.mxu0 %v4753
      %4910 = vmatprep.subr.bf16.mxu0 0
      %4911 = vmatpush1.bf16.msra.mxu0 %v4754
      %4912 = vmatprep.subr.bf16.mxu0 0
      %4913 = vmatpush1.bf16.msra.mxu0 %v4755
      %4914 = vmatprep.subr.bf16.mxu0 0
      %4915 = vmatpush1.bf16.msra.mxu0 %v4756
      %4916 = vmatprep.subr.bf16.mxu0 0
      %4917 = vmatpush1.bf16.msra.mxu0 %v4757
      %4918 = vmatprep.mubr.bf16.mxu0 %v4160
      %4919 = vmatmul.mubr.bf16.gmra.mrb[0].mxu0 %v4159
      %v4920 = vpop.f32.mrb[0].mxu0
      %v4921 = vadd.f32 %v4452, %v4920
      %v4922 = vpop.f32.mrb[0].mxu0
      %v4923 = vpop.f32.mrb[0].mxu0
      %v4924 = vadd.f32 %v4452, %v4923
      %v4925 = vpop.f32.mrb[0].mxu0
      %4926 = vmatprep.mubr.bf16.mxu0 %v4169
      %4927 = vmatmul.mubr.bf16.gmra.mrb[0].mxu0 %v4168
      %v4928 = vpop.f32.mrb[0].mxu0
      %v4929 = vadd.f32 %v4452, %v4928
      %v4930 = vpop.f32.mrb[0].mxu0
      %v4931 = vpop.f32.mrb[0].mxu0
      %v4932 = vadd.f32 %v4452, %v4931
      %v4933 = vpop.f32.mrb[0].mxu0
      %4934 = vmatprep.mubr.bf16.mxu0 %v4178
      %4935 = vmatmul.mubr.bf16.gmra.mrb[0].mxu0 %v4177
      %v4936 = vpop.f32.mrb[0].mxu0
      %v4937 = vadd.f32 %v4452, %v4936
      %v4938 = vpop.f32.mrb[0].mxu0
      %v4939 = vpop.f32.mrb[0].mxu0
      %v4940 = vadd.f32 %v4452, %v4939
      %v4941 = vpop.f32.mrb[0].mxu0
      %4942 = vmatprep.mubr.bf16.mxu0 %v4187
      %4943 = vmatmul.mubr.bf16.gmra.mrb[0].mxu0 %v4186
      %v4944 = vpop.f32.mrb[0].mxu0
      %v4945 = vadd.f32 %v4452, %v4944
      %v4946 = vpop.f32.mrb[0].mxu0
      %v4947 = vpop.f32.mrb[0].mxu0
      %v4948 = vadd.f32 %v4452, %v4947
      %v4949 = vpop.f32.mrb[0].mxu0
      %4950 = vmatprep.mubr.bf16.mxu0 %v4196
      %4951 = vmatmul.mubr.bf16.gmra.mrb[0].mxu0 %v4195
      %v4952 = vpop.f32.mrb[0].mxu0
      %v4953 = vadd.f32 %v4452, %v4952
      %v4954 = vpop.f32.mrb[0].mxu0
      %v4955 = vpop.f32.mrb[0].mxu0
      %v4956 = vadd.f32 %v4452, %v4955
      %v4957 = vpop.f32.mrb[0].mxu0
      %4958 = vmatprep.mubr.bf16.mxu0 %v4205
      %4959 = vmatmul.mubr.bf16.gmra.mrb[0].mxu0 %v4204
      %v4960 = vpop.f32.mrb[0].mxu0
      %v4961 = vadd.f32 %v4452, %v4960
      %v4962 = vpop.f32.mrb[0].mxu0
      %v4963 = vpop.f32.mrb[0].mxu0
      %v4964 = vadd.f32 %v4452, %v4963
      %v4965 = vpop.f32.mrb[0].mxu0
      %4966 = vmatprep.mubr.bf16.mxu0 %v4214
      %4967 = vmatmul.mubr.bf16.gmra.mrb[0].mxu0 %v4213
      %v4968 = vpop.f32.mrb[0].mxu0
      %v4969 = vadd.f32 %v4452, %v4968
      %v4970 = vpop.f32.mrb[0].mxu0
      %v4971 = vpop.f32.mrb[0].mxu0
      %v4972 = vadd.f32 %v4452, %v4971
      %v4973 = vpop.f32.mrb[0].mxu0
      %4974 = vmatprep.mubr.bf16.mxu0 %v4223
      %4975 = vmatmul.mubr.bf16.gmra.mrb[0].mxu0 %v4222
      %v4976 = vpop.f32.mrb[0].mxu0
      %v4977 = vadd.f32 %v4452, %v4976
      %v4978 = vpop.f32.mrb[0].mxu0
      %v4979 = vpop.f32.mrb[0].mxu0
      %v4980 = vadd.f32 %v4452, %v4979
      %v4981 = vpop.f32.mrb[0].mxu0
      %4982 = vmatprep.mubr.bf16.mxu0 %v4232
      %4983 = vmatmul.mubr.bf16.gmra.mrb[0].mxu0 %v4231
      %v4984 = vpop.f32.mrb[0].mxu0
      %v4985 = vadd.f32 %v4452, %v4984
      %v4986 = vpop.f32.mrb[0].mxu0
      %v4987 = vpop.f32.mrb[0].mxu0
      %v4988 = vadd.f32 %v4452, %v4987
      %v4989 = vpop.f32.mrb[0].mxu0
      %4990 = vmatprep.mubr.bf16.mxu0 %v4241
      %4991 = vmatmul.mubr.bf16.gmra.mrb[0].mxu0 %v4240
      %v4992 = vpop.f32.mrb[0].mxu0
      %v4993 = vadd.f32 %v4452, %v4992
      %v4994 = vpop.f32.mrb[0].mxu0
      %v4995 = vpop.f32.mrb[0].mxu0
      %v4996 = vadd.f32 %v4452, %v4995
      %v4997 = vpop.f32.mrb[0].mxu0
      %4998 = vmatprep.mubr.bf16.mxu0 %v4250
      %4999 = vmatmul.mubr.bf16.gmra.mrb[0].mxu0 %v4249
      %v5000 = vpop.f32.mrb[0].mxu0
      %v5001 = vadd.f32 %v4452, %v5000
      %v5002 = vpop.f32.mrb[0].mxu0
      %v5003 = vpop.f32.mrb[0].mxu0
      %v5004 = vadd.f32 %v4452, %v5003
      %v5005 = vpop.f32.mrb[0].mxu0
      %5006 = vmatprep.mubr.bf16.mxu0 %v4259
      %5007 = vmatmul.mubr.bf16.gmra.mrb[0].mxu0 %v4258
      %v5008 = vpop.f32.mrb[0].mxu0
      %v5009 = vadd.f32 %v4452, %v5008
      %v5010 = vpop.f32.mrb[0].mxu0
      %v5011 = vpop.f32.mrb[0].mxu0
      %v5012 = vadd.f32 %v4452, %v5011
      %v5013 = vpop.f32.mrb[0].mxu0
      %5014 = vmatprep.mubr.bf16.mxu0 %v4268
      %5015 = vmatmul.mubr.bf16.gmra.mrb[0].mxu0 %v4267
      %v5016 = vpop.f32.mrb[0].mxu0
      %v5017 = vadd.f32 %v4452, %v5016
      %v5018 = vpop.f32.mrb[0].mxu0
      %v5019 = vpop.f32.mrb[0].mxu0
      %v5020 = vadd.f32 %v4452, %v5019
      %v5021 = vpop.f32.mrb[0].mxu0
      %5022 = vmatprep.mubr.bf16.mxu0 %v4277
      %5023 = vmatmul.mubr.bf16.gmra.mrb[0].mxu0 %v4276
      %v5024 = vpop.f32.mrb[0].mxu0
      %v5025 = vadd.f32 %v4452, %v5024
      %v5026 = vpop.f32.mrb[0].mxu0
      %v5027 = vpop.f32.mrb[0].mxu0
      %v5028 = vadd.f32 %v4452, %v5027
      %v5029 = vpop.f32.mrb[0].mxu0
      %5030 = vmatprep.mubr.bf16.mxu0 %v4286
      %5031 = vmatmul.mubr.bf16.gmra.mrb[0].mxu0 %v4285
      %v5032 = vpop.f32.mrb[0].mxu0
      %v5033 = vadd.f32 %v4452, %v5032
      %v5034 = vpop.f32.mrb[0].mxu0
      %v5035 = vpop.f32.mrb[0].mxu0
      %v5036 = vadd.f32 %v4452, %v5035
      %v5037 = vpop.f32.mrb[0].mxu0
      %5038 = vmatprep.mubr.bf16.mxu0 %v4295
      %5039 = vmatmul.mubr.bf16.gmra.mrb[0].mxu0 %v4294
      %v5040 = vpop.f32.mrb[0].mxu0
      %v5041 = vadd.f32 %v4452, %v5040
      %v5042 = vpop.f32.mrb[0].mxu0
      %v5043 = vpop.f32.mrb[0].mxu0
      %v5044 = vadd.f32 %v4452, %v5043
      %v5045 = vpop.f32.mrb[0].mxu0
      %5046 = vdwg.mxu0
      %5047 = vmatprep.subr.bf16.mxu0 0
      %5048 = vmatpush1.bf16.msra.mxu0 %v4758
      %5049 = vmatprep.subr.bf16.mxu0 0
      %5050 = vmatpush1.bf16.msra.mxu0 %v4759
      %5051 = vmatprep.subr.bf16.mxu0 0
      %5052 = vmatpush1.bf16.msra.mxu0 %v4760
      %5053 = vmatprep.subr.bf16.mxu0 0
      %5054 = vmatpush1.bf16.msra.mxu0 %v4761
      %5055 = vmatprep.subr.bf16.mxu0 0
      %5056 = vmatpush1.bf16.msra.mxu0 %v4762
      %5057 = vmatprep.subr.bf16.mxu0 0
      %5058 = vmatpush1.bf16.msra.mxu0 %v4763
      %5059 = vmatprep.subr.bf16.mxu0 0
      %5060 = vmatpush1.bf16.msra.mxu0 %v4764
      %5061 = vmatprep.subr.bf16.mxu0 0
      %5062 = vmatpush1.bf16.msra.mxu0 %v4765
      %5063 = vmatprep.subr.bf16.mxu0 0
      %5064 = vmatpush1.bf16.msra.mxu0 %v4766
      %5065 = vmatprep.subr.bf16.mxu0 0
      %5066 = vmatpush1.bf16.msra.mxu0 %v4767
      %5067 = vmatprep.subr.bf16.mxu0 0
      %5068 = vmatpush1.bf16.msra.mxu0 %v4768
      %5069 = vmatprep.subr.bf16.mxu0 0
      %5070 = vmatpush1.bf16.msra.mxu0 %v4769
      %5071 = vmatprep.subr.bf16.mxu0 0
      %5072 = vmatpush1.bf16.msra.mxu0 %v4770
      %5073 = vmatprep.subr.bf16.mxu0 0
      %5074 = vmatpush1.bf16.msra.mxu0 %v4771
      %5075 = vmatprep.subr.bf16.mxu0 0
      %5076 = vmatpush1.bf16.msra.mxu0 %v4772
      %5077 = vmatprep.subr.bf16.mxu0 0
      %5078 = vmatpush1.bf16.msra.mxu0 %v4773
      %5079 = vmatprep.mubr.bf16.mxu0 %v4162
      %5080 = vmatmul.mubr.bf16.gmra.mrb[0].mxu0 %v4161
      %v5081 = vpop.f32.mrb[0].mxu0
      %v5082 = vadd.f32 %v4921, %v5081
      %v5083 = vpop.f32.mrb[0].mxu0
      %v5084 = vpop.f32.mrb[0].mxu0
      %v5085 = vadd.f32 %v4924, %v5084
      %v5086 = vpop.f32.mrb[0].mxu0
      %5087 = vmatprep.mubr.bf16.mxu0 %v4171
      %5088 = vmatmul.mubr.bf16.gmra.mrb[0].mxu0 %v4170
      %v5089 = vpop.f32.mrb[0].mxu0
      %v5090 = vadd.f32 %v4929, %v5089
      %v5091 = vpop.f32.mrb[0].mxu0
      %v5092 = vpop.f32.mrb[0].mxu0
      %v5093 = vadd.f32 %v4932, %v5092
      %v5094 = vpop.f32.mrb[0].mxu0
      %5095 = vmatprep.mubr.bf16.mxu0 %v4180
      %5096 = vmatmul.mubr.bf16.gmra.mrb[0].mxu0 %v4179
      %v5097 = vpop.f32.mrb[0].mxu0
      %v5098 = vadd.f32 %v4937, %v5097
      %v5099 = vpop.f32.mrb[0].mxu0
      %v5100 = vpop.f32.mrb[0].mxu0
      %v5101 = vadd.f32 %v4940, %v5100
      %v5102 = vpop.f32.mrb[0].mxu0
      %5103 = vmatprep.mubr.bf16.mxu0 %v4189
      %5104 = vmatmul.mubr.bf16.gmra.mrb[0].mxu0 %v4188
      %v5105 = vpop.f32.mrb[0].mxu0
      %v5106 = vadd.f32 %v4945, %v5105
      %v5107 = vpop.f32.mrb[0].mxu0
      %v5108 = vpop.f32.mrb[0].mxu0
      %v5109 = vadd.f32 %v4948, %v5108
      %v5110 = vpop.f32.mrb[0].mxu0
      %5111 = vmatprep.mubr.bf16.mxu0 %v4198
      %5112 = vmatmul.mubr.bf16.gmra.mrb[0].mxu0 %v4197
      %v5113 = vpop.f32.mrb[0].mxu0
      %v5114 = vadd.f32 %v4953, %v5113
      %v5115 = vpop.f32.mrb[0].mxu0
      %v5116 = vpop.f32.mrb[0].mxu0
      %v5117 = vadd.f32 %v4956, %v5116
      %v5118 = vpop.f32.mrb[0].mxu0
      %5119 = vmatprep.mubr.bf16.mxu0 %v4207
      %5120 = vmatmul.mubr.bf16.gmra.mrb[0].mxu0 %v4206
      %v5121 = vpop.f32.mrb[0].mxu0
      %v5122 = vadd.f32 %v4961, %v5121
      %v5123 = vpop.f32.mrb[0].mxu0
      %v5124 = vpop.f32.mrb[0].mxu0
      %v5125 = vadd.f32 %v4964, %v5124
      %v5126 = vpop.f32.mrb[0].mxu0
      %5127 = vmatprep.mubr.bf16.mxu0 %v4216
      %5128 = vmatmul.mubr.bf16.gmra.mrb[0].mxu0 %v4215
      %v5129 = vpop.f32.mrb[0].mxu0
      %v5130 = vadd.f32 %v4969, %v5129
      %v5131 = vpop.f32.mrb[0].mxu0
      %v5132 = vpop.f32.mrb[0].mxu0
      %v5133 = vadd.f32 %v4972, %v5132
      %v5134 = vpop.f32.mrb[0].mxu0
      %5135 = vmatprep.mubr.bf16.mxu0 %v4225
      %5136 = vmatmul.mubr.bf16.gmra.mrb[0].mxu0 %v4224
      %v5137 = vpop.f32.mrb[0].mxu0
      %v5138 = vadd.f32 %v4977, %v5137
      %v5139 = vpop.f32.mrb[0].mxu0
      %v5140 = vpop.f32.mrb[0].mxu0
      %v5141 = vadd.f32 %v4980, %v5140
      %v5142 = vpop.f32.mrb[0].mxu0
      %5143 = vmatprep.mubr.bf16.mxu0 %v4234
      %5144 = vmatmul.mubr.bf16.gmra.mrb[0].mxu0 %v4233
      %v5145 = vpop.f32.mrb[0].mxu0
      %v5146 = vadd.f32 %v4985, %v5145
      %v5147 = vpop.f32.mrb[0].mxu0
      %v5148 = vpop.f32.mrb[0].mxu0
      %v5149 = vadd.f32 %v4988, %v5148
      %v5150 = vpop.f32.mrb[0].mxu0
      %5151 = vmatprep.mubr.bf16.mxu0 %v4243
      %5152 = vmatmul.mubr.bf16.gmra.mrb[0].mxu0 %v4242
      %v5153 = vpop.f32.mrb[0].mxu0
      %v5154 = vadd.f32 %v4993, %v5153
      %v5155 = vpop.f32.mrb[0].mxu0
      %v5156 = vpop.f32.mrb[0].mxu0
      %v5157 = vadd.f32 %v4996, %v5156
      %v5158 = vpop.f32.mrb[0].mxu0
      %5159 = vmatprep.mubr.bf16.mxu0 %v4252
      %5160 = vmatmul.mubr.bf16.gmra.mrb[0].mxu0 %v4251
      %v5161 = vpop.f32.mrb[0].mxu0
      %v5162 = vadd.f32 %v5001, %v5161
      %v5163 = vpop.f32.mrb[0].mxu0
      %v5164 = vpop.f32.mrb[0].mxu0
      %v5165 = vadd.f32 %v5004, %v5164
      %v5166 = vpop.f32.mrb[0].mxu0
      %5167 = vmatprep.mubr.bf16.mxu0 %v4261
      %5168 = vmatmul.mubr.bf16.gmra.mrb[0].mxu0 %v4260
      %v5169 = vpop.f32.mrb[0].mxu0
      %v5170 = vadd.f32 %v5009, %v5169
      %v5171 = vpop.f32.mrb[0].mxu0
      %v5172 = vpop.f32.mrb[0].mxu0
      %v5173 = vadd.f32 %v5012, %v5172
      %v5174 = vpop.f32.mrb[0].mxu0
      %5175 = vmatprep.mubr.bf16.mxu0 %v4270
      %5176 = vmatmul.mubr.bf16.gmra.mrb[0].mxu0 %v4269
      %v5177 = vpop.f32.mrb[0].mxu0
      %v5178 = vadd.f32 %v5017, %v5177
      %v5179 = vpop.f32.mrb[0].mxu0
      %v5180 = vpop.f32.mrb[0].mxu0
      %v5181 = vadd.f32 %v5020, %v5180
      %v5182 = vpop.f32.mrb[0].mxu0
      %5183 = vmatprep.mubr.bf16.mxu0 %v4279
      %5184 = vmatmul.mubr.bf16.gmra.mrb[0].mxu0 %v4278
      %v5185 = vpop.f32.mrb[0].mxu0
      %v5186 = vadd.f32 %v5025, %v5185
      %v5187 = vpop.f32.mrb[0].mxu0
      %v5188 = vpop.f32.mrb[0].mxu0
      %v5189 = vadd.f32 %v5028, %v5188
      %v5190 = vpop.f32.mrb[0].mxu0
      %5191 = vmatprep.mubr.bf16.mxu0 %v4288
      %5192 = vmatmul.mubr.bf16.gmra.mrb[0].mxu0 %v4287
      %v5193 = vpop.f32.mrb[0].mxu0
      %v5194 = vadd.f32 %v5033, %v5193
      %v5195 = vpop.f32.mrb[0].mxu0
      %v5196 = vpop.f32.mrb[0].mxu0
      %v5197 = vadd.f32 %v5036, %v5196
      %v5198 = vpop.f32.mrb[0].mxu0
      %5199 = vmatprep.mubr.bf16.mxu0 %v4297
      %5200 = vmatmul.mubr.bf16.gmra.mrb[0].mxu0 %v4296
      %v5201 = vpop.f32.mrb[0].mxu0
      %v5202 = vadd.f32 %v5041, %v5201
      %v5203 = vpop.f32.mrb[0].mxu0
      %v5204 = vpop.f32.mrb[0].mxu0
      %v5205 = vadd.f32 %v5044, %v5204
      %v5206 = vpop.f32.mrb[0].mxu0
      %5207 = vdwg.mxu0
      %5208 = vmatprep.subr.bf16.mxu0 0
      %5209 = vmatpush1.bf16.msra.mxu0 %v4774
      %5210 = vmatprep.subr.bf16.mxu0 0
      %5211 = vmatpush1.bf16.msra.mxu0 %v4775
      %5212 = vmatprep.subr.bf16.mxu0 0
      %5213 = vmatpush1.bf16.msra.mxu0 %v4776
      %5214 = vmatprep.subr.bf16.mxu0 0
      %5215 = vmatpush1.bf16.msra.mxu0 %v4777
      %5216 = vmatprep.subr.bf16.mxu0 0
      %5217 = vmatpush1.bf16.msra.mxu0 %v4778
      %5218 = vmatprep.subr.bf16.mxu0 0
      %5219 = vmatpush1.bf16.msra.mxu0 %v4779
      %5220 = vmatprep.subr.bf16.mxu0 0
      %5221 = vmatpush1.bf16.msra.mxu0 %v4780
      %5222 = vmatprep.subr.bf16.mxu0 0
      %5223 = vmatpush1.bf16.msra.mxu0 %v4781
      %5224 = vmatprep.subr.bf16.mxu0 0
      %5225 = vmatpush1.bf16.msra.mxu0 %v4782
      %5226 = vmatprep.subr.bf16.mxu0 0
      %5227 = vmatpush1.bf16.msra.mxu0 %v4783
      %5228 = vmatprep.subr.bf16.mxu0 0
      %5229 = vmatpush1.bf16.msra.mxu0 %v4784
      %5230 = vmatprep.subr.bf16.mxu0 0
      %5231 = vmatpush1.bf16.msra.mxu0 %v4785
      %5232 = vmatprep.subr.bf16.mxu0 0
      %5233 = vmatpush1.bf16.msra.mxu0 %v4786
      %5234 = vmatprep.subr.bf16.mxu0 0
      %5235 = vmatpush1.bf16.msra.mxu0 %v4787
      %5236 = vmatprep.subr.bf16.mxu0 0
      %5237 = vmatpush1.bf16.msra.mxu0 %v4788
      %5238 = vmatprep.subr.bf16.mxu0 0
      %5239 = vmatpush1.bf16.msra.mxu0 %v4789
      %5240 = vmatprep.mubr.bf16.mxu0 %v4164
      %5241 = vmatmul.mubr.bf16.gmra.mrb[0].mxu0 %v4163
      %v5242 = vpop.f32.mrb[0].mxu0
      %v5243 = vadd.f32 %v5082, %v5242
      %v5244 = vpop.f32.mrb[0].mxu0
      %v5245 = vpop.f32.mrb[0].mxu0
      %v5246 = vadd.f32 %v5085, %v5245
      %v5247 = vpop.f32.mrb[0].mxu0
      %5248 = vmatprep.mubr.bf16.mxu0 %v4173
      %5249 = vmatmul.mubr.bf16.gmra.mrb[0].mxu0 %v4172
      %v5250 = vpop.f32.mrb[0].mxu0
      %v5251 = vadd.f32 %v5090, %v5250
      %v5252 = vpop.f32.mrb[0].mxu0
      %v5253 = vpop.f32.mrb[0].mxu0
      %v5254 = vadd.f32 %v5093, %v5253
      %v5255 = vpop.f32.mrb[0].mxu0
      %5256 = vmatprep.mubr.bf16.mxu0 %v4182
      %5257 = vmatmul.mubr.bf16.gmra.mrb[0].mxu0 %v4181
      %v5258 = vpop.f32.mrb[0].mxu0
      %v5259 = vadd.f32 %v5098, %v5258
      %v5260 = vpop.f32.mrb[0].mxu0
      %v5261 = vpop.f32.mrb[0].mxu0
      %v5262 = vadd.f32 %v5101, %v5261
      %v5263 = vpop.f32.mrb[0].mxu0
      %5264 = vmatprep.mubr.bf16.mxu0 %v4191
      %5265 = vmatmul.mubr.bf16.gmra.mrb[0].mxu0 %v4190
      %v5266 = vpop.f32.mrb[0].mxu0
      %v5267 = vadd.f32 %v5106, %v5266
      %v5268 = vpop.f32.mrb[0].mxu0
      %v5269 = vpop.f32.mrb[0].mxu0
      %v5270 = vadd.f32 %v5109, %v5269
      %v5271 = vpop.f32.mrb[0].mxu0
      %5272 = vmatprep.mubr.bf16.mxu0 %v4200
      %5273 = vmatmul.mubr.bf16.gmra.mrb[0].mxu0 %v4199
      %v5274 = vpop.f32.mrb[0].mxu0
      %v5275 = vadd.f32 %v5114, %v5274
      %v5276 = vpop.f32.mrb[0].mxu0
      %v5277 = vpop.f32.mrb[0].mxu0
      %v5278 = vadd.f32 %v5117, %v5277
      %v5279 = vpop.f32.mrb[0].mxu0
      %5280 = vmatprep.mubr.bf16.mxu0 %v4209
      %5281 = vmatmul.mubr.bf16.gmra.mrb[0].mxu0 %v4208
      %v5282 = vpop.f32.mrb[0].mxu0
      %v5283 = vadd.f32 %v5122, %v5282
      %v5284 = vpop.f32.mrb[0].mxu0
      %v5285 = vpop.f32.mrb[0].mxu0
      %v5286 = vadd.f32 %v5125, %v5285
      %v5287 = vpop.f32.mrb[0].mxu0
      %5288 = vmatprep.mubr.bf16.mxu0 %v4218
      %5289 = vmatmul.mubr.bf16.gmra.mrb[0].mxu0 %v4217
      %v5290 = vpop.f32.mrb[0].mxu0
      %v5291 = vadd.f32 %v5130, %v5290
      %v5292 = vpop.f32.mrb[0].mxu0
      %v5293 = vpop.f32.mrb[0].mxu0
      %v5294 = vadd.f32 %v5133, %v5293
      %v5295 = vpop.f32.mrb[0].mxu0
      %5296 = vmatprep.mubr.bf16.mxu0 %v4227
      %5297 = vmatmul.mubr.bf16.gmra.mrb[0].mxu0 %v4226
      %v5298 = vpop.f32.mrb[0].mxu0
      %v5299 = vadd.f32 %v5138, %v5298
      %v5300 = vpop.f32.mrb[0].mxu0
      %v5301 = vpop.f32.mrb[0].mxu0
      %v5302 = vadd.f32 %v5141, %v5301
      %v5303 = vpop.f32.mrb[0].mxu0
      %5304 = vmatprep.mubr.bf16.mxu0 %v4236
      %5305 = vmatmul.mubr.bf16.gmra.mrb[0].mxu0 %v4235
      %v5306 = vpop.f32.mrb[0].mxu0
      %v5307 = vadd.f32 %v5146, %v5306
      %v5308 = vpop.f32.mrb[0].mxu0
      %v5309 = vpop.f32.mrb[0].mxu0
      %v5310 = vadd.f32 %v5149, %v5309
      %v5311 = vpop.f32.mrb[0].mxu0
      %5312 = vmatprep.mubr.bf16.mxu0 %v4245
      %5313 = vmatmul.mubr.bf16.gmra.mrb[0].mxu0 %v4244
      %v5314 = vpop.f32.mrb[0].mxu0
      %v5315 = vadd.f32 %v5154, %v5314
      %v5316 = vpop.f32.mrb[0].mxu0
      %v5317 = vpop.f32.mrb[0].mxu0
      %v5318 = vadd.f32 %v5157, %v5317
      %v5319 = vpop.f32.mrb[0].mxu0
      %5320 = vmatprep.mubr.bf16.mxu0 %v4254
      %5321 = vmatmul.mubr.bf16.gmra.mrb[0].mxu0 %v4253
      %v5322 = vpop.f32.mrb[0].mxu0
      %v5323 = vadd.f32 %v5162, %v5322
      %v5324 = vpop.f32.mrb[0].mxu0
      %v5325 = vpop.f32.mrb[0].mxu0
      %v5326 = vadd.f32 %v5165, %v5325
      %v5327 = vpop.f32.mrb[0].mxu0
      %5328 = vmatprep.mubr.bf16.mxu0 %v4263
      %5329 = vmatmul.mubr.bf16.gmra.mrb[0].mxu0 %v4262
      %v5330 = vpop.f32.mrb[0].mxu0
      %v5331 = vadd.f32 %v5170, %v5330
      %v5332 = vpop.f32.mrb[0].mxu0
      %v5333 = vpop.f32.mrb[0].mxu0
      %v5334 = vadd.f32 %v5173, %v5333
      %v5335 = vpop.f32.mrb[0].mxu0
      %5336 = vmatprep.mubr.bf16.mxu0 %v4272
      %5337 = vmatmul.mubr.bf16.gmra.mrb[0].mxu0 %v4271
      %v5338 = vpop.f32.mrb[0].mxu0
      %v5339 = vadd.f32 %v5178, %v5338
      %v5340 = vpop.f32.mrb[0].mxu0
      %v5341 = vpop.f32.mrb[0].mxu0
      %v5342 = vadd.f32 %v5181, %v5341
      %v5343 = vpop.f32.mrb[0].mxu0
      %5344 = vmatprep.mubr.bf16.mxu0 %v4281
      %5345 = vmatmul.mubr.bf16.gmra.mrb[0].mxu0 %v4280
      %v5346 = vpop.f32.mrb[0].mxu0
      %v5347 = vadd.f32 %v5186, %v5346
      %v5348 = vpop.f32.mrb[0].mxu0
      %v5349 = vpop.f32.mrb[0].mxu0
      %v5350 = vadd.f32 %v5189, %v5349
      %v5351 = vpop.f32.mrb[0].mxu0
      %5352 = vmatprep.mubr.bf16.mxu0 %v4290
      %5353 = vmatmul.mubr.bf16.gmra.mrb[0].mxu0 %v4289
      %v5354 = vpop.f32.mrb[0].mxu0
      %v5355 = vadd.f32 %v5194, %v5354
      %v5356 = vpop.f32.mrb[0].mxu0
      %v5357 = vpop.f32.mrb[0].mxu0
      %v5358 = vadd.f32 %v5197, %v5357
      %v5359 = vpop.f32.mrb[0].mxu0
      %5360 = vmatprep.mubr.bf16.mxu0 %v4299
      %5361 = vmatmul.mubr.bf16.gmra.mrb[0].mxu0 %v4298
      %v5362 = vpop.f32.mrb[0].mxu0
      %v5363 = vadd.f32 %v5202, %v5362
      %v5364 = vpop.f32.mrb[0].mxu0
      %v5365 = vpop.f32.mrb[0].mxu0
      %v5366 = vadd.f32 %v5205, %v5365
      %v5367 = vpop.f32.mrb[0].mxu0
      %5368 = vdwg.mxu0
      %5369 = vmatprep.subr.bf16.mxu0 0
      %5370 = vmatpush1.bf16.msra.mxu0 %v4790
      %5371 = vmatprep.subr.bf16.mxu0 0
      %5372 = vmatpush1.bf16.msra.mxu0 %v4791
      %5373 = vmatprep.subr.bf16.mxu0 0
      %5374 = vmatpush1.bf16.msra.mxu0 %v4792
      %5375 = vmatprep.subr.bf16.mxu0 0
      %5376 = vmatpush1.bf16.msra.mxu0 %v4793
      %5377 = vmatprep.subr.bf16.mxu0 0
      %5378 = vmatpush1.bf16.msra.mxu0 %v4794
      %5379 = vmatprep.subr.bf16.mxu0 0
      %5380 = vmatpush1.bf16.msra.mxu0 %v4795
      %5381 = vmatprep.subr.bf16.mxu0 0
      %5382 = vmatpush1.bf16.msra.mxu0 %v4796
      %5383 = vmatprep.subr.bf16.mxu0 0
      %5384 = vmatpush1.bf16.msra.mxu0 %v4797
      %5385 = vmatprep.subr.bf16.mxu0 0
      %5386 = vmatpush1.bf16.msra.mxu0 %v4798
      %5387 = vmatprep.subr.bf16.mxu0 0
      %5388 = vmatpush1.bf16.msra.mxu0 %v4799
      %5389 = vmatprep.subr.bf16.mxu0 0
      %5390 = vmatpush1.bf16.msra.mxu0 %v4800
      %5391 = vmatprep.subr.bf16.mxu0 0
      %5392 = vmatpush1.bf16.msra.mxu0 %v4801
      %5393 = vmatprep.subr.bf16.mxu0 0
      %5394 = vmatpush1.bf16.msra.mxu0 %v4802
      %5395 = vmatprep.subr.bf16.mxu0 0
      %5396 = vmatpush1.bf16.msra.mxu0 %v4803
      %5397 = vmatprep.subr.bf16.mxu0 0
      %5398 = vmatpush1.bf16.msra.mxu0 %v4804
      %5399 = vmatprep.subr.bf16.mxu0 0
      %5400 = vmatpush1.bf16.msra.mxu0 %v4805
      %5401 = vmatprep.mubr.bf16.mxu0 %v4166
      %5402 = vmatmul.mubr.bf16.gmra.mrb[0].mxu0 %v4165
      %v5403 = vpop.f32.mrb[0].mxu0
      %v5404 = vadd.f32 %v5243, %v5403
      %v5405 = vpop.f32.mrb[0].mxu0
      %v5406 = vpop.f32.mrb[0].mxu0
      %v5407 = vadd.f32 %v5246, %v5406
      %v5408 = vpop.f32.mrb[0].mxu0
      %5409 = vmatprep.mubr.bf16.mxu0 %v4175
      %5410 = vmatmul.mubr.bf16.gmra.mrb[0].mxu0 %v4174
      %v5411 = vpop.f32.mrb[0].mxu0
      %v5412 = vadd.f32 %v5251, %v5411
      %v5413 = vpop.f32.mrb[0].mxu0
      %v5414 = vpop.f32.mrb[0].mxu0
      %v5415 = vadd.f32 %v5254, %v5414
      %v5416 = vpop.f32.mrb[0].mxu0
      %5417 = vmatprep.mubr.bf16.mxu0 %v4184
      %5418 = vmatmul.mubr.bf16.gmra.mrb[0].mxu0 %v4183
      %v5419 = vpop.f32.mrb[0].mxu0
      %v5420 = vadd.f32 %v5259, %v5419
      %v5421 = vpop.f32.mrb[0].mxu0
      %v5422 = vpop.f32.mrb[0].mxu0
      %v5423 = vadd.f32 %v5262, %v5422
      %v5424 = vpop.f32.mrb[0].mxu0
      %5425 = vmatprep.mubr.bf16.mxu0 %v4193
      %5426 = vmatmul.mubr.bf16.gmra.mrb[0].mxu0 %v4192
      %v5427 = vpop.f32.mrb[0].mxu0
      %v5428 = vadd.f32 %v5267, %v5427
      %v5429 = vpop.f32.mrb[0].mxu0
      %v5430 = vpop.f32.mrb[0].mxu0
      %v5431 = vadd.f32 %v5270, %v5430
      %v5432 = vpop.f32.mrb[0].mxu0
      %5433 = vmatprep.mubr.bf16.mxu0 %v4202
      %5434 = vmatmul.mubr.bf16.gmra.mrb[0].mxu0 %v4201
      %v5435 = vpop.f32.mrb[0].mxu0
      %v5436 = vadd.f32 %v5275, %v5435
      %v5437 = vpop.f32.mrb[0].mxu0
      %v5438 = vpop.f32.mrb[0].mxu0
      %v5439 = vadd.f32 %v5278, %v5438
      %v5440 = vpop.f32.mrb[0].mxu0
      %5441 = vmatprep.mubr.bf16.mxu0 %v4211
      %5442 = vmatmul.mubr.bf16.gmra.mrb[0].mxu0 %v4210
      %v5443 = vpop.f32.mrb[0].mxu0
      %v5444 = vadd.f32 %v5283, %v5443
      %v5445 = vpop.f32.mrb[0].mxu0
      %v5446 = vpop.f32.mrb[0].mxu0
      %v5447 = vadd.f32 %v5286, %v5446
      %v5448 = vpop.f32.mrb[0].mxu0
      %5449 = vmatprep.mubr.bf16.mxu0 %v4220
      %5450 = vmatmul.mubr.bf16.gmra.mrb[0].mxu0 %v4219
      %v5451 = vpop.f32.mrb[0].mxu0
      %v5452 = vadd.f32 %v5291, %v5451
      %v5453 = vpop.f32.mrb[0].mxu0
      %v5454 = vpop.f32.mrb[0].mxu0
      %v5455 = vadd.f32 %v5294, %v5454
      %v5456 = vpop.f32.mrb[0].mxu0
      %5457 = vmatprep.mubr.bf16.mxu0 %v4229
      %5458 = vmatmul.mubr.bf16.gmra.mrb[0].mxu0 %v4228
      %v5459 = vpop.f32.mrb[0].mxu0
      %v5460 = vadd.f32 %v5299, %v5459
      %v5461 = vpop.f32.mrb[0].mxu0
      %v5462 = vpop.f32.mrb[0].mxu0
      %v5463 = vadd.f32 %v5302, %v5462
      %v5464 = vpop.f32.mrb[0].mxu0
      %5465 = vmatprep.mubr.bf16.mxu0 %v4238
      %5466 = vmatmul.mubr.bf16.gmra.mrb[0].mxu0 %v4237
      %v5467 = vpop.f32.mrb[0].mxu0
      %v5468 = vadd.f32 %v5307, %v5467
      %v5469 = vpop.f32.mrb[0].mxu0
      %v5470 = vpop.f32.mrb[0].mxu0
      %v5471 = vadd.f32 %v5310, %v5470
      %v5472 = vpop.f32.mrb[0].mxu0
      %5473 = vmatprep.mubr.bf16.mxu0 %v4247
      %5474 = vmatmul.mubr.bf16.gmra.mrb[0].mxu0 %v4246
      %v5475 = vpop.f32.mrb[0].mxu0
      %v5476 = vadd.f32 %v5315, %v5475
      %v5477 = vpop.f32.mrb[0].mxu0
      %v5478 = vpop.f32.mrb[0].mxu0
      %v5479 = vadd.f32 %v5318, %v5478
      %v5480 = vpop.f32.mrb[0].mxu0
      %5481 = vmatprep.mubr.bf16.mxu0 %v4256
      %5482 = vmatmul.mubr.bf16.gmra.mrb[0].mxu0 %v4255
      %v5483 = vpop.f32.mrb[0].mxu0
      %v5484 = vadd.f32 %v5323, %v5483
      %v5485 = vpop.f32.mrb[0].mxu0
      %v5486 = vpop.f32.mrb[0].mxu0
      %v5487 = vadd.f32 %v5326, %v5486
      %v5488 = vpop.f32.mrb[0].mxu0
      %5489 = vmatprep.mubr.bf16.mxu0 %v4265
      %5490 = vmatmul.mubr.bf16.gmra.mrb[0].mxu0 %v4264
      %v5491 = vpop.f32.mrb[0].mxu0
      %v5492 = vadd.f32 %v5331, %v5491
      %v5493 = vpop.f32.mrb[0].mxu0
      %v5494 = vpop.f32.mrb[0].mxu0
      %v5495 = vadd.f32 %v5334, %v5494
      %v5496 = vpop.f32.mrb[0].mxu0
      %5497 = vmatprep.mubr.bf16.mxu0 %v4274
      %5498 = vmatmul.mubr.bf16.gmra.mrb[0].mxu0 %v4273
      %v5499 = vpop.f32.mrb[0].mxu0
      %v5500 = vadd.f32 %v5339, %v5499
      %v5501 = vpop.f32.mrb[0].mxu0
      %v5502 = vpop.f32.mrb[0].mxu0
      %v5503 = vadd.f32 %v5342, %v5502
      %v5504 = vpop.f32.mrb[0].mxu0
      %5505 = vmatprep.mubr.bf16.mxu0 %v4283
      %5506 = vmatmul.mubr.bf16.gmra.mrb[0].mxu0 %v4282
      %v5507 = vpop.f32.mrb[0].mxu0
      %v5508 = vadd.f32 %v5347, %v5507
      %v5509 = vpop.f32.mrb[0].mxu0
      %v5510 = vpop.f32.mrb[0].mxu0
      %v5511 = vadd.f32 %v5350, %v5510
      %v5512 = vpop.f32.mrb[0].mxu0
      %5513 = vmatprep.mubr.bf16.mxu0 %v4292
      %5514 = vmatmul.mubr.bf16.gmra.mrb[0].mxu0 %v4291
      %v5515 = vpop.f32.mrb[0].mxu0
      %v5516 = vadd.f32 %v5355, %v5515
      %v5517 = vpop.f32.mrb[0].mxu0
      %v5518 = vpop.f32.mrb[0].mxu0
      %v5519 = vadd.f32 %v5358, %v5518
      %v5520 = vpop.f32.mrb[0].mxu0
      %5521 = vmatprep.mubr.bf16.mxu0 %v4301
      %5522 = vmatmul.mubr.bf16.gmra.mrb[0].mxu0 %v4300
      %v5523 = vpop.f32.mrb[0].mxu0
      %v5524 = vadd.f32 %v5363, %v5523
      %v5525 = vpop.f32.mrb[0].mxu0
      %v5526 = vpop.f32.mrb[0].mxu0
      %v5527 = vadd.f32 %v5366, %v5526
      %v5528 = vpop.f32.mrb[0].mxu0
      %5529 = vdwg.mxu0
      %5530 = vmatprep.subr.bf16.mxu0 0
      %5531 = vmatpush1.bf16.msra.mxu0 %v4806
      %5532 = vmatprep.subr.bf16.mxu0 0
      %5533 = vmatpush1.bf16.msra.mxu0 %v4807
      %5534 = vmatprep.subr.bf16.mxu0 0
      %5535 = vmatpush1.bf16.msra.mxu0 %v4808
      %5536 = vmatprep.subr.bf16.mxu0 0
      %5537 = vmatpush1.bf16.msra.mxu0 %v4809
      %5538 = vmatprep.subr.bf16.mxu0 0
      %5539 = vmatpush1.bf16.msra.mxu0 %v4810
      %5540 = vmatprep.subr.bf16.mxu0 0
      %5541 = vmatpush1.bf16.msra.mxu0 %v4811
      %5542 = vmatprep.subr.bf16.mxu0 0
      %5543 = vmatpush1.bf16.msra.mxu0 %v4812
      %5544 = vmatprep.subr.bf16.mxu0 0
      %5545 = vmatpush1.bf16.msra.mxu0 %v4813
      %5546 = vmatprep.subr.bf16.mxu0 0
      %5547 = vmatpush1.bf16.msra.mxu0 0
      %5548 = vmatprep.subr.bf16.mxu0 0
      %5549 = vmatpush1.bf16.msra.mxu0 0
      %5550 = vmatprep.subr.bf16.mxu0 0
      %5551 = vmatpush1.bf16.msra.mxu0 0
      %5552 = vmatprep.subr.bf16.mxu0 0
      %5553 = vmatpush1.bf16.msra.mxu0 0
      %5554 = vmatprep.subr.bf16.mxu0 0
      %5555 = vmatpush1.bf16.msra.mxu0 0
      %5556 = vmatprep.subr.bf16.mxu0 0
      %5557 = vmatpush1.bf16.msra.mxu0 0
      %5558 = vmatprep.subr.bf16.mxu0 0
      %5559 = vmatpush1.bf16.msra.mxu0 0
      %5560 = vmatprep.subr.bf16.mxu0 0
      %5561 = vmatpush1.bf16.msra.mxu0 0
      %5562 = vmatprep.mubr.bf16.mxu0 0
      %5563 = vmatmul.mubr.bf16.gmra.mrb[0].mxu0 %v4167
      %v5564 = vpop.f32.mrb[0].mxu0
      %v5565 = vadd.f32 %v5404, %v5564
      %v5566 = vpop.f32.mrb[0].mxu0
      %v5567 = vpop.f32.mrb[0].mxu0
      %v5568 = vadd.f32 %v5407, %v5567
      %v5569 = vpop.f32.mrb[0].mxu0
      %5570 = vmatprep.mubr.bf16.mxu0 0
      %5571 = vmatmul.mubr.bf16.gmra.mrb[0].mxu0 %v4176
      %v5572 = vpop.f32.mrb[0].mxu0
      %v5573 = vadd.f32 %v5412, %v5572
      %v5574 = vpop.f32.mrb[0].mxu0
      %v5575 = vpop.f32.mrb[0].mxu0
      %v5576 = vadd.f32 %v5415, %v5575
      %v5577 = vpop.f32.mrb[0].mxu0
      %5578 = vmatprep.mubr.bf16.mxu0 0
      %5579 = vmatmul.mubr.bf16.gmra.mrb[0].mxu0 %v4185
      %v5580 = vpop.f32.mrb[0].mxu0
      %v5581 = vadd.f32 %v5420, %v5580
      %v5582 = vpop.f32.mrb[0].mxu0
      %v5583 = vpop.f32.mrb[0].mxu0
      %v5584 = vadd.f32 %v5423, %v5583
      %v5585 = vpop.f32.mrb[0].mxu0
      %5586 = vmatprep.mubr.bf16.mxu0 0
      %5587 = vmatmul.mubr.bf16.gmra.mrb[0].mxu0 %v4194
      %v5588 = vpop.f32.mrb[0].mxu0
      %v5589 = vadd.f32 %v5428, %v5588
      %v5590 = vpop.f32.mrb[0].mxu0
      %v5591 = vpop.f32.mrb[0].mxu0
      %v5592 = vadd.f32 %v5431, %v5591
      %v5593 = vpop.f32.mrb[0].mxu0
      %5594 = vmatprep.mubr.bf16.mxu0 0
      %5595 = vmatmul.mubr.bf16.gmra.mrb[0].mxu0 %v4203
      %v5596 = vpop.f32.mrb[0].mxu0
      %v5597 = vadd.f32 %v5436, %v5596
      %v5598 = vpop.f32.mrb[0].mxu0
      %v5599 = vpop.f32.mrb[0].mxu0
      %v5600 = vadd.f32 %v5439, %v5599
      %v5601 = vpop.f32.mrb[0].mxu0
      %5602 = vmatprep.mubr.bf16.mxu0 0
      %5603 = vmatmul.mubr.bf16.gmra.mrb[0].mxu0 %v4212
      %v5604 = vpop.f32.mrb[0].mxu0
      %v5605 = vadd.f32 %v5444, %v5604
      %v5606 = vpop.f32.mrb[0].mxu0
      %v5607 = vpop.f32.mrb[0].mxu0
      %v5608 = vadd.f32 %v5447, %v5607
      %v5609 = vpop.f32.mrb[0].mxu0
      %5610 = vmatprep.mubr.bf16.mxu0 0
      %5611 = vmatmul.mubr.bf16.gmra.mrb[0].mxu0 %v4221
      %v5612 = vpop.f32.mrb[0].mxu0
      %v5613 = vadd.f32 %v5452, %v5612
      %v5614 = vpop.f32.mrb[0].mxu0
      %v5615 = vpop.f32.mrb[0].mxu0
      %v5616 = vadd.f32 %v5455, %v5615
      %v5617 = vpop.f32.mrb[0].mxu0
      %5618 = vmatprep.mubr.bf16.mxu0 0
      %5619 = vmatmul.mubr.bf16.gmra.mrb[0].mxu0 %v4230
      %v5620 = vpop.f32.mrb[0].mxu0
      %v5621 = vadd.f32 %v5460, %v5620
      %v5622 = vpop.f32.mrb[0].mxu0
      %v5623 = vpop.f32.mrb[0].mxu0
      %v5624 = vadd.f32 %v5463, %v5623
      %v5625 = vpop.f32.mrb[0].mxu0
      %5626 = vmatprep.mubr.bf16.mxu0 0
      %5627 = vmatmul.mubr.bf16.gmra.mrb[0].mxu0 %v4239
      %v5628 = vpop.f32.mrb[0].mxu0
      %v5629 = vadd.f32 %v5468, %v5628
      %v5630 = vpop.f32.mrb[0].mxu0
      %v5631 = vpop.f32.mrb[0].mxu0
      %v5632 = vadd.f32 %v5471, %v5631
      %v5633 = vpop.f32.mrb[0].mxu0
      %5634 = vmatprep.mubr.bf16.mxu0 0
      %5635 = vmatmul.mubr.bf16.gmra.mrb[0].mxu0 %v4248
      %v5636 = vpop.f32.mrb[0].mxu0
      %v5637 = vadd.f32 %v5476, %v5636
      %v5638 = vpop.f32.mrb[0].mxu0
      %v5639 = vpop.f32.mrb[0].mxu0
      %v5640 = vadd.f32 %v5479, %v5639
      %v5641 = vpop.f32.mrb[0].mxu0
      %5642 = vmatprep.mubr.bf16.mxu0 0
      %5643 = vmatmul.mubr.bf16.gmra.mrb[0].mxu0 %v4257
      %v5644 = vpop.f32.mrb[0].mxu0
      %v5645 = vadd.f32 %v5484, %v5644
      %v5646 = vpop.f32.mrb[0].mxu0
      %v5647 = vpop.f32.mrb[0].mxu0
      %v5648 = vadd.f32 %v5487, %v5647
      %v5649 = vpop.f32.mrb[0].mxu0
      %5650 = vmatprep.mubr.bf16.mxu0 0
      %5651 = vmatmul.mubr.bf16.gmra.mrb[0].mxu0 %v4266
      %v5652 = vpop.f32.mrb[0].mxu0
      %v5653 = vadd.f32 %v5492, %v5652
      %v5654 = vpop.f32.mrb[0].mxu0
      %v5655 = vpop.f32.mrb[0].mxu0
      %v5656 = vadd.f32 %v5495, %v5655
      %v5657 = vpop.f32.mrb[0].mxu0
      %5658 = vmatprep.mubr.bf16.mxu0 0
      %5659 = vmatmul.mubr.bf16.gmra.mrb[0].mxu0 %v4275
      %v5660 = vpop.f32.mrb[0].mxu0
      %v5661 = vadd.f32 %v5500, %v5660
      %v5662 = vpop.f32.mrb[0].mxu0
      %v5663 = vpop.f32.mrb[0].mxu0
      %v5664 = vadd.f32 %v5503, %v5663
      %v5665 = vpop.f32.mrb[0].mxu0
      %5666 = vmatprep.mubr.bf16.mxu0 0
      %5667 = vmatmul.mubr.bf16.gmra.mrb[0].mxu0 %v4284
      %v5668 = vpop.f32.mrb[0].mxu0
      %v5669 = vadd.f32 %v5508, %v5668
      %v5670 = vpop.f32.mrb[0].mxu0
      %v5671 = vpop.f32.mrb[0].mxu0
      %v5672 = vadd.f32 %v5511, %v5671
      %v5673 = vpop.f32.mrb[0].mxu0
      %5674 = vmatprep.mubr.bf16.mxu0 0
      %5675 = vmatmul.mubr.bf16.gmra.mrb[0].mxu0 %v4293
      %v5676 = vpop.f32.mrb[0].mxu0
      %v5677 = vadd.f32 %v5516, %v5676
      %v5678 = vpop.f32.mrb[0].mxu0
      %v5679 = vpop.f32.mrb[0].mxu0
      %v5680 = vadd.f32 %v5519, %v5679
      %v5681 = vpop.f32.mrb[0].mxu0
      %5682 = vmatprep.mubr.bf16.mxu0 0
      %5683 = vmatmul.mubr.bf16.gmra.mrb[0].mxu0 %v4302
      %v5684 = vpop.f32.mrb[0].mxu0
      %v5685 = vadd.f32 %v5524, %v5684
      %v5686 = vpop.f32.mrb[0].mxu0
      %v5687 = vpop.f32.mrb[0].mxu0
      %v5688 = vadd.f32 %v5527, %v5687
      %v5689 = vpop.f32.mrb[0].mxu0
      %5690 = vdwg.mxu0
      %v5691 = vpack.c.bf16 %v5568, %v5565
      %v5692 = vpack.c.bf16 %v5576, %v5573
      %v5693 = vpack.c.bf16 %v5584, %v5581
      %v5694 = vpack.c.bf16 %v5592, %v5589
      %v5695 = vpack.c.bf16 %v5600, %v5597
      %v5696 = vpack.c.bf16 %v5608, %v5605
      %v5697 = vpack.c.bf16 %v5616, %v5613
      %v5698 = vpack.c.bf16 %v5624, %v5621
      %v5699 = vpack.c.bf16 %v5632, %v5629
      %v5700 = vpack.c.bf16 %v5640, %v5637
      %v5701 = vpack.c.bf16 %v5648, %v5645
      %v5702 = vpack.c.bf16 %v5656, %v5653
      %v5703 = vpack.c.bf16 %v5664, %v5661
      %v5704 = vpack.c.bf16 %v5672, %v5669
      %v5705 = vpack.c.bf16 %v5680, %v5677
      %v5706 = vpack.c.bf16 %v5688, %v5685
      %v5723 = vunpack.c.l.b16 %v5691
      %v5724 = vunpack.c.h.b16 %v5691
      %v5725 = vunpack.c.l.b16 %v5692
      %v5726 = vunpack.c.h.b16 %v5692
      %v5727 = vunpack.c.l.b16 %v5693
      %v5728 = vunpack.c.h.b16 %v5693
      %v5729 = vunpack.c.l.b16 %v5694
      %v5730 = vunpack.c.h.b16 %v5694
      %v5731 = vunpack.c.l.b16 %v5695
      %v5732 = vunpack.c.h.b16 %v5695
      %v5733 = vunpack.c.l.b16 %v5696
      %v5734 = vunpack.c.h.b16 %v5696
      %v5735 = vunpack.c.l.b16 %v5697
      %v5736 = vunpack.c.h.b16 %v5697
      %v5737 = vunpack.c.l.b16 %v5698
      %v5738 = vunpack.c.h.b16 %v5698
      %v5739 = vunpack.c.l.b16 %v5699
      %v5740 = vunpack.c.h.b16 %v5699
      %v5741 = vunpack.c.l.b16 %v5700
      %v5742 = vunpack.c.h.b16 %v5700
      %v5743 = vunpack.c.l.b16 %v5701
      %v5744 = vunpack.c.h.b16 %v5701
      %v5745 = vunpack.c.l.b16 %v5702
      %v5746 = vunpack.c.h.b16 %v5702
      %v5747 = vunpack.c.l.b16 %v5703
      %v5748 = vunpack.c.h.b16 %v5703
      %v5749 = vunpack.c.l.b16 %v5704
      %v5750 = vunpack.c.h.b16 %v5704
      %v5751 = vunpack.c.l.b16 %v5705
      %v5752 = vunpack.c.h.b16 %v5705
      %v5753 = vunpack.c.l.b16 %v5706
      %v5754 = vunpack.c.h.b16 %v5706
      %v5755 = vpack.c.b16 %v5723, %v5723
      %v5756 = vpack.c.b16 %v5724, %v5724
      %v5757 = vpack.c.b16 %v5725, %v5725
      %v5758 = vpack.c.b16 %v5726, %v5726
      %v5759 = vpack.c.b16 %v5727, %v5727
      %v5760 = vpack.c.b16 %v5728, %v5728
      %v5761 = vpack.c.b16 %v5729, %v5729
      %v5762 = vpack.c.b16 %v5730, %v5730
      %v5763 = vpack.c.b16 %v5731, %v5731
      %v5764 = vpack.c.b16 %v5732, %v5732
      %v5765 = vpack.c.b16 %v5733, %v5733
      %v5766 = vpack.c.b16 %v5734, %v5734
      %v5767 = vpack.c.b16 %v5735, %v5735
      %v5768 = vpack.c.b16 %v5736, %v5736
      %v5769 = vpack.c.b16 %v5737, %v5737
      %v5770 = vpack.c.b16 %v5738, %v5738
      %v5771 = vpack.c.b16 %v5739, %v5739
      %v5772 = vpack.c.b16 %v5740, %v5740
      %v5773 = vpack.c.b16 %v5741, %v5741
      %v5774 = vpack.c.b16 %v5742, %v5742
      %v5775 = vpack.c.b16 %v5743, %v5743
      %v5776 = vpack.c.b16 %v5744, %v5744
      %v5777 = vpack.c.b16 %v5745, %v5745
      %v5778 = vpack.c.b16 %v5746, %v5746
      %v5779 = vpack.c.b16 %v5747, %v5747
      %v5780 = vpack.c.b16 %v5748, %v5748
      %v5781 = vpack.c.b16 %v5749, %v5749
      %v5782 = vpack.c.b16 %v5750, %v5750
      %v5783 = vpack.c.b16 %v5751, %v5751
      %v5784 = vpack.c.b16 %v5752, %v5752
      %v5785 = vpack.c.b16 %v5753, %v5753
      %v5786 = vpack.c.b16 %v5754, %v5754
      %5819 = vst [vmem:[%s291] sm:$0xf] %v5755
      %5820 = vst [vmem:[%s291 + $0x4] sm:$0xf] %v5756
      %5821 = vst [vmem:[%s291 + $0x8] sm:$0xf] %v5757
      %5822 = vst [vmem:[%s291 + $0xc] sm:$0xf] %v5758
      %5823 = vst [vmem:[%s291 + $0x10] sm:$0xf] %v5759
      %5824 = vst [vmem:[%s291 + $0x14] sm:$0xf] %v5760
      %5825 = vst [vmem:[%s291 + $0x18] sm:$0xf] %v5761
      %5826 = vst [vmem:[%s291 + $0x1c] sm:$0xf] %v5762
      %5827 = vst [vmem:[%s291 + $0x20] sm:$0xf] %v5763
      %5828 = vst [vmem:[%s291 + $0x24] sm:$0xf] %v5764
      %5829 = vst [vmem:[%s291 + $0x28] sm:$0xf] %v5765
      %5830 = vst [vmem:[%s291 + $0x2c] sm:$0xf] %v5766
      %5831 = vst [vmem:[%s291 + $0x30] sm:$0xf] %v5767
      %5832 = vst [vmem:[%s291 + $0x34] sm:$0xf] %v5768
      %5833 = vst [vmem:[%s291 + $0x38] sm:$0xf] %v5769
      %5834 = vst [vmem:[%s291 + $0x3c] sm:$0xf] %v5770
      %5835 = vst [vmem:[%s291 + $0x40] sm:$0xf] %v5771
      %5836 = vst [vmem:[%s291 + $0x44] sm:$0xf] %v5772
      %5837 = vst [vmem:[%s291 + $0x48] sm:$0xf] %v5773
      %5838 = vst [vmem:[%s291 + $0x4c] sm:$0xf] %v5774
      %5839 = vst [vmem:[%s291 + $0x50] sm:$0xf] %v5775
      %5840 = vst [vmem:[%s291 + $0x54] sm:$0xf] %v5776
      %5841 = vst [vmem:[%s291 + $0x58] sm:$0xf] %v5777
      %5842 = vst [vmem:[%s291 + $0x5c] sm:$0xf] %v5778
      %5843 = vst [vmem:[%s291 + $0x60] sm:$0xf] %v5779
      %5844 = vst [vmem:[%s291 + $0x64] sm:$0xf] %v5780
      %5845 = vst [vmem:[%s291 + $0x68] sm:$0xf] %v5781
      %5846 = vst [vmem:[%s291 + $0x6c] sm:$0xf] %v5782
      %5847 = vst [vmem:[%s291 + $0x70] sm:$0xf] %v5783
      %5848 = vst [vmem:[%s291 + $0x74] sm:$0xf] %v5784
      %5849 = vst [vmem:[%s291 + $0x78] sm:$0xf] %v5785
      %5850 = vst [vmem:[%s291 + $0x7c] sm:$0xf] %v5786
      %v5851 = vadd.f32 %v5565, %v5568
      %v5852 = vadd.f32 %v5851, %v5573
      %v5853 = vadd.f32 %v5852, %v5576
      %v5854 = vadd.f32 %v5853, %v5581
      %v5855 = vadd.f32 %v5854, %v5584
      %v5856 = vadd.f32 %v5855, %v5589
      %v5857 = vadd.f32 %v5856, %v5592
      %v5858 = vadd.f32 %v5857, %v5597
      %v5859 = vadd.f32 %v5858, %v5600
      %v5860 = vadd.f32 %v5859, %v5605
      %v5861 = vadd.f32 %v5860, %v5608
      %v5862 = vadd.f32 %v5861, %v5613
      %v5863 = vadd.f32 %v5862, %v5616
      %v5864 = vadd.f32 %v5863, %v5621
      %v5865 = vadd.f32 %v5864, %v5624
      %v5866 = vadd.f32 %v5865, %v5629
      %v5867 = vadd.f32 %v5866, %v5632
      %v5868 = vadd.f32 %v5867, %v5637
      %v5869 = vadd.f32 %v5868, %v5640
      %v5870 = vadd.f32 %v5869, %v5645
      %v5871 = vadd.f32 %v5870, %v5648
      %v5872 = vadd.f32 %v5871, %v5653
      %v5873 = vadd.f32 %v5872, %v5656
      %v5874 = vadd.f32 %v5873, %v5661
      %v5875 = vadd.f32 %v5874, %v5664
      %v5876 = vadd.f32 %v5875, %v5669
      %v5877 = vadd.f32 %v5876, %v5672
      %v5878 = vadd.f32 %v5877, %v5677
      %v5879 = vadd.f32 %v5878, %v5680
      %v5880 = vadd.f32 %v5879, %v5685
      %v5881 = vadd.f32 %v5880, %v5688
      %v5882 = vrot.slane %v5881, 4
      %v5883 = vadd.f32 %v5881, %v5882
      %v5884 = vrot.slane %v5883, 2
      %v5885 = vadd.f32 %v5883, %v5884
      %v5886 = vrot.slane %v5885, 1
      %v5887 = vadd.f32 %v5885, %v5886
      %5888 = vst [vmem:[%s295] sm:$0xff] %v5887
      %v5889 = vmul.f32 %v5565, %v5565
      %v5890 = vmul.f32 %v5568, %v5568
      %v5891 = vmul.f32 %v5573, %v5573
      %v5892 = vmul.f32 %v5576, %v5576
      %v5893 = vmul.f32 %v5581, %v5581
      %v5894 = vmul.f32 %v5584, %v5584
      %v5895 = vmul.f32 %v5589, %v5589
      %v5896 = vmul.f32 %v5592, %v5592
      %v5897 = vmul.f32 %v5597, %v5597
      %v5898 = vmul.f32 %v5600, %v5600
      %v5899 = vmul.f32 %v5605, %v5605
      %v5900 = vmul.f32 %v5608, %v5608
      %v5901 = vmul.f32 %v5613, %v5613
      %v5902 = vmul.f32 %v5616, %v5616
      %v5903 = vmul.f32 %v5621, %v5621
      %v5904 = vmul.f32 %v5624, %v5624
      %v5905 = vmul.f32 %v5629, %v5629
      %v5906 = vmul.f32 %v5632, %v5632
      %v5907 = vmul.f32 %v5637, %v5637
      %v5908 = vmul.f32 %v5640, %v5640
      %v5909 = vmul.f32 %v5645, %v5645
      %v5910 = vmul.f32 %v5648, %v5648
      %v5911 = vmul.f32 %v5653, %v5653
      %v5912 = vmul.f32 %v5656, %v5656
      %v5913 = vmul.f32 %v5661, %v5661
      %v5914 = vmul.f32 %v5664, %v5664
      %v5915 = vmul.f32 %v5669, %v5669
      %v5916 = vmul.f32 %v5672, %v5672
      %v5917 = vmul.f32 %v5677, %v5677
      %v5918 = vmul.f32 %v5680, %v5680
      %v5919 = vmul.f32 %v5685, %v5685
      %v5920 = vmul.f32 %v5688, %v5688
      %v5921 = vadd.f32 %v5889, %v5890
      %v5922 = vadd.f32 %v5921, %v5891
      %v5923 = vadd.f32 %v5922, %v5892
      %v5924 = vadd.f32 %v5923, %v5893
      %v5925 = vadd.f32 %v5924, %v5894
      %v5926 = vadd.f32 %v5925, %v5895
      %v5927 = vadd.f32 %v5926, %v5896
      %v5928 = vadd.f32 %v5927, %v5897
      %v5929 = vadd.f32 %v5928, %v5898
      %v5930 = vadd.f32 %v5929, %v5899
      %v5931 = vadd.f32 %v5930, %v5900
      %v5932 = vadd.f32 %v5931, %v5901
      %v5933 = vadd.f32 %v5932, %v5902
      %v5934 = vadd.f32 %v5933, %v5903
      %v5935 = vadd.f32 %v5934, %v5904
      %v5936 = vadd.f32 %v5935, %v5905
      %v5937 = vadd.f32 %v5936, %v5906
      %v5938 = vadd.f32 %v5937, %v5907
      %v5939 = vadd.f32 %v5938, %v5908
      %v5940 = vadd.f32 %v5939, %v5909
      %v5941 = vadd.f32 %v5940, %v5910
      %v5942 = vadd.f32 %v5941, %v5911
      %v5943 = vadd.f32 %v5942, %v5912
      %v5944 = vadd.f32 %v5943, %v5913
      %v5945 = vadd.f32 %v5944, %v5914
      %v5946 = vadd.f32 %v5945, %v5915
      %v5947 = vadd.f32 %v5946, %v5916
      %v5948 = vadd.f32 %v5947, %v5917
      %v5949 = vadd.f32 %v5948, %v5918
      %v5950 = vadd.f32 %v5949, %v5919
      %v5951 = vadd.f32 %v5950, %v5920
      %v5952 = vrot.slane %v5951, 4
      %v5953 = vadd.f32 %v5951, %v5952
      %v5954 = vrot.slane %v5953, 2
      %v5955 = vadd.f32 %v5953, %v5954
      %v5956 = vrot.slane %v5955, 1
      %v5957 = vadd.f32 %v5955, %v5956
      %5958 = vst [vmem:[%s299] sm:$0xff] %v5957
      %p5959 = scmp.lt.s32.totalorder %s19, 1
      %s5960 = scalar_select %p5959, %s19, 1
      %s5961 = smul.addr %s5960, 32
      %s5962 = smul.addr %s5961, 4
      %s5963 = scalar_lea.vmem %s5, %s5962
      %p5964 = scmp.lt.s32.totalorder %s19, 1
      %s5965 = scalar_select %p5964, %s19, 1
      %s5966 = smul.addr %s5965, 8
      %s5967 = scalar_lea.vmem %s6, %s5966
      %p5968 = scmp.lt.s32.totalorder %s19, 1
      %s5969 = scalar_select %p5968, %s19, 1
      %s5970 = smul.addr %s5969, 8
      %s5971 = scalar_lea.vmem %s7, %s5970
      // Predicated region
      $region41: #{double_conv_forward.4} parent=39 // pred_check
        %p5972 = pneg %p147
      $region42: #{double_conv_forward.4} parent=39 // pred_check_branch
        %5974 = sbr.rel (%p5972) target = $region44
      $region43: #{double_conv_forward.4} parent=39 // pred_region
        _
      $region44: #{double_conv_forward.4} parent=39 // pred_fallthru
        _
      // Predicated region
      $region45: #{double_conv_forward.4} parent=39 // pred_check
        %p5975 = pneg %p173
      $region46: #{double_conv_forward.4} parent=39 // pred_check_branch
        %5977 = sbr.rel (%p5975) target = $region48
      $region47: #{double_conv_forward.4} parent=39 // pred_region
        _
      $region48: #{double_conv_forward.4} parent=39 // pred_fallthru
        _
      // Predicated region
      $region49: #{double_conv_forward.4} parent=39 // pred_check
        %p5978 = pneg %p199
      $region50: #{double_conv_forward.4} parent=39 // pred_check_branch
        %5980 = sbr.rel (%p5978) target = $region52
      $region51: #{double_conv_forward.4} parent=39 // pred_region
        _
      $region52: #{double_conv_forward.4} parent=39 // pred_fallthru
        _
    $region40: #{double_conv_forward.4} parent=5 // pred_fallthru
      _
    %p5981 = scmp.le.s32.totalorder 2, %s14
    // Predicated region
    $region53: #{double_conv_forward.4} parent=5 // pred_check
      %p5982 = pneg %p5981
    $region54: #{double_conv_forward.4} parent=5 // pred_check_branch
      %5984 = sbr.rel (%p5982) target = $region56
    $region55: #{double_conv_forward.4} parent=5 // pred_region
      %s5985 = ssub.s32 %s14, 2
      // Predicated region
      $region57: #{double_conv_forward.4} parent=55 // pred_check
        %p5986 = pneg %p153
      $region58: #{double_conv_forward.4} parent=55 // pred_check_branch
        %5988 = sbr.rel (%p5986) target = $region60
      $region59: #{double_conv_forward.4} parent=55 // pred_region
        %p5989 = scmp.lt.s32.totalorder %s20, 1
        %s5990 = scalar_select %p5989, %s20, 1
        %s5991 = smul.addr %s5990, 32
        %s5992 = smul.addr %s5991, 4
        %s5993 = scalar_lea.vmem %s5, %s5992
      $region60: #{double_conv_forward.4} parent=55 // pred_fallthru
        _
      // Predicated region
      $region61: #{double_conv_forward.4} parent=55 // pred_check
        %p5994 = pneg %p179
      $region62: #{double_conv_forward.4} parent=55 // pred_check_branch
        %5996 = sbr.rel (%p5994) target = $region64
      $region63: #{double_conv_forward.4} parent=55 // pred_region
        %p5997 = scmp.lt.s32.totalorder %s20, 1
        %s5998 = scalar_select %p5997, %s20, 1
        %s5999 = smul.addr %s5998, 8
        %s6000 = scalar_lea.vmem %s6, %s5999
      $region64: #{double_conv_forward.4} parent=55 // pred_fallthru
        _
      // Predicated region
      $region65: #{double_conv_forward.4} parent=55 // pred_check
        %p6001 = pneg %p205
      $region66: #{double_conv_forward.4} parent=55 // pred_check_branch
        %6003 = sbr.rel (%p6001) target = $region68
      $region67: #{double_conv_forward.4} parent=55 // pred_region
        %p6004 = scmp.lt.s32.totalorder %s20, 1
        %s6005 = scalar_select %p6004, %s20, 1
        %s6006 = smul.addr %s6005, 8
        %s6007 = scalar_lea.vmem %s7, %s6006
      $region68: #{double_conv_forward.4} parent=55 // pred_fallthru
        _
    $region56: #{double_conv_forward.4} parent=5 // pred_fallthru
      _
  $region6: #{double_conv_forward.4} parent=0 // loop_footer
    %s18 = sadd.s32 1, %s14
  $region7: #{double_conv_forward.4} parent=0 // loop_footer_branch
    %13 = sbr.rel target = $region3
  $region8: #{double_conv_forward.4} parent=0 // loop_exit
    _

</llo_original>
